<compile_context>
chip_gen: v5e
topology: v5e:2x2
jax: 0.10.0
libtpu: 0.0.40
codegen_flags: <defaults>
</compile_context>

<pallas_src>
import functools
import math

import jax
import jax.numpy as jnp
from jax.experimental import pallas as pl
from jax.experimental.pallas import tpu as pltpu


# Operand dtype for MXU matmuls.  Keep f32 here for exact parity with the
# PyTorch reference; switch to jnp.bfloat16 on v6e/v7x for ~2-3x MXU throughput
# at production sizes (accumulation stays f32 via preferred_element_type).
MATMUL_DTYPE = jnp.float32


def _mm(a, b):
    """a @ b on the MXU with f32 accumulation."""
    return jnp.dot(a.astype(MATMUL_DTYPE), b.astype(MATMUL_DTYPE),
                   preferred_element_type=jnp.float32)


def _mm_nt(a, b):
    """a @ b.T on the MXU with f32 accumulation (contract last dims)."""
    return jax.lax.dot_general(a.astype(MATMUL_DTYPE), b.astype(MATMUL_DTYPE),
                               (((1,), (1,)), ((), ())),
                               preferred_element_type=jnp.float32)


def _layer_norm(x, g, b, eps=1e-5):
    mean = jnp.mean(x, axis=-1, keepdims=True)
    c = x - mean
    var = jnp.mean(c * c, axis=-1, keepdims=True)
    return c * jax.lax.rsqrt(var + eps) * g + b


# ----------------------------------------------------------------------------
# In-kernel GELU: exact (erf) if Mosaic lowers lax.erf, else tanh approximation.
# ----------------------------------------------------------------------------
def _erf_in_pallas_ok():
    def k(x_ref, o_ref):
        o_ref[...] = jax.lax.erf(x_ref[...])
    try:
        f = pl.pallas_call(k, out_shape=jax.ShapeDtypeStruct((8, 128), jnp.float32))
        jax.block_until_ready(f(jnp.zeros((8, 128), jnp.float32)))
        return True
    except Exception:
        return False


_USE_EXACT_GELU = _erf_in_pallas_ok()


def _kernel_gelu(x):
    if _USE_EXACT_GELU:
        return 0.5 * x * (1.0 + jax.lax.erf(x * (1.0 / math.sqrt(2.0))))
    # TODO(synk): tanh-approx GELU (differs from torch's exact erf GELU by <1e-3)
    # is only used when Mosaic cannot lower lax.erf on this runtime.
    c = math.sqrt(2.0 / math.pi)
    return 0.5 * x * (1.0 + jnp.tanh(c * (x + 0.044715 * (x * x * x))))


# ----------------------------------------------------------------------------
# Fused encoder kernel: embedding + all CT blocks + output accumulation.
# ----------------------------------------------------------------------------
def _encoder_kernel(emb_in_ref, maskneg_ref, shift_dn_ref, shift_up_ref,
                    seq_avg_ref, group_avg_ref,
                    embed_w_ref, embed_b_ref,
                    conv_w_ref, conv_b_ref, gn_g_ref, gn_b_ref,
                    in_w_ref, in_b_ref, out_w_ref, out_b_ref,
                    ff1_w_ref, ff1_b_ref, ff2_w_ref, ff2_b_ref,
                    ln1_g_ref, ln1_b_ref, ln2_g_ref, ln2_b_ref,
                    out_ref, *, nhead, layer_num):
    BL, D = out_ref.shape
    B, L = maskneg_ref.shape
    Dh = D // nhead
    scale = 1.0 / math.sqrt(Dh)

    shift_dn = shift_dn_ref[...]      # (BL, BL): row i picks row i-1 of same sequence
    shift_up = shift_up_ref[...]      # (BL, BL): row i picks row i+1 of same sequence
    seq_avg = seq_avg_ref[...]        # (BL, BL): per-sample average over L
    group_avg = group_avg_ref[...]    # (D, D):   per-group average over channels
    maskneg = maskneg_ref[...]        # (B, L):   0 / -1e9 additive key-padding mask

    # Fused node + position embedding: [onehot | pe] @ [[Wn],[Wp]] + (bn + bp).
    x = _mm(emb_in_ref[...], embed_w_ref[...]) + embed_b_ref[...]      # (BL, D)

    acc = jnp.zeros((BL, D), jnp.float32)

    for l in range(layer_num):
        # ----- CNNBlock: 3 x (Conv1d(3, pad=1) + GroupNorm(8) + GELU) + residual -----
        for c in range(3):
            idx = l * 3 + c
            w = conv_w_ref[idx]                              # (3D, D): [tap-1|tap0|tap+1]
            b = conv_b_ref[pl.ds(idx, 1), :]                 # (1, D)
            x_prev = _mm(shift_dn, x)                        # zero-padded x[l-1]
            x_next = _mm(shift_up, x)                        # zero-padded x[l+1]
            y = (_mm(x_prev, w[0:D, :]) + _mm(x, w[D:2 * D, :])
                 + _mm(x_next, w[2 * D:3 * D, :]) + b)       # (BL, D)

            # GroupNorm(8): centered two-pass stats per (sample, group).
            mean = _mm(_mm(seq_avg, y), group_avg)           # (BL, D)
            yc = y - mean
            var = _mm(_mm(seq_avg, yc * yc), group_avg)      # biased variance
            yn = (yc * jax.lax.rsqrt(var + 1e-5)
                  * gn_g_ref[pl.ds(idx, 1), :] + gn_b_ref[pl.ds(idx, 1), :])
            x = _kernel_gelu(yn) + x                         # dropout = identity (eval)
        x = x * (1.0 / 3.0)

        # ----- TransformerEncoderLayer (batch_first, post-norm, ReLU FFN) -----
        qkv = _mm(x, in_w_ref[l]) + in_b_ref[pl.ds(l, 1), :]           # (BL, 3D)
        out_w = out_w_ref[l]                                           # (D, D)
        sa_parts = []
        for bidx in range(B):
            qkv_b = qkv[bidx * L:(bidx + 1) * L, :]                    # (L, 3D)
            neg_b = maskneg[bidx:bidx + 1, :]                          # (1, L)
            sa_b = jnp.zeros((L, D), jnp.float32)
            for h in range(nhead):
                q = qkv_b[:, h * Dh:(h + 1) * Dh]
                k = qkv_b[:, D + h * Dh:D + (h + 1) * Dh]
                v = qkv_b[:, 2 * D + h * Dh:2 * D + (h + 1) * Dh]
                s = _mm_nt(q, k) * scale + neg_b                       # (L, L)
                s = s - jnp.max(s, axis=-1, keepdims=True)
                p = jnp.exp(s)
                p = p / jnp.sum(p, axis=-1, keepdims=True)
                ctx = _mm(p, v)                                        # (L, Dh)
                # Fold the output projection into the head loop (no attn scratch,
                # no narrow masked stores).
                sa_b = sa_b + _mm(ctx, out_w[h * Dh:(h + 1) * Dh, :])
            sa_parts.append(sa_b)
        sa = jnp.concatenate(sa_parts, axis=0) + out_b_ref[pl.ds(l, 1), :]

        x1 = _layer_norm(x + sa, ln1_g_ref[pl.ds(l, 1), :], ln1_b_ref[pl.ds(l, 1), :])
        h1 = jnp.maximum(_mm(x1, ff1_w_ref[l]) + ff1_b_ref[pl.ds(l, 1), :], 0.0)
        h2 = _mm(h1, ff2_w_ref[l]) + ff2_b_ref[pl.ds(l, 1), :]
        x = _layer_norm(x1 + h2, ln2_g_ref[pl.ds(l, 1), :], ln2_b_ref[pl.ds(l, 1), :])

        acc = acc + x

    out_ref[...] = acc * (1.0 / layer_num)


def encoder_pallas(emb_in, maskneg, shift_dn, shift_up, seq_avg, group_avg, p, *, nhead):
    BL = emb_in.shape[0]
    D = p["embed_w"].shape[1]
    layer_num = p["in_w"].shape[0]
    kernel = functools.partial(_encoder_kernel, nhead=nhead, layer_num=layer_num)
    # No grid: every operand is a whole-array VMEM resident (weights+activations
    # total well under 1 MiB), so the whole encoder is a single dispatch with a
    # single HBM read of the inputs/weights and a single HBM write of the output.
    return pl.pallas_call(
        kernel,
        out_shape=jax.ShapeDtypeStruct((BL, D), jnp.float32),
        compiler_params=pltpu.CompilerParams(vmem_limit_bytes=32 * 1024 * 1024),
    )(emb_in, maskneg, shift_dn, shift_up, seq_avg, group_avg,
      p["embed_w"], p["embed_b"].reshape(1, D),
      p["conv_w"], p["conv_b"], p["gn_g"], p["gn_b"],
      p["in_w"], p["in_b"], p["out_w"], p["out_b"],
      p["ff1_w"], p["ff1_b"], p["ff2_w"], p["ff2_b"],
      p["ln1_g"], p["ln1_b"], p["ln2_g"], p["ln2_b"])


# ----------------------------------------------------------------------------
# Fused pair predictor kernel: Linear -> GELU -> Linear -> GELU -> Linear,
# applied to the row-stacked [emb_i|emb_j ; emb_j|emb_i] input, plus the
# (cm_ur + cm_bl) / 2 average -- one dispatch, no intermediate HBM traffic.
# ----------------------------------------------------------------------------
def _pair_predictor_kernel(pairs_ref, w1_ref, b1_ref, w2_ref, b2_ref,
                           wo_ref, bo_ref, o_ref):
    h = _kernel_gelu(_mm(pairs_ref[...], w1_ref[...]) + b1_ref[...])
    h = _kernel_gelu(_mm(h, w2_ref[...]) + b2_ref[...])
    o = _mm(h, wo_ref[...]) + bo_ref[...]                      # (2P, 1)
    P = o_ref.shape[0]
    o_ref[...] = (o[0:P, :] + o[P:2 * P, :]) * 0.5


def pair_predictor_pallas(pairs, p):
    P = pairs.shape[0] // 2
    D = p["p1_w"].shape[1]
    return pl.pallas_call(
        _pair_predictor_kernel,
        out_shape=jax.ShapeDtypeStruct((P, 1), jnp.float32),
    )(pairs, p["p1_w"], p["p1_b"].reshape(1, D),
      p["p2_w"], p["p2_b"].reshape(1, D),
      p["po_w"], p["po_b"].reshape(1, 1))


# ----------------------------------------------------------------------------
# Full forward (jit-compiled end-to-end)
# ----------------------------------------------------------------------------
@functools.partial(jax.jit, static_argnames=("nhead",))
def pretrain_net_forward(params, node_onehot, node_pe, pred_pairs, pad_mask, *, nhead):
    B, L, _ = node_onehot.shape
    D = node_pe.shape[-1]
    BL = B * L

    emb_in = jnp.concatenate([node_onehot, node_pe], axis=-1).reshape(BL, 4 + D)
    maskneg = jnp.where(pad_mask, -1e9, 0.0).astype(jnp.float32)   # NaN-safe vs -inf

    # Structural matrices (constant-folded under jit): per-sequence shifts for the
    # zero-padded conv taps, per-sample sequence average and per-group channel
    # average for GroupNorm.
    idx = jnp.arange(BL)
    same_seq = (idx[:, None] // L) == (idx[None, :] // L)
    shift_dn = jnp.where(((idx[:, None] - 1) == idx[None, :]) & same_seq,
                         1.0, 0.0).astype(jnp.float32)
    shift_up = jnp.where(((idx[:, None] + 1) == idx[None, :]) & same_seq,
                         1.0, 0.0).astype(jnp.float32)
    seq_avg = jnp.where(same_seq, 1.0 / L, 0.0).astype(jnp.float32)
    gidx = jnp.arange(D) // (D // 8)
    group_avg = jnp.where(gidx[:, None] == gidx[None, :],
                          1.0 / (D // 8), 0.0).astype(jnp.float32)

    emb = encoder_pallas(emb_in, maskneg, shift_dn, shift_up, seq_avg, group_avg,
                         params, nhead=nhead)                       # (B*L, D)

    # Boolean-mask compaction + pair gather stays in XLA (jnp.nonzero/jnp.take);
    # matches torch `emb[~pad_mask][pred_pairs]` provided pair indices < n_valid.
    # TODO(synk): out-of-range pair indices silently map to valid row 0 instead of
    # erroring like the torch boolean gather.
    valid_idx = jnp.nonzero(jnp.logical_not(pad_mask).reshape(-1),
                            size=BL, fill_value=0)[0]
    emb_i = jnp.take(emb, jnp.take(valid_idx, pred_pairs[0]), axis=0)
    emb_j = jnp.take(emb, jnp.take(valid_idx, pred_pairs[1]), axis=0)

    pairs = jnp.concatenate(
        [jnp.concatenate([emb_i, emb_j], axis=1),
         jnp.concatenate([emb_j, emb_i], axis=1)], axis=0)          # (2P, 2D)
    cm = pair_predictor_pallas(pairs, params)                       # (P, 1)
    return cm.reshape(-1)


# ----------------------------------------------------------------------------
# Deterministic parameter initialization (weights stored pre-stacked per block)
# ----------------------------------------------------------------------------
class KeyGen:
    def __init__(self, key):
        self.key = key
        self.i = 0

    def __call__(self):
        self.i += 1
        return jax.random.fold_in(self.key, self.i)


def init_params(key, D, layer_num):
    kg = KeyGen(key)

    def rnd(shape, scale=0.05):
        return scale * jax.random.normal(kg(), shape, jnp.float32)

    NL = layer_num
    F = D  # PretrainNet passes dim_feedforward = embedding_dim
    params = {
        # fused embedding: [onehot | pe] @ [[Wn],[Wp]] + (bn + bp)
        "embed_w": rnd((4 + D, D)), "embed_b": rnd((D,)),
        # CNN blocks: per (block, conv-layer) a (3D, D) weight = [tap-1|tap0|tap+1]
        "conv_w": rnd((NL * 3, 3 * D, D)), "conv_b": rnd((NL * 3, D)),
        "gn_g": 1.0 + rnd((NL * 3, D)), "gn_b": rnd((NL * 3, D)),
        # transformer encoder layers
        "in_w": rnd((NL, D, 3 * D)), "in_b": rnd((NL, 3 * D)),
        "out_w": rnd((NL, D, D)), "out_b": rnd((NL, D)),
        "ff1_w": rnd((NL, D, F)), "ff1_b": rnd((NL, F)),
        "ff2_w": rnd((NL, F, D)), "ff2_b": rnd((NL, D)),
        "ln1_g": 1.0 + rnd((NL, D)), "ln1_b": rnd((NL, D)),
        "ln2_g": 1.0 + rnd((NL, D)), "ln2_b": rnd((NL, D)),
        # pair predictor
        "p1_w": rnd((2 * D, D)), "p1_b": rnd((D,)),
        "p2_w": rnd((D, D)), "p2_b": rnd((D,)),
        "po_w": rnd((D, 1)), "po_b": rnd((1,)),
    }
    return params


# ----------------------------------------------------------------------------
# main
# ----------------------------------------------------------------------------
if __name__ == "__main__":
    B, L, D = 2, 16, 32
    layer_num, nhead = 2, 4
    P = 8  # number of predicted pairs

    key = jax.random.PRNGKey(0)
    k_par, k_cls, k_pe, k_pair = jax.random.split(key, 4)

    params = init_params(k_par, D, layer_num)

    classes = jax.random.randint(k_cls, (B, L), 0, 4)
    node_onehot = jax.nn.one_hot(classes, 4, dtype=jnp.float32)      # (B, L, 4)
    node_pe = jax.random.normal(k_pe, (B, L, D), jnp.float32)        # (B, L, D)

    lengths = jnp.array([14, 12])
    pad_mask = jnp.arange(L)[None, :] >= lengths[:, None]            # (B, L) bool
    n_valid = int(jnp.sum(jnp.logical_not(pad_mask)))

    pred_pairs = jax.random.randint(k_pair, (2, P), 0, n_valid)      # (2, P)

    out = pretrain_net_forward(params, node_onehot, node_pe, pred_pairs, pad_mask,
                               nhead=nhead)
    out = jax.block_until_ready(out)
    assert out.shape == (P,)
    print("KERNEL_OK")
</pallas_src>

<mosaic_0001>
module attributes {stable_mosaic.version = 11 : i64} {
  func.func @k(%arg0: memref<8x128xf32, #tpu.memory_space<vmem>>, %arg1: memref<8x128xf32, #tpu.memory_space<vmem>>) attributes {dimension_semantics = [], scalar_prefetch = 0 : i64, scratch_operands = 0 : i64, tpu.core_type = #tpu.core_type<tc>} {
    %c0 = arith.constant 0 : index
    %c0_0 = arith.constant 0 : index
    %0 = vector.load %arg0[%c0, %c0_0] : memref<8x128xf32, #tpu.memory_space<vmem>>, vector<8x128xf32>
    %1 = math.erf %0 : vector<8x128xf32>
    %c0_1 = arith.constant 0 : index
    %c0_2 = arith.constant 0 : index
    %2 = vector.load %arg1[%c0_1, %c0_2] : memref<8x128xf32, #tpu.memory_space<vmem>>, vector<8x128xf32>
    tpu.vector_store %arg1[%c0_1, %c0_2], %1 {strides = array<i32>} : memref<8x128xf32, #tpu.memory_space<vmem>>, vector<8x128xf32>,
    return
  }
}

module attributes {stable_mosaic.version = 11 : i64} {
  func.func @_encoder_kernel(%arg0: memref<32x36xf32, #tpu.memory_space<vmem>>, %arg1: memref<2x16xf32, #tpu.memory_space<vmem>>, %arg2: memref<32x32xf32, #tpu.memory_space<vmem>>, %arg3: memref<32x32xf32, #tpu.memory_space<vmem>>, %arg4: memref<32x32xf32, #tpu.memory_space<vmem>>, %arg5: memref<32x32xf32, #tpu.memory_space<vmem>>, %arg6: memref<36x32xf32, #tpu.memory_space<vmem>>, %arg7: memref<1x32xf32, #tpu.memory_space<vmem>>, %arg8: memref<6x96x32xf32, #tpu.memory_space<vmem>>, %arg9: memref<6x32xf32, #tpu.memory_space<vmem>>, %arg10: memref<6x32xf32, #tpu.memory_space<vmem>>, %arg11: memref<6x32xf32, #tpu.memory_space<vmem>>, %arg12: memref<2x32x96xf32, #tpu.memory_space<vmem>>, %arg13: memref<2x96xf32, #tpu.memory_space<vmem>>, %arg14: memref<2x32x32xf32, #tpu.memory_space<vmem>>, %arg15: memref<2x32xf32, #tpu.memory_space<vmem>>, %arg16: memref<2x32x32xf32, #tpu.memory_space<vmem>>, %arg17: memref<2x32xf32, #tpu.memory_space<vmem>>, %arg18: memref<2x32x32xf32, #tpu.memory_space<vmem>>, %arg19: memref<2x32xf32, #tpu.memory_space<vmem>>, %arg20: memref<2x32xf32, #tpu.memory_space<vmem>>, %arg21: memref<2x32xf32, #tpu.memory_space<vmem>>, %arg22: memref<2x32xf32, #tpu.memory_space<vmem>>, %arg23: memref<2x32xf32, #tpu.memory_space<vmem>>, %arg24: memref<32x32xf32, #tpu.memory_space<vmem>>) attributes {dimension_semantics = [], scalar_prefetch = 0 : i64, scratch_operands = 0 : i64, tpu.core_type = #tpu.core_type<tc>} {
    %c0 = arith.constant 0 : index
    %c0_0 = arith.constant 0 : index
    %0 = vector.load %arg2[%c0, %c0_0] : memref<32x32xf32, #tpu.memory_space<vmem>>, vector<32x32xf32>
    %c0_1 = arith.constant 0 : index
    %c0_2 = arith.constant 0 : index
    %1 = vector.load %arg3[%c0_1, %c0_2] : memref<32x32xf32, #tpu.memory_space<vmem>>, vector<32x32xf32>
    %c0_3 = arith.constant 0 : index
    %c0_4 = arith.constant 0 : index
    %2 = vector.load %arg4[%c0_3, %c0_4] : memref<32x32xf32, #tpu.memory_space<vmem>>, vector<32x32xf32>
    %c0_5 = arith.constant 0 : index
    %c0_6 = arith.constant 0 : index
    %3 = vector.load %arg5[%c0_5, %c0_6] : memref<32x32xf32, #tpu.memory_space<vmem>>, vector<32x32xf32>
    %c0_7 = arith.constant 0 : index
    %c0_8 = arith.constant 0 : index
    %4 = vector.load %arg1[%c0_7, %c0_8] : memref<2x16xf32, #tpu.memory_space<vmem>>, vector<2x16xf32>
    %c0_9 = arith.constant 0 : index
    %c0_10 = arith.constant 0 : index
    %5 = vector.load %arg0[%c0_9, %c0_10] : memref<32x36xf32, #tpu.memory_space<vmem>>, vector<32x36xf32>
    %c0_11 = arith.constant 0 : index
    %c0_12 = arith.constant 0 : index
    %6 = vector.load %arg6[%c0_11, %c0_12] : memref<36x32xf32, #tpu.memory_space<vmem>>, vector<36x32xf32>
    %cst = arith.constant dense<0.000000e+00> : vector<32x32xf32>
    %7 = tpu.matmul %5, %6, %cst {dimension_numbers = #tpu.dot_dimension_numbers<[1], [0], [0], [1], [0, 0, 1, 1], [], []>} : vector<32x36xf32>, vector<36x32xf32>, vector<32x32xf32> -> vector<32x32xf32>
    %c0_13 = arith.constant 0 : index
    %c0_14 = arith.constant 0 : index
    %8 = vector.load %arg7[%c0_13, %c0_14] : memref<1x32xf32, #tpu.memory_space<vmem>>, vector<1x32xf32>
    %9 = vector.broadcast %8 : vector<1x32xf32> to vector<32x32xf32>
    %10 = arith.addf %7, %9 : vector<32x32xf32>
    %cst_15 = arith.constant 0.000000e+00 : f32
    %11 = vector.broadcast %cst_15 : f32 to vector<32x32xf32>
    %c0_16 = arith.constant 0 : index
    %c0_17 = arith.constant 0 : index
    %c0_18 = arith.constant 0 : index
    %12 = vector.load %arg8[%c0_16, %c0_17, %c0_18] : memref<6x96x32xf32, #tpu.memory_space<vmem>>, vector<1x96x32xf32>
    %13 = vector.shape_cast %12 : vector<1x96x32xf32> to vector<96x32xf32>
    %c0_19 = arith.constant 0 : index
    %c0_20 = arith.constant 0 : index
    %14 = vector.load %arg9[%c0_19, %c0_20] : memref<6x32xf32, #tpu.memory_space<vmem>>, vector<1x32xf32>
    %cst_21 = arith.constant dense<0.000000e+00> : vector<32x32xf32>
    %15 = tpu.matmul %0, %10, %cst_21 {dimension_numbers = #tpu.dot_dimension_numbers<[1], [0], [0], [1], [0, 0, 1, 1], [], []>} : vector<32x32xf32>, vector<32x32xf32>, vector<32x32xf32> -> vector<32x32xf32>
    %cst_22 = arith.constant dense<0.000000e+00> : vector<32x32xf32>
    %16 = tpu.matmul %1, %10, %cst_22 {dimension_numbers = #tpu.dot_dimension_numbers<[1], [0], [0], [1], [0, 0, 1, 1], [], []>} : vector<32x32xf32>, vector<32x32xf32>, vector<32x32xf32> -> vector<32x32xf32>
    %17 = vector.extract_strided_slice %13 {offsets = [0, 0], sizes = [32, 32], strides = [1, 1]} : vector<96x32xf32> to vector<32x32xf32>
    %cst_23 = arith.constant dense<0.000000e+00> : vector<32x32xf32>
    %18 = tpu.matmul %15, %17, %cst_23 {dimension_numbers = #tpu.dot_dimension_numbers<[1], [0], [0], [1], [0, 0, 1, 1], [], []>} : vector<32x32xf32>, vector<32x32xf32>, vector<32x32xf32> -> vector<32x32xf32>
    %19 = vector.extract_strided_slice %13 {offsets = [32, 0], sizes = [32, 32], strides = [1, 1]} : vector<96x32xf32> to vector<32x32xf32>
    %cst_24 = arith.constant dense<0.000000e+00> : vector<32x32xf32>
    %20 = tpu.matmul %10, %19, %cst_24 {dimension_numbers = #tpu.dot_dimension_numbers<[1], [0], [0], [1], [0, 0, 1, 1], [], []>} : vector<32x32xf32>, vector<32x32xf32>, vector<32x32xf32> -> vector<32x32xf32>
    %21 = arith.addf %18, %20 : vector<32x32xf32>
    %22 = vector.extract_strided_slice %13 {offsets = [64, 0], sizes = [32, 32], strides = [1, 1]} : vector<96x32xf32> to vector<32x32xf32>
    %cst_25 = arith.constant dense<0.000000e+00> : vector<32x32xf32>
    %23 = tpu.matmul %16, %22, %cst_25 {dimension_numbers = #tpu.dot_dimension_numbers<[1], [0], [0], [1], [0, 0, 1, 1], [], []>} : vector<32x32xf32>, vector<32x32xf32>, vector<32x32xf32> -> vector<32x32xf32>
    %24 = arith.addf %21, %23 : vector<32x32xf32>
    %25 = vector.broadcast %14 : vector<1x32xf32> to vector<32x32xf32>
    %26 = arith.addf %24, %25 : vector<32x32xf32>
    %cst_26 = arith.constant dense<0.000000e+00> : vector<32x32xf32>
    %27 = tpu.matmul %2, %26, %cst_26 {dimension_numbers = #tpu.dot_dimension_numbers<[1], [0], [0], [1], [0, 0, 1, 1], [], []>} : vector<32x32xf32>, vector<32x32xf32>, vector<32x32xf32> -> vector<32x32xf32>
    %cst_27 = arith.constant dense<0.000000e+00> : vector<32x32xf32>
    %28 = tpu.matmul %27, %3, %cst_27 {dimension_numbers = #tpu.dot_dimension_numbers<[1], [0], [0], [1], [0, 0, 1, 1], [], []>} : vector<32x32xf32>, vector<32x32xf32>, vector<32x32xf32> -> vector<32x32xf32>
    %29 = arith.subf %26, %28 : vector<32x32xf32>
    %30 = arith.mulf %29, %29 : vector<32x32xf32>
    %cst_28 = arith.constant dense<0.000000e+00> : vector<32x32xf32>
    %31 = tpu.matmul %2, %30, %cst_28 {dimension_numbers = #tpu.dot_dimension_numbers<[1], [0], [0], [1], [0, 0, 1, 1], [], []>} : vector<32x32xf32>, vector<32x32xf32>, vector<32x32xf32> -> vector<32x32xf32>
    %cst_29 = arith.constant dense<0.000000e+00> : vector<32x32xf32>
    %32 = tpu.matmul %31, %3, %cst_29 {dimension_numbers = #tpu.dot_dimension_numbers<[1], [0], [0], [1], [0, 0, 1, 1], [], []>} : vector<32x32xf32>, vector<32x32xf32>, vector<32x32xf32> -> vector<32x32xf32>
    %cst_30 = arith.constant 9.99999974E-6 : f32
    %33 = vector.broadcast %cst_30 : f32 to vector<32x32xf32>
    %34 = arith.addf %32, %33 : vector<32x32xf32>
    %35 = math.rsqrt %34 : vector<32x32xf32>
    %36 = arith.mulf %29, %35 : vector<32x32xf32>
    %c0_31 = arith.constant 0 : index
    %c0_32 = arith.constant 0 : index
    %37 = vector.load %arg10[%c0_31, %c0_32] : memref<6x32xf32, #tpu.memory_space<vmem>>, vector<1x32xf32>
    %38 = vector.broadcast %37 : vector<1x32xf32> to vector<32x32xf32>
    %39 = arith.mulf %36, %38 : vector<32x32xf32>
    %c0_33 = arith.constant 0 : index
    %c0_34 = arith.constant 0 : index
    %40 = vector.load %arg11[%c0_33, %c0_34] : memref<6x32xf32, #tpu.memory_space<vmem>>, vector<1x32xf32>
    %41 = vector.broadcast %40 : vector<1x32xf32> to vector<32x32xf32>
    %42 = arith.addf %39, %41 : vector<32x32xf32>
    %cst_35 = arith.constant 5.000000e-01 : f32
    %43 = vector.broadcast %cst_35 : f32 to vector<32x32xf32>
    %44 = arith.mulf %43, %42 : vector<32x32xf32>
    %45 = arith.mulf %42, %42 : vector<32x32xf32>
    %46 = arith.mulf %45, %42 : vector<32x32xf32>
    %cst_36 = arith.constant 4.471500e-02 : f32
    %47 = vector.broadcast %cst_36 : f32 to vector<32x32xf32>
    %48 = arith.mulf %47, %46 : vector<32x32xf32>
    %49 = arith.addf %42, %48 : vector<32x32xf32>
    %cst_37 = arith.constant 0.797884583 : f32
    %50 = vector.broadcast %cst_37 : f32 to vector<32x32xf32>
    %51 = arith.mulf %50, %49 : vector<32x32xf32>
    %52 = math.tanh %51 : vector<32x32xf32>
    %cst_38 = arith.constant 1.000000e+00 : f32
    %53 = vector.broadcast %cst_38 : f32 to vector<32x32xf32>
    %54 = arith.addf %53, %52 : vector<32x32xf32>
    %55 = arith.mulf %44, %54 : vector<32x32xf32>
    %56 = arith.addf %55, %10 : vector<32x32xf32>
    %c1 = arith.constant 1 : index
    %c0_39 = arith.constant 0 : index
    %c0_40 = arith.constant 0 : index
    %57 = vector.load %arg8[%c1, %c0_39, %c0_40] : memref<6x96x32xf32, #tpu.memory_space<vmem>>, vector<1x96x32xf32>
    %58 = vector.shape_cast %57 : vector<1x96x32xf32> to vector<96x32xf32>
    %c1_41 = arith.constant 1 : index
    %c0_42 = arith.constant 0 : index
    %59 = vector.load %arg9[%c1_41, %c0_42] : memref<6x32xf32, #tpu.memory_space<vmem>>, vector<1x32xf32>
    %cst_43 = arith.constant dense<0.000000e+00> : vector<32x32xf32>
    %60 = tpu.matmul %0, %56, %cst_43 {dimension_numbers = #tpu.dot_dimension_numbers<[1], [0], [0], [1], [0, 0, 1, 1], [], []>} : vector<32x32xf32>, vector<32x32xf32>, vector<32x32xf32> -> vector<32x32xf32>
    %cst_44 = arith.constant dense<0.000000e+00> : vector<32x32xf32>
    %61 = tpu.matmul %1, %56, %cst_44 {dimension_numbers = #tpu.dot_dimension_numbers<[1], [0], [0], [1], [0, 0, 1, 1], [], []>} : vector<32x32xf32>, vector<32x32xf32>, vector<32x32xf32> -> vector<32x32xf32>
    %62 = vector.extract_strided_slice %58 {offsets = [0, 0], sizes = [32, 32], strides = [1, 1]} : vector<96x32xf32> to vector<32x32xf32>
    %cst_45 = arith.constant dense<0.000000e+00> : vector<32x32xf32>
    %63 = tpu.matmul %60, %62, %cst_45 {dimension_numbers = #tpu.dot_dimension_numbers<[1], [0], [0], [1], [0, 0, 1, 1], [], []>} : vector<32x32xf32>, vector<32x32xf32>, vector<32x32xf32> -> vector<32x32xf32>
    %64 = vector.extract_strided_slice %58 {offsets = [32, 0], sizes = [32, 32], strides = [1, 1]} : vector<96x32xf32> to vector<32x32xf32>
    %cst_46 = arith.constant dense<0.000000e+00> : vector<32x32xf32>
    %65 = tpu.matmul %56, %64, %cst_46 {dimension_numbers = #tpu.dot_dimension_numbers<[1], [0], [0], [1], [0, 0, 1, 1], [], []>} : vector<32x32xf32>, vector<32x32xf32>, vector<32x32xf32> -> vector<32x32xf32>
    %66 = arith.addf %63, %65 : vector<32x32xf32>
    %67 = vector.extract_strided_slice %58 {offsets = [64, 0], sizes = [32, 32], strides = [1, 1]} : vector<96x32xf32> to vector<32x32xf32>
    %cst_47 = arith.constant dense<0.000000e+00> : vector<32x32xf32>
    %68 = tpu.matmul %61, %67, %cst_47 {dimension_numbers = #tpu.dot_dimension_numbers<[1], [0], [0], [1], [0, 0, 1, 1], [], []>} : vector<32x32xf32>, vector<32x32xf32>, vector<32x32xf32> -> vector<32x32xf32>
    %69 = arith.addf %66, %68 : vector<32x32xf32>
    %70 = vector.broadcast %59 : vector<1x32xf32> to vector<32x32xf32>
    %71 = arith.addf %69, %70 : vector<32x32xf32>
    %cst_48 = arith.constant dense<0.000000e+00> : vector<32x32xf32>
    %72 = tpu.matmul %2, %71, %cst_48 {dimension_numbers = #tpu.dot_dimension_numbers<[1], [0], [0], [1], [0, 0, 1, 1], [], []>} : vector<32x32xf32>, vector<32x32xf32>, vector<32x32xf32> -> vector<32x32xf32>
    %cst_49 = arith.constant dense<0.000000e+00> : vector<32x32xf32>
    %73 = tpu.matmul %72, %3, %cst_49 {dimension_numbers = #tpu.dot_dimension_numbers<[1], [0], [0], [1], [0, 0, 1, 1], [], []>} : vector<32x32xf32>, vector<32x32xf32>, vector<32x32xf32> -> vector<32x32xf32>
    %74 = arith.subf %71, %73 : vector<32x32xf32>
    %75 = arith.mulf %74, %74 : vector<32x32xf32>
    %cst_50 = arith.constant dense<0.000000e+00> : vector<32x32xf32>
    %76 = tpu.matmul %2, %75, %cst_50 {dimension_numbers = #tpu.dot_dimension_numbers<[1], [0], [0], [1], [0, 0, 1, 1], [], []>} : vector<32x32xf32>, vector<32x32xf32>, vector<32x32xf32> -> vector<32x32xf32>
    %cst_51 = arith.constant dense<0.000000e+00> : vector<32x32xf32>
    %77 = tpu.matmul %76, %3, %cst_51 {dimension_numbers = #tpu.dot_dimension_numbers<[1], [0], [0], [1], [0, 0, 1, 1], [], []>} : vector<32x32xf32>, vector<32x32xf32>, vector<32x32xf32> -> vector<32x32xf32>
    %cst_52 = arith.constant 9.99999974E-6 : f32
    %78 = vector.broadcast %cst_52 : f32 to vector<32x32xf32>
    %79 = arith.addf %77, %78 : vector<32x32xf32>
    %80 = math.rsqrt %79 : vector<32x32xf32>
    %81 = arith.mulf %74, %80 : vector<32x32xf32>
    %c1_53 = arith.constant 1 : index
    %c0_54 = arith.constant 0 : index
    %82 = vector.load %arg10[%c1_53, %c0_54] : memref<6x32xf32, #tpu.memory_space<vmem>>, vector<1x32xf32>
    %83 = vector.broadcast %82 : vector<1x32xf32> to vector<32x32xf32>
    %84 = arith.mulf %81, %83 : vector<32x32xf32>
    %c1_55 = arith.constant 1 : index
    %c0_56 = arith.constant 0 : index
    %85 = vector.load %arg11[%c1_55, %c0_56] : memref<6x32xf32, #tpu.memory_space<vmem>>, vector<1x32xf32>
    %86 = vector.broadcast %85 : vector<1x32xf32> to vector<32x32xf32>
    %87 = arith.addf %84, %86 : vector<32x32xf32>
    %cst_57 = arith.constant 5.000000e-01 : f32
    %88 = vector.broadcast %cst_57 : f32 to vector<32x32xf32>
    %89 = arith.mulf %88, %87 : vector<32x32xf32>
    %90 = arith.mulf %87, %87 : vector<32x32xf32>
    %91 = arith.mulf %90, %87 : vector<32x32xf32>
    %cst_58 = arith.constant 4.471500e-02 : f32
    %92 = vector.broadcast %cst_58 : f32 to vector<32x32xf32>
    %93 = arith.mulf %92, %91 : vector<32x32xf32>
    %94 = arith.addf %87, %93 : vector<32x32xf32>
    %cst_59 = arith.constant 0.797884583 : f32
    %95 = vector.broadcast %cst_59 : f32 to vector<32x32xf32>
    %96 = arith.mulf %95, %94 : vector<32x32xf32>
    %97 = math.tanh %96 : vector<32x32xf32>
    %cst_60 = arith.constant 1.000000e+00 : f32
    %98 = vector.broadcast %cst_60 : f32 to vector<32x32xf32>
    %99 = arith.addf %98, %97 : vector<32x32xf32>
    %100 = arith.mulf %89, %99 : vector<32x32xf32>
    %101 = arith.addf %100, %56 : vector<32x32xf32>
    %c2 = arith.constant 2 : index
    %c0_61 = arith.constant 0 : index
    %c0_62 = arith.constant 0 : index
    %102 = vector.load %arg8[%c2, %c0_61, %c0_62] : memref<6x96x32xf32, #tpu.memory_space<vmem>>, vector<1x96x32xf32>
    %103 = vector.shape_cast %102 : vector<1x96x32xf32> to vector<96x32xf32>
    %c2_63 = arith.constant 2 : index
    %c0_64 = arith.constant 0 : index
    %104 = vector.load %arg9[%c2_63, %c0_64] : memref<6x32xf32, #tpu.memory_space<vmem>>, vector<1x32xf32>
    %cst_65 = arith.constant dense<0.000000e+00> : vector<32x32xf32>
    %105 = tpu.matmul %0, %101, %cst_65 {dimension_numbers = #tpu.dot_dimension_numbers<[1], [0], [0], [1], [0, 0, 1, 1], [], []>} : vector<32x32xf32>, vector<32x32xf32>, vector<32x32xf32> -> vector<32x32xf32>
    %cst_66 = arith.constant dense<0.000000e+00> : vector<32x32xf32>
    %106 = tpu.matmul %1, %101, %cst_66 {dimension_numbers = #tpu.dot_dimension_numbers<[1], [0], [0], [1], [0, 0, 1, 1], [], []>} : vector<32x32xf32>, vector<32x32xf32>, vector<32x32xf32> -> vector<32x32xf32>
    %107 = vector.extract_strided_slice %103 {offsets = [0, 0], sizes = [32, 32], strides = [1, 1]} : vector<96x32xf32> to vector<32x32xf32>
    %cst_67 = arith.constant dense<0.000000e+00> : vector<32x32xf32>
    %108 = tpu.matmul %105, %107, %cst_67 {dimension_numbers = #tpu.dot_dimension_numbers<[1], [0], [0], [1], [0, 0, 1, 1], [], []>} : vector<32x32xf32>, vector<32x32xf32>, vector<32x32xf32> -> vector<32x32xf32>
    %109 = vector.extract_strided_slice %103 {offsets = [32, 0], sizes = [32, 32], strides = [1, 1]} : vector<96x32xf32> to vector<32x32xf32>
    %cst_68 = arith.constant dense<0.000000e+00> : vector<32x32xf32>
    %110 = tpu.matmul %101, %109, %cst_68 {dimension_numbers = #tpu.dot_dimension_numbers<[1], [0], [0], [1], [0, 0, 1, 1], [], []>} : vector<32x32xf32>, vector<32x32xf32>, vector<32x32xf32> -> vector<32x32xf32>
    %111 = arith.addf %108, %110 : vector<32x32xf32>
    %112 = vector.extract_strided_slice %103 {offsets = [64, 0], sizes = [32, 32], strides = [1, 1]} : vector<96x32xf32> to vector<32x32xf32>
    %cst_69 = arith.constant dense<0.000000e+00> : vector<32x32xf32>
    %113 = tpu.matmul %106, %112, %cst_69 {dimension_numbers = #tpu.dot_dimension_numbers<[1], [0], [0], [1], [0, 0, 1, 1], [], []>} : vector<32x32xf32>, vector<32x32xf32>, vector<32x32xf32> -> vector<32x32xf32>
    %114 = arith.addf %111, %113 : vector<32x32xf32>
    %115 = vector.broadcast %104 : vector<1x32xf32> to vector<32x32xf32>
    %116 = arith.addf %114, %115 : vector<32x32xf32>
    %cst_70 = arith.constant dense<0.000000e+00> : vector<32x32xf32>
    %117 = tpu.matmul %2, %116, %cst_70 {dimension_numbers = #tpu.dot_dimension_numbers<[1], [0], [0], [1], [0, 0, 1, 1], [], []>} : vector<32x32xf32>, vector<32x32xf32>, vector<32x32xf32> -> vector<32x32xf32>
    %cst_71 = arith.constant dense<0.000000e+00> : vector<32x32xf32>
    %118 = tpu.matmul %117, %3, %cst_71 {dimension_numbers = #tpu.dot_dimension_numbers<[1], [0], [0], [1], [0, 0, 1, 1], [], []>} : vector<32x32xf32>, vector<32x32xf32>, vector<32x32xf32> -> vector<32x32xf32>
    %119 = arith.subf %116, %118 : vector<32x32xf32>
    %120 = arith.mulf %119, %119 : vector<32x32xf32>
    %cst_72 = arith.constant dense<0.000000e+00> : vector<32x32xf32>
    %121 = tpu.matmul %2, %120, %cst_72 {dimension_numbers = #tpu.dot_dimension_numbers<[1], [0], [0], [1], [0, 0, 1, 1], [], []>} : vector<32x32xf32>, vector<32x32xf32>, vector<32x32xf32> -> vector<32x32xf32>
    %cst_73 = arith.constant dense<0.000000e+00> : vector<32x32xf32>
    %122 = tpu.matmul %121, %3, %cst_73 {dimension_numbers = #tpu.dot_dimension_numbers<[1], [0], [0], [1], [0, 0, 1, 1], [], []>} : vector<32x32xf32>, vector<32x32xf32>, vector<32x32xf32> -> vector<32x32xf32>
    %cst_74 = arith.constant 9.99999974E-6 : f32
    %123 = vector.broadcast %cst_74 : f32 to vector<32x32xf32>
    %124 = arith.addf %122, %123 : vector<32x32xf32>
    %125 = math.rsqrt %124 : vector<32x32xf32>
    %126 = arith.mulf %119, %125 : vector<32x32xf32>
    %c2_75 = arith.constant 2 : index
    %c0_76 = arith.constant 0 : index
    %127 = vector.load %arg10[%c2_75, %c0_76] : memref<6x32xf32, #tpu.memory_space<vmem>>, vector<1x32xf32>
    %128 = vector.broadcast %127 : vector<1x32xf32> to vector<32x32xf32>
    %129 = arith.mulf %126, %128 : vector<32x32xf32>
    %c2_77 = arith.constant 2 : index
    %c0_78 = arith.constant 0 : index
    %130 = vector.load %arg11[%c2_77, %c0_78] : memref<6x32xf32, #tpu.memory_space<vmem>>, vector<1x32xf32>
    %131 = vector.broadcast %130 : vector<1x32xf32> to vector<32x32xf32>
    %132 = arith.addf %129, %131 : vector<32x32xf32>
    %cst_79 = arith.constant 5.000000e-01 : f32
    %133 = vector.broadcast %cst_79 : f32 to vector<32x32xf32>
    %134 = arith.mulf %133, %132 : vector<32x32xf32>
    %135 = arith.mulf %132, %132 : vector<32x32xf32>
    %136 = arith.mulf %135, %132 : vector<32x32xf32>
    %cst_80 = arith.constant 4.471500e-02 : f32
    %137 = vector.broadcast %cst_80 : f32 to vector<32x32xf32>
    %138 = arith.mulf %137, %136 : vector<32x32xf32>
    %139 = arith.addf %132, %138 : vector<32x32xf32>
    %cst_81 = arith.constant 0.797884583 : f32
    %140 = vector.broadcast %cst_81 : f32 to vector<32x32xf32>
    %141 = arith.mulf %140, %139 : vector<32x32xf32>
    %142 = math.tanh %141 : vector<32x32xf32>
    %cst_82 = arith.constant 1.000000e+00 : f32
    %143 = vector.broadcast %cst_82 : f32 to vector<32x32xf32>
    %144 = arith.addf %143, %142 : vector<32x32xf32>
    %145 = arith.mulf %134, %144 : vector<32x32xf32>
    %146 = arith.addf %145, %101 : vector<32x32xf32>
    %cst_83 = arith.constant 0.333333343 : f32
    %147 = vector.broadcast %cst_83 : f32 to vector<32x32xf32>
    %148 = arith.mulf %146, %147 : vector<32x32xf32>
    %c0_84 = arith.constant 0 : index
    %c0_85 = arith.constant 0 : index
    %c0_86 = arith.constant 0 : index
    %149 = vector.load %arg12[%c0_84, %c0_85, %c0_86] : memref<2x32x96xf32, #tpu.memory_space<vmem>>, vector<1x32x96xf32>
    %150 = vector.shape_cast %149 : vector<1x32x96xf32> to vector<32x96xf32>
    %cst_87 = arith.constant dense<0.000000e+00> : vector<32x96xf32>
    %151 = tpu.matmul %148, %150, %cst_87 {dimension_numbers = #tpu.dot_dimension_numbers<[1], [0], [0], [1], [0, 0, 1, 1], [], []>} : vector<32x32xf32>, vector<32x96xf32>, vector<32x96xf32> -> vector<32x96xf32>
    %c0_88 = arith.constant 0 : index
    %c0_89 = arith.constant 0 : index
    %152 = vector.load %arg13[%c0_88, %c0_89] : memref<2x96xf32, #tpu.memory_space<vmem>>, vector<1x96xf32>
    %153 = vector.broadcast %152 : vector<1x96xf32> to vector<32x96xf32>
    %154 = arith.addf %151, %153 : vector<32x96xf32>
    %c0_90 = arith.constant 0 : index
    %c0_91 = arith.constant 0 : index
    %c0_92 = arith.constant 0 : index
    %155 = vector.load %arg14[%c0_90, %c0_91, %c0_92] : memref<2x32x32xf32, #tpu.memory_space<vmem>>, vector<1x32x32xf32>
    %156 = vector.shape_cast %155 : vector<1x32x32xf32> to vector<32x32xf32>
    %157 = vector.extract_strided_slice %154 {offsets = [0, 0], sizes = [16, 96], strides = [1, 1]} : vector<32x96xf32> to vector<16x96xf32>
    %158 = vector.extract_strided_slice %4 {offsets = [0, 0], sizes = [1, 16], strides = [1, 1]} : vector<2x16xf32> to vector<1x16xf32>
    %cst_93 = arith.constant 0.000000e+00 : f32
    %159 = vector.broadcast %cst_93 : f32 to vector<16x32xf32>
    %160 = vector.extract_strided_slice %157 {offsets = [0, 0], sizes = [16, 8], strides = [1, 1]} : vector<16x96xf32> to vector<16x8xf32>
    %161 = vector.extract_strided_slice %157 {offsets = [0, 32], sizes = [16, 8], strides = [1, 1]} : vector<16x96xf32> to vector<16x8xf32>
    %162 = vector.extract_strided_slice %157 {offsets = [0, 64], sizes = [16, 8], strides = [1, 1]} : vector<16x96xf32> to vector<16x8xf32>
    %cst_94 = arith.constant dense<0.000000e+00> : vector<16x16xf32>
    %163 = tpu.matmul %160, %161, %cst_94 {dimension_numbers = #tpu.dot_dimension_numbers<[1], [1], [0], [0], [0, 0, 1, 0], [], []>} : vector<16x8xf32>, vector<16x8xf32>, vector<16x16xf32> -> vector<16x16xf32>
    %cst_95 = arith.constant 0.353553385 : f32
    %164 = vector.broadcast %cst_95 : f32 to vector<16x16xf32>
    %165 = arith.mulf %163, %164 : vector<16x16xf32>
    %166 = vector.broadcast %158 : vector<1x16xf32> to vector<16x16xf32>
    %167 = arith.addf %165, %166 : vector<16x16xf32>
    %cst_96 = arith.constant dense<0xFF800000> : vector<16xf32>
    %168 = vector.multi_reduction <maximumf>, %167, %cst_96 [1] : vector<16x16xf32> to vector<16xf32>
    %169 = vector.shape_cast %168 : vector<16xf32> to vector<16x1xf32>
    %170 = vector.broadcast %169 : vector<16x1xf32> to vector<16x16xf32>
    %171 = arith.subf %167, %170 : vector<16x16xf32>
    %172 = math.exp %171 : vector<16x16xf32>
    %cst_97 = arith.constant dense<0.000000e+00> : vector<16xf32>
    %173 = vector.multi_reduction <add>, %172, %cst_97 [1] : vector<16x16xf32> to vector<16xf32>
    %174 = vector.shape_cast %173 : vector<16xf32> to vector<16x1xf32>
    %175 = vector.broadcast %174 : vector<16x1xf32> to vector<16x16xf32>
    %176 = arith.divf %172, %175 : vector<16x16xf32>
    %cst_98 = arith.constant dense<0.000000e+00> : vector<16x8xf32>
    %177 = tpu.matmul %176, %162, %cst_98 {dimension_numbers = #tpu.dot_dimension_numbers<[1], [0], [0], [1], [0, 0, 1, 1], [], []>} : vector<16x16xf32>, vector<16x8xf32>, vector<16x8xf32> -> vector<16x8xf32>
    %178 = vector.extract_strided_slice %156 {offsets = [0, 0], sizes = [8, 32], strides = [1, 1]} : vector<32x32xf32> to vector<8x32xf32>
    %cst_99 = arith.constant dense<0.000000e+00> : vector<16x32xf32>
    %179 = tpu.matmul %177, %178, %cst_99 {dimension_numbers = #tpu.dot_dimension_numbers<[1], [0], [0], [1], [0, 0, 1, 1], [], []>} : vector<16x8xf32>, vector<8x32xf32>, vector<16x32xf32> -> vector<16x32xf32>
    %180 = arith.addf %159, %179 : vector<16x32xf32>
    %181 = vector.extract_strided_slice %157 {offsets = [0, 8], sizes = [16, 8], strides = [1, 1]} : vector<16x96xf32> to vector<16x8xf32>
    %182 = vector.extract_strided_slice %157 {offsets = [0, 40], sizes = [16, 8], strides = [1, 1]} : vector<16x96xf32> to vector<16x8xf32>
    %183 = vector.extract_strided_slice %157 {offsets = [0, 72], sizes = [16, 8], strides = [1, 1]} : vector<16x96xf32> to vector<16x8xf32>
    %cst_100 = arith.constant dense<0.000000e+00> : vector<16x16xf32>
    %184 = tpu.matmul %181, %182, %cst_100 {dimension_numbers = #tpu.dot_dimension_numbers<[1], [1], [0], [0], [0, 0, 1, 0], [], []>} : vector<16x8xf32>, vector<16x8xf32>, vector<16x16xf32> -> vector<16x16xf32>
    %cst_101 = arith.constant 0.353553385 : f32
    %185 = vector.broadcast %cst_101 : f32 to vector<16x16xf32>
    %186 = arith.mulf %184, %185 : vector<16x16xf32>
    %187 = vector.broadcast %158 : vector<1x16xf32> to vector<16x16xf32>
    %188 = arith.addf %186, %187 : vector<16x16xf32>
    %cst_102 = arith.constant dense<0xFF800000> : vector<16xf32>
    %189 = vector.multi_reduction <maximumf>, %188, %cst_102 [1] : vector<16x16xf32> to vector<16xf32>
    %190 = vector.shape_cast %189 : vector<16xf32> to vector<16x1xf32>
    %191 = vector.broadcast %190 : vector<16x1xf32> to vector<16x16xf32>
    %192 = arith.subf %188, %191 : vector<16x16xf32>
    %193 = math.exp %192 : vector<16x16xf32>
    %cst_103 = arith.constant dense<0.000000e+00> : vector<16xf32>
    %194 = vector.multi_reduction <add>, %193, %cst_103 [1] : vector<16x16xf32> to vector<16xf32>
    %195 = vector.shape_cast %194 : vector<16xf32> to vector<16x1xf32>
    %196 = vector.broadcast %195 : vector<16x1xf32> to vector<16x16xf32>
    %197 = arith.divf %193, %196 : vector<16x16xf32>
    %cst_104 = arith.constant dense<0.000000e+00> : vector<16x8xf32>
    %198 = tpu.matmul %197, %183, %cst_104 {dimension_numbers = #tpu.dot_dimension_numbers<[1], [0], [0], [1], [0, 0, 1, 1], [], []>} : vector<16x16xf32>, vector<16x8xf32>, vector<16x8xf32> -> vector<16x8xf32>
    %199 = vector.extract_strided_slice %156 {offsets = [8, 0], sizes = [8, 32], strides = [1, 1]} : vector<32x32xf32> to vector<8x32xf32>
    %cst_105 = arith.constant dense<0.000000e+00> : vector<16x32xf32>
    %200 = tpu.matmul %198, %199, %cst_105 {dimension_numbers = #tpu.dot_dimension_numbers<[1], [0], [0], [1], [0, 0, 1, 1], [], []>} : vector<16x8xf32>, vector<8x32xf32>, vector<16x32xf32> -> vector<16x32xf32>
    %201 = arith.addf %180, %200 : vector<16x32xf32>
    %202 = vector.extract_strided_slice %157 {offsets = [0, 16], sizes = [16, 8], strides = [1, 1]} : vector<16x96xf32> to vector<16x8xf32>
    %203 = vector.extract_strided_slice %157 {offsets = [0, 48], sizes = [16, 8], strides = [1, 1]} : vector<16x96xf32> to vector<16x8xf32>
    %204 = vector.extract_strided_slice %157 {offsets = [0, 80], sizes = [16, 8], strides = [1, 1]} : vector<16x96xf32> to vector<16x8xf32>
    %cst_106 = arith.constant dense<0.000000e+00> : vector<16x16xf32>
    %205 = tpu.matmul %202, %203, %cst_106 {dimension_numbers = #tpu.dot_dimension_numbers<[1], [1], [0], [0], [0, 0, 1, 0], [], []>} : vector<16x8xf32>, vector<16x8xf32>, vector<16x16xf32> -> vector<16x16xf32>
    %cst_107 = arith.constant 0.353553385 : f32
    %206 = vector.broadcast %cst_107 : f32 to vector<16x16xf32>
    %207 = arith.mulf %205, %206 : vector<16x16xf32>
    %208 = vector.broadcast %158 : vector<1x16xf32> to vector<16x16xf32>
    %209 = arith.addf %207, %208 : vector<16x16xf32>
    %cst_108 = arith.constant dense<0xFF800000> : vector<16xf32>
    %210 = vector.multi_reduction <maximumf>, %209, %cst_108 [1] : vector<16x16xf32> to vector<16xf32>
    %211 = vector.shape_cast %210 : vector<16xf32> to vector<16x1xf32>
    %212 = vector.broadcast %211 : vector<16x1xf32> to vector<16x16xf32>
    %213 = arith.subf %209, %212 : vector<16x16xf32>
    %214 = math.exp %213 : vector<16x16xf32>
    %cst_109 = arith.constant dense<0.000000e+00> : vector<16xf32>
    %215 = vector.multi_reduction <add>, %214, %cst_109 [1] : vector<16x16xf32> to vector<16xf32>
    %216 = vector.shape_cast %215 : vector<16xf32> to vector<16x1xf32>
    %217 = vector.broadcast %216 : vector<16x1xf32> to vector<16x16xf32>
    %218 = arith.divf %214, %217 : vector<16x16xf32>
    %cst_110 = arith.constant dense<0.000000e+00> : vector<16x8xf32>
    %219 = tpu.matmul %218, %204, %cst_110 {dimension_numbers = #tpu.dot_dimension_numbers<[1], [0], [0], [1], [0, 0, 1, 1], [], []>} : vector<16x16xf32>, vector<16x8xf32>, vector<16x8xf32> -> vector<16x8xf32>
    %220 = vector.extract_strided_slice %156 {offsets = [16, 0], sizes = [8, 32], strides = [1, 1]} : vector<32x32xf32> to vector<8x32xf32>
    %cst_111 = arith.constant dense<0.000000e+00> : vector<16x32xf32>
    %221 = tpu.matmul %219, %220, %cst_111 {dimension_numbers = #tpu.dot_dimension_numbers<[1], [0], [0], [1], [0, 0, 1, 1], [], []>} : vector<16x8xf32>, vector<8x32xf32>, vector<16x32xf32> -> vector<16x32xf32>
    %222 = arith.addf %201, %221 : vector<16x32xf32>
    %223 = vector.extract_strided_slice %157 {offsets = [0, 24], sizes = [16, 8], strides = [1, 1]} : vector<16x96xf32> to vector<16x8xf32>
    %224 = vector.extract_strided_slice %157 {offsets = [0, 56], sizes = [16, 8], strides = [1, 1]} : vector<16x96xf32> to vector<16x8xf32>
    %225 = vector.extract_strided_slice %157 {offsets = [0, 88], sizes = [16, 8], strides = [1, 1]} : vector<16x96xf32> to vector<16x8xf32>
    %cst_112 = arith.constant dense<0.000000e+00> : vector<16x16xf32>
    %226 = tpu.matmul %223, %224, %cst_112 {dimension_numbers = #tpu.dot_dimension_numbers<[1], [1], [0], [0], [0, 0, 1, 0], [], []>} : vector<16x8xf32>, vector<16x8xf32>, vector<16x16xf32> -> vector<16x16xf32>
    %cst_113 = arith.constant 0.353553385 : f32
    %227 = vector.broadcast %cst_113 : f32 to vector<16x16xf32>
    %228 = arith.mulf %226, %227 : vector<16x16xf32>
    %229 = vector.broadcast %158 : vector<1x16xf32> to vector<16x16xf32>
    %230 = arith.addf %228, %229 : vector<16x16xf32>
    %cst_114 = arith.constant dense<0xFF800000> : vector<16xf32>
    %231 = vector.multi_reduction <maximumf>, %230, %cst_114 [1] : vector<16x16xf32> to vector<16xf32>
    %232 = vector.shape_cast %231 : vector<16xf32> to vector<16x1xf32>
    %233 = vector.broadcast %232 : vector<16x1xf32> to vector<16x16xf32>
    %234 = arith.subf %230, %233 : vector<16x16xf32>
    %235 = math.exp %234 : vector<16x16xf32>
    %cst_115 = arith.constant dense<0.000000e+00> : vector<16xf32>
    %236 = vector.multi_reduction <add>, %235, %cst_115 [1] : vector<16x16xf32> to vector<16xf32>
    %237 = vector.shape_cast %236 : vector<16xf32> to vector<16x1xf32>
    %238 = vector.broadcast %237 : vector<16x1xf32> to vector<16x16xf32>
    %239 = arith.divf %235, %238 : vector<16x16xf32>
    %cst_116 = arith.constant dense<0.000000e+00> : vector<16x8xf32>
    %240 = tpu.matmul %239, %225, %cst_116 {dimension_numbers = #tpu.dot_dimension_numbers<[1], [0], [0], [1], [0, 0, 1, 1], [], []>} : vector<16x16xf32>, vector<16x8xf32>, vector<16x8xf32> -> vector<16x8xf32>
    %241 = vector.extract_strided_slice %156 {offsets = [24, 0], sizes = [8, 32], strides = [1, 1]} : vector<32x32xf32> to vector<8x32xf32>
    %cst_117 = arith.constant dense<0.000000e+00> : vector<16x32xf32>
    %242 = tpu.matmul %240, %241, %cst_117 {dimension_numbers = #tpu.dot_dimension_numbers<[1], [0], [0], [1], [0, 0, 1, 1], [], []>} : vector<16x8xf32>, vector<8x32xf32>, vector<16x32xf32> -> vector<16x32xf32>
    %243 = arith.addf %222, %242 : vector<16x32xf32>
    %244 = vector.extract_strided_slice %154 {offsets = [16, 0], sizes = [16, 96], strides = [1, 1]} : vector<32x96xf32> to vector<16x96xf32>
    %245 = vector.extract_strided_slice %4 {offsets = [1, 0], sizes = [1, 16], strides = [1, 1]} : vector<2x16xf32> to vector<1x16xf32>
    %cst_118 = arith.constant 0.000000e+00 : f32
    %246 = vector.broadcast %cst_118 : f32 to vector<16x32xf32>
    %247 = vector.extract_strided_slice %244 {offsets = [0, 0], sizes = [16, 8], strides = [1, 1]} : vector<16x96xf32> to vector<16x8xf32>
    %248 = vector.extract_strided_slice %244 {offsets = [0, 32], sizes = [16, 8], strides = [1, 1]} : vector<16x96xf32> to vector<16x8xf32>
    %249 = vector.extract_strided_slice %244 {offsets = [0, 64], sizes = [16, 8], strides = [1, 1]} : vector<16x96xf32> to vector<16x8xf32>
    %cst_119 = arith.constant dense<0.000000e+00> : vector<16x16xf32>
    %250 = tpu.matmul %247, %248, %cst_119 {dimension_numbers = #tpu.dot_dimension_numbers<[1], [1], [0], [0], [0, 0, 1, 0], [], []>} : vector<16x8xf32>, vector<16x8xf32>, vector<16x16xf32> -> vector<16x16xf32>
    %cst_120 = arith.constant 0.353553385 : f32
    %251 = vector.broadcast %cst_120 : f32 to vector<16x16xf32>
    %252 = arith.mulf %250, %251 : vector<16x16xf32>
    %253 = vector.broadcast %245 : vector<1x16xf32> to vector<16x16xf32>
    %254 = arith.addf %252, %253 : vector<16x16xf32>
    %cst_121 = arith.constant dense<0xFF800000> : vector<16xf32>
    %255 = vector.multi_reduction <maximumf>, %254, %cst_121 [1] : vector<16x16xf32> to vector<16xf32>
    %256 = vector.shape_cast %255 : vector<16xf32> to vector<16x1xf32>
    %257 = vector.broadcast %256 : vector<16x1xf32> to vector<16x16xf32>
    %258 = arith.subf %254, %257 : vector<16x16xf32>
    %259 = math.exp %258 : vector<16x16xf32>
    %cst_122 = arith.constant dense<0.000000e+00> : vector<16xf32>
    %260 = vector.multi_reduction <add>, %259, %cst_122 [1] : vector<16x16xf32> to vector<16xf32>
    %261 = vector.shape_cast %260 : vector<16xf32> to vector<16x1xf32>
    %262 = vector.broadcast %261 : vector<16x1xf32> to vector<16x16xf32>
    %263 = arith.divf %259, %262 : vector<16x16xf32>
    %cst_123 = arith.constant dense<0.000000e+00> : vector<16x8xf32>
    %264 = tpu.matmul %263, %249, %cst_123 {dimension_numbers = #tpu.dot_dimension_numbers<[1], [0], [0], [1], [0, 0, 1, 1], [], []>} : vector<16x16xf32>, vector<16x8xf32>, vector<16x8xf32> -> vector<16x8xf32>
    %265 = vector.extract_strided_slice %156 {offsets = [0, 0], sizes = [8, 32], strides = [1, 1]} : vector<32x32xf32> to vector<8x32xf32>
    %cst_124 = arith.constant dense<0.000000e+00> : vector<16x32xf32>
    %266 = tpu.matmul %264, %265, %cst_124 {dimension_numbers = #tpu.dot_dimension_numbers<[1], [0], [0], [1], [0, 0, 1, 1], [], []>} : vector<16x8xf32>, vector<8x32xf32>, vector<16x32xf32> -> vector<16x32xf32>
    %267 = arith.addf %246, %266 : vector<16x32xf32>
    %268 = vector.extract_strided_slice %244 {offsets = [0, 8], sizes = [16, 8], strides = [1, 1]} : vector<16x96xf32> to vector<16x8xf32>
    %269 = vector.extract_strided_slice %244 {offsets = [0, 40], sizes = [16, 8], strides = [1, 1]} : vector<16x96xf32> to vector<16x8xf32>
    %270 = vector.extract_strided_slice %244 {offsets = [0, 72], sizes = [16, 8], strides = [1, 1]} : vector<16x96xf32> to vector<16x8xf32>
    %cst_125 = arith.constant dense<0.000000e+00> : vector<16x16xf32>
    %271 = tpu.matmul %268, %269, %cst_125 {dimension_numbers = #tpu.dot_dimension_numbers<[1], [1], [0], [0], [0, 0, 1, 0], [], []>} : vector<16x8xf32>, vector<16x8xf32>, vector<16x16xf32> -> vector<16x16xf32>
    %cst_126 = arith.constant 0.353553385 : f32
    %272 = vector.broadcast %cst_126 : f32 to vector<16x16xf32>
    %273 = arith.mulf %271, %272 : vector<16x16xf32>
    %274 = vector.broadcast %245 : vector<1x16xf32> to vector<16x16xf32>
    %275 = arith.addf %273, %274 : vector<16x16xf32>
    %cst_127 = arith.constant dense<0xFF800000> : vector<16xf32>
    %276 = vector.multi_reduction <maximumf>, %275, %cst_127 [1] : vector<16x16xf32> to vector<16xf32>
    %277 = vector.shape_cast %276 : vector<16xf32> to vector<16x1xf32>
    %278 = vector.broadcast %277 : vector<16x1xf32> to vector<16x16xf32>
    %279 = arith.subf %275, %278 : vector<16x16xf32>
    %280 = math.exp %279 : vector<16x16xf32>
    %cst_128 = arith.constant dense<0.000000e+00> : vector<16xf32>
    %281 = vector.multi_reduction <add>, %280, %cst_128 [1] : vector<16x16xf32> to vector<16xf32>
    %282 = vector.shape_cast %281 : vector<16xf32> to vector<16x1xf32>
    %283 = vector.broadcast %282 : vector<16x1xf32> to vector<16x16xf32>
    %284 = arith.divf %280, %283 : vector<16x16xf32>
    %cst_129 = arith.constant dense<0.000000e+00> : vector<16x8xf32>
    %285 = tpu.matmul %284, %270, %cst_129 {dimension_numbers = #tpu.dot_dimension_numbers<[1], [0], [0], [1], [0, 0, 1, 1], [], []>} : vector<16x16xf32>, vector<16x8xf32>, vector<16x8xf32> -> vector<16x8xf32>
    %286 = vector.extract_strided_slice %156 {offsets = [8, 0], sizes = [8, 32], strides = [1, 1]} : vector<32x32xf32> to vector<8x32xf32>
    %cst_130 = arith.constant dense<0.000000e+00> : vector<16x32xf32>
    %287 = tpu.matmul %285, %286, %cst_130 {dimension_numbers = #tpu.dot_dimension_numbers<[1], [0], [0], [1], [0, 0, 1, 1], [], []>} : vector<16x8xf32>, vector<8x32xf32>, vector<16x32xf32> -> vector<16x32xf32>
    %288 = arith.addf %267, %287 : vector<16x32xf32>
    %289 = vector.extract_strided_slice %244 {offsets = [0, 16], sizes = [16, 8], strides = [1, 1]} : vector<16x96xf32> to vector<16x8xf32>
    %290 = vector.extract_strided_slice %244 {offsets = [0, 48], sizes = [16, 8], strides = [1, 1]} : vector<16x96xf32> to vector<16x8xf32>
    %291 = vector.extract_strided_slice %244 {offsets = [0, 80], sizes = [16, 8], strides = [1, 1]} : vector<16x96xf32> to vector<16x8xf32>
    %cst_131 = arith.constant dense<0.000000e+00> : vector<16x16xf32>
    %292 = tpu.matmul %289, %290, %cst_131 {dimension_numbers = #tpu.dot_dimension_numbers<[1], [1], [0], [0], [0, 0, 1, 0], [], []>} : vector<16x8xf32>, vector<16x8xf32>, vector<16x16xf32> -> vector<16x16xf32>
    %cst_132 = arith.constant 0.353553385 : f32
    %293 = vector.broadcast %cst_132 : f32 to vector<16x16xf32>
    %294 = arith.mulf %292, %293 : vector<16x16xf32>
    %295 = vector.broadcast %245 : vector<1x16xf32> to vector<16x16xf32>
    %296 = arith.addf %294, %295 : vector<16x16xf32>
    %cst_133 = arith.constant dense<0xFF800000> : vector<16xf32>
    %297 = vector.multi_reduction <maximumf>, %296, %cst_133 [1] : vector<16x16xf32> to vector<16xf32>
    %298 = vector.shape_cast %297 : vector<16xf32> to vector<16x1xf32>
    %299 = vector.broadcast %298 : vector<16x1xf32> to vector<16x16xf32>
    %300 = arith.subf %296, %299 : vector<16x16xf32>
    %301 = math.exp %300 : vector<16x16xf32>
    %cst_134 = arith.constant dense<0.000000e+00> : vector<16xf32>
    %302 = vector.multi_reduction <add>, %301, %cst_134 [1] : vector<16x16xf32> to vector<16xf32>
    %303 = vector.shape_cast %302 : vector<16xf32> to vector<16x1xf32>
    %304 = vector.broadcast %303 : vector<16x1xf32> to vector<16x16xf32>
    %305 = arith.divf %301, %304 : vector<16x16xf32>
    %cst_135 = arith.constant dense<0.000000e+00> : vector<16x8xf32>
    %306 = tpu.matmul %305, %291, %cst_135 {dimension_numbers = #tpu.dot_dimension_numbers<[1], [0], [0], [1], [0, 0, 1, 1], [], []>} : vector<16x16xf32>, vector<16x8xf32>, vector<16x8xf32> -> vector<16x8xf32>
    %307 = vector.extract_strided_slice %156 {offsets = [16, 0], sizes = [8, 32], strides = [1, 1]} : vector<32x32xf32> to vector<8x32xf32>
    %cst_136 = arith.constant dense<0.000000e+00> : vector<16x32xf32>
    %308 = tpu.matmul %306, %307, %cst_136 {dimension_numbers = #tpu.dot_dimension_numbers<[1], [0], [0], [1], [0, 0, 1, 1], [], []>} : vector<16x8xf32>, vector<8x32xf32>, vector<16x32xf32> -> vector<16x32xf32>
    %309 = arith.addf %288, %308 : vector<16x32xf32>
    %310 = vector.extract_strided_slice %244 {offsets = [0, 24], sizes = [16, 8], strides = [1, 1]} : vector<16x96xf32> to vector<16x8xf32>
    %311 = vector.extract_strided_slice %244 {offsets = [0, 56], sizes = [16, 8], strides = [1, 1]} : vector<16x96xf32> to vector<16x8xf32>
    %312 = vector.extract_strided_slice %244 {offsets = [0, 88], sizes = [16, 8], strides = [1, 1]} : vector<16x96xf32> to vector<16x8xf32>
    %cst_137 = arith.constant dense<0.000000e+00> : vector<16x16xf32>
    %313 = tpu.matmul %310, %311, %cst_137 {dimension_numbers = #tpu.dot_dimension_numbers<[1], [1], [0], [0], [0, 0, 1, 0], [], []>} : vector<16x8xf32>, vector<16x8xf32>, vector<16x16xf32> -> vector<16x16xf32>
    %cst_138 = arith.constant 0.353553385 : f32
    %314 = vector.broadcast %cst_138 : f32 to vector<16x16xf32>
    %315 = arith.mulf %313, %314 : vector<16x16xf32>
    %316 = vector.broadcast %245 : vector<1x16xf32> to vector<16x16xf32>
    %317 = arith.addf %315, %316 : vector<16x16xf32>
    %cst_139 = arith.constant dense<0xFF800000> : vector<16xf32>
    %318 = vector.multi_reduction <maximumf>, %317, %cst_139 [1] : vector<16x16xf32> to vector<16xf32>
    %319 = vector.shape_cast %318 : vector<16xf32> to vector<16x1xf32>
    %320 = vector.broadcast %319 : vector<16x1xf32> to vector<16x16xf32>
    %321 = arith.subf %317, %320 : vector<16x16xf32>
    %322 = math.exp %321 : vector<16x16xf32>
    %cst_140 = arith.constant dense<0.000000e+00> : vector<16xf32>
    %323 = vector.multi_reduction <add>, %322, %cst_140 [1] : vector<16x16xf32> to vector<16xf32>
    %324 = vector.shape_cast %323 : vector<16xf32> to vector<16x1xf32>
    %325 = vector.broadcast %324 : vector<16x1xf32> to vector<16x16xf32>
    %326 = arith.divf %322, %325 : vector<16x16xf32>
    %cst_141 = arith.constant dense<0.000000e+00> : vector<16x8xf32>
    %327 = tpu.matmul %326, %312, %cst_141 {dimension_numbers = #tpu.dot_dimension_numbers<[1], [0], [0], [1], [0, 0, 1, 1], [], []>} : vector<16x16xf32>, vector<16x8xf32>, vector<16x8xf32> -> vector<16x8xf32>
    %328 = vector.extract_strided_slice %156 {offsets = [24, 0], sizes = [8, 32], strides = [1, 1]} : vector<32x32xf32> to vector<8x32xf32>
    %cst_142 = arith.constant dense<0.000000e+00> : vector<16x32xf32>
    %329 = tpu.matmul %327, %328, %cst_142 {dimension_numbers = #tpu.dot_dimension_numbers<[1], [0], [0], [1], [0, 0, 1, 1], [], []>} : vector<16x8xf32>, vector<8x32xf32>, vector<16x32xf32> -> vector<16x32xf32>
    %330 = arith.addf %309, %329 : vector<16x32xf32>
    %331 = tpu.concatenate %243, %330 in 0 : vector<16x32xf32>, vector<16x32xf32> -> vector<32x32xf32>
    %c0_143 = arith.constant 0 : index
    %c0_144 = arith.constant 0 : index
    %332 = vector.load %arg15[%c0_143, %c0_144] : memref<2x32xf32, #tpu.memory_space<vmem>>, vector<1x32xf32>
    %333 = vector.broadcast %332 : vector<1x32xf32> to vector<32x32xf32>
    %334 = arith.addf %331, %333 : vector<32x32xf32>
    %335 = arith.addf %148, %334 : vector<32x32xf32>
    %c0_145 = arith.constant 0 : index
    %c0_146 = arith.constant 0 : index
    %336 = vector.load %arg20[%c0_145, %c0_146] : memref<2x32xf32, #tpu.memory_space<vmem>>, vector<1x32xf32>
    %c0_147 = arith.constant 0 : index
    %c0_148 = arith.constant 0 : index
    %337 = vector.load %arg21[%c0_147, %c0_148] : memref<2x32xf32, #tpu.memory_space<vmem>>, vector<1x32xf32>
    %cst_149 = arith.constant dense<0.000000e+00> : vector<32xf32>
    %338 = vector.multi_reduction <add>, %335, %cst_149 [1] : vector<32x32xf32> to vector<32xf32>
    %339 = vector.shape_cast %338 : vector<32xf32> to vector<32x1xf32>
    %cst_150 = arith.constant 3.200000e+01 : f32
    %340 = vector.broadcast %cst_150 : f32 to vector<32x1xf32>
    %341 = arith.divf %339, %340 : vector<32x1xf32>
    %342 = vector.broadcast %341 : vector<32x1xf32> to vector<32x32xf32>
    %343 = arith.subf %335, %342 : vector<32x32xf32>
    %344 = arith.mulf %343, %343 : vector<32x32xf32>
    %cst_151 = arith.constant dense<0.000000e+00> : vector<32xf32>
    %345 = vector.multi_reduction <add>, %344, %cst_151 [1] : vector<32x32xf32> to vector<32xf32>
    %346 = vector.shape_cast %345 : vector<32xf32> to vector<32x1xf32>
    %cst_152 = arith.constant 3.200000e+01 : f32
    %347 = vector.broadcast %cst_152 : f32 to vector<32x1xf32>
    %348 = arith.divf %346, %347 : vector<32x1xf32>
    %cst_153 = arith.constant 9.99999974E-6 : f32
    %349 = vector.broadcast %cst_153 : f32 to vector<32x1xf32>
    %350 = arith.addf %348, %349 : vector<32x1xf32>
    %351 = math.rsqrt %350 : vector<32x1xf32>
    %352 = vector.broadcast %351 : vector<32x1xf32> to vector<32x32xf32>
    %353 = arith.mulf %343, %352 : vector<32x32xf32>
    %354 = vector.broadcast %336 : vector<1x32xf32> to vector<32x32xf32>
    %355 = arith.mulf %353, %354 : vector<32x32xf32>
    %356 = vector.broadcast %337 : vector<1x32xf32> to vector<32x32xf32>
    %357 = arith.addf %355, %356 : vector<32x32xf32>
    %c0_154 = arith.constant 0 : index
    %c0_155 = arith.constant 0 : index
    %c0_156 = arith.constant 0 : index
    %358 = vector.load %arg16[%c0_154, %c0_155, %c0_156] : memref<2x32x32xf32, #tpu.memory_space<vmem>>, vector<1x32x32xf32>
    %359 = vector.shape_cast %358 : vector<1x32x32xf32> to vector<32x32xf32>
    %cst_157 = arith.constant dense<0.000000e+00> : vector<32x32xf32>
    %360 = tpu.matmul %357, %359, %cst_157 {dimension_numbers = #tpu.dot_dimension_numbers<[1], [0], [0], [1], [0, 0, 1, 1], [], []>} : vector<32x32xf32>, vector<32x32xf32>, vector<32x32xf32> -> vector<32x32xf32>
    %c0_158 = arith.constant 0 : index
    %c0_159 = arith.constant 0 : index
    %361 = vector.load %arg17[%c0_158, %c0_159] : memref<2x32xf32, #tpu.memory_space<vmem>>, vector<1x32xf32>
    %362 = vector.broadcast %361 : vector<1x32xf32> to vector<32x32xf32>
    %363 = arith.addf %360, %362 : vector<32x32xf32>
    %cst_160 = arith.constant 0.000000e+00 : f32
    %364 = vector.broadcast %cst_160 : f32 to vector<32x32xf32>
    %365 = arith.maximumf %363, %364 : vector<32x32xf32>
    %c0_161 = arith.constant 0 : index
    %c0_162 = arith.constant 0 : index
    %c0_163 = arith.constant 0 : index
    %366 = vector.load %arg18[%c0_161, %c0_162, %c0_163] : memref<2x32x32xf32, #tpu.memory_space<vmem>>, vector<1x32x32xf32>
    %367 = vector.shape_cast %366 : vector<1x32x32xf32> to vector<32x32xf32>
    %cst_164 = arith.constant dense<0.000000e+00> : vector<32x32xf32>
    %368 = tpu.matmul %365, %367, %cst_164 {dimension_numbers = #tpu.dot_dimension_numbers<[1], [0], [0], [1], [0, 0, 1, 1], [], []>} : vector<32x32xf32>, vector<32x32xf32>, vector<32x32xf32> -> vector<32x32xf32>
    %c0_165 = arith.constant 0 : index
    %c0_166 = arith.constant 0 : index
    %369 = vector.load %arg19[%c0_165, %c0_166] : memref<2x32xf32, #tpu.memory_space<vmem>>, vector<1x32xf32>
    %370 = vector.broadcast %369 : vector<1x32xf32> to vector<32x32xf32>
    %371 = arith.addf %368, %370 : vector<32x32xf32>
    %372 = arith.addf %357, %371 : vector<32x32xf32>
    %c0_167 = arith.constant 0 : index
    %c0_168 = arith.constant 0 : index
    %373 = vector.load %arg22[%c0_167, %c0_168] : memref<2x32xf32, #tpu.memory_space<vmem>>, vector<1x32xf32>
    %c0_169 = arith.constant 0 : index
    %c0_170 = arith.constant 0 : index
    %374 = vector.load %arg23[%c0_169, %c0_170] : memref<2x32xf32, #tpu.memory_space<vmem>>, vector<1x32xf32>
    %cst_171 = arith.constant dense<0.000000e+00> : vector<32xf32>
    %375 = vector.multi_reduction <add>, %372, %cst_171 [1] : vector<32x32xf32> to vector<32xf32>
    %376 = vector.shape_cast %375 : vector<32xf32> to vector<32x1xf32>
    %cst_172 = arith.constant 3.200000e+01 : f32
    %377 = vector.broadcast %cst_172 : f32 to vector<32x1xf32>
    %378 = arith.divf %376, %377 : vector<32x1xf32>
    %379 = vector.broadcast %378 : vector<32x1xf32> to vector<32x32xf32>
    %380 = arith.subf %372, %379 : vector<32x32xf32>
    %381 = arith.mulf %380, %380 : vector<32x32xf32>
    %cst_173 = arith.constant dense<0.000000e+00> : vector<32xf32>
    %382 = vector.multi_reduction <add>, %381, %cst_173 [1] : vector<32x32xf32> to vector<32xf32>
    %383 = vector.shape_cast %382 : vector<32xf32> to vector<32x1xf32>
    %cst_174 = arith.constant 3.200000e+01 : f32
    %384 = vector.broadcast %cst_174 : f32 to vector<32x1xf32>
    %385 = arith.divf %383, %384 : vector<32x1xf32>
    %cst_175 = arith.constant 9.99999974E-6 : f32
    %386 = vector.broadcast %cst_175 : f32 to vector<32x1xf32>
    %387 = arith.addf %385, %386 : vector<32x1xf32>
    %388 = math.rsqrt %387 : vector<32x1xf32>
    %389 = vector.broadcast %388 : vector<32x1xf32> to vector<32x32xf32>
    %390 = arith.mulf %380, %389 : vector<32x32xf32>
    %391 = vector.broadcast %373 : vector<1x32xf32> to vector<32x32xf32>
    %392 = arith.mulf %390, %391 : vector<32x32xf32>
    %393 = vector.broadcast %374 : vector<1x32xf32> to vector<32x32xf32>
    %394 = arith.addf %392, %393 : vector<32x32xf32>
    %395 = arith.addf %11, %394 : vector<32x32xf32>
    %c3 = arith.constant 3 : index
    %c0_176 = arith.constant 0 : index
    %c0_177 = arith.constant 0 : index
    %396 = vector.load %arg8[%c3, %c0_176, %c0_177] : memref<6x96x32xf32, #tpu.memory_space<vmem>>, vector<1x96x32xf32>
    %397 = vector.shape_cast %396 : vector<1x96x32xf32> to vector<96x32xf32>
    %c3_178 = arith.constant 3 : index
    %c0_179 = arith.constant 0 : index
    %398 = vector.load %arg9[%c3_178, %c0_179] : memref<6x32xf32, #tpu.memory_space<vmem>>, vector<1x32xf32>
    %cst_180 = arith.constant dense<0.000000e+00> : vector<32x32xf32>
    %399 = tpu.matmul %0, %394, %cst_180 {dimension_numbers = #tpu.dot_dimension_numbers<[1], [0], [0], [1], [0, 0, 1, 1], [], []>} : vector<32x32xf32>, vector<32x32xf32>, vector<32x32xf32> -> vector<32x32xf32>
    %cst_181 = arith.constant dense<0.000000e+00> : vector<32x32xf32>
    %400 = tpu.matmul %1, %394, %cst_181 {dimension_numbers = #tpu.dot_dimension_numbers<[1], [0], [0], [1], [0, 0, 1, 1], [], []>} : vector<32x32xf32>, vector<32x32xf32>, vector<32x32xf32> -> vector<32x32xf32>
    %401 = vector.extract_strided_slice %397 {offsets = [0, 0], sizes = [32, 32], strides = [1, 1]} : vector<96x32xf32> to vector<32x32xf32>
    %cst_182 = arith.constant dense<0.000000e+00> : vector<32x32xf32>
    %402 = tpu.matmul %399, %401, %cst_182 {dimension_numbers = #tpu.dot_dimension_numbers<[1], [0], [0], [1], [0, 0, 1, 1], [], []>} : vector<32x32xf32>, vector<32x32xf32>, vector<32x32xf32> -> vector<32x32xf32>
    %403 = vector.extract_strided_slice %397 {offsets = [32, 0], sizes = [32, 32], strides = [1, 1]} : vector<96x32xf32> to vector<32x32xf32>
    %cst_183 = arith.constant dense<0.000000e+00> : vector<32x32xf32>
    %404 = tpu.matmul %394, %403, %cst_183 {dimension_numbers = #tpu.dot_dimension_numbers<[1], [0], [0], [1], [0, 0, 1, 1], [], []>} : vector<32x32xf32>, vector<32x32xf32>, vector<32x32xf32> -> vector<32x32xf32>
    %405 = arith.addf %402, %404 : vector<32x32xf32>
    %406 = vector.extract_strided_slice %397 {offsets = [64, 0], sizes = [32, 32], strides = [1, 1]} : vector<96x32xf32> to vector<32x32xf32>
    %cst_184 = arith.constant dense<0.000000e+00> : vector<32x32xf32>
    %407 = tpu.matmul %400, %406, %cst_184 {dimension_numbers = #tpu.dot_dimension_numbers<[1], [0], [0], [1], [0, 0, 1, 1], [], []>} : vector<32x32xf32>, vector<32x32xf32>, vector<32x32xf32> -> vector<32x32xf32>
    %408 = arith.addf %405, %407 : vector<32x32xf32>
    %409 = vector.broadcast %398 : vector<1x32xf32> to vector<32x32xf32>
    %410 = arith.addf %408, %409 : vector<32x32xf32>
    %cst_185 = arith.constant dense<0.000000e+00> : vector<32x32xf32>
    %411 = tpu.matmul %2, %410, %cst_185 {dimension_numbers = #tpu.dot_dimension_numbers<[1], [0], [0], [1], [0, 0, 1, 1], [], []>} : vector<32x32xf32>, vector<32x32xf32>, vector<32x32xf32> -> vector<32x32xf32>
    %cst_186 = arith.constant dense<0.000000e+00> : vector<32x32xf32>
    %412 = tpu.matmul %411, %3, %cst_186 {dimension_numbers = #tpu.dot_dimension_numbers<[1], [0], [0], [1], [0, 0, 1, 1], [], []>} : vector<32x32xf32>, vector<32x32xf32>, vector<32x32xf32> -> vector<32x32xf32>
    %413 = arith.subf %410, %412 : vector<32x32xf32>
    %414 = arith.mulf %413, %413 : vector<32x32xf32>
    %cst_187 = arith.constant dense<0.000000e+00> : vector<32x32xf32>
    %415 = tpu.matmul %2, %414, %cst_187 {dimension_numbers = #tpu.dot_dimension_numbers<[1], [0], [0], [1], [0, 0, 1, 1], [], []>} : vector<32x32xf32>, vector<32x32xf32>, vector<32x32xf32> -> vector<32x32xf32>
    %cst_188 = arith.constant dense<0.000000e+00> : vector<32x32xf32>
    %416 = tpu.matmul %415, %3, %cst_188 {dimension_numbers = #tpu.dot_dimension_numbers<[1], [0], [0], [1], [0, 0, 1, 1], [], []>} : vector<32x32xf32>, vector<32x32xf32>, vector<32x32xf32> -> vector<32x32xf32>
    %cst_189 = arith.constant 9.99999974E-6 : f32
    %417 = vector.broadcast %cst_189 : f32 to vector<32x32xf32>
    %418 = arith.addf %416, %417 : vector<32x32xf32>
    %419 = math.rsqrt %418 : vector<32x32xf32>
    %420 = arith.mulf %413, %419 : vector<32x32xf32>
    %c3_190 = arith.constant 3 : index
    %c0_191 = arith.constant 0 : index
    %421 = vector.load %arg10[%c3_190, %c0_191] : memref<6x32xf32, #tpu.memory_space<vmem>>, vector<1x32xf32>
    %422 = vector.broadcast %421 : vector<1x32xf32> to vector<32x32xf32>
    %423 = arith.mulf %420, %422 : vector<32x32xf32>
    %c3_192 = arith.constant 3 : index
    %c0_193 = arith.constant 0 : index
    %424 = vector.load %arg11[%c3_192, %c0_193] : memref<6x32xf32, #tpu.memory_space<vmem>>, vector<1x32xf32>
    %425 = vector.broadcast %424 : vector<1x32xf32> to vector<32x32xf32>
    %426 = arith.addf %423, %425 : vector<32x32xf32>
    %cst_194 = arith.constant 5.000000e-01 : f32
    %427 = vector.broadcast %cst_194 : f32 to vector<32x32xf32>
    %428 = arith.mulf %427, %426 : vector<32x32xf32>
    %429 = arith.mulf %426, %426 : vector<32x32xf32>
    %430 = arith.mulf %429, %426 : vector<32x32xf32>
    %cst_195 = arith.constant 4.471500e-02 : f32
    %431 = vector.broadcast %cst_195 : f32 to vector<32x32xf32>
    %432 = arith.mulf %431, %430 : vector<32x32xf32>
    %433 = arith.addf %426, %432 : vector<32x32xf32>
    %cst_196 = arith.constant 0.797884583 : f32
    %434 = vector.broadcast %cst_196 : f32 to vector<32x32xf32>
    %435 = arith.mulf %434, %433 : vector<32x32xf32>
    %436 = math.tanh %435 : vector<32x32xf32>
    %cst_197 = arith.constant 1.000000e+00 : f32
    %437 = vector.broadcast %cst_197 : f32 to vector<32x32xf32>
    %438 = arith.addf %437, %436 : vector<32x32xf32>
    %439 = arith.mulf %428, %438 : vector<32x32xf32>
    %440 = arith.addf %439, %394 : vector<32x32xf32>
    %c4 = arith.constant 4 : index
    %c0_198 = arith.constant 0 : index
    %c0_199 = arith.constant 0 : index
    %441 = vector.load %arg8[%c4, %c0_198, %c0_199] : memref<6x96x32xf32, #tpu.memory_space<vmem>>, vector<1x96x32xf32>
    %442 = vector.shape_cast %441 : vector<1x96x32xf32> to vector<96x32xf32>
    %c4_200 = arith.constant 4 : index
    %c0_201 = arith.constant 0 : index
    %443 = vector.load %arg9[%c4_200, %c0_201] : memref<6x32xf32, #tpu.memory_space<vmem>>, vector<1x32xf32>
    %cst_202 = arith.constant dense<0.000000e+00> : vector<32x32xf32>
    %444 = tpu.matmul %0, %440, %cst_202 {dimension_numbers = #tpu.dot_dimension_numbers<[1], [0], [0], [1], [0, 0, 1, 1], [], []>} : vector<32x32xf32>, vector<32x32xf32>, vector<32x32xf32> -> vector<32x32xf32>
    %cst_203 = arith.constant dense<0.000000e+00> : vector<32x32xf32>
    %445 = tpu.matmul %1, %440, %cst_203 {dimension_numbers = #tpu.dot_dimension_numbers<[1], [0], [0], [1], [0, 0, 1, 1], [], []>} : vector<32x32xf32>, vector<32x32xf32>, vector<32x32xf32> -> vector<32x32xf32>
    %446 = vector.extract_strided_slice %442 {offsets = [0, 0], sizes = [32, 32], strides = [1, 1]} : vector<96x32xf32> to vector<32x32xf32>
    %cst_204 = arith.constant dense<0.000000e+00> : vector<32x32xf32>
    %447 = tpu.matmul %444, %446, %cst_204 {dimension_numbers = #tpu.dot_dimension_numbers<[1], [0], [0], [1], [0, 0, 1, 1], [], []>} : vector<32x32xf32>, vector<32x32xf32>, vector<32x32xf32> -> vector<32x32xf32>
    %448 = vector.extract_strided_slice %442 {offsets = [32, 0], sizes = [32, 32], strides = [1, 1]} : vector<96x32xf32> to vector<32x32xf32>
    %cst_205 = arith.constant dense<0.000000e+00> : vector<32x32xf32>
    %449 = tpu.matmul %440, %448, %cst_205 {dimension_numbers = #tpu.dot_dimension_numbers<[1], [0], [0], [1], [0, 0, 1, 1], [], []>} : vector<32x32xf32>, vector<32x32xf32>, vector<32x32xf32> -> vector<32x32xf32>
    %450 = arith.addf %447, %449 : vector<32x32xf32>
    %451 = vector.extract_strided_slice %442 {offsets = [64, 0], sizes = [32, 32], strides = [1, 1]} : vector<96x32xf32> to vector<32x32xf32>
    %cst_206 = arith.constant dense<0.000000e+00> : vector<32x32xf32>
    %452 = tpu.matmul %445, %451, %cst_206 {dimension_numbers = #tpu.dot_dimension_numbers<[1], [0], [0], [1], [0, 0, 1, 1], [], []>} : vector<32x32xf32>, vector<32x32xf32>, vector<32x32xf32> -> vector<32x32xf32>
    %453 = arith.addf %450, %452 : vector<32x32xf32>
    %454 = vector.broadcast %443 : vector<1x32xf32> to vector<32x32xf32>
    %455 = arith.addf %453, %454 : vector<32x32xf32>
    %cst_207 = arith.constant dense<0.000000e+00> : vector<32x32xf32>
    %456 = tpu.matmul %2, %455, %cst_207 {dimension_numbers = #tpu.dot_dimension_numbers<[1], [0], [0], [1], [0, 0, 1, 1], [], []>} : vector<32x32xf32>, vector<32x32xf32>, vector<32x32xf32> -> vector<32x32xf32>
    %cst_208 = arith.constant dense<0.000000e+00> : vector<32x32xf32>
    %457 = tpu.matmul %456, %3, %cst_208 {dimension_numbers = #tpu.dot_dimension_numbers<[1], [0], [0], [1], [0, 0, 1, 1], [], []>} : vector<32x32xf32>, vector<32x32xf32>, vector<32x32xf32> -> vector<32x32xf32>
    %458 = arith.subf %455, %457 : vector<32x32xf32>
    %459 = arith.mulf %458, %458 : vector<32x32xf32>
    %cst_209 = arith.constant dense<0.000000e+00> : vector<32x32xf32>
    %460 = tpu.matmul %2, %459, %cst_209 {dimension_numbers = #tpu.dot_dimension_numbers<[1], [0], [0], [1], [0, 0, 1, 1], [], []>} : vector<32x32xf32>, vector<32x32xf32>, vector<32x32xf32> -> vector<32x32xf32>
    %cst_210 = arith.constant dense<0.000000e+00> : vector<32x32xf32>
    %461 = tpu.matmul %460, %3, %cst_210 {dimension_numbers = #tpu.dot_dimension_numbers<[1], [0], [0], [1], [0, 0, 1, 1], [], []>} : vector<32x32xf32>, vector<32x32xf32>, vector<32x32xf32> -> vector<32x32xf32>
    %cst_211 = arith.constant 9.99999974E-6 : f32
    %462 = vector.broadcast %cst_211 : f32 to vector<32x32xf32>
    %463 = arith.addf %461, %462 : vector<32x32xf32>
    %464 = math.rsqrt %463 : vector<32x32xf32>
    %465 = arith.mulf %458, %464 : vector<32x32xf32>
    %c4_212 = arith.constant 4 : index
    %c0_213 = arith.constant 0 : index
    %466 = vector.load %arg10[%c4_212, %c0_213] : memref<6x32xf32, #tpu.memory_space<vmem>>, vector<1x32xf32>
    %467 = vector.broadcast %466 : vector<1x32xf32> to vector<32x32xf32>
    %468 = arith.mulf %465, %467 : vector<32x32xf32>
    %c4_214 = arith.constant 4 : index
    %c0_215 = arith.constant 0 : index
    %469 = vector.load %arg11[%c4_214, %c0_215] : memref<6x32xf32, #tpu.memory_space<vmem>>, vector<1x32xf32>
    %470 = vector.broadcast %469 : vector<1x32xf32> to vector<32x32xf32>
    %471 = arith.addf %468, %470 : vector<32x32xf32>
    %cst_216 = arith.constant 5.000000e-01 : f32
    %472 = vector.broadcast %cst_216 : f32 to vector<32x32xf32>
    %473 = arith.mulf %472, %471 : vector<32x32xf32>
    %474 = arith.mulf %471, %471 : vector<32x32xf32>
    %475 = arith.mulf %474, %471 : vector<32x32xf32>
    %cst_217 = arith.constant 4.471500e-02 : f32
    %476 = vector.broadcast %cst_217 : f32 to vector<32x32xf32>
    %477 = arith.mulf %476, %475 : vector<32x32xf32>
    %478 = arith.addf %471, %477 : vector<32x32xf32>
    %cst_218 = arith.constant 0.797884583 : f32
    %479 = vector.broadcast %cst_218 : f32 to vector<32x32xf32>
    %480 = arith.mulf %479, %478 : vector<32x32xf32>
    %481 = math.tanh %480 : vector<32x32xf32>
    %cst_219 = arith.constant 1.000000e+00 : f32
    %482 = vector.broadcast %cst_219 : f32 to vector<32x32xf32>
    %483 = arith.addf %482, %481 : vector<32x32xf32>
    %484 = arith.mulf %473, %483 : vector<32x32xf32>
    %485 = arith.addf %484, %440 : vector<32x32xf32>
    %c5 = arith.constant 5 : index
    %c0_220 = arith.constant 0 : index
    %c0_221 = arith.constant 0 : index
    %486 = vector.load %arg8[%c5, %c0_220, %c0_221] : memref<6x96x32xf32, #tpu.memory_space<vmem>>, vector<1x96x32xf32>
    %487 = vector.shape_cast %486 : vector<1x96x32xf32> to vector<96x32xf32>
    %c5_222 = arith.constant 5 : index
    %c0_223 = arith.constant 0 : index
    %488 = vector.load %arg9[%c5_222, %c0_223] : memref<6x32xf32, #tpu.memory_space<vmem>>, vector<1x32xf32>
    %cst_224 = arith.constant dense<0.000000e+00> : vector<32x32xf32>
    %489 = tpu.matmul %0, %485, %cst_224 {dimension_numbers = #tpu.dot_dimension_numbers<[1], [0], [0], [1], [0, 0, 1, 1], [], []>} : vector<32x32xf32>, vector<32x32xf32>, vector<32x32xf32> -> vector<32x32xf32>
    %cst_225 = arith.constant dense<0.000000e+00> : vector<32x32xf32>
    %490 = tpu.matmul %1, %485, %cst_225 {dimension_numbers = #tpu.dot_dimension_numbers<[1], [0], [0], [1], [0, 0, 1, 1], [], []>} : vector<32x32xf32>, vector<32x32xf32>, vector<32x32xf32> -> vector<32x32xf32>
    %491 = vector.extract_strided_slice %487 {offsets = [0, 0], sizes = [32, 32], strides = [1, 1]} : vector<96x32xf32> to vector<32x32xf32>
    %cst_226 = arith.constant dense<0.000000e+00> : vector<32x32xf32>
    %492 = tpu.matmul %489, %491, %cst_226 {dimension_numbers = #tpu.dot_dimension_numbers<[1], [0], [0], [1], [0, 0, 1, 1], [], []>} : vector<32x32xf32>, vector<32x32xf32>, vector<32x32xf32> -> vector<32x32xf32>
    %493 = vector.extract_strided_slice %487 {offsets = [32, 0], sizes = [32, 32], strides = [1, 1]} : vector<96x32xf32> to vector<32x32xf32>
    %cst_227 = arith.constant dense<0.000000e+00> : vector<32x32xf32>
    %494 = tpu.matmul %485, %493, %cst_227 {dimension_numbers = #tpu.dot_dimension_numbers<[1], [0], [0], [1], [0, 0, 1, 1], [], []>} : vector<32x32xf32>, vector<32x32xf32>, vector<32x32xf32> -> vector<32x32xf32>
    %495 = arith.addf %492, %494 : vector<32x32xf32>
    %496 = vector.extract_strided_slice %487 {offsets = [64, 0], sizes = [32, 32], strides = [1, 1]} : vector<96x32xf32> to vector<32x32xf32>
    %cst_228 = arith.constant dense<0.000000e+00> : vector<32x32xf32>
    %497 = tpu.matmul %490, %496, %cst_228 {dimension_numbers = #tpu.dot_dimension_numbers<[1], [0], [0], [1], [0, 0, 1, 1], [], []>} : vector<32x32xf32>, vector<32x32xf32>, vector<32x32xf32> -> vector<32x32xf32>
    %498 = arith.addf %495, %497 : vector<32x32xf32>
    %499 = vector.broadcast %488 : vector<1x32xf32> to vector<32x32xf32>
    %500 = arith.addf %498, %499 : vector<32x32xf32>
    %cst_229 = arith.constant dense<0.000000e+00> : vector<32x32xf32>
    %501 = tpu.matmul %2, %500, %cst_229 {dimension_numbers = #tpu.dot_dimension_numbers<[1], [0], [0], [1], [0, 0, 1, 1], [], []>} : vector<32x32xf32>, vector<32x32xf32>, vector<32x32xf32> -> vector<32x32xf32>
    %cst_230 = arith.constant dense<0.000000e+00> : vector<32x32xf32>
    %502 = tpu.matmul %501, %3, %cst_230 {dimension_numbers = #tpu.dot_dimension_numbers<[1], [0], [0], [1], [0, 0, 1, 1], [], []>} : vector<32x32xf32>, vector<32x32xf32>, vector<32x32xf32> -> vector<32x32xf32>
    %503 = arith.subf %500, %502 : vector<32x32xf32>
    %504 = arith.mulf %503, %503 : vector<32x32xf32>
    %cst_231 = arith.constant dense<0.000000e+00> : vector<32x32xf32>
    %505 = tpu.matmul %2, %504, %cst_231 {dimension_numbers = #tpu.dot_dimension_numbers<[1], [0], [0], [1], [0, 0, 1, 1], [], []>} : vector<32x32xf32>, vector<32x32xf32>, vector<32x32xf32> -> vector<32x32xf32>
    %cst_232 = arith.constant dense<0.000000e+00> : vector<32x32xf32>
    %506 = tpu.matmul %505, %3, %cst_232 {dimension_numbers = #tpu.dot_dimension_numbers<[1], [0], [0], [1], [0, 0, 1, 1], [], []>} : vector<32x32xf32>, vector<32x32xf32>, vector<32x32xf32> -> vector<32x32xf32>
    %cst_233 = arith.constant 9.99999974E-6 : f32
    %507 = vector.broadcast %cst_233 : f32 to vector<32x32xf32>
    %508 = arith.addf %506, %507 : vector<32x32xf32>
    %509 = math.rsqrt %508 : vector<32x32xf32>
    %510 = arith.mulf %503, %509 : vector<32x32xf32>
    %c5_234 = arith.constant 5 : index
    %c0_235 = arith.constant 0 : index
    %511 = vector.load %arg10[%c5_234, %c0_235] : memref<6x32xf32, #tpu.memory_space<vmem>>, vector<1x32xf32>
    %512 = vector.broadcast %511 : vector<1x32xf32> to vector<32x32xf32>
    %513 = arith.mulf %510, %512 : vector<32x32xf32>
    %c5_236 = arith.constant 5 : index
    %c0_237 = arith.constant 0 : index
    %514 = vector.load %arg11[%c5_236, %c0_237] : memref<6x32xf32, #tpu.memory_space<vmem>>, vector<1x32xf32>
    %515 = vector.broadcast %514 : vector<1x32xf32> to vector<32x32xf32>
    %516 = arith.addf %513, %515 : vector<32x32xf32>
    %cst_238 = arith.constant 5.000000e-01 : f32
    %517 = vector.broadcast %cst_238 : f32 to vector<32x32xf32>
    %518 = arith.mulf %517, %516 : vector<32x32xf32>
    %519 = arith.mulf %516, %516 : vector<32x32xf32>
    %520 = arith.mulf %519, %516 : vector<32x32xf32>
    %cst_239 = arith.constant 4.471500e-02 : f32
    %521 = vector.broadcast %cst_239 : f32 to vector<32x32xf32>
    %522 = arith.mulf %521, %520 : vector<32x32xf32>
    %523 = arith.addf %516, %522 : vector<32x32xf32>
    %cst_240 = arith.constant 0.797884583 : f32
    %524 = vector.broadcast %cst_240 : f32 to vector<32x32xf32>
    %525 = arith.mulf %524, %523 : vector<32x32xf32>
    %526 = math.tanh %525 : vector<32x32xf32>
    %cst_241 = arith.constant 1.000000e+00 : f32
    %527 = vector.broadcast %cst_241 : f32 to vector<32x32xf32>
    %528 = arith.addf %527, %526 : vector<32x32xf32>
    %529 = arith.mulf %518, %528 : vector<32x32xf32>
    %530 = arith.addf %529, %485 : vector<32x32xf32>
    %cst_242 = arith.constant 0.333333343 : f32
    %531 = vector.broadcast %cst_242 : f32 to vector<32x32xf32>
    %532 = arith.mulf %530, %531 : vector<32x32xf32>
    %c1_243 = arith.constant 1 : index
    %c0_244 = arith.constant 0 : index
    %c0_245 = arith.constant 0 : index
    %533 = vector.load %arg12[%c1_243, %c0_244, %c0_245] : memref<2x32x96xf32, #tpu.memory_space<vmem>>, vector<1x32x96xf32>
    %534 = vector.shape_cast %533 : vector<1x32x96xf32> to vector<32x96xf32>
    %cst_246 = arith.constant dense<0.000000e+00> : vector<32x96xf32>
    %535 = tpu.matmul %532, %534, %cst_246 {dimension_numbers = #tpu.dot_dimension_numbers<[1], [0], [0], [1], [0, 0, 1, 1], [], []>} : vector<32x32xf32>, vector<32x96xf32>, vector<32x96xf32> -> vector<32x96xf32>
    %c1_247 = arith.constant 1 : index
    %c0_248 = arith.constant 0 : index
    %536 = vector.load %arg13[%c1_247, %c0_248] : memref<2x96xf32, #tpu.memory_space<vmem>>, vector<1x96xf32>
    %537 = vector.broadcast %536 : vector<1x96xf32> to vector<32x96xf32>
    %538 = arith.addf %535, %537 : vector<32x96xf32>
    %c1_249 = arith.constant 1 : index
    %c0_250 = arith.constant 0 : index
    %c0_251 = arith.constant 0 : index
    %539 = vector.load %arg14[%c1_249, %c0_250, %c0_251] : memref<2x32x32xf32, #tpu.memory_space<vmem>>, vector<1x32x32xf32>
    %540 = vector.shape_cast %539 : vector<1x32x32xf32> to vector<32x32xf32>
    %541 = vector.extract_strided_slice %538 {offsets = [0, 0], sizes = [16, 96], strides = [1, 1]} : vector<32x96xf32> to vector<16x96xf32>
    %542 = vector.extract_strided_slice %4 {offsets = [0, 0], sizes = [1, 16], strides = [1, 1]} : vector<2x16xf32> to vector<1x16xf32>
    %cst_252 = arith.constant 0.000000e+00 : f32
    %543 = vector.broadcast %cst_252 : f32 to vector<16x32xf32>
    %544 = vector.extract_strided_slice %541 {offsets = [0, 0], sizes = [16, 8], strides = [1, 1]} : vector<16x96xf32> to vector<16x8xf32>
    %545 = vector.extract_strided_slice %541 {offsets = [0, 32], sizes = [16, 8], strides = [1, 1]} : vector<16x96xf32> to vector<16x8xf32>
    %546 = vector.extract_strided_slice %541 {offsets = [0, 64], sizes = [16, 8], strides = [1, 1]} : vector<16x96xf32> to vector<16x8xf32>
    %cst_253 = arith.constant dense<0.000000e+00> : vector<16x16xf32>
    %547 = tpu.matmul %544, %545, %cst_253 {dimension_numbers = #tpu.dot_dimension_numbers<[1], [1], [0], [0], [0, 0, 1, 0], [], []>} : vector<16x8xf32>, vector<16x8xf32>, vector<16x16xf32> -> vector<16x16xf32>
    %cst_254 = arith.constant 0.353553385 : f32
    %548 = vector.broadcast %cst_254 : f32 to vector<16x16xf32>
    %549 = arith.mulf %547, %548 : vector<16x16xf32>
    %550 = vector.broadcast %542 : vector<1x16xf32> to vector<16x16xf32>
    %551 = arith.addf %549, %550 : vector<16x16xf32>
    %cst_255 = arith.constant dense<0xFF800000> : vector<16xf32>
    %552 = vector.multi_reduction <maximumf>, %551, %cst_255 [1] : vector<16x16xf32> to vector<16xf32>
    %553 = vector.shape_cast %552 : vector<16xf32> to vector<16x1xf32>
    %554 = vector.broadcast %553 : vector<16x1xf32> to vector<16x16xf32>
    %555 = arith.subf %551, %554 : vector<16x16xf32>
    %556 = math.exp %555 : vector<16x16xf32>
    %cst_256 = arith.constant dense<0.000000e+00> : vector<16xf32>
    %557 = vector.multi_reduction <add>, %556, %cst_256 [1] : vector<16x16xf32> to vector<16xf32>
    %558 = vector.shape_cast %557 : vector<16xf32> to vector<16x1xf32>
    %559 = vector.broadcast %558 : vector<16x1xf32> to vector<16x16xf32>
    %560 = arith.divf %556, %559 : vector<16x16xf32>
    %cst_257 = arith.constant dense<0.000000e+00> : vector<16x8xf32>
    %561 = tpu.matmul %560, %546, %cst_257 {dimension_numbers = #tpu.dot_dimension_numbers<[1], [0], [0], [1], [0, 0, 1, 1], [], []>} : vector<16x16xf32>, vector<16x8xf32>, vector<16x8xf32> -> vector<16x8xf32>
    %562 = vector.extract_strided_slice %540 {offsets = [0, 0], sizes = [8, 32], strides = [1, 1]} : vector<32x32xf32> to vector<8x32xf32>
    %cst_258 = arith.constant dense<0.000000e+00> : vector<16x32xf32>
    %563 = tpu.matmul %561, %562, %cst_258 {dimension_numbers = #tpu.dot_dimension_numbers<[1], [0], [0], [1], [0, 0, 1, 1], [], []>} : vector<16x8xf32>, vector<8x32xf32>, vector<16x32xf32> -> vector<16x32xf32>
    %564 = arith.addf %543, %563 : vector<16x32xf32>
    %565 = vector.extract_strided_slice %541 {offsets = [0, 8], sizes = [16, 8], strides = [1, 1]} : vector<16x96xf32> to vector<16x8xf32>
    %566 = vector.extract_strided_slice %541 {offsets = [0, 40], sizes = [16, 8], strides = [1, 1]} : vector<16x96xf32> to vector<16x8xf32>
    %567 = vector.extract_strided_slice %541 {offsets = [0, 72], sizes = [16, 8], strides = [1, 1]} : vector<16x96xf32> to vector<16x8xf32>
    %cst_259 = arith.constant dense<0.000000e+00> : vector<16x16xf32>
    %568 = tpu.matmul %565, %566, %cst_259 {dimension_numbers = #tpu.dot_dimension_numbers<[1], [1], [0], [0], [0, 0, 1, 0], [], []>} : vector<16x8xf32>, vector<16x8xf32>, vector<16x16xf32> -> vector<16x16xf32>
    %cst_260 = arith.constant 0.353553385 : f32
    %569 = vector.broadcast %cst_260 : f32 to vector<16x16xf32>
    %570 = arith.mulf %568, %569 : vector<16x16xf32>
    %571 = vector.broadcast %542 : vector<1x16xf32> to vector<16x16xf32>
    %572 = arith.addf %570, %571 : vector<16x16xf32>
    %cst_261 = arith.constant dense<0xFF800000> : vector<16xf32>
    %573 = vector.multi_reduction <maximumf>, %572, %cst_261 [1] : vector<16x16xf32> to vector<16xf32>
    %574 = vector.shape_cast %573 : vector<16xf32> to vector<16x1xf32>
    %575 = vector.broadcast %574 : vector<16x1xf32> to vector<16x16xf32>
    %576 = arith.subf %572, %575 : vector<16x16xf32>
    %577 = math.exp %576 : vector<16x16xf32>
    %cst_262 = arith.constant dense<0.000000e+00> : vector<16xf32>
    %578 = vector.multi_reduction <add>, %577, %cst_262 [1] : vector<16x16xf32> to vector<16xf32>
    %579 = vector.shape_cast %578 : vector<16xf32> to vector<16x1xf32>
    %580 = vector.broadcast %579 : vector<16x1xf32> to vector<16x16xf32>
    %581 = arith.divf %577, %580 : vector<16x16xf32>
    %cst_263 = arith.constant dense<0.000000e+00> : vector<16x8xf32>
    %582 = tpu.matmul %581, %567, %cst_263 {dimension_numbers = #tpu.dot_dimension_numbers<[1], [0], [0], [1], [0, 0, 1, 1], [], []>} : vector<16x16xf32>, vector<16x8xf32>, vector<16x8xf32> -> vector<16x8xf32>
    %583 = vector.extract_strided_slice %540 {offsets = [8, 0], sizes = [8, 32], strides = [1, 1]} : vector<32x32xf32> to vector<8x32xf32>
    %cst_264 = arith.constant dense<0.000000e+00> : vector<16x32xf32>
    %584 = tpu.matmul %582, %583, %cst_264 {dimension_numbers = #tpu.dot_dimension_numbers<[1], [0], [0], [1], [0, 0, 1, 1], [], []>} : vector<16x8xf32>, vector<8x32xf32>, vector<16x32xf32> -> vector<16x32xf32>
    %585 = arith.addf %564, %584 : vector<16x32xf32>
    %586 = vector.extract_strided_slice %541 {offsets = [0, 16], sizes = [16, 8], strides = [1, 1]} : vector<16x96xf32> to vector<16x8xf32>
    %587 = vector.extract_strided_slice %541 {offsets = [0, 48], sizes = [16, 8], strides = [1, 1]} : vector<16x96xf32> to vector<16x8xf32>
    %588 = vector.extract_strided_slice %541 {offsets = [0, 80], sizes = [16, 8], strides = [1, 1]} : vector<16x96xf32> to vector<16x8xf32>
    %cst_265 = arith.constant dense<0.000000e+00> : vector<16x16xf32>
    %589 = tpu.matmul %586, %587, %cst_265 {dimension_numbers = #tpu.dot_dimension_numbers<[1], [1], [0], [0], [0, 0, 1, 0], [], []>} : vector<16x8xf32>, vector<16x8xf32>, vector<16x16xf32> -> vector<16x16xf32>
    %cst_266 = arith.constant 0.353553385 : f32
    %590 = vector.broadcast %cst_266 : f32 to vector<16x16xf32>
    %591 = arith.mulf %589, %590 : vector<16x16xf32>
    %592 = vector.broadcast %542 : vector<1x16xf32> to vector<16x16xf32>
    %593 = arith.addf %591, %592 : vector<16x16xf32>
    %cst_267 = arith.constant dense<0xFF800000> : vector<16xf32>
    %594 = vector.multi_reduction <maximumf>, %593, %cst_267 [1] : vector<16x16xf32> to vector<16xf32>
    %595 = vector.shape_cast %594 : vector<16xf32> to vector<16x1xf32>
    %596 = vector.broadcast %595 : vector<16x1xf32> to vector<16x16xf32>
    %597 = arith.subf %593, %596 : vector<16x16xf32>
    %598 = math.exp %597 : vector<16x16xf32>
    %cst_268 = arith.constant dense<0.000000e+00> : vector<16xf32>
    %599 = vector.multi_reduction <add>, %598, %cst_268 [1] : vector<16x16xf32> to vector<16xf32>
    %600 = vector.shape_cast %599 : vector<16xf32> to vector<16x1xf32>
    %601 = vector.broadcast %600 : vector<16x1xf32> to vector<16x16xf32>
    %602 = arith.divf %598, %601 : vector<16x16xf32>
    %cst_269 = arith.constant dense<0.000000e+00> : vector<16x8xf32>
    %603 = tpu.matmul %602, %588, %cst_269 {dimension_numbers = #tpu.dot_dimension_numbers<[1], [0], [0], [1], [0, 0, 1, 1], [], []>} : vector<16x16xf32>, vector<16x8xf32>, vector<16x8xf32> -> vector<16x8xf32>
    %604 = vector.extract_strided_slice %540 {offsets = [16, 0], sizes = [8, 32], strides = [1, 1]} : vector<32x32xf32> to vector<8x32xf32>
    %cst_270 = arith.constant dense<0.000000e+00> : vector<16x32xf32>
    %605 = tpu.matmul %603, %604, %cst_270 {dimension_numbers = #tpu.dot_dimension_numbers<[1], [0], [0], [1], [0, 0, 1, 1], [], []>} : vector<16x8xf32>, vector<8x32xf32>, vector<16x32xf32> -> vector<16x32xf32>
    %606 = arith.addf %585, %605 : vector<16x32xf32>
    %607 = vector.extract_strided_slice %541 {offsets = [0, 24], sizes = [16, 8], strides = [1, 1]} : vector<16x96xf32> to vector<16x8xf32>
    %608 = vector.extract_strided_slice %541 {offsets = [0, 56], sizes = [16, 8], strides = [1, 1]} : vector<16x96xf32> to vector<16x8xf32>
    %609 = vector.extract_strided_slice %541 {offsets = [0, 88], sizes = [16, 8], strides = [1, 1]} : vector<16x96xf32> to vector<16x8xf32>
    %cst_271 = arith.constant dense<0.000000e+00> : vector<16x16xf32>
    %610 = tpu.matmul %607, %608, %cst_271 {dimension_numbers = #tpu.dot_dimension_numbers<[1], [1], [0], [0], [0, 0, 1, 0], [], []>} : vector<16x8xf32>, vector<16x8xf32>, vector<16x16xf32> -> vector<16x16xf32>
    %cst_272 = arith.constant 0.353553385 : f32
    %611 = vector.broadcast %cst_272 : f32 to vector<16x16xf32>
    %612 = arith.mulf %610, %611 : vector<16x16xf32>
    %613 = vector.broadcast %542 : vector<1x16xf32> to vector<16x16xf32>
    %614 = arith.addf %612, %613 : vector<16x16xf32>
    %cst_273 = arith.constant dense<0xFF800000> : vector<16xf32>
    %615 = vector.multi_reduction <maximumf>, %614, %cst_273 [1] : vector<16x16xf32> to vector<16xf32>
    %616 = vector.shape_cast %615 : vector<16xf32> to vector<16x1xf32>
    %617 = vector.broadcast %616 : vector<16x1xf32> to vector<16x16xf32>
    %618 = arith.subf %614, %617 : vector<16x16xf32>
    %619 = math.exp %618 : vector<16x16xf32>
    %cst_274 = arith.constant dense<0.000000e+00> : vector<16xf32>
    %620 = vector.multi_reduction <add>, %619, %cst_274 [1] : vector<16x16xf32> to vector<16xf32>
    %621 = vector.shape_cast %620 : vector<16xf32> to vector<16x1xf32>
    %622 = vector.broadcast %621 : vector<16x1xf32> to vector<16x16xf32>
    %623 = arith.divf %619, %622 : vector<16x16xf32>
    %cst_275 = arith.constant dense<0.000000e+00> : vector<16x8xf32>
    %624 = tpu.matmul %623, %609, %cst_275 {dimension_numbers = #tpu.dot_dimension_numbers<[1], [0], [0], [1], [0, 0, 1, 1], [], []>} : vector<16x16xf32>, vector<16x8xf32>, vector<16x8xf32> -> vector<16x8xf32>
    %625 = vector.extract_strided_slice %540 {offsets = [24, 0], sizes = [8, 32], strides = [1, 1]} : vector<32x32xf32> to vector<8x32xf32>
    %cst_276 = arith.constant dense<0.000000e+00> : vector<16x32xf32>
    %626 = tpu.matmul %624, %625, %cst_276 {dimension_numbers = #tpu.dot_dimension_numbers<[1], [0], [0], [1], [0, 0, 1, 1], [], []>} : vector<16x8xf32>, vector<8x32xf32>, vector<16x32xf32> -> vector<16x32xf32>
    %627 = arith.addf %606, %626 : vector<16x32xf32>
    %628 = vector.extract_strided_slice %538 {offsets = [16, 0], sizes = [16, 96], strides = [1, 1]} : vector<32x96xf32> to vector<16x96xf32>
    %629 = vector.extract_strided_slice %4 {offsets = [1, 0], sizes = [1, 16], strides = [1, 1]} : vector<2x16xf32> to vector<1x16xf32>
    %cst_277 = arith.constant 0.000000e+00 : f32
    %630 = vector.broadcast %cst_277 : f32 to vector<16x32xf32>
    %631 = vector.extract_strided_slice %628 {offsets = [0, 0], sizes = [16, 8], strides = [1, 1]} : vector<16x96xf32> to vector<16x8xf32>
    %632 = vector.extract_strided_slice %628 {offsets = [0, 32], sizes = [16, 8], strides = [1, 1]} : vector<16x96xf32> to vector<16x8xf32>
    %633 = vector.extract_strided_slice %628 {offsets = [0, 64], sizes = [16, 8], strides = [1, 1]} : vector<16x96xf32> to vector<16x8xf32>
    %cst_278 = arith.constant dense<0.000000e+00> : vector<16x16xf32>
    %634 = tpu.matmul %631, %632, %cst_278 {dimension_numbers = #tpu.dot_dimension_numbers<[1], [1], [0], [0], [0, 0, 1, 0], [], []>} : vector<16x8xf32>, vector<16x8xf32>, vector<16x16xf32> -> vector<16x16xf32>
    %cst_279 = arith.constant 0.353553385 : f32
    %635 = vector.broadcast %cst_279 : f32 to vector<16x16xf32>
    %636 = arith.mulf %634, %635 : vector<16x16xf32>
    %637 = vector.broadcast %629 : vector<1x16xf32> to vector<16x16xf32>
    %638 = arith.addf %636, %637 : vector<16x16xf32>
    %cst_280 = arith.constant dense<0xFF800000> : vector<16xf32>
    %639 = vector.multi_reduction <maximumf>, %638, %cst_280 [1] : vector<16x16xf32> to vector<16xf32>
    %640 = vector.shape_cast %639 : vector<16xf32> to vector<16x1xf32>
    %641 = vector.broadcast %640 : vector<16x1xf32> to vector<16x16xf32>
    %642 = arith.subf %638, %641 : vector<16x16xf32>
    %643 = math.exp %642 : vector<16x16xf32>
    %cst_281 = arith.constant dense<0.000000e+00> : vector<16xf32>
    %644 = vector.multi_reduction <add>, %643, %cst_281 [1] : vector<16x16xf32> to vector<16xf32>
    %645 = vector.shape_cast %644 : vector<16xf32> to vector<16x1xf32>
    %646 = vector.broadcast %645 : vector<16x1xf32> to vector<16x16xf32>
    %647 = arith.divf %643, %646 : vector<16x16xf32>
    %cst_282 = arith.constant dense<0.000000e+00> : vector<16x8xf32>
    %648 = tpu.matmul %647, %633, %cst_282 {dimension_numbers = #tpu.dot_dimension_numbers<[1], [0], [0], [1], [0, 0, 1, 1], [], []>} : vector<16x16xf32>, vector<16x8xf32>, vector<16x8xf32> -> vector<16x8xf32>
    %649 = vector.extract_strided_slice %540 {offsets = [0, 0], sizes = [8, 32], strides = [1, 1]} : vector<32x32xf32> to vector<8x32xf32>
    %cst_283 = arith.constant dense<0.000000e+00> : vector<16x32xf32>
    %650 = tpu.matmul %648, %649, %cst_283 {dimension_numbers = #tpu.dot_dimension_numbers<[1], [0], [0], [1], [0, 0, 1, 1], [], []>} : vector<16x8xf32>, vector<8x32xf32>, vector<16x32xf32> -> vector<16x32xf32>
    %651 = arith.addf %630, %650 : vector<16x32xf32>
    %652 = vector.extract_strided_slice %628 {offsets = [0, 8], sizes = [16, 8], strides = [1, 1]} : vector<16x96xf32> to vector<16x8xf32>
    %653 = vector.extract_strided_slice %628 {offsets = [0, 40], sizes = [16, 8], strides = [1, 1]} : vector<16x96xf32> to vector<16x8xf32>
    %654 = vector.extract_strided_slice %628 {offsets = [0, 72], sizes = [16, 8], strides = [1, 1]} : vector<16x96xf32> to vector<16x8xf32>
    %cst_284 = arith.constant dense<0.000000e+00> : vector<16x16xf32>
    %655 = tpu.matmul %652, %653, %cst_284 {dimension_numbers = #tpu.dot_dimension_numbers<[1], [1], [0], [0], [0, 0, 1, 0], [], []>} : vector<16x8xf32>, vector<16x8xf32>, vector<16x16xf32> -> vector<16x16xf32>
    %cst_285 = arith.constant 0.353553385 : f32
    %656 = vector.broadcast %cst_285 : f32 to vector<16x16xf32>
    %657 = arith.mulf %655, %656 : vector<16x16xf32>
    %658 = vector.broadcast %629 : vector<1x16xf32> to vector<16x16xf32>
    %659 = arith.addf %657, %658 : vector<16x16xf32>
    %cst_286 = arith.constant dense<0xFF800000> : vector<16xf32>
    %660 = vector.multi_reduction <maximumf>, %659, %cst_286 [1] : vector<16x16xf32> to vector<16xf32>
    %661 = vector.shape_cast %660 : vector<16xf32> to vector<16x1xf32>
    %662 = vector.broadcast %661 : vector<16x1xf32> to vector<16x16xf32>
    %663 = arith.subf %659, %662 : vector<16x16xf32>
    %664 = math.exp %663 : vector<16x16xf32>
    %cst_287 = arith.constant dense<0.000000e+00> : vector<16xf32>
    %665 = vector.multi_reduction <add>, %664, %cst_287 [1] : vector<16x16xf32> to vector<16xf32>
    %666 = vector.shape_cast %665 : vector<16xf32> to vector<16x1xf32>
    %667 = vector.broadcast %666 : vector<16x1xf32> to vector<16x16xf32>
    %668 = arith.divf %664, %667 : vector<16x16xf32>
    %cst_288 = arith.constant dense<0.000000e+00> : vector<16x8xf32>
    %669 = tpu.matmul %668, %654, %cst_288 {dimension_numbers = #tpu.dot_dimension_numbers<[1], [0], [0], [1], [0, 0, 1, 1], [], []>} : vector<16x16xf32>, vector<16x8xf32>, vector<16x8xf32> -> vector<16x8xf32>
    %670 = vector.extract_strided_slice %540 {offsets = [8, 0], sizes = [8, 32], strides = [1, 1]} : vector<32x32xf32> to vector<8x32xf32>
    %cst_289 = arith.constant dense<0.000000e+00> : vector<16x32xf32>
    %671 = tpu.matmul %669, %670, %cst_289 {dimension_numbers = #tpu.dot_dimension_numbers<[1], [0], [0], [1], [0, 0, 1, 1], [], []>} : vector<16x8xf32>, vector<8x32xf32>, vector<16x32xf32> -> vector<16x32xf32>
    %672 = arith.addf %651, %671 : vector<16x32xf32>
    %673 = vector.extract_strided_slice %628 {offsets = [0, 16], sizes = [16, 8], strides = [1, 1]} : vector<16x96xf32> to vector<16x8xf32>
    %674 = vector.extract_strided_slice %628 {offsets = [0, 48], sizes = [16, 8], strides = [1, 1]} : vector<16x96xf32> to vector<16x8xf32>
    %675 = vector.extract_strided_slice %628 {offsets = [0, 80], sizes = [16, 8], strides = [1, 1]} : vector<16x96xf32> to vector<16x8xf32>
    %cst_290 = arith.constant dense<0.000000e+00> : vector<16x16xf32>
    %676 = tpu.matmul %673, %674, %cst_290 {dimension_numbers = #tpu.dot_dimension_numbers<[1], [1], [0], [0], [0, 0, 1, 0], [], []>} : vector<16x8xf32>, vector<16x8xf32>, vector<16x16xf32> -> vector<16x16xf32>
    %cst_291 = arith.constant 0.353553385 : f32
    %677 = vector.broadcast %cst_291 : f32 to vector<16x16xf32>
    %678 = arith.mulf %676, %677 : vector<16x16xf32>
    %679 = vector.broadcast %629 : vector<1x16xf32> to vector<16x16xf32>
    %680 = arith.addf %678, %679 : vector<16x16xf32>
    %cst_292 = arith.constant dense<0xFF800000> : vector<16xf32>
    %681 = vector.multi_reduction <maximumf>, %680, %cst_292 [1] : vector<16x16xf32> to vector<16xf32>
    %682 = vector.shape_cast %681 : vector<16xf32> to vector<16x1xf32>
    %683 = vector.broadcast %682 : vector<16x1xf32> to vector<16x16xf32>
    %684 = arith.subf %680, %683 : vector<16x16xf32>
    %685 = math.exp %684 : vector<16x16xf32>
    %cst_293 = arith.constant dense<0.000000e+00> : vector<16xf32>
    %686 = vector.multi_reduction <add>, %685, %cst_293 [1] : vector<16x16xf32> to vector<16xf32>
    %687 = vector.shape_cast %686 : vector<16xf32> to vector<16x1xf32>
    %688 = vector.broadcast %687 : vector<16x1xf32> to vector<16x16xf32>
    %689 = arith.divf %685, %688 : vector<16x16xf32>
    %cst_294 = arith.constant dense<0.000000e+00> : vector<16x8xf32>
    %690 = tpu.matmul %689, %675, %cst_294 {dimension_numbers = #tpu.dot_dimension_numbers<[1], [0], [0], [1], [0, 0, 1, 1], [], []>} : vector<16x16xf32>, vector<16x8xf32>, vector<16x8xf32> -> vector<16x8xf32>
    %691 = vector.extract_strided_slice %540 {offsets = [16, 0], sizes = [8, 32], strides = [1, 1]} : vector<32x32xf32> to vector<8x32xf32>
    %cst_295 = arith.constant dense<0.000000e+00> : vector<16x32xf32>
    %692 = tpu.matmul %690, %691, %cst_295 {dimension_numbers = #tpu.dot_dimension_numbers<[1], [0], [0], [1], [0, 0, 1, 1], [], []>} : vector<16x8xf32>, vector<8x32xf32>, vector<16x32xf32> -> vector<16x32xf32>
    %693 = arith.addf %672, %692 : vector<16x32xf32>
    %694 = vector.extract_strided_slice %628 {offsets = [0, 24], sizes = [16, 8], strides = [1, 1]} : vector<16x96xf32> to vector<16x8xf32>
    %695 = vector.extract_strided_slice %628 {offsets = [0, 56], sizes = [16, 8], strides = [1, 1]} : vector<16x96xf32> to vector<16x8xf32>
    %696 = vector.extract_strided_slice %628 {offsets = [0, 88], sizes = [16, 8], strides = [1, 1]} : vector<16x96xf32> to vector<16x8xf32>
    %cst_296 = arith.constant dense<0.000000e+00> : vector<16x16xf32>
    %697 = tpu.matmul %694, %695, %cst_296 {dimension_numbers = #tpu.dot_dimension_numbers<[1], [1], [0], [0], [0, 0, 1, 0], [], []>} : vector<16x8xf32>, vector<16x8xf32>, vector<16x16xf32> -> vector<16x16xf32>
    %cst_297 = arith.constant 0.353553385 : f32
    %698 = vector.broadcast %cst_297 : f32 to vector<16x16xf32>
    %699 = arith.mulf %697, %698 : vector<16x16xf32>
    %700 = vector.broadcast %629 : vector<1x16xf32> to vector<16x16xf32>
    %701 = arith.addf %699, %700 : vector<16x16xf32>
    %cst_298 = arith.constant dense<0xFF800000> : vector<16xf32>
    %702 = vector.multi_reduction <maximumf>, %701, %cst_298 [1] : vector<16x16xf32> to vector<16xf32>
    %703 = vector.shape_cast %702 : vector<16xf32> to vector<16x1xf32>
    %704 = vector.broadcast %703 : vector<16x1xf32> to vector<16x16xf32>
    %705 = arith.subf %701, %704 : vector<16x16xf32>
    %706 = math.exp %705 : vector<16x16xf32>
    %cst_299 = arith.constant dense<0.000000e+00> : vector<16xf32>
    %707 = vector.multi_reduction <add>, %706, %cst_299 [1] : vector<16x16xf32> to vector<16xf32>
    %708 = vector.shape_cast %707 : vector<16xf32> to vector<16x1xf32>
    %709 = vector.broadcast %708 : vector<16x1xf32> to vector<16x16xf32>
    %710 = arith.divf %706, %709 : vector<16x16xf32>
    %cst_300 = arith.constant dense<0.000000e+00> : vector<16x8xf32>
    %711 = tpu.matmul %710, %696, %cst_300 {dimension_numbers = #tpu.dot_dimension_numbers<[1], [0], [0], [1], [0, 0, 1, 1], [], []>} : vector<16x16xf32>, vector<16x8xf32>, vector<16x8xf32> -> vector<16x8xf32>
    %712 = vector.extract_strided_slice %540 {offsets = [24, 0], sizes = [8, 32], strides = [1, 1]} : vector<32x32xf32> to vector<8x32xf32>
    %cst_301 = arith.constant dense<0.000000e+00> : vector<16x32xf32>
    %713 = tpu.matmul %711, %712, %cst_301 {dimension_numbers = #tpu.dot_dimension_numbers<[1], [0], [0], [1], [0, 0, 1, 1], [], []>} : vector<16x8xf32>, vector<8x32xf32>, vector<16x32xf32> -> vector<16x32xf32>
    %714 = arith.addf %693, %713 : vector<16x32xf32>
    %715 = tpu.concatenate %627, %714 in 0 : vector<16x32xf32>, vector<16x32xf32> -> vector<32x32xf32>
    %c1_302 = arith.constant 1 : index
    %c0_303 = arith.constant 0 : index
    %716 = vector.load %arg15[%c1_302, %c0_303] : memref<2x32xf32, #tpu.memory_space<vmem>>, vector<1x32xf32>
    %717 = vector.broadcast %716 : vector<1x32xf32> to vector<32x32xf32>
    %718 = arith.addf %715, %717 : vector<32x32xf32>
    %719 = arith.addf %532, %718 : vector<32x32xf32>
    %c1_304 = arith.constant 1 : index
    %c0_305 = arith.constant 0 : index
    %720 = vector.load %arg20[%c1_304, %c0_305] : memref<2x32xf32, #tpu.memory_space<vmem>>, vector<1x32xf32>
    %c1_306 = arith.constant 1 : index
    %c0_307 = arith.constant 0 : index
    %721 = vector.load %arg21[%c1_306, %c0_307] : memref<2x32xf32, #tpu.memory_space<vmem>>, vector<1x32xf32>
    %cst_308 = arith.constant dense<0.000000e+00> : vector<32xf32>
    %722 = vector.multi_reduction <add>, %719, %cst_308 [1] : vector<32x32xf32> to vector<32xf32>
    %723 = vector.shape_cast %722 : vector<32xf32> to vector<32x1xf32>
    %cst_309 = arith.constant 3.200000e+01 : f32
    %724 = vector.broadcast %cst_309 : f32 to vector<32x1xf32>
    %725 = arith.divf %723, %724 : vector<32x1xf32>
    %726 = vector.broadcast %725 : vector<32x1xf32> to vector<32x32xf32>
    %727 = arith.subf %719, %726 : vector<32x32xf32>
    %728 = arith.mulf %727, %727 : vector<32x32xf32>
    %cst_310 = arith.constant dense<0.000000e+00> : vector<32xf32>
    %729 = vector.multi_reduction <add>, %728, %cst_310 [1] : vector<32x32xf32> to vector<32xf32>
    %730 = vector.shape_cast %729 : vector<32xf32> to vector<32x1xf32>
    %cst_311 = arith.constant 3.200000e+01 : f32
    %731 = vector.broadcast %cst_311 : f32 to vector<32x1xf32>
    %732 = arith.divf %730, %731 : vector<32x1xf32>
    %cst_312 = arith.constant 9.99999974E-6 : f32
    %733 = vector.broadcast %cst_312 : f32 to vector<32x1xf32>
    %734 = arith.addf %732, %733 : vector<32x1xf32>
    %735 = math.rsqrt %734 : vector<32x1xf32>
    %736 = vector.broadcast %735 : vector<32x1xf32> to vector<32x32xf32>
    %737 = arith.mulf %727, %736 : vector<32x32xf32>
    %738 = vector.broadcast %720 : vector<1x32xf32> to vector<32x32xf32>
    %739 = arith.mulf %737, %738 : vector<32x32xf32>
    %740 = vector.broadcast %721 : vector<1x32xf32> to vector<32x32xf32>
    %741 = arith.addf %739, %740 : vector<32x32xf32>
    %c1_313 = arith.constant 1 : index
    %c0_314 = arith.constant 0 : index
    %c0_315 = arith.constant 0 : index
    %742 = vector.load %arg16[%c1_313, %c0_314, %c0_315] : memref<2x32x32xf32, #tpu.memory_space<vmem>>, vector<1x32x32xf32>
    %743 = vector.shape_cast %742 : vector<1x32x32xf32> to vector<32x32xf32>
    %cst_316 = arith.constant dense<0.000000e+00> : vector<32x32xf32>
    %744 = tpu.matmul %741, %743, %cst_316 {dimension_numbers = #tpu.dot_dimension_numbers<[1], [0], [0], [1], [0, 0, 1, 1], [], []>} : vector<32x32xf32>, vector<32x32xf32>, vector<32x32xf32> -> vector<32x32xf32>
    %c1_317 = arith.constant 1 : index
    %c0_318 = arith.constant 0 : index
    %745 = vector.load %arg17[%c1_317, %c0_318] : memref<2x32xf32, #tpu.memory_space<vmem>>, vector<1x32xf32>
    %746 = vector.broadcast %745 : vector<1x32xf32> to vector<32x32xf32>
    %747 = arith.addf %744, %746 : vector<32x32xf32>
    %cst_319 = arith.constant 0.000000e+00 : f32
    %748 = vector.broadcast %cst_319 : f32 to vector<32x32xf32>
    %749 = arith.maximumf %747, %748 : vector<32x32xf32>
    %c1_320 = arith.constant 1 : index
    %c0_321 = arith.constant 0 : index
    %c0_322 = arith.constant 0 : index
    %750 = vector.load %arg18[%c1_320, %c0_321, %c0_322] : memref<2x32x32xf32, #tpu.memory_space<vmem>>, vector<1x32x32xf32>
    %751 = vector.shape_cast %750 : vector<1x32x32xf32> to vector<32x32xf32>
    %cst_323 = arith.constant dense<0.000000e+00> : vector<32x32xf32>
    %752 = tpu.matmul %749, %751, %cst_323 {dimension_numbers = #tpu.dot_dimension_numbers<[1], [0], [0], [1], [0, 0, 1, 1], [], []>} : vector<32x32xf32>, vector<32x32xf32>, vector<32x32xf32> -> vector<32x32xf32>
    %c1_324 = arith.constant 1 : index
    %c0_325 = arith.constant 0 : index
    %753 = vector.load %arg19[%c1_324, %c0_325] : memref<2x32xf32, #tpu.memory_space<vmem>>, vector<1x32xf32>
    %754 = vector.broadcast %753 : vector<1x32xf32> to vector<32x32xf32>
    %755 = arith.addf %752, %754 : vector<32x32xf32>
    %756 = arith.addf %741, %755 : vector<32x32xf32>
    %c1_326 = arith.constant 1 : index
    %c0_327 = arith.constant 0 : index
    %757 = vector.load %arg22[%c1_326, %c0_327] : memref<2x32xf32, #tpu.memory_space<vmem>>, vector<1x32xf32>
    %c1_328 = arith.constant 1 : index
    %c0_329 = arith.constant 0 : index
    %758 = vector.load %arg23[%c1_328, %c0_329] : memref<2x32xf32, #tpu.memory_space<vmem>>, vector<1x32xf32>
    %cst_330 = arith.constant dense<0.000000e+00> : vector<32xf32>
    %759 = vector.multi_reduction <add>, %756, %cst_330 [1] : vector<32x32xf32> to vector<32xf32>
    %760 = vector.shape_cast %759 : vector<32xf32> to vector<32x1xf32>
    %cst_331 = arith.constant 3.200000e+01 : f32
    %761 = vector.broadcast %cst_331 : f32 to vector<32x1xf32>
    %762 = arith.divf %760, %761 : vector<32x1xf32>
    %763 = vector.broadcast %762 : vector<32x1xf32> to vector<32x32xf32>
    %764 = arith.subf %756, %763 : vector<32x32xf32>
    %765 = arith.mulf %764, %764 : vector<32x32xf32>
    %cst_332 = arith.constant dense<0.000000e+00> : vector<32xf32>
    %766 = vector.multi_reduction <add>, %765, %cst_332 [1] : vector<32x32xf32> to vector<32xf32>
    %767 = vector.shape_cast %766 : vector<32xf32> to vector<32x1xf32>
    %cst_333 = arith.constant 3.200000e+01 : f32
    %768 = vector.broadcast %cst_333 : f32 to vector<32x1xf32>
    %769 = arith.divf %767, %768 : vector<32x1xf32>
    %cst_334 = arith.constant 9.99999974E-6 : f32
    %770 = vector.broadcast %cst_334 : f32 to vector<32x1xf32>
    %771 = arith.addf %769, %770 : vector<32x1xf32>
    %772 = math.rsqrt %771 : vector<32x1xf32>
    %773 = vector.broadcast %772 : vector<32x1xf32> to vector<32x32xf32>
    %774 = arith.mulf %764, %773 : vector<32x32xf32>
    %775 = vector.broadcast %757 : vector<1x32xf32> to vector<32x32xf32>
    %776 = arith.mulf %774, %775 : vector<32x32xf32>
    %777 = vector.broadcast %758 : vector<1x32xf32> to vector<32x32xf32>
    %778 = arith.addf %776, %777 : vector<32x32xf32>
    %779 = arith.addf %395, %778 : vector<32x32xf32>
    %cst_335 = arith.constant 5.000000e-01 : f32
    %780 = vector.broadcast %cst_335 : f32 to vector<32x32xf32>
    %781 = arith.mulf %779, %780 : vector<32x32xf32>
    %c0_336 = arith.constant 0 : index
    %c0_337 = arith.constant 0 : index
    %782 = vector.load %arg24[%c0_336, %c0_337] : memref<32x32xf32, #tpu.memory_space<vmem>>, vector<32x32xf32>
    tpu.vector_store %arg24[%c0_336, %c0_337], %781 {strides = array<i32>} : memref<32x32xf32, #tpu.memory_space<vmem>>, vector<32x32xf32>,
    return
  }
}

module attributes {stable_mosaic.version = 11 : i64} {
  func.func @_pair_predictor_kernel(%arg0: memref<16x64xf32, #tpu.memory_space<vmem>>, %arg1: memref<64x32xf32, #tpu.memory_space<vmem>>, %arg2: memref<1x32xf32, #tpu.memory_space<vmem>>, %arg3: memref<32x32xf32, #tpu.memory_space<vmem>>, %arg4: memref<1x32xf32, #tpu.memory_space<vmem>>, %arg5: memref<32x1xf32, #tpu.memory_space<vmem>>, %arg6: memref<1x1xf32, #tpu.memory_space<vmem>>, %arg7: memref<8x1xf32, #tpu.memory_space<vmem>>) attributes {dimension_semantics = [], scalar_prefetch = 0 : i64, scratch_operands = 0 : i64, tpu.core_type = #tpu.core_type<tc>} {
    %c0 = arith.constant 0 : index
    %c0_0 = arith.constant 0 : index
    %0 = vector.load %arg0[%c0, %c0_0] : memref<16x64xf32, #tpu.memory_space<vmem>>, vector<16x64xf32>
    %c0_1 = arith.constant 0 : index
    %c0_2 = arith.constant 0 : index
    %1 = vector.load %arg1[%c0_1, %c0_2] : memref<64x32xf32, #tpu.memory_space<vmem>>, vector<64x32xf32>
    %cst = arith.constant dense<0.000000e+00> : vector<16x32xf32>
    %2 = tpu.matmul %0, %1, %cst {dimension_numbers = #tpu.dot_dimension_numbers<[1], [0], [0], [1], [0, 0, 1, 1], [], []>} : vector<16x64xf32>, vector<64x32xf32>, vector<16x32xf32> -> vector<16x32xf32>
    %c0_3 = arith.constant 0 : index
    %c0_4 = arith.constant 0 : index
    %3 = vector.load %arg2[%c0_3, %c0_4] : memref<1x32xf32, #tpu.memory_space<vmem>>, vector<1x32xf32>
    %4 = vector.broadcast %3 : vector<1x32xf32> to vector<16x32xf32>
    %5 = arith.addf %2, %4 : vector<16x32xf32>
    %cst_5 = arith.constant 5.000000e-01 : f32
    %6 = vector.broadcast %cst_5 : f32 to vector<16x32xf32>
    %7 = arith.mulf %6, %5 : vector<16x32xf32>
    %8 = arith.mulf %5, %5 : vector<16x32xf32>
    %9 = arith.mulf %8, %5 : vector<16x32xf32>
    %cst_6 = arith.constant 4.471500e-02 : f32
    %10 = vector.broadcast %cst_6 : f32 to vector<16x32xf32>
    %11 = arith.mulf %10, %9 : vector<16x32xf32>
    %12 = arith.addf %5, %11 : vector<16x32xf32>
    %cst_7 = arith.constant 0.797884583 : f32
    %13 = vector.broadcast %cst_7 : f32 to vector<16x32xf32>
    %14 = arith.mulf %13, %12 : vector<16x32xf32>
    %15 = math.tanh %14 : vector<16x32xf32>
    %cst_8 = arith.constant 1.000000e+00 : f32
    %16 = vector.broadcast %cst_8 : f32 to vector<16x32xf32>
    %17 = arith.addf %16, %15 : vector<16x32xf32>
    %18 = arith.mulf %7, %17 : vector<16x32xf32>
    %c0_9 = arith.constant 0 : index
    %c0_10 = arith.constant 0 : index
    %19 = vector.load %arg3[%c0_9, %c0_10] : memref<32x32xf32, #tpu.memory_space<vmem>>, vector<32x32xf32>
    %cst_11 = arith.constant dense<0.000000e+00> : vector<16x32xf32>
    %20 = tpu.matmul %18, %19, %cst_11 {dimension_numbers = #tpu.dot_dimension_numbers<[1], [0], [0], [1], [0, 0, 1, 1], [], []>} : vector<16x32xf32>, vector<32x32xf32>, vector<16x32xf32> -> vector<16x32xf32>
    %c0_12 = arith.constant 0 : index
    %c0_13 = arith.constant 0 : index
    %21 = vector.load %arg4[%c0_12, %c0_13] : memref<1x32xf32, #tpu.memory_space<vmem>>, vector<1x32xf32>
    %22 = vector.broadcast %21 : vector<1x32xf32> to vector<16x32xf32>
    %23 = arith.addf %20, %22 : vector<16x32xf32>
    %cst_14 = arith.constant 5.000000e-01 : f32
    %24 = vector.broadcast %cst_14 : f32 to vector<16x32xf32>
    %25 = arith.mulf %24, %23 : vector<16x32xf32>
    %26 = arith.mulf %23, %23 : vector<16x32xf32>
    %27 = arith.mulf %26, %23 : vector<16x32xf32>
    %cst_15 = arith.constant 4.471500e-02 : f32
    %28 = vector.broadcast %cst_15 : f32 to vector<16x32xf32>
    %29 = arith.mulf %28, %27 : vector<16x32xf32>
    %30 = arith.addf %23, %29 : vector<16x32xf32>
    %cst_16 = arith.constant 0.797884583 : f32
    %31 = vector.broadcast %cst_16 : f32 to vector<16x32xf32>
    %32 = arith.mulf %31, %30 : vector<16x32xf32>
    %33 = math.tanh %32 : vector<16x32xf32>
    %cst_17 = arith.constant 1.000000e+00 : f32
    %34 = vector.broadcast %cst_17 : f32 to vector<16x32xf32>
    %35 = arith.addf %34, %33 : vector<16x32xf32>
    %36 = arith.mulf %25, %35 : vector<16x32xf32>
    %c0_18 = arith.constant 0 : index
    %c0_19 = arith.constant 0 : index
    %37 = vector.load %arg5[%c0_18, %c0_19] : memref<32x1xf32, #tpu.memory_space<vmem>>, vector<32x1xf32>
    %cst_20 = arith.constant dense<0.000000e+00> : vector<16x1xf32>
    %38 = tpu.matmul %36, %37, %cst_20 {dimension_numbers = #tpu.dot_dimension_numbers<[1], [0], [0], [1], [0, 0, 1, 1], [], []>} : vector<16x32xf32>, vector<32x1xf32>, vector<16x1xf32> -> vector<16x1xf32>
    %c0_21 = arith.constant 0 : index
    %c0_22 = arith.constant 0 : index
    %39 = vector.load %arg6[%c0_21, %c0_22] : memref<1x1xf32, #tpu.memory_space<vmem>>, vector<1x1xf32>
    %40 = vector.broadcast %39 : vector<1x1xf32> to vector<16x1xf32>
    %41 = arith.addf %38, %40 : vector<16x1xf32>
    %42 = vector.extract_strided_slice %41 {offsets = [0, 0], sizes = [8, 1], strides = [1, 1]} : vector<16x1xf32> to vector<8x1xf32>
    %43 = vector.extract_strided_slice %41 {offsets = [8, 0], sizes = [8, 1], strides = [1, 1]} : vector<16x1xf32> to vector<8x1xf32>
    %44 = arith.addf %42, %43 : vector<8x1xf32>
    %cst_23 = arith.constant 5.000000e-01 : f32
    %45 = vector.broadcast %cst_23 : f32 to vector<8x1xf32>
    %46 = arith.mulf %44, %45 : vector<8x1xf32>
    %c0_24 = arith.constant 0 : index
    %c0_25 = arith.constant 0 : index
    %47 = vector.load %arg7[%c0_24, %c0_25] : memref<8x1xf32, #tpu.memory_space<vmem>>, vector<8x1xf32>
    tpu.vector_store %arg7[%c0_24, %c0_25], %46 {strides = array<i32>} : memref<8x1xf32, #tpu.memory_space<vmem>>, vector<8x1xf32>,
    return
  }
}

</mosaic_0001>

<llo_original>
// kernel: tpu_custom_call.1
$region0: #{tpu_custom_call.1}
  #allocation0 [shape = 'u32[]', space=smem, size = 0x4, offset = 0x4, fixed_abs, tag = 'smem constant byte address 0x4 - core index']
  #allocation1 [shape = 'u32[72,128]{1,0:T(1,128)}', space=vmem, size = 0x9000, scoped, tag = 'internal scratch']
  %s0 = inlined_call_operand.hbm [shape: f32[8,128], index: 0, kind: input, shape index: {}]
  %s1 = inlined_call_operand.hbm [shape: f32[8,128], index: 1, kind: output, shape index: {}]
  %s2 = sld [smem:[#allocation0]]
  $region18: #{tpu_custom_call.1} parent=0
    _
  %s4 = ssub.s32 1, %s2
  %s5 = scalar_select 0, %s4, %s2
  $region1: #{tpu_custom_call.1} parent=0
    #allocation2 [shape = 'u8[4096]{0}', space=vmem, size = 0x1000, scoped, tag = 'input window, operand 0, single buffered']
    #allocation3 [shape = 's32[1]{0}', space=sflag, size = 0x4, scoped, tag = 'scoped memory for tpu_custom_call.1']
    #allocation4 [shape = 's32[1]{0}', space=sflag, size = 0x4, scoped, tag = 'scoped memory for tpu_custom_call.1']
    #allocation5 [shape = 'u8[4096]{0}', space=vmem, size = 0x1000, scoped, tag = 'output window, operand 0, single buffered']
    %6 = vsyncpa [#allocation3], 0
    %7 = vsyncpa [#allocation4], 0
    // Predicated region
    $region2: #{tpu_custom_call.1} parent=1 // pred_check
      _
    $region3: #{tpu_custom_call.1} parent=1 // pred_check_branch
      %9 = sbr.rel (0) target = $region5
    $region4: #{tpu_custom_call.1} parent=1 // pred_region
      %11 = vsyncadd [#allocation3], 0
      %s13 = sshll.u32 %s0, 4
      %s14 = int_to_ptr.hbm [resolvable:$true] %s13
      %s15 = sshll.u32 [#allocation2], 4
      %s16 = int_to_ptr.vmem [resolvable:$true] %s15
      %18 = dma.hbm_to_vmem [thread:$0]  %s14, 128, %s16, [#allocation3]
    $region5: #{tpu_custom_call.1} parent=1 // pred_fallthru
      _
    // Predicated region
    $region6: #{tpu_custom_call.1} parent=1 // pred_check
      _
    $region7: #{tpu_custom_call.1} parent=1 // pred_check_branch
      %20 = sbr.rel (0) target = $region9
    $region8: #{tpu_custom_call.1} parent=1 // pred_region
      %22 = dma.done [#allocation3], 128
    $region9: #{tpu_custom_call.1} parent=1 // pred_fallthru
      _
    %v23 = vld [vmem:[#allocation2] sm:$0xff]
    %v24 = vmul.f32 %v23, %v23
    %v25 = vmin.f32 16.0, %v24
    %v26 = vmul.f32 %v25, 2.1237322e-06
    %v27 = vadd.f32 %v26, 0.00028619796
    %v28 = vmul.f32 %v25, %v27
    %v29 = vadd.f32 %v28, 0.0036580483
    %v30 = vmul.f32 %v25, %v29
    %v31 = vadd.f32 %v30, 0.05243302
    %v32 = vmul.f32 %v25, %v31
    %v33 = vadd.f32 %v32, 0.18741608
    %v34 = vmul.f32 %v25, %v33
    %v35 = vadd.f32 %v34, 1.1283791
    %v36 = vmul.f32 %v23, %v35
    %v37 = vmul.f32 %v25, 3.8918573e-05
    %v38 = vadd.f32 %v37, 0.001143296
    %v39 = vmul.f32 %v25, %v38
    %v40 = vadd.f32 %v39, 0.014752088
    %v41 = vmul.f32 %v25, %v40
    %v42 = vadd.f32 %v41, 0.112945676
    %v43 = vmul.f32 %v25, %v42
    %v44 = vadd.f32 %v43, 0.4994258
    %v45 = vmul.f32 %v25, %v44
    %v46 = vadd.f32 %v45, 1.0
    %v47 = vrcp.pop %v46
    %v48 = vmul.f32 %v46, %v47
    %v49 = vsub.f32 1.0, %v48
    %v50 = vmul.f32 %v47, %v49
    %v51 = vadd.f32 %v47, %v50
    %vm52 = vweird.f32 %v46
    %vm53 = vweird.f32 %v47
    %vm54 = vmor %vm52, %vm53
    %v55 = vsel %vm54, %v47, %v51
    %v56 = vand.u32 2147483647, %v46
    %vm57 = vcmp.eq.f32.partialorder %v56, 8.507059e+37
    %v58 = vand.u32 %v46, 2147483648
    %v59 = vor.u32 1.1754944e-38, %v58
    %v60 = vsel %vm57, %v59, %v55
    %v61 = vmul.f32 %v36, %v60
    %v62 = vmin.f32 %v61, 1.0
    %v63 = vmax.f32 %v62, -1.0
    %64 = vst [vmem:[#allocation5] sm:$0xff] %v63
    // Predicated region
    $region10: #{tpu_custom_call.1} parent=1 // pred_check
      _
    $region11: #{tpu_custom_call.1} parent=1 // pred_check_branch
      %66 = sbr.rel (0) target = $region13
    $region12: #{tpu_custom_call.1} parent=1 // pred_region
      %68 = vsyncadd [#allocation4], 0
      %s70 = sshll.u32 [#allocation5], 4
      %s71 = int_to_ptr.vmem [resolvable:$true] %s70
      %s72 = sshll.u32 %s1, 4
      %s73 = int_to_ptr.hbm [resolvable:$true] %s72
      %75 = dma.vmem_to_hbm [thread:$0]  %s71, 128, %s73, [#allocation4]
    $region13: #{tpu_custom_call.1} parent=1 // pred_fallthru
      _
    // Predicated region
    $region14: #{tpu_custom_call.1} parent=1 // pred_check
      _
    $region15: #{tpu_custom_call.1} parent=1 // pred_check_branch
      %77 = sbr.rel (0) target = $region17
    $region16: #{tpu_custom_call.1} parent=1 // pred_region
      %79 = dma.done [#allocation4], 128
    $region17: #{tpu_custom_call.1} parent=1 // pred_fallthru
      _
    %80 = vsyncpa [#allocation3], 1
    %81 = vsyncpa [#allocation4], 1

// kernel: pretrain_net_forward.3
$region0: #{pretrain_net_forward.3}
  #allocation0 [shape = 'u32[]', space=smem, size = 0x4, offset = 0x4, fixed_abs, tag = 'smem constant byte address 0x4 - core index']
  #allocation1 [shape = 'u32[72,128]{1,0:T(1,128)}', space=vmem, size = 0x9000, scoped, tag = 'internal scratch']
  #allocation2 [shape = 'f32[1,1]{1,0:T(1,128)S(1)}', space=vmem, size = 0x200, scoped, tag = 'scoped memory for pretrain_net_forward.3']
  %s0 = inlined_call_operand.vmem [shape: f32[16,64], index: 0, kind: input, shape index: {}]
  %s1 = inlined_call_operand.vmem [shape: f32[64,32], index: 1, kind: input, shape index: {}]
  %s2 = inlined_call_operand.vmem [shape: f32[1,32], index: 2, kind: input, shape index: {}]
  %s3 = inlined_call_operand.vmem [shape: f32[32,32], index: 3, kind: input, shape index: {}]
  %s4 = inlined_call_operand.vmem [shape: f32[1,32], index: 4, kind: input, shape index: {}]
  %s5 = inlined_call_operand.vmem [shape: f32[32,1], index: 5, kind: input, shape index: {}]
  %s6 = inlined_call_operand.<no memory space> [shape: f32[1,1], index: 6, kind: input, shape index: {}]
  %s7 = inlined_call_operand.vmem [shape: f32[8,1], index: 7, kind: output, shape index: {}]
  %s8 = sld [smem:[#allocation0]]
  $region38: #{pretrain_net_forward.3} parent=0
    _
  %s10 = ssub.s32 1, %s8
  %s11 = scalar_select 0, %s10, %s8
  %v12 = vstv %s6
  %13 = vst [vmem:[#allocation2] sm:$0x1] %v12
  // Predicated region
  $region2: #{pretrain_net_forward.3} parent=0 // pred_check
    _
  $region3: #{pretrain_net_forward.3} parent=0 // pred_check_branch
    %15 = sbr.rel (0) target = $region5
  $region4: #{pretrain_net_forward.3} parent=0 // pred_region
    _
  $region5: #{pretrain_net_forward.3} parent=0 // pred_fallthru
    _
  // Predicated region
  $region6: #{pretrain_net_forward.3} parent=0 // pred_check
    _
  $region7: #{pretrain_net_forward.3} parent=0 // pred_check_branch
    %17 = sbr.rel (0) target = $region9
  $region8: #{pretrain_net_forward.3} parent=0 // pred_region
    _
  $region9: #{pretrain_net_forward.3} parent=0 // pred_fallthru
    _
  // Predicated region
  $region10: #{pretrain_net_forward.3} parent=0 // pred_check
    _
  $region11: #{pretrain_net_forward.3} parent=0 // pred_check_branch
    %19 = sbr.rel (0) target = $region13
  $region12: #{pretrain_net_forward.3} parent=0 // pred_region
    _
  $region13: #{pretrain_net_forward.3} parent=0 // pred_fallthru
    _
  // Predicated region
  $region14: #{pretrain_net_forward.3} parent=0 // pred_check
    _
  $region15: #{pretrain_net_forward.3} parent=0 // pred_check_branch
    %21 = sbr.rel (0) target = $region17
  $region16: #{pretrain_net_forward.3} parent=0 // pred_region
    _
  $region17: #{pretrain_net_forward.3} parent=0 // pred_fallthru
    _
  // Predicated region
  $region18: #{pretrain_net_forward.3} parent=0 // pred_check
    _
  $region19: #{pretrain_net_forward.3} parent=0 // pred_check_branch
    %23 = sbr.rel (0) target = $region21
  $region20: #{pretrain_net_forward.3} parent=0 // pred_region
    _
  $region21: #{pretrain_net_forward.3} parent=0 // pred_fallthru
    _
  // Predicated region
  $region22: #{pretrain_net_forward.3} parent=0 // pred_check
    _
  $region23: #{pretrain_net_forward.3} parent=0 // pred_check_branch
    %25 = sbr.rel (0) target = $region25
  $region24: #{pretrain_net_forward.3} parent=0 // pred_region
    _
  $region25: #{pretrain_net_forward.3} parent=0 // pred_fallthru
    _
  // Predicated region
  $region26: #{pretrain_net_forward.3} parent=0 // pred_check
    _
  $region27: #{pretrain_net_forward.3} parent=0 // pred_check_branch
    %27 = sbr.rel (0) target = $region29
  $region28: #{pretrain_net_forward.3} parent=0 // pred_region
    _
  $region29: #{pretrain_net_forward.3} parent=0 // pred_fallthru
    _
  %v28 = vld [vmem:[%s0] sm:$0xff]
  %v29 = vld [vmem:[%s0 + $0x8] sm:$0xff]
  %v30 = vld [vmem:[%s1] sm:$0xff]
  %v31 = vld [vmem:[%s1 + $0x8] sm:$0xff]
  %v32 = vld [vmem:[%s1 + $0x10] sm:$0xff]
  %v33 = vld [vmem:[%s1 + $0x18] sm:$0xff]
  %v34 = vld [vmem:[%s1 + $0x20] sm:$0xff]
  %v35 = vld [vmem:[%s1 + $0x28] sm:$0xff]
  %v36 = vld [vmem:[%s1 + $0x30] sm:$0xff]
  %v37 = vld [vmem:[%s1 + $0x38] sm:$0xff]
  %v38 = vld [vmem:[%s2] sm:$0x1]
  %v40 = vperm.slane %v38, 0
  %vm42 = vcmask 523264
  %v44 = vsel %vm42, %v28, 0
  %v47 = vsel %vm42, %v29, 0
  %49 = vmatpush.msra.mxu0 0.0
  %50 = vmatpush.msra.mxu0 0.0
  %51 = vmatpush.msra.mxu0 0.0
  %52 = vmatpush.msra.mxu0 0.0
  %53 = vmatpush.msra.mxu0 0.0
  %54 = vmatpush.msra.mxu0 0.0
  %55 = vmatpush.msra.mxu0 0.0
  %56 = vmatpush.msra.mxu0 0.0
  %57 = vmatpush.msra.mxu0 %v37
  %58 = vmatpush.msra.mxu0 %v36
  %59 = vmatpush.msra.mxu0 %v35
  %60 = vmatpush.msra.mxu0 %v34
  %61 = vmatpush.msra.mxu0 %v33
  %62 = vmatpush.msra.mxu0 %v32
  %63 = vmatpush.msra.mxu0 %v31
  %64 = vmatpush.msra.mxu0 %v30
  %65 = vmatmul.f32.gmra.mxu0 %v44
  %v66 = vpop.f32.mrf.mxu0
  %v67 = vadd.f32 %v40, %v66
  %68 = vmatmul.f32.gmra.mxu0 %v47
  %v69 = vpop.f32.mrf.mxu0
  %v70 = vadd.f32 %v40, %v69
  %71 = vdwg.mxu0
  %v72 = vmul.f32 %v67, 0.5
  %v73 = vmul.f32 %v70, 0.5
  %v74 = vmul.f32 %v67, %v67
  %v75 = vmul.f32 %v70, %v70
  %v76 = vmul.f32 %v74, %v67
  %v77 = vmul.f32 %v75, %v70
  %v78 = vmul.f32 %v76, 0.044715
  %v79 = vmul.f32 %v77, 0.044715
  %v80 = vadd.f32 %v67, %v78
  %v81 = vadd.f32 %v70, %v79
  %v82 = vmul.f32 %v80, 0.7978846
  %v83 = vmul.f32 %v81, 0.7978846
  %v84 = vtanh.pop %v82
  %v85 = vtanh.pop %v83
  %v86 = vadd.f32 %v84, 1.0
  %v87 = vadd.f32 %v85, 1.0
  %v88 = vmul.f32 %v72, %v86
  %v89 = vmul.f32 %v73, %v87
  %v90 = vld [vmem:[%s3] sm:$0xff]
  %v91 = vld [vmem:[%s3 + $0x8] sm:$0xff]
  %v92 = vld [vmem:[%s3 + $0x10] sm:$0xff]
  %v93 = vld [vmem:[%s3 + $0x18] sm:$0xff]
  %v94 = vld [vmem:[%s4] sm:$0x1]
  %v96 = vperm.slane %v94, 0
  %vm98 = vcmask 261120
  %v100 = vsel %vm98, %v88, 0
  %v103 = vsel %vm98, %v89, 0
  %105 = vmatpush.msra.mxu0 0.0
  %106 = vmatpush.msra.mxu0 0.0
  %107 = vmatpush.msra.mxu0 0.0
  %108 = vmatpush.msra.mxu0 0.0
  %109 = vmatpush.msra.mxu0 0.0
  %110 = vmatpush.msra.mxu0 0.0
  %111 = vmatpush.msra.mxu0 0.0
  %112 = vmatpush.msra.mxu0 0.0
  %113 = vmatpush.msra.mxu0 0.0
  %114 = vmatpush.msra.mxu0 0.0
  %115 = vmatpush.msra.mxu0 0.0
  %116 = vmatpush.msra.mxu0 0.0
  %117 = vmatpush.msra.mxu0 %v93
  %118 = vmatpush.msra.mxu0 %v92
  %119 = vmatpush.msra.mxu0 %v91
  %120 = vmatpush.msra.mxu0 %v90
  %121 = vmatmul.f32.gmra.mxu0 %v100
  %v122 = vpop.f32.mrf.mxu0
  %v123 = vadd.f32 %v96, %v122
  %124 = vmatmul.f32.gmra.mxu0 %v103
  %v125 = vpop.f32.mrf.mxu0
  %v126 = vadd.f32 %v96, %v125
  %127 = vdwg.mxu0
  %v128 = vmul.f32 %v123, 0.5
  %v129 = vmul.f32 %v126, 0.5
  %v130 = vmul.f32 %v123, %v123
  %v131 = vmul.f32 %v126, %v126
  %v132 = vmul.f32 %v130, %v123
  %v133 = vmul.f32 %v131, %v126
  %v134 = vmul.f32 %v132, 0.044715
  %v135 = vmul.f32 %v133, 0.044715
  %v136 = vadd.f32 %v123, %v134
  %v137 = vadd.f32 %v126, %v135
  %v138 = vmul.f32 %v136, 0.7978846
  %v139 = vmul.f32 %v137, 0.7978846
  %v140 = vtanh.pop %v138
  %v141 = vtanh.pop %v139
  %v142 = vadd.f32 %v140, 1.0
  %v143 = vadd.f32 %v141, 1.0
  %v144 = vmul.f32 %v128, %v142
  %v145 = vmul.f32 %v129, %v143
  %v146 = vld [vmem:[%s5] sm:$0xff]
  %v147 = vld [vmem:[%s5 + $0x8] sm:$0xff]
  %v148 = vld [vmem:[%s5 + $0x10] sm:$0xff]
  %v149 = vld [vmem:[%s5 + $0x18] sm:$0xff]
  %v150 = vld [vmem:[#allocation2] sm:$0x1]
  %v152 = vperm.slane %v150, 0
  %v155 = vsel %vm98, %v144, 0
  %v158 = vsel %vm98, %v145, 0
  %160 = vmatpush.msra.mxu0 0.0
  %161 = vmatpush.msra.mxu0 0.0
  %162 = vmatpush.msra.mxu0 0.0
  %163 = vmatpush.msra.mxu0 0.0
  %164 = vmatpush.msra.mxu0 0.0
  %165 = vmatpush.msra.mxu0 0.0
  %166 = vmatpush.msra.mxu0 0.0
  %167 = vmatpush.msra.mxu0 0.0
  %168 = vmatpush.msra.mxu0 0.0
  %169 = vmatpush.msra.mxu0 0.0
  %170 = vmatpush.msra.mxu0 0.0
  %171 = vmatpush.msra.mxu0 0.0
  %172 = vmatpush.msra.mxu0 %v149
  %173 = vmatpush.msra.mxu0 %v148
  %174 = vmatpush.msra.mxu0 %v147
  %175 = vmatpush.msra.mxu0 %v146
  %176 = vmatmul.f32.gmra.mxu0 %v155
  %v177 = vpop.f32.mrf.mxu0
  %v178 = vadd.f32 %v152, %v177
  %179 = vmatmul.f32.gmra.mxu0 %v158
  %v180 = vpop.f32.mrf.mxu0
  %v181 = vadd.f32 %v152, %v180
  %182 = vdwg.mxu0
  %v183 = vadd.f32 %v178, %v181
  %v184 = vmul.f32 %v183, 0.5
  %vm185 = vcmask 7168
  %186 = vst.msk [vmem:[%s7] sm:$0xff] %vm185, %v184
  // Predicated region
  $region30: #{pretrain_net_forward.3} parent=0 // pred_check
    _
  $region31: #{pretrain_net_forward.3} parent=0 // pred_check_branch
    %188 = sbr.rel (0) target = $region33
  $region32: #{pretrain_net_forward.3} parent=0 // pred_region
    _
  $region33: #{pretrain_net_forward.3} parent=0 // pred_fallthru
    _
  // Predicated region
  $region34: #{pretrain_net_forward.3} parent=0 // pred_check
    _
  $region35: #{pretrain_net_forward.3} parent=0 // pred_check_branch
    %190 = sbr.rel (0) target = $region37
  $region36: #{pretrain_net_forward.3} parent=0 // pred_region
    _
  $region37: #{pretrain_net_forward.3} parent=0 // pred_fallthru
    _

// kernel: pretrain_net_forward.2
$region0: #{pretrain_net_forward.2}
  #allocation0 [shape = 'u32[]', space=smem, size = 0x4, offset = 0x4, fixed_abs, tag = 'smem constant byte address 0x4 - core index']
  #allocation1 [shape = 'u32[72,128]{1,0:T(1,128)}', space=vmem, size = 0x9000, scoped, tag = 'internal scratch']
  %s0 = inlined_call_operand.vmem [shape: f32[32,36], index: 0, kind: input, shape index: {}]
  %s1 = inlined_call_operand.vmem [shape: f32[2,16], index: 1, kind: input, shape index: {}]
  %s2 = inlined_call_operand.vmem [shape: f32[32,32], index: 2, kind: input, shape index: {}]
  %s3 = inlined_call_operand.vmem [shape: f32[32,32], index: 3, kind: input, shape index: {}]
  %s4 = inlined_call_operand.vmem [shape: f32[32,32], index: 4, kind: input, shape index: {}]
  %s5 = inlined_call_operand.vmem [shape: f32[32,32], index: 5, kind: input, shape index: {}]
  %s6 = inlined_call_operand.vmem [shape: f32[36,32], index: 6, kind: input, shape index: {}]
  %s7 = inlined_call_operand.vmem [shape: f32[1,32], index: 7, kind: input, shape index: {}]
  %s8 = inlined_call_operand.vmem [shape: f32[6,96,32], index: 8, kind: input, shape index: {}]
  %s9 = inlined_call_operand.vmem [shape: f32[6,32], index: 9, kind: input, shape index: {}]
  %s10 = inlined_call_operand.vmem [shape: f32[6,32], index: 10, kind: input, shape index: {}]
  %s11 = inlined_call_operand.vmem [shape: f32[6,32], index: 11, kind: input, shape index: {}]
  %s12 = inlined_call_operand.vmem [shape: f32[2,32,96], index: 12, kind: input, shape index: {}]
  %s13 = inlined_call_operand.vmem [shape: f32[2,96], index: 13, kind: input, shape index: {}]
  %s14 = inlined_call_operand.vmem [shape: f32[2,32,32], index: 14, kind: input, shape index: {}]
  %s15 = inlined_call_operand.vmem [shape: f32[2,32], index: 15, kind: input, shape index: {}]
  %s16 = inlined_call_operand.vmem [shape: f32[2,32,32], index: 16, kind: input, shape index: {}]
  %s17 = inlined_call_operand.vmem [shape: f32[2,32], index: 17, kind: input, shape index: {}]
  %s18 = inlined_call_operand.vmem [shape: f32[2,32,32], index: 18, kind: input, shape index: {}]
  %s19 = inlined_call_operand.vmem [shape: f32[2,32], index: 19, kind: input, shape index: {}]
  %s20 = inlined_call_operand.vmem [shape: f32[2,32], index: 20, kind: input, shape index: {}]
  %s21 = inlined_call_operand.vmem [shape: f32[2,32], index: 21, kind: input, shape index: {}]
  %s22 = inlined_call_operand.vmem [shape: f32[2,32], index: 22, kind: input, shape index: {}]
  %s23 = inlined_call_operand.vmem [shape: f32[2,32], index: 23, kind: input, shape index: {}]
  %s24 = inlined_call_operand.vmem [shape: f32[32,32], index: 24, kind: output, shape index: {}]
  %s25 = sld [smem:[#allocation0]]
  $region106: #{pretrain_net_forward.2} parent=0
    _
  %s27 = ssub.s32 1, %s25
  %s28 = scalar_select 0, %s27, %s25
  // Predicated region
  $region2: #{pretrain_net_forward.2} parent=0 // pred_check
    _
  $region3: #{pretrain_net_forward.2} parent=0 // pred_check_branch
    %30 = sbr.rel (0) target = $region5
  $region4: #{pretrain_net_forward.2} parent=0 // pred_region
    _
  $region5: #{pretrain_net_forward.2} parent=0 // pred_fallthru
    _
  // Predicated region
  $region6: #{pretrain_net_forward.2} parent=0 // pred_check
    _
  $region7: #{pretrain_net_forward.2} parent=0 // pred_check_branch
    %32 = sbr.rel (0) target = $region9
  $region8: #{pretrain_net_forward.2} parent=0 // pred_region
    _
  $region9: #{pretrain_net_forward.2} parent=0 // pred_fallthru
    _
  // Predicated region
  $region10: #{pretrain_net_forward.2} parent=0 // pred_check
    _
  $region11: #{pretrain_net_forward.2} parent=0 // pred_check_branch
    %34 = sbr.rel (0) target = $region13
  $region12: #{pretrain_net_forward.2} parent=0 // pred_region
    _
  $region13: #{pretrain_net_forward.2} parent=0 // pred_fallthru
    _
  // Predicated region
  $region14: #{pretrain_net_forward.2} parent=0 // pred_check
    _
  $region15: #{pretrain_net_forward.2} parent=0 // pred_check_branch
    %36 = sbr.rel (0) target = $region17
  $region16: #{pretrain_net_forward.2} parent=0 // pred_region
    _
  $region17: #{pretrain_net_forward.2} parent=0 // pred_fallthru
    _
  // Predicated region
  $region18: #{pretrain_net_forward.2} parent=0 // pred_check
    _
  $region19: #{pretrain_net_forward.2} parent=0 // pred_check_branch
    %38 = sbr.rel (0) target = $region21
  $region20: #{pretrain_net_forward.2} parent=0 // pred_region
    _
  $region21: #{pretrain_net_forward.2} parent=0 // pred_fallthru
    _
  // Predicated region
  $region22: #{pretrain_net_forward.2} parent=0 // pred_check
    _
  $region23: #{pretrain_net_forward.2} parent=0 // pred_check_branch
    %40 = sbr.rel (0) target = $region25
  $region24: #{pretrain_net_forward.2} parent=0 // pred_region
    _
  $region25: #{pretrain_net_forward.2} parent=0 // pred_fallthru
    _
  // Predicated region
  $region26: #{pretrain_net_forward.2} parent=0 // pred_check
    _
  $region27: #{pretrain_net_forward.2} parent=0 // pred_check_branch
    %42 = sbr.rel (0) target = $region29
  $region28: #{pretrain_net_forward.2} parent=0 // pred_region
    _
  $region29: #{pretrain_net_forward.2} parent=0 // pred_fallthru
    _
  // Predicated region
  $region30: #{pretrain_net_forward.2} parent=0 // pred_check
    _
  $region31: #{pretrain_net_forward.2} parent=0 // pred_check_branch
    %44 = sbr.rel (0) target = $region33
  $region32: #{pretrain_net_forward.2} parent=0 // pred_region
    _
  $region33: #{pretrain_net_forward.2} parent=0 // pred_fallthru
    _
  // Predicated region
  $region34: #{pretrain_net_forward.2} parent=0 // pred_check
    _
  $region35: #{pretrain_net_forward.2} parent=0 // pred_check_branch
    %46 = sbr.rel (0) target = $region37
  $region36: #{pretrain_net_forward.2} parent=0 // pred_region
    _
  $region37: #{pretrain_net_forward.2} parent=0 // pred_fallthru
    _
  // Predicated region
  $region38: #{pretrain_net_forward.2} parent=0 // pred_check
    _
  $region39: #{pretrain_net_forward.2} parent=0 // pred_check_branch
    %48 = sbr.rel (0) target = $region41
  $region40: #{pretrain_net_forward.2} parent=0 // pred_region
    _
  $region41: #{pretrain_net_forward.2} parent=0 // pred_fallthru
    _
  // Predicated region
  $region42: #{pretrain_net_forward.2} parent=0 // pred_check
    _
  $region43: #{pretrain_net_forward.2} parent=0 // pred_check_branch
    %50 = sbr.rel (0) target = $region45
  $region44: #{pretrain_net_forward.2} parent=0 // pred_region
    _
  $region45: #{pretrain_net_forward.2} parent=0 // pred_fallthru
    _
  // Predicated region
  $region46: #{pretrain_net_forward.2} parent=0 // pred_check
    _
  $region47: #{pretrain_net_forward.2} parent=0 // pred_check_branch
    %52 = sbr.rel (0) target = $region49
  $region48: #{pretrain_net_forward.2} parent=0 // pred_region
    _
  $region49: #{pretrain_net_forward.2} parent=0 // pred_fallthru
    _
  // Predicated region
  $region50: #{pretrain_net_forward.2} parent=0 // pred_check
    _
  $region51: #{pretrain_net_forward.2} parent=0 // pred_check_branch
    %54 = sbr.rel (0) target = $region53
  $region52: #{pretrain_net_forward.2} parent=0 // pred_region
    _
  $region53: #{pretrain_net_forward.2} parent=0 // pred_fallthru
    _
  // Predicated region
  $region54: #{pretrain_net_forward.2} parent=0 // pred_check
    _
  $region55: #{pretrain_net_forward.2} parent=0 // pred_check_branch
    %56 = sbr.rel (0) target = $region57
  $region56: #{pretrain_net_forward.2} parent=0 // pred_region
    _
  $region57: #{pretrain_net_forward.2} parent=0 // pred_fallthru
    _
  // Predicated region
  $region58: #{pretrain_net_forward.2} parent=0 // pred_check
    _
  $region59: #{pretrain_net_forward.2} parent=0 // pred_check_branch
    %58 = sbr.rel (0) target = $region61
  $region60: #{pretrain_net_forward.2} parent=0 // pred_region
    _
  $region61: #{pretrain_net_forward.2} parent=0 // pred_fallthru
    _
  // Predicated region
  $region62: #{pretrain_net_forward.2} parent=0 // pred_check
    _
  $region63: #{pretrain_net_forward.2} parent=0 // pred_check_branch
    %60 = sbr.rel (0) target = $region65
  $region64: #{pretrain_net_forward.2} parent=0 // pred_region
    _
  $region65: #{pretrain_net_forward.2} parent=0 // pred_fallthru
    _
  // Predicated region
  $region66: #{pretrain_net_forward.2} parent=0 // pred_check
    _
  $region67: #{pretrain_net_forward.2} parent=0 // pred_check_branch
    %62 = sbr.rel (0) target = $region69
  $region68: #{pretrain_net_forward.2} parent=0 // pred_region
    _
  $region69: #{pretrain_net_forward.2} parent=0 // pred_fallthru
    _
  // Predicated region
  $region70: #{pretrain_net_forward.2} parent=0 // pred_check
    _
  $region71: #{pretrain_net_forward.2} parent=0 // pred_check_branch
    %64 = sbr.rel (0) target = $region73
  $region72: #{pretrain_net_forward.2} parent=0 // pred_region
    _
  $region73: #{pretrain_net_forward.2} parent=0 // pred_fallthru
    _
  // Predicated region
  $region74: #{pretrain_net_forward.2} parent=0 // pred_check
    _
  $region75: #{pretrain_net_forward.2} parent=0 // pred_check_branch
    %66 = sbr.rel (0) target = $region77
  $region76: #{pretrain_net_forward.2} parent=0 // pred_region
    _
  $region77: #{pretrain_net_forward.2} parent=0 // pred_fallthru
    _
  // Predicated region
  $region78: #{pretrain_net_forward.2} parent=0 // pred_check
    _
  $region79: #{pretrain_net_forward.2} parent=0 // pred_check_branch
    %68 = sbr.rel (0) target = $region81
  $region80: #{pretrain_net_forward.2} parent=0 // pred_region
    _
  $region81: #{pretrain_net_forward.2} parent=0 // pred_fallthru
    _
  // Predicated region
  $region82: #{pretrain_net_forward.2} parent=0 // pred_check
    _
  $region83: #{pretrain_net_forward.2} parent=0 // pred_check_branch
    %70 = sbr.rel (0) target = $region85
  $region84: #{pretrain_net_forward.2} parent=0 // pred_region
    _
  $region85: #{pretrain_net_forward.2} parent=0 // pred_fallthru
    _
  // Predicated region
  $region86: #{pretrain_net_forward.2} parent=0 // pred_check
    _
  $region87: #{pretrain_net_forward.2} parent=0 // pred_check_branch
    %72 = sbr.rel (0) target = $region89
  $region88: #{pretrain_net_forward.2} parent=0 // pred_region
    _
  $region89: #{pretrain_net_forward.2} parent=0 // pred_fallthru
    _
  // Predicated region
  $region90: #{pretrain_net_forward.2} parent=0 // pred_check
    _
  $region91: #{pretrain_net_forward.2} parent=0 // pred_check_branch
    %74 = sbr.rel (0) target = $region93
  $region92: #{pretrain_net_forward.2} parent=0 // pred_region
    _
  $region93: #{pretrain_net_forward.2} parent=0 // pred_fallthru
    _
  // Predicated region
  $region94: #{pretrain_net_forward.2} parent=0 // pred_check
    _
  $region95: #{pretrain_net_forward.2} parent=0 // pred_check_branch
    %76 = sbr.rel (0) target = $region97
  $region96: #{pretrain_net_forward.2} parent=0 // pred_region
    _
  $region97: #{pretrain_net_forward.2} parent=0 // pred_fallthru
    _
  %v77 = vld [vmem:[%s2] sm:$0xff]
  %v78 = vld [vmem:[%s2 + $0x8] sm:$0xff]
  %v79 = vld [vmem:[%s2 + $0x10] sm:$0xff]
  %v80 = vld [vmem:[%s2 + $0x18] sm:$0xff]
  %v81 = vld [vmem:[%s3] sm:$0xff]
  %v82 = vld [vmem:[%s3 + $0x8] sm:$0xff]
  %v83 = vld [vmem:[%s3 + $0x10] sm:$0xff]
  %v84 = vld [vmem:[%s3 + $0x18] sm:$0xff]
  %v85 = vld [vmem:[%s4] sm:$0xff]
  %v86 = vld [vmem:[%s4 + $0x8] sm:$0xff]
  %v87 = vld [vmem:[%s4 + $0x10] sm:$0xff]
  %v88 = vld [vmem:[%s4 + $0x18] sm:$0xff]
  %v89 = vld [vmem:[%s5] sm:$0xff]
  %v90 = vld [vmem:[%s5 + $0x8] sm:$0xff]
  %v91 = vld [vmem:[%s5 + $0x10] sm:$0xff]
  %v92 = vld [vmem:[%s5 + $0x18] sm:$0xff]
  %v93 = vld [vmem:[%s1] sm:$0x3]
  %v94 = vld [vmem:[%s0] sm:$0xff]
  %v95 = vld [vmem:[%s0 + $0x8] sm:$0xff]
  %v96 = vld [vmem:[%s0 + $0x10] sm:$0xff]
  %v97 = vld [vmem:[%s0 + $0x18] sm:$0xff]
  %v98 = vld [vmem:[%s6] sm:$0xff]
  %v99 = vld [vmem:[%s6 + $0x8] sm:$0xff]
  %v100 = vld [vmem:[%s6 + $0x10] sm:$0xff]
  %v101 = vld [vmem:[%s6 + $0x18] sm:$0xff]
  %v102 = vld [vmem:[%s6 + $0x20] sm:$0xf]
  %v103 = vld [vmem:[%s7] sm:$0x1]
  %v105 = vperm.slane %v103, 0
  %vm107 = vcmask 293888
  %v109 = vsel %vm107, %v94, 0
  %v112 = vsel %vm107, %v95, 0
  %v115 = vsel %vm107, %v96, 0
  %v118 = vsel %vm107, %v97, 0
  %vm120 = vcmask 1043456
  %v122 = vsel %vm120, %v102, 0
  %124 = vmatpush.msra.mxu0 0.0
  %125 = vmatpush.msra.mxu0 0.0
  %126 = vmatpush.msra.mxu0 0.0
  %127 = vmatpush.msra.mxu0 0.0
  %128 = vmatpush.msra.mxu0 0.0
  %129 = vmatpush.msra.mxu0 0.0
  %130 = vmatpush.msra.mxu0 0.0
  %131 = vmatpush.msra.mxu0 0.0
  %132 = vmatpush.msra.mxu0 0.0
  %133 = vmatpush.msra.mxu0 0.0
  %134 = vmatpush.msra.mxu0 0.0
  %135 = vmatpush.msra.mxu0 %v122
  %136 = vmatpush.msra.mxu0 %v101
  %137 = vmatpush.msra.mxu0 %v100
  %138 = vmatpush.msra.mxu0 %v99
  %139 = vmatpush.msra.mxu0 %v98
  %140 = vmatmul.f32.gmra.mxu0 %v109
  %v141 = vpop.f32.mrf.mxu0
  %v142 = vadd.f32 %v105, %v141
  %143 = vmatmul.f32.gmra.mxu0 %v112
  %v144 = vpop.f32.mrf.mxu0
  %v145 = vadd.f32 %v105, %v144
  %146 = vmatmul.f32.gmra.mxu0 %v115
  %v147 = vpop.f32.mrf.mxu0
  %v148 = vadd.f32 %v105, %v147
  %149 = vmatmul.f32.gmra.mxu0 %v118
  %v150 = vpop.f32.mrf.mxu0
  %v151 = vadd.f32 %v105, %v150
  %152 = vdwg.mxu0
  %v153 = vld [vmem:[%s8] sm:$0xff]
  %v154 = vld [vmem:[%s8 + $0x8] sm:$0xff]
  %v155 = vld [vmem:[%s8 + $0x10] sm:$0xff]
  %v156 = vld [vmem:[%s8 + $0x18] sm:$0xff]
  %v157 = vld [vmem:[%s8 + $0x20] sm:$0xff]
  %v158 = vld [vmem:[%s8 + $0x28] sm:$0xff]
  %v159 = vld [vmem:[%s8 + $0x30] sm:$0xff]
  %v160 = vld [vmem:[%s8 + $0x38] sm:$0xff]
  %v161 = vld [vmem:[%s8 + $0x40] sm:$0xff]
  %v162 = vld [vmem:[%s8 + $0x48] sm:$0xff]
  %v163 = vld [vmem:[%s8 + $0x50] sm:$0xff]
  %v164 = vld [vmem:[%s8 + $0x58] sm:$0xff]
  %v165 = vld [vmem:[%s9] sm:$0x1]
  %vm166 = vcmask 261120
  %v168 = vsel %vm166, %v77, 0
  %v171 = vsel %vm166, %v78, 0
  %v174 = vsel %vm166, %v79, 0
  %v177 = vsel %vm166, %v80, 0
  %179 = vmatpush.msra.mxu0 0.0
  %180 = vmatpush.msra.mxu0 0.0
  %181 = vmatpush.msra.mxu0 0.0
  %182 = vmatpush.msra.mxu0 0.0
  %183 = vmatpush.msra.mxu0 0.0
  %184 = vmatpush.msra.mxu0 0.0
  %185 = vmatpush.msra.mxu0 0.0
  %186 = vmatpush.msra.mxu0 0.0
  %187 = vmatpush.msra.mxu0 0.0
  %188 = vmatpush.msra.mxu0 0.0
  %189 = vmatpush.msra.mxu0 0.0
  %190 = vmatpush.msra.mxu0 0.0
  %191 = vmatpush.msra.mxu0 %v151
  %192 = vmatpush.msra.mxu0 %v148
  %193 = vmatpush.msra.mxu0 %v145
  %194 = vmatpush.msra.mxu0 %v142
  %195 = vmatmul.f32.gmra.mxu0 %v168
  %v196 = vpop.f32.mrf.mxu0
  %v197 = vadd.f32 0.0, %v196
  %198 = vmatmul.f32.gmra.mxu0 %v171
  %v199 = vpop.f32.mrf.mxu0
  %v200 = vadd.f32 0.0, %v199
  %201 = vmatmul.f32.gmra.mxu0 %v174
  %v202 = vpop.f32.mrf.mxu0
  %v203 = vadd.f32 0.0, %v202
  %204 = vmatmul.f32.gmra.mxu0 %v177
  %v205 = vpop.f32.mrf.mxu0
  %v206 = vadd.f32 0.0, %v205
  %207 = vdwg.mxu0
  %v209 = vsel %vm166, %v81, 0
  %v212 = vsel %vm166, %v82, 0
  %v215 = vsel %vm166, %v83, 0
  %v218 = vsel %vm166, %v84, 0
  %220 = vmatpush.msra.mxu0 0.0
  %221 = vmatpush.msra.mxu0 0.0
  %222 = vmatpush.msra.mxu0 0.0
  %223 = vmatpush.msra.mxu0 0.0
  %224 = vmatpush.msra.mxu0 0.0
  %225 = vmatpush.msra.mxu0 0.0
  %226 = vmatpush.msra.mxu0 0.0
  %227 = vmatpush.msra.mxu0 0.0
  %228 = vmatpush.msra.mxu0 0.0
  %229 = vmatpush.msra.mxu0 0.0
  %230 = vmatpush.msra.mxu0 0.0
  %231 = vmatpush.msra.mxu0 0.0
  %232 = vmatpush.msra.mxu0 %v151
  %233 = vmatpush.msra.mxu0 %v148
  %234 = vmatpush.msra.mxu0 %v145
  %235 = vmatpush.msra.mxu0 %v142
  %236 = vmatmul.f32.gmra.mxu0 %v209
  %v237 = vpop.f32.mrf.mxu0
  %v238 = vadd.f32 0.0, %v237
  %239 = vmatmul.f32.gmra.mxu0 %v212
  %v240 = vpop.f32.mrf.mxu0
  %v241 = vadd.f32 0.0, %v240
  %242 = vmatmul.f32.gmra.mxu0 %v215
  %v243 = vpop.f32.mrf.mxu0
  %v244 = vadd.f32 0.0, %v243
  %245 = vmatmul.f32.gmra.mxu0 %v218
  %v246 = vpop.f32.mrf.mxu0
  %v247 = vadd.f32 0.0, %v246
  %248 = vdwg.mxu0
  %v250 = vsel %vm166, %v142, 0
  %v253 = vsel %vm166, %v145, 0
  %v256 = vsel %vm166, %v148, 0
  %v259 = vsel %vm166, %v151, 0
  %261 = vmatpush.msra.mxu0 0.0
  %262 = vmatpush.msra.mxu0 0.0
  %263 = vmatpush.msra.mxu0 0.0
  %264 = vmatpush.msra.mxu0 0.0
  %265 = vmatpush.msra.mxu0 0.0
  %266 = vmatpush.msra.mxu0 0.0
  %267 = vmatpush.msra.mxu0 0.0
  %268 = vmatpush.msra.mxu0 0.0
  %269 = vmatpush.msra.mxu0 0.0
  %270 = vmatpush.msra.mxu0 0.0
  %271 = vmatpush.msra.mxu0 0.0
  %272 = vmatpush.msra.mxu0 0.0
  %273 = vmatpush.msra.mxu0 %v160
  %274 = vmatpush.msra.mxu0 %v159
  %275 = vmatpush.msra.mxu0 %v158
  %276 = vmatpush.msra.mxu0 %v157
  %277 = vmatmul.f32.gmra.mxu0 %v250
  %v278 = vpop.f32.mrf.mxu0
  %v279 = vadd.f32 0.0, %v278
  %280 = vmatmul.f32.gmra.mxu0 %v253
  %v281 = vpop.f32.mrf.mxu0
  %v282 = vadd.f32 0.0, %v281
  %283 = vmatmul.f32.gmra.mxu0 %v256
  %v284 = vpop.f32.mrf.mxu0
  %v285 = vadd.f32 0.0, %v284
  %286 = vmatmul.f32.gmra.mxu0 %v259
  %v287 = vpop.f32.mrf.mxu0
  %v288 = vadd.f32 0.0, %v287
  %289 = vdwg.mxu0
  %v291 = vsel %vm166, %v197, 0
  %v294 = vsel %vm166, %v200, 0
  %v297 = vsel %vm166, %v203, 0
  %v300 = vsel %vm166, %v206, 0
  %302 = vmatpush.msra.mxu0 0.0
  %303 = vmatpush.msra.mxu0 0.0
  %304 = vmatpush.msra.mxu0 0.0
  %305 = vmatpush.msra.mxu0 0.0
  %306 = vmatpush.msra.mxu0 0.0
  %307 = vmatpush.msra.mxu0 0.0
  %308 = vmatpush.msra.mxu0 0.0
  %309 = vmatpush.msra.mxu0 0.0
  %310 = vmatpush.msra.mxu0 0.0
  %311 = vmatpush.msra.mxu0 0.0
  %312 = vmatpush.msra.mxu0 0.0
  %313 = vmatpush.msra.mxu0 0.0
  %314 = vmatpush.msra.mxu0 %v156
  %315 = vmatpush.msra.mxu0 %v155
  %316 = vmatpush.msra.mxu0 %v154
  %317 = vmatpush.msra.mxu0 %v153
  %318 = vmatmul.f32.gmra.mxu0 %v291
  %v319 = vpop.f32.mrf.mxu0
  %v320 = vadd.f32 %v279, %v319
  %321 = vmatmul.f32.gmra.mxu0 %v294
  %v322 = vpop.f32.mrf.mxu0
  %v323 = vadd.f32 %v282, %v322
  %324 = vmatmul.f32.gmra.mxu0 %v297
  %v325 = vpop.f32.mrf.mxu0
  %v326 = vadd.f32 %v285, %v325
  %327 = vmatmul.f32.gmra.mxu0 %v300
  %v328 = vpop.f32.mrf.mxu0
  %v329 = vadd.f32 %v288, %v328
  %330 = vdwg.mxu0
  %v332 = vsel %vm166, %v238, 0
  %v335 = vsel %vm166, %v241, 0
  %v338 = vsel %vm166, %v244, 0
  %v341 = vsel %vm166, %v247, 0
  %343 = vmatpush.msra.mxu0 0.0
  %344 = vmatpush.msra.mxu0 0.0
  %345 = vmatpush.msra.mxu0 0.0
  %346 = vmatpush.msra.mxu0 0.0
  %347 = vmatpush.msra.mxu0 0.0
  %348 = vmatpush.msra.mxu0 0.0
  %349 = vmatpush.msra.mxu0 0.0
  %350 = vmatpush.msra.mxu0 0.0
  %351 = vmatpush.msra.mxu0 0.0
  %352 = vmatpush.msra.mxu0 0.0
  %353 = vmatpush.msra.mxu0 0.0
  %354 = vmatpush.msra.mxu0 0.0
  %355 = vmatpush.msra.mxu0 %v164
  %356 = vmatpush.msra.mxu0 %v163
  %357 = vmatpush.msra.mxu0 %v162
  %358 = vmatpush.msra.mxu0 %v161
  %359 = vmatmul.f32.gmra.mxu0 %v332
  %v360 = vpop.f32.mrf.mxu0
  %v361 = vadd.f32 0.0, %v360
  %362 = vmatmul.f32.gmra.mxu0 %v335
  %v363 = vpop.f32.mrf.mxu0
  %v364 = vadd.f32 0.0, %v363
  %365 = vmatmul.f32.gmra.mxu0 %v338
  %v366 = vpop.f32.mrf.mxu0
  %v367 = vadd.f32 0.0, %v366
  %368 = vmatmul.f32.gmra.mxu0 %v341
  %v369 = vpop.f32.mrf.mxu0
  %v370 = vadd.f32 0.0, %v369
  %371 = vdwg.mxu0
  %v372 = vadd.f32 %v320, %v361
  %v373 = vadd.f32 %v323, %v364
  %v374 = vadd.f32 %v326, %v367
  %v375 = vadd.f32 %v329, %v370
  %v376 = vperm.slane %v165, 0
  %v377 = vadd.f32 %v372, %v376
  %v378 = vadd.f32 %v373, %v376
  %v379 = vadd.f32 %v374, %v376
  %v380 = vadd.f32 %v375, %v376
  %v382 = vsel %vm166, %v85, 0
  %v385 = vsel %vm166, %v86, 0
  %v388 = vsel %vm166, %v87, 0
  %v391 = vsel %vm166, %v88, 0
  %393 = vmatpush.msra.mxu0 0.0
  %394 = vmatpush.msra.mxu0 0.0
  %395 = vmatpush.msra.mxu0 0.0
  %396 = vmatpush.msra.mxu0 0.0
  %397 = vmatpush.msra.mxu0 0.0
  %398 = vmatpush.msra.mxu0 0.0
  %399 = vmatpush.msra.mxu0 0.0
  %400 = vmatpush.msra.mxu0 0.0
  %401 = vmatpush.msra.mxu0 0.0
  %402 = vmatpush.msra.mxu0 0.0
  %403 = vmatpush.msra.mxu0 0.0
  %404 = vmatpush.msra.mxu0 0.0
  %405 = vmatpush.msra.mxu0 %v380
  %406 = vmatpush.msra.mxu0 %v379
  %407 = vmatpush.msra.mxu0 %v378
  %408 = vmatpush.msra.mxu0 %v377
  %409 = vmatmul.f32.gmra.mxu0 %v382
  %v410 = vpop.f32.mrf.mxu0
  %v411 = vadd.f32 0.0, %v410
  %412 = vmatmul.f32.gmra.mxu0 %v385
  %v413 = vpop.f32.mrf.mxu0
  %v414 = vadd.f32 0.0, %v413
  %415 = vmatmul.f32.gmra.mxu0 %v388
  %v416 = vpop.f32.mrf.mxu0
  %v417 = vadd.f32 0.0, %v416
  %418 = vmatmul.f32.gmra.mxu0 %v391
  %v419 = vpop.f32.mrf.mxu0
  %v420 = vadd.f32 0.0, %v419
  %421 = vdwg.mxu0
  %v423 = vsel %vm166, %v411, 0
  %v426 = vsel %vm166, %v414, 0
  %v429 = vsel %vm166, %v417, 0
  %v432 = vsel %vm166, %v420, 0
  %434 = vmatpush.msra.mxu0 0.0
  %435 = vmatpush.msra.mxu0 0.0
  %436 = vmatpush.msra.mxu0 0.0
  %437 = vmatpush.msra.mxu0 0.0
  %438 = vmatpush.msra.mxu0 0.0
  %439 = vmatpush.msra.mxu0 0.0
  %440 = vmatpush.msra.mxu0 0.0
  %441 = vmatpush.msra.mxu0 0.0
  %442 = vmatpush.msra.mxu0 0.0
  %443 = vmatpush.msra.mxu0 0.0
  %444 = vmatpush.msra.mxu0 0.0
  %445 = vmatpush.msra.mxu0 0.0
  %446 = vmatpush.msra.mxu0 %v92
  %447 = vmatpush.msra.mxu0 %v91
  %448 = vmatpush.msra.mxu0 %v90
  %449 = vmatpush.msra.mxu0 %v89
  %450 = vmatmul.f32.gmra.mxu0 %v423
  %v451 = vpop.f32.mrf.mxu0
  %v452 = vadd.f32 0.0, %v451
  %453 = vmatmul.f32.gmra.mxu0 %v426
  %v454 = vpop.f32.mrf.mxu0
  %v455 = vadd.f32 0.0, %v454
  %456 = vmatmul.f32.gmra.mxu0 %v429
  %v457 = vpop.f32.mrf.mxu0
  %v458 = vadd.f32 0.0, %v457
  %459 = vmatmul.f32.gmra.mxu0 %v432
  %v460 = vpop.f32.mrf.mxu0
  %v461 = vadd.f32 0.0, %v460
  %462 = vdwg.mxu0
  %v463 = vsub.f32 %v377, %v452
  %v464 = vsub.f32 %v378, %v455
  %v465 = vsub.f32 %v379, %v458
  %v466 = vsub.f32 %v380, %v461
  %v467 = vmul.f32 %v463, %v463
  %v468 = vmul.f32 %v464, %v464
  %v469 = vmul.f32 %v465, %v465
  %v470 = vmul.f32 %v466, %v466
  %471 = vmatpush.msra.mxu0 0.0
  %472 = vmatpush.msra.mxu0 0.0
  %473 = vmatpush.msra.mxu0 0.0
  %474 = vmatpush.msra.mxu0 0.0
  %475 = vmatpush.msra.mxu0 0.0
  %476 = vmatpush.msra.mxu0 0.0
  %477 = vmatpush.msra.mxu0 0.0
  %478 = vmatpush.msra.mxu0 0.0
  %479 = vmatpush.msra.mxu0 0.0
  %480 = vmatpush.msra.mxu0 0.0
  %481 = vmatpush.msra.mxu0 0.0
  %482 = vmatpush.msra.mxu0 0.0
  %483 = vmatpush.msra.mxu0 %v470
  %484 = vmatpush.msra.mxu0 %v469
  %485 = vmatpush.msra.mxu0 %v468
  %486 = vmatpush.msra.mxu0 %v467
  %487 = vmatmul.f32.gmra.mxu0 %v382
  %v488 = vpop.f32.mrf.mxu0
  %v489 = vadd.f32 0.0, %v488
  %490 = vmatmul.f32.gmra.mxu0 %v385
  %v491 = vpop.f32.mrf.mxu0
  %v492 = vadd.f32 0.0, %v491
  %493 = vmatmul.f32.gmra.mxu0 %v388
  %v494 = vpop.f32.mrf.mxu0
  %v495 = vadd.f32 0.0, %v494
  %496 = vmatmul.f32.gmra.mxu0 %v391
  %v497 = vpop.f32.mrf.mxu0
  %v498 = vadd.f32 0.0, %v497
  %499 = vdwg.mxu0
  %v501 = vsel %vm166, %v489, 0
  %v504 = vsel %vm166, %v492, 0
  %v507 = vsel %vm166, %v495, 0
  %v510 = vsel %vm166, %v498, 0
  %512 = vmatpush.msra.mxu0 0.0
  %513 = vmatpush.msra.mxu0 0.0
  %514 = vmatpush.msra.mxu0 0.0
  %515 = vmatpush.msra.mxu0 0.0
  %516 = vmatpush.msra.mxu0 0.0
  %517 = vmatpush.msra.mxu0 0.0
  %518 = vmatpush.msra.mxu0 0.0
  %519 = vmatpush.msra.mxu0 0.0
  %520 = vmatpush.msra.mxu0 0.0
  %521 = vmatpush.msra.mxu0 0.0
  %522 = vmatpush.msra.mxu0 0.0
  %523 = vmatpush.msra.mxu0 0.0
  %524 = vmatpush.msra.mxu0 %v92
  %525 = vmatpush.msra.mxu0 %v91
  %526 = vmatpush.msra.mxu0 %v90
  %527 = vmatpush.msra.mxu0 %v89
  %528 = vmatmul.f32.gmra.mxu0 %v501
  %v529 = vpop.f32.mrf.mxu0
  %v530 = vadd.f32 1e-05, %v529
  %531 = vmatmul.f32.gmra.mxu0 %v504
  %v532 = vpop.f32.mrf.mxu0
  %v533 = vadd.f32 1e-05, %v532
  %534 = vmatmul.f32.gmra.mxu0 %v507
  %v535 = vpop.f32.mrf.mxu0
  %v536 = vadd.f32 1e-05, %v535
  %537 = vmatmul.f32.gmra.mxu0 %v510
  %v538 = vpop.f32.mrf.mxu0
  %v539 = vadd.f32 1e-05, %v538
  %540 = vdwg.mxu0
  %v541 = vrsqrt.pop %v530
  %v542 = vmul.f32 %v541, %v530
  %v543 = vmul.f32 %v542, %v541
  %v544 = vmul.f32 0.5, %v543
  %v545 = vsub.f32 1.5, %v544
  %v546 = vmul.f32 %v541, %v545
  %vm547 = vweird.f32 %v530
  %vm548 = vweird.f32 %v541
  %vm549 = vmor %vm547, %vm548
  %v550 = vsel %vm549, %v541, %v546
  %v551 = vrsqrt.pop %v533
  %v552 = vmul.f32 %v551, %v533
  %v553 = vmul.f32 %v552, %v551
  %v554 = vmul.f32 0.5, %v553
  %v555 = vsub.f32 1.5, %v554
  %v556 = vmul.f32 %v551, %v555
  %vm557 = vweird.f32 %v533
  %vm558 = vweird.f32 %v551
  %vm559 = vmor %vm557, %vm558
  %v560 = vsel %vm559, %v551, %v556
  %v561 = vrsqrt.pop %v536
  %v562 = vmul.f32 %v561, %v536
  %v563 = vmul.f32 %v562, %v561
  %v564 = vmul.f32 0.5, %v563
  %v565 = vsub.f32 1.5, %v564
  %v566 = vmul.f32 %v561, %v565
  %vm567 = vweird.f32 %v536
  %vm568 = vweird.f32 %v561
  %vm569 = vmor %vm567, %vm568
  %v570 = vsel %vm569, %v561, %v566
  %v571 = vrsqrt.pop %v539
  %v572 = vmul.f32 %v571, %v539
  %v573 = vmul.f32 %v572, %v571
  %v574 = vmul.f32 0.5, %v573
  %v575 = vsub.f32 1.5, %v574
  %v576 = vmul.f32 %v571, %v575
  %vm577 = vweird.f32 %v539
  %vm578 = vweird.f32 %v571
  %vm579 = vmor %vm577, %vm578
  %v580 = vsel %vm579, %v571, %v576
  %v581 = vmul.f32 %v463, %v550
  %v582 = vmul.f32 %v464, %v560
  %v583 = vmul.f32 %v465, %v570
  %v584 = vmul.f32 %v466, %v580
  %v585 = vld [vmem:[%s10] sm:$0x1]
  %v586 = vperm.slane %v585, 0
  %v587 = vmul.f32 %v581, %v586
  %v588 = vmul.f32 %v582, %v586
  %v589 = vmul.f32 %v583, %v586
  %v590 = vmul.f32 %v584, %v586
  %v591 = vld [vmem:[%s11] sm:$0x1]
  %v592 = vperm.slane %v591, 0
  %v593 = vadd.f32 %v587, %v592
  %v594 = vadd.f32 %v588, %v592
  %v595 = vadd.f32 %v589, %v592
  %v596 = vadd.f32 %v590, %v592
  %v597 = vmul.f32 %v593, 0.5
  %v598 = vmul.f32 %v594, 0.5
  %v599 = vmul.f32 %v595, 0.5
  %v600 = vmul.f32 %v596, 0.5
  %v601 = vmul.f32 %v593, %v593
  %v602 = vmul.f32 %v594, %v594
  %v603 = vmul.f32 %v595, %v595
  %v604 = vmul.f32 %v596, %v596
  %v605 = vmul.f32 %v601, %v593
  %v606 = vmul.f32 %v602, %v594
  %v607 = vmul.f32 %v603, %v595
  %v608 = vmul.f32 %v604, %v596
  %v609 = vmul.f32 %v605, 0.044715
  %v610 = vmul.f32 %v606, 0.044715
  %v611 = vmul.f32 %v607, 0.044715
  %v612 = vmul.f32 %v608, 0.044715
  %v613 = vadd.f32 %v593, %v609
  %v614 = vadd.f32 %v594, %v610
  %v615 = vadd.f32 %v595, %v611
  %v616 = vadd.f32 %v596, %v612
  %v617 = vmul.f32 %v613, 0.7978846
  %v618 = vmul.f32 %v614, 0.7978846
  %v619 = vmul.f32 %v615, 0.7978846
  %v620 = vmul.f32 %v616, 0.7978846
  %v621 = vtanh.pop %v617
  %v622 = vtanh.pop %v618
  %v623 = vtanh.pop %v619
  %v624 = vtanh.pop %v620
  %v625 = vadd.f32 %v621, 1.0
  %v626 = vadd.f32 %v622, 1.0
  %v627 = vadd.f32 %v623, 1.0
  %v628 = vadd.f32 %v624, 1.0
  %v629 = vmul.f32 %v597, %v625
  %v630 = vmul.f32 %v598, %v626
  %v631 = vmul.f32 %v599, %v627
  %v632 = vmul.f32 %v600, %v628
  %v633 = vadd.f32 %v629, %v142
  %v634 = vadd.f32 %v630, %v145
  %v635 = vadd.f32 %v631, %v148
  %v636 = vadd.f32 %v632, %v151
  %s637 = scalar_lea.vmem %s8, 96
  %v638 = vld [vmem:[%s637] sm:$0xff]
  %v639 = vld [vmem:[%s637 + $0x8] sm:$0xff]
  %v640 = vld [vmem:[%s637 + $0x10] sm:$0xff]
  %v641 = vld [vmem:[%s637 + $0x18] sm:$0xff]
  %v642 = vld [vmem:[%s637 + $0x20] sm:$0xff]
  %v643 = vld [vmem:[%s637 + $0x28] sm:$0xff]
  %v644 = vld [vmem:[%s637 + $0x30] sm:$0xff]
  %v645 = vld [vmem:[%s637 + $0x38] sm:$0xff]
  %v646 = vld [vmem:[%s637 + $0x40] sm:$0xff]
  %v647 = vld [vmem:[%s637 + $0x48] sm:$0xff]
  %v648 = vld [vmem:[%s637 + $0x50] sm:$0xff]
  %v649 = vld [vmem:[%s637 + $0x58] sm:$0xff]
  %v650 = vld [vmem:[%s9 + $0x1] sm:$0x1]
  %651 = vmatpush.msra.mxu0 0.0
  %652 = vmatpush.msra.mxu0 0.0
  %653 = vmatpush.msra.mxu0 0.0
  %654 = vmatpush.msra.mxu0 0.0
  %655 = vmatpush.msra.mxu0 0.0
  %656 = vmatpush.msra.mxu0 0.0
  %657 = vmatpush.msra.mxu0 0.0
  %658 = vmatpush.msra.mxu0 0.0
  %659 = vmatpush.msra.mxu0 0.0
  %660 = vmatpush.msra.mxu0 0.0
  %661 = vmatpush.msra.mxu0 0.0
  %662 = vmatpush.msra.mxu0 0.0
  %663 = vmatpush.msra.mxu0 %v636
  %664 = vmatpush.msra.mxu0 %v635
  %665 = vmatpush.msra.mxu0 %v634
  %666 = vmatpush.msra.mxu0 %v633
  %667 = vmatmul.f32.gmra.mxu0 %v168
  %v668 = vpop.f32.mrf.mxu0
  %v669 = vadd.f32 0.0, %v668
  %670 = vmatmul.f32.gmra.mxu0 %v171
  %v671 = vpop.f32.mrf.mxu0
  %v672 = vadd.f32 0.0, %v671
  %673 = vmatmul.f32.gmra.mxu0 %v174
  %v674 = vpop.f32.mrf.mxu0
  %v675 = vadd.f32 0.0, %v674
  %676 = vmatmul.f32.gmra.mxu0 %v177
  %v677 = vpop.f32.mrf.mxu0
  %v678 = vadd.f32 0.0, %v677
  %679 = vdwg.mxu0
  %680 = vmatpush.msra.mxu0 0.0
  %681 = vmatpush.msra.mxu0 0.0
  %682 = vmatpush.msra.mxu0 0.0
  %683 = vmatpush.msra.mxu0 0.0
  %684 = vmatpush.msra.mxu0 0.0
  %685 = vmatpush.msra.mxu0 0.0
  %686 = vmatpush.msra.mxu0 0.0
  %687 = vmatpush.msra.mxu0 0.0
  %688 = vmatpush.msra.mxu0 0.0
  %689 = vmatpush.msra.mxu0 0.0
  %690 = vmatpush.msra.mxu0 0.0
  %691 = vmatpush.msra.mxu0 0.0
  %692 = vmatpush.msra.mxu0 %v636
  %693 = vmatpush.msra.mxu0 %v635
  %694 = vmatpush.msra.mxu0 %v634
  %695 = vmatpush.msra.mxu0 %v633
  %696 = vmatmul.f32.gmra.mxu0 %v209
  %v697 = vpop.f32.mrf.mxu0
  %v698 = vadd.f32 0.0, %v697
  %699 = vmatmul.f32.gmra.mxu0 %v212
  %v700 = vpop.f32.mrf.mxu0
  %v701 = vadd.f32 0.0, %v700
  %702 = vmatmul.f32.gmra.mxu0 %v215
  %v703 = vpop.f32.mrf.mxu0
  %v704 = vadd.f32 0.0, %v703
  %705 = vmatmul.f32.gmra.mxu0 %v218
  %v706 = vpop.f32.mrf.mxu0
  %v707 = vadd.f32 0.0, %v706
  %708 = vdwg.mxu0
  %v710 = vsel %vm166, %v633, 0
  %v713 = vsel %vm166, %v634, 0
  %v716 = vsel %vm166, %v635, 0
  %v719 = vsel %vm166, %v636, 0
  %721 = vmatpush.msra.mxu0 0.0
  %722 = vmatpush.msra.mxu0 0.0
  %723 = vmatpush.msra.mxu0 0.0
  %724 = vmatpush.msra.mxu0 0.0
  %725 = vmatpush.msra.mxu0 0.0
  %726 = vmatpush.msra.mxu0 0.0
  %727 = vmatpush.msra.mxu0 0.0
  %728 = vmatpush.msra.mxu0 0.0
  %729 = vmatpush.msra.mxu0 0.0
  %730 = vmatpush.msra.mxu0 0.0
  %731 = vmatpush.msra.mxu0 0.0
  %732 = vmatpush.msra.mxu0 0.0
  %733 = vmatpush.msra.mxu0 %v645
  %734 = vmatpush.msra.mxu0 %v644
  %735 = vmatpush.msra.mxu0 %v643
  %736 = vmatpush.msra.mxu0 %v642
  %737 = vmatmul.f32.gmra.mxu0 %v710
  %v738 = vpop.f32.mrf.mxu0
  %v739 = vadd.f32 0.0, %v738
  %740 = vmatmul.f32.gmra.mxu0 %v713
  %v741 = vpop.f32.mrf.mxu0
  %v742 = vadd.f32 0.0, %v741
  %743 = vmatmul.f32.gmra.mxu0 %v716
  %v744 = vpop.f32.mrf.mxu0
  %v745 = vadd.f32 0.0, %v744
  %746 = vmatmul.f32.gmra.mxu0 %v719
  %v747 = vpop.f32.mrf.mxu0
  %v748 = vadd.f32 0.0, %v747
  %749 = vdwg.mxu0
  %v751 = vsel %vm166, %v669, 0
  %v754 = vsel %vm166, %v672, 0
  %v757 = vsel %vm166, %v675, 0
  %v760 = vsel %vm166, %v678, 0
  %762 = vmatpush.msra.mxu0 0.0
  %763 = vmatpush.msra.mxu0 0.0
  %764 = vmatpush.msra.mxu0 0.0
  %765 = vmatpush.msra.mxu0 0.0
  %766 = vmatpush.msra.mxu0 0.0
  %767 = vmatpush.msra.mxu0 0.0
  %768 = vmatpush.msra.mxu0 0.0
  %769 = vmatpush.msra.mxu0 0.0
  %770 = vmatpush.msra.mxu0 0.0
  %771 = vmatpush.msra.mxu0 0.0
  %772 = vmatpush.msra.mxu0 0.0
  %773 = vmatpush.msra.mxu0 0.0
  %774 = vmatpush.msra.mxu0 %v641
  %775 = vmatpush.msra.mxu0 %v640
  %776 = vmatpush.msra.mxu0 %v639
  %777 = vmatpush.msra.mxu0 %v638
  %778 = vmatmul.f32.gmra.mxu0 %v751
  %v779 = vpop.f32.mrf.mxu0
  %v780 = vadd.f32 %v739, %v779
  %781 = vmatmul.f32.gmra.mxu0 %v754
  %v782 = vpop.f32.mrf.mxu0
  %v783 = vadd.f32 %v742, %v782
  %784 = vmatmul.f32.gmra.mxu0 %v757
  %v785 = vpop.f32.mrf.mxu0
  %v786 = vadd.f32 %v745, %v785
  %787 = vmatmul.f32.gmra.mxu0 %v760
  %v788 = vpop.f32.mrf.mxu0
  %v789 = vadd.f32 %v748, %v788
  %790 = vdwg.mxu0
  %v792 = vsel %vm166, %v698, 0
  %v795 = vsel %vm166, %v701, 0
  %v798 = vsel %vm166, %v704, 0
  %v801 = vsel %vm166, %v707, 0
  %803 = vmatpush.msra.mxu0 0.0
  %804 = vmatpush.msra.mxu0 0.0
  %805 = vmatpush.msra.mxu0 0.0
  %806 = vmatpush.msra.mxu0 0.0
  %807 = vmatpush.msra.mxu0 0.0
  %808 = vmatpush.msra.mxu0 0.0
  %809 = vmatpush.msra.mxu0 0.0
  %810 = vmatpush.msra.mxu0 0.0
  %811 = vmatpush.msra.mxu0 0.0
  %812 = vmatpush.msra.mxu0 0.0
  %813 = vmatpush.msra.mxu0 0.0
  %814 = vmatpush.msra.mxu0 0.0
  %815 = vmatpush.msra.mxu0 %v649
  %816 = vmatpush.msra.mxu0 %v648
  %817 = vmatpush.msra.mxu0 %v647
  %818 = vmatpush.msra.mxu0 %v646
  %819 = vmatmul.f32.gmra.mxu0 %v792
  %v820 = vpop.f32.mrf.mxu0
  %v821 = vadd.f32 0.0, %v820
  %822 = vmatmul.f32.gmra.mxu0 %v795
  %v823 = vpop.f32.mrf.mxu0
  %v824 = vadd.f32 0.0, %v823
  %825 = vmatmul.f32.gmra.mxu0 %v798
  %v826 = vpop.f32.mrf.mxu0
  %v827 = vadd.f32 0.0, %v826
  %828 = vmatmul.f32.gmra.mxu0 %v801
  %v829 = vpop.f32.mrf.mxu0
  %v830 = vadd.f32 0.0, %v829
  %831 = vdwg.mxu0
  %v832 = vadd.f32 %v780, %v821
  %v833 = vadd.f32 %v783, %v824
  %v834 = vadd.f32 %v786, %v827
  %v835 = vadd.f32 %v789, %v830
  %v836 = vperm.slane %v650, 0
  %v837 = vadd.f32 %v832, %v836
  %v838 = vadd.f32 %v833, %v836
  %v839 = vadd.f32 %v834, %v836
  %v840 = vadd.f32 %v835, %v836
  %841 = vmatpush.msra.mxu0 0.0
  %842 = vmatpush.msra.mxu0 0.0
  %843 = vmatpush.msra.mxu0 0.0
  %844 = vmatpush.msra.mxu0 0.0
  %845 = vmatpush.msra.mxu0 0.0
  %846 = vmatpush.msra.mxu0 0.0
  %847 = vmatpush.msra.mxu0 0.0
  %848 = vmatpush.msra.mxu0 0.0
  %849 = vmatpush.msra.mxu0 0.0
  %850 = vmatpush.msra.mxu0 0.0
  %851 = vmatpush.msra.mxu0 0.0
  %852 = vmatpush.msra.mxu0 0.0
  %853 = vmatpush.msra.mxu0 %v840
  %854 = vmatpush.msra.mxu0 %v839
  %855 = vmatpush.msra.mxu0 %v838
  %856 = vmatpush.msra.mxu0 %v837
  %857 = vmatmul.f32.gmra.mxu0 %v382
  %v858 = vpop.f32.mrf.mxu0
  %v859 = vadd.f32 0.0, %v858
  %860 = vmatmul.f32.gmra.mxu0 %v385
  %v861 = vpop.f32.mrf.mxu0
  %v862 = vadd.f32 0.0, %v861
  %863 = vmatmul.f32.gmra.mxu0 %v388
  %v864 = vpop.f32.mrf.mxu0
  %v865 = vadd.f32 0.0, %v864
  %866 = vmatmul.f32.gmra.mxu0 %v391
  %v867 = vpop.f32.mrf.mxu0
  %v868 = vadd.f32 0.0, %v867
  %869 = vdwg.mxu0
  %v871 = vsel %vm166, %v859, 0
  %v874 = vsel %vm166, %v862, 0
  %v877 = vsel %vm166, %v865, 0
  %v880 = vsel %vm166, %v868, 0
  %882 = vmatpush.msra.mxu0 0.0
  %883 = vmatpush.msra.mxu0 0.0
  %884 = vmatpush.msra.mxu0 0.0
  %885 = vmatpush.msra.mxu0 0.0
  %886 = vmatpush.msra.mxu0 0.0
  %887 = vmatpush.msra.mxu0 0.0
  %888 = vmatpush.msra.mxu0 0.0
  %889 = vmatpush.msra.mxu0 0.0
  %890 = vmatpush.msra.mxu0 0.0
  %891 = vmatpush.msra.mxu0 0.0
  %892 = vmatpush.msra.mxu0 0.0
  %893 = vmatpush.msra.mxu0 0.0
  %894 = vmatpush.msra.mxu0 %v92
  %895 = vmatpush.msra.mxu0 %v91
  %896 = vmatpush.msra.mxu0 %v90
  %897 = vmatpush.msra.mxu0 %v89
  %898 = vmatmul.f32.gmra.mxu0 %v871
  %v899 = vpop.f32.mrf.mxu0
  %v900 = vadd.f32 0.0, %v899
  %901 = vmatmul.f32.gmra.mxu0 %v874
  %v902 = vpop.f32.mrf.mxu0
  %v903 = vadd.f32 0.0, %v902
  %904 = vmatmul.f32.gmra.mxu0 %v877
  %v905 = vpop.f32.mrf.mxu0
  %v906 = vadd.f32 0.0, %v905
  %907 = vmatmul.f32.gmra.mxu0 %v880
  %v908 = vpop.f32.mrf.mxu0
  %v909 = vadd.f32 0.0, %v908
  %910 = vdwg.mxu0
  %v911 = vsub.f32 %v837, %v900
  %v912 = vsub.f32 %v838, %v903
  %v913 = vsub.f32 %v839, %v906
  %v914 = vsub.f32 %v840, %v909
  %v915 = vmul.f32 %v911, %v911
  %v916 = vmul.f32 %v912, %v912
  %v917 = vmul.f32 %v913, %v913
  %v918 = vmul.f32 %v914, %v914
  %919 = vmatpush.msra.mxu0 0.0
  %920 = vmatpush.msra.mxu0 0.0
  %921 = vmatpush.msra.mxu0 0.0
  %922 = vmatpush.msra.mxu0 0.0
  %923 = vmatpush.msra.mxu0 0.0
  %924 = vmatpush.msra.mxu0 0.0
  %925 = vmatpush.msra.mxu0 0.0
  %926 = vmatpush.msra.mxu0 0.0
  %927 = vmatpush.msra.mxu0 0.0
  %928 = vmatpush.msra.mxu0 0.0
  %929 = vmatpush.msra.mxu0 0.0
  %930 = vmatpush.msra.mxu0 0.0
  %931 = vmatpush.msra.mxu0 %v918
  %932 = vmatpush.msra.mxu0 %v917
  %933 = vmatpush.msra.mxu0 %v916
  %934 = vmatpush.msra.mxu0 %v915
  %935 = vmatmul.f32.gmra.mxu0 %v382
  %v936 = vpop.f32.mrf.mxu0
  %v937 = vadd.f32 0.0, %v936
  %938 = vmatmul.f32.gmra.mxu0 %v385
  %v939 = vpop.f32.mrf.mxu0
  %v940 = vadd.f32 0.0, %v939
  %941 = vmatmul.f32.gmra.mxu0 %v388
  %v942 = vpop.f32.mrf.mxu0
  %v943 = vadd.f32 0.0, %v942
  %944 = vmatmul.f32.gmra.mxu0 %v391
  %v945 = vpop.f32.mrf.mxu0
  %v946 = vadd.f32 0.0, %v945
  %947 = vdwg.mxu0
  %v949 = vsel %vm166, %v937, 0
  %v952 = vsel %vm166, %v940, 0
  %v955 = vsel %vm166, %v943, 0
  %v958 = vsel %vm166, %v946, 0
  %960 = vmatpush.msra.mxu0 0.0
  %961 = vmatpush.msra.mxu0 0.0
  %962 = vmatpush.msra.mxu0 0.0
  %963 = vmatpush.msra.mxu0 0.0
  %964 = vmatpush.msra.mxu0 0.0
  %965 = vmatpush.msra.mxu0 0.0
  %966 = vmatpush.msra.mxu0 0.0
  %967 = vmatpush.msra.mxu0 0.0
  %968 = vmatpush.msra.mxu0 0.0
  %969 = vmatpush.msra.mxu0 0.0
  %970 = vmatpush.msra.mxu0 0.0
  %971 = vmatpush.msra.mxu0 0.0
  %972 = vmatpush.msra.mxu0 %v92
  %973 = vmatpush.msra.mxu0 %v91
  %974 = vmatpush.msra.mxu0 %v90
  %975 = vmatpush.msra.mxu0 %v89
  %976 = vmatmul.f32.gmra.mxu0 %v949
  %v977 = vpop.f32.mrf.mxu0
  %v978 = vadd.f32 1e-05, %v977
  %979 = vmatmul.f32.gmra.mxu0 %v952
  %v980 = vpop.f32.mrf.mxu0
  %v981 = vadd.f32 1e-05, %v980
  %982 = vmatmul.f32.gmra.mxu0 %v955
  %v983 = vpop.f32.mrf.mxu0
  %v984 = vadd.f32 1e-05, %v983
  %985 = vmatmul.f32.gmra.mxu0 %v958
  %v986 = vpop.f32.mrf.mxu0
  %v987 = vadd.f32 1e-05, %v986
  %988 = vdwg.mxu0
  %v989 = vrsqrt.pop %v978
  %v990 = vmul.f32 %v989, %v978
  %v991 = vmul.f32 %v990, %v989
  %v992 = vmul.f32 0.5, %v991
  %v993 = vsub.f32 1.5, %v992
  %v994 = vmul.f32 %v989, %v993
  %vm995 = vweird.f32 %v978
  %vm996 = vweird.f32 %v989
  %vm997 = vmor %vm995, %vm996
  %v998 = vsel %vm997, %v989, %v994
  %v999 = vrsqrt.pop %v981
  %v1000 = vmul.f32 %v999, %v981
  %v1001 = vmul.f32 %v1000, %v999
  %v1002 = vmul.f32 0.5, %v1001
  %v1003 = vsub.f32 1.5, %v1002
  %v1004 = vmul.f32 %v999, %v1003
  %vm1005 = vweird.f32 %v981
  %vm1006 = vweird.f32 %v999
  %vm1007 = vmor %vm1005, %vm1006
  %v1008 = vsel %vm1007, %v999, %v1004
  %v1009 = vrsqrt.pop %v984
  %v1010 = vmul.f32 %v1009, %v984
  %v1011 = vmul.f32 %v1010, %v1009
  %v1012 = vmul.f32 0.5, %v1011
  %v1013 = vsub.f32 1.5, %v1012
  %v1014 = vmul.f32 %v1009, %v1013
  %vm1015 = vweird.f32 %v984
  %vm1016 = vweird.f32 %v1009
  %vm1017 = vmor %vm1015, %vm1016
  %v1018 = vsel %vm1017, %v1009, %v1014
  %v1019 = vrsqrt.pop %v987
  %v1020 = vmul.f32 %v1019, %v987
  %v1021 = vmul.f32 %v1020, %v1019
  %v1022 = vmul.f32 0.5, %v1021
  %v1023 = vsub.f32 1.5, %v1022
  %v1024 = vmul.f32 %v1019, %v1023
  %vm1025 = vweird.f32 %v987
  %vm1026 = vweird.f32 %v1019
  %vm1027 = vmor %vm1025, %vm1026
  %v1028 = vsel %vm1027, %v1019, %v1024
  %v1029 = vmul.f32 %v911, %v998
  %v1030 = vmul.f32 %v912, %v1008
  %v1031 = vmul.f32 %v913, %v1018
  %v1032 = vmul.f32 %v914, %v1028
  %v1033 = vld [vmem:[%s10 + $0x1] sm:$0x1]
  %v1034 = vperm.slane %v1033, 0
  %v1035 = vmul.f32 %v1029, %v1034
  %v1036 = vmul.f32 %v1030, %v1034
  %v1037 = vmul.f32 %v1031, %v1034
  %v1038 = vmul.f32 %v1032, %v1034
  %v1039 = vld [vmem:[%s11 + $0x1] sm:$0x1]
  %v1040 = vperm.slane %v1039, 0
  %v1041 = vadd.f32 %v1035, %v1040
  %v1042 = vadd.f32 %v1036, %v1040
  %v1043 = vadd.f32 %v1037, %v1040
  %v1044 = vadd.f32 %v1038, %v1040
  %v1045 = vmul.f32 %v1041, 0.5
  %v1046 = vmul.f32 %v1042, 0.5
  %v1047 = vmul.f32 %v1043, 0.5
  %v1048 = vmul.f32 %v1044, 0.5
  %v1049 = vmul.f32 %v1041, %v1041
  %v1050 = vmul.f32 %v1042, %v1042
  %v1051 = vmul.f32 %v1043, %v1043
  %v1052 = vmul.f32 %v1044, %v1044
  %v1053 = vmul.f32 %v1049, %v1041
  %v1054 = vmul.f32 %v1050, %v1042
  %v1055 = vmul.f32 %v1051, %v1043
  %v1056 = vmul.f32 %v1052, %v1044
  %v1057 = vmul.f32 %v1053, 0.044715
  %v1058 = vmul.f32 %v1054, 0.044715
  %v1059 = vmul.f32 %v1055, 0.044715
  %v1060 = vmul.f32 %v1056, 0.044715
  %v1061 = vadd.f32 %v1041, %v1057
  %v1062 = vadd.f32 %v1042, %v1058
  %v1063 = vadd.f32 %v1043, %v1059
  %v1064 = vadd.f32 %v1044, %v1060
  %v1065 = vmul.f32 %v1061, 0.7978846
  %v1066 = vmul.f32 %v1062, 0.7978846
  %v1067 = vmul.f32 %v1063, 0.7978846
  %v1068 = vmul.f32 %v1064, 0.7978846
  %v1069 = vtanh.pop %v1065
  %v1070 = vtanh.pop %v1066
  %v1071 = vtanh.pop %v1067
  %v1072 = vtanh.pop %v1068
  %v1073 = vadd.f32 %v1069, 1.0
  %v1074 = vadd.f32 %v1070, 1.0
  %v1075 = vadd.f32 %v1071, 1.0
  %v1076 = vadd.f32 %v1072, 1.0
  %v1077 = vmul.f32 %v1045, %v1073
  %v1078 = vmul.f32 %v1046, %v1074
  %v1079 = vmul.f32 %v1047, %v1075
  %v1080 = vmul.f32 %v1048, %v1076
  %v1081 = vadd.f32 %v1077, %v633
  %v1082 = vadd.f32 %v1078, %v634
  %v1083 = vadd.f32 %v1079, %v635
  %v1084 = vadd.f32 %v1080, %v636
  %s1085 = scalar_lea.vmem %s8, 192
  %v1086 = vld [vmem:[%s1085] sm:$0xff]
  %v1087 = vld [vmem:[%s1085 + $0x8] sm:$0xff]
  %v1088 = vld [vmem:[%s1085 + $0x10] sm:$0xff]
  %v1089 = vld [vmem:[%s1085 + $0x18] sm:$0xff]
  %v1090 = vld [vmem:[%s1085 + $0x20] sm:$0xff]
  %v1091 = vld [vmem:[%s1085 + $0x28] sm:$0xff]
  %v1092 = vld [vmem:[%s1085 + $0x30] sm:$0xff]
  %v1093 = vld [vmem:[%s1085 + $0x38] sm:$0xff]
  %v1094 = vld [vmem:[%s1085 + $0x40] sm:$0xff]
  %v1095 = vld [vmem:[%s1085 + $0x48] sm:$0xff]
  %v1096 = vld [vmem:[%s1085 + $0x50] sm:$0xff]
  %v1097 = vld [vmem:[%s1085 + $0x58] sm:$0xff]
  %v1098 = vld [vmem:[%s9 + $0x2] sm:$0x1]
  %1099 = vmatpush.msra.mxu0 0.0
  %1100 = vmatpush.msra.mxu0 0.0
  %1101 = vmatpush.msra.mxu0 0.0
  %1102 = vmatpush.msra.mxu0 0.0
  %1103 = vmatpush.msra.mxu0 0.0
  %1104 = vmatpush.msra.mxu0 0.0
  %1105 = vmatpush.msra.mxu0 0.0
  %1106 = vmatpush.msra.mxu0 0.0
  %1107 = vmatpush.msra.mxu0 0.0
  %1108 = vmatpush.msra.mxu0 0.0
  %1109 = vmatpush.msra.mxu0 0.0
  %1110 = vmatpush.msra.mxu0 0.0
  %1111 = vmatpush.msra.mxu0 %v1084
  %1112 = vmatpush.msra.mxu0 %v1083
  %1113 = vmatpush.msra.mxu0 %v1082
  %1114 = vmatpush.msra.mxu0 %v1081
  %1115 = vmatmul.f32.gmra.mxu0 %v168
  %v1116 = vpop.f32.mrf.mxu0
  %v1117 = vadd.f32 0.0, %v1116
  %1118 = vmatmul.f32.gmra.mxu0 %v171
  %v1119 = vpop.f32.mrf.mxu0
  %v1120 = vadd.f32 0.0, %v1119
  %1121 = vmatmul.f32.gmra.mxu0 %v174
  %v1122 = vpop.f32.mrf.mxu0
  %v1123 = vadd.f32 0.0, %v1122
  %1124 = vmatmul.f32.gmra.mxu0 %v177
  %v1125 = vpop.f32.mrf.mxu0
  %v1126 = vadd.f32 0.0, %v1125
  %1127 = vdwg.mxu0
  %1128 = vmatpush.msra.mxu0 0.0
  %1129 = vmatpush.msra.mxu0 0.0
  %1130 = vmatpush.msra.mxu0 0.0
  %1131 = vmatpush.msra.mxu0 0.0
  %1132 = vmatpush.msra.mxu0 0.0
  %1133 = vmatpush.msra.mxu0 0.0
  %1134 = vmatpush.msra.mxu0 0.0
  %1135 = vmatpush.msra.mxu0 0.0
  %1136 = vmatpush.msra.mxu0 0.0
  %1137 = vmatpush.msra.mxu0 0.0
  %1138 = vmatpush.msra.mxu0 0.0
  %1139 = vmatpush.msra.mxu0 0.0
  %1140 = vmatpush.msra.mxu0 %v1084
  %1141 = vmatpush.msra.mxu0 %v1083
  %1142 = vmatpush.msra.mxu0 %v1082
  %1143 = vmatpush.msra.mxu0 %v1081
  %1144 = vmatmul.f32.gmra.mxu0 %v209
  %v1145 = vpop.f32.mrf.mxu0
  %v1146 = vadd.f32 0.0, %v1145
  %1147 = vmatmul.f32.gmra.mxu0 %v212
  %v1148 = vpop.f32.mrf.mxu0
  %v1149 = vadd.f32 0.0, %v1148
  %1150 = vmatmul.f32.gmra.mxu0 %v215
  %v1151 = vpop.f32.mrf.mxu0
  %v1152 = vadd.f32 0.0, %v1151
  %1153 = vmatmul.f32.gmra.mxu0 %v218
  %v1154 = vpop.f32.mrf.mxu0
  %v1155 = vadd.f32 0.0, %v1154
  %1156 = vdwg.mxu0
  %v1158 = vsel %vm166, %v1081, 0
  %v1161 = vsel %vm166, %v1082, 0
  %v1164 = vsel %vm166, %v1083, 0
  %v1167 = vsel %vm166, %v1084, 0
  %1169 = vmatpush.msra.mxu0 0.0
  %1170 = vmatpush.msra.mxu0 0.0
  %1171 = vmatpush.msra.mxu0 0.0
  %1172 = vmatpush.msra.mxu0 0.0
  %1173 = vmatpush.msra.mxu0 0.0
  %1174 = vmatpush.msra.mxu0 0.0
  %1175 = vmatpush.msra.mxu0 0.0
  %1176 = vmatpush.msra.mxu0 0.0
  %1177 = vmatpush.msra.mxu0 0.0
  %1178 = vmatpush.msra.mxu0 0.0
  %1179 = vmatpush.msra.mxu0 0.0
  %1180 = vmatpush.msra.mxu0 0.0
  %1181 = vmatpush.msra.mxu0 %v1093
  %1182 = vmatpush.msra.mxu0 %v1092
  %1183 = vmatpush.msra.mxu0 %v1091
  %1184 = vmatpush.msra.mxu0 %v1090
  %1185 = vmatmul.f32.gmra.mxu0 %v1158
  %v1186 = vpop.f32.mrf.mxu0
  %v1187 = vadd.f32 0.0, %v1186
  %1188 = vmatmul.f32.gmra.mxu0 %v1161
  %v1189 = vpop.f32.mrf.mxu0
  %v1190 = vadd.f32 0.0, %v1189
  %1191 = vmatmul.f32.gmra.mxu0 %v1164
  %v1192 = vpop.f32.mrf.mxu0
  %v1193 = vadd.f32 0.0, %v1192
  %1194 = vmatmul.f32.gmra.mxu0 %v1167
  %v1195 = vpop.f32.mrf.mxu0
  %v1196 = vadd.f32 0.0, %v1195
  %1197 = vdwg.mxu0
  %v1199 = vsel %vm166, %v1117, 0
  %v1202 = vsel %vm166, %v1120, 0
  %v1205 = vsel %vm166, %v1123, 0
  %v1208 = vsel %vm166, %v1126, 0
  %1210 = vmatpush.msra.mxu0 0.0
  %1211 = vmatpush.msra.mxu0 0.0
  %1212 = vmatpush.msra.mxu0 0.0
  %1213 = vmatpush.msra.mxu0 0.0
  %1214 = vmatpush.msra.mxu0 0.0
  %1215 = vmatpush.msra.mxu0 0.0
  %1216 = vmatpush.msra.mxu0 0.0
  %1217 = vmatpush.msra.mxu0 0.0
  %1218 = vmatpush.msra.mxu0 0.0
  %1219 = vmatpush.msra.mxu0 0.0
  %1220 = vmatpush.msra.mxu0 0.0
  %1221 = vmatpush.msra.mxu0 0.0
  %1222 = vmatpush.msra.mxu0 %v1089
  %1223 = vmatpush.msra.mxu0 %v1088
  %1224 = vmatpush.msra.mxu0 %v1087
  %1225 = vmatpush.msra.mxu0 %v1086
  %1226 = vmatmul.f32.gmra.mxu0 %v1199
  %v1227 = vpop.f32.mrf.mxu0
  %v1228 = vadd.f32 %v1187, %v1227
  %1229 = vmatmul.f32.gmra.mxu0 %v1202
  %v1230 = vpop.f32.mrf.mxu0
  %v1231 = vadd.f32 %v1190, %v1230
  %1232 = vmatmul.f32.gmra.mxu0 %v1205
  %v1233 = vpop.f32.mrf.mxu0
  %v1234 = vadd.f32 %v1193, %v1233
  %1235 = vmatmul.f32.gmra.mxu0 %v1208
  %v1236 = vpop.f32.mrf.mxu0
  %v1237 = vadd.f32 %v1196, %v1236
  %1238 = vdwg.mxu0
  %v1240 = vsel %vm166, %v1146, 0
  %v1243 = vsel %vm166, %v1149, 0
  %v1246 = vsel %vm166, %v1152, 0
  %v1249 = vsel %vm166, %v1155, 0
  %1251 = vmatpush.msra.mxu0 0.0
  %1252 = vmatpush.msra.mxu0 0.0
  %1253 = vmatpush.msra.mxu0 0.0
  %1254 = vmatpush.msra.mxu0 0.0
  %1255 = vmatpush.msra.mxu0 0.0
  %1256 = vmatpush.msra.mxu0 0.0
  %1257 = vmatpush.msra.mxu0 0.0
  %1258 = vmatpush.msra.mxu0 0.0
  %1259 = vmatpush.msra.mxu0 0.0
  %1260 = vmatpush.msra.mxu0 0.0
  %1261 = vmatpush.msra.mxu0 0.0
  %1262 = vmatpush.msra.mxu0 0.0
  %1263 = vmatpush.msra.mxu0 %v1097
  %1264 = vmatpush.msra.mxu0 %v1096
  %1265 = vmatpush.msra.mxu0 %v1095
  %1266 = vmatpush.msra.mxu0 %v1094
  %1267 = vmatmul.f32.gmra.mxu0 %v1240
  %v1268 = vpop.f32.mrf.mxu0
  %v1269 = vadd.f32 0.0, %v1268
  %1270 = vmatmul.f32.gmra.mxu0 %v1243
  %v1271 = vpop.f32.mrf.mxu0
  %v1272 = vadd.f32 0.0, %v1271
  %1273 = vmatmul.f32.gmra.mxu0 %v1246
  %v1274 = vpop.f32.mrf.mxu0
  %v1275 = vadd.f32 0.0, %v1274
  %1276 = vmatmul.f32.gmra.mxu0 %v1249
  %v1277 = vpop.f32.mrf.mxu0
  %v1278 = vadd.f32 0.0, %v1277
  %1279 = vdwg.mxu0
  %v1280 = vadd.f32 %v1228, %v1269
  %v1281 = vadd.f32 %v1231, %v1272
  %v1282 = vadd.f32 %v1234, %v1275
  %v1283 = vadd.f32 %v1237, %v1278
  %v1284 = vperm.slane %v1098, 0
  %v1285 = vadd.f32 %v1280, %v1284
  %v1286 = vadd.f32 %v1281, %v1284
  %v1287 = vadd.f32 %v1282, %v1284
  %v1288 = vadd.f32 %v1283, %v1284
  %1289 = vmatpush.msra.mxu0 0.0
  %1290 = vmatpush.msra.mxu0 0.0
  %1291 = vmatpush.msra.mxu0 0.0
  %1292 = vmatpush.msra.mxu0 0.0
  %1293 = vmatpush.msra.mxu0 0.0
  %1294 = vmatpush.msra.mxu0 0.0
  %1295 = vmatpush.msra.mxu0 0.0
  %1296 = vmatpush.msra.mxu0 0.0
  %1297 = vmatpush.msra.mxu0 0.0
  %1298 = vmatpush.msra.mxu0 0.0
  %1299 = vmatpush.msra.mxu0 0.0
  %1300 = vmatpush.msra.mxu0 0.0
  %1301 = vmatpush.msra.mxu0 %v1288
  %1302 = vmatpush.msra.mxu0 %v1287
  %1303 = vmatpush.msra.mxu0 %v1286
  %1304 = vmatpush.msra.mxu0 %v1285
  %1305 = vmatmul.f32.gmra.mxu0 %v382
  %v1306 = vpop.f32.mrf.mxu0
  %v1307 = vadd.f32 0.0, %v1306
  %1308 = vmatmul.f32.gmra.mxu0 %v385
  %v1309 = vpop.f32.mrf.mxu0
  %v1310 = vadd.f32 0.0, %v1309
  %1311 = vmatmul.f32.gmra.mxu0 %v388
  %v1312 = vpop.f32.mrf.mxu0
  %v1313 = vadd.f32 0.0, %v1312
  %1314 = vmatmul.f32.gmra.mxu0 %v391
  %v1315 = vpop.f32.mrf.mxu0
  %v1316 = vadd.f32 0.0, %v1315
  %1317 = vdwg.mxu0
  %v1319 = vsel %vm166, %v1307, 0
  %v1322 = vsel %vm166, %v1310, 0
  %v1325 = vsel %vm166, %v1313, 0
  %v1328 = vsel %vm166, %v1316, 0
  %1330 = vmatpush.msra.mxu0 0.0
  %1331 = vmatpush.msra.mxu0 0.0
  %1332 = vmatpush.msra.mxu0 0.0
  %1333 = vmatpush.msra.mxu0 0.0
  %1334 = vmatpush.msra.mxu0 0.0
  %1335 = vmatpush.msra.mxu0 0.0
  %1336 = vmatpush.msra.mxu0 0.0
  %1337 = vmatpush.msra.mxu0 0.0
  %1338 = vmatpush.msra.mxu0 0.0
  %1339 = vmatpush.msra.mxu0 0.0
  %1340 = vmatpush.msra.mxu0 0.0
  %1341 = vmatpush.msra.mxu0 0.0
  %1342 = vmatpush.msra.mxu0 %v92
  %1343 = vmatpush.msra.mxu0 %v91
  %1344 = vmatpush.msra.mxu0 %v90
  %1345 = vmatpush.msra.mxu0 %v89
  %1346 = vmatmul.f32.gmra.mxu0 %v1319
  %v1347 = vpop.f32.mrf.mxu0
  %v1348 = vadd.f32 0.0, %v1347
  %1349 = vmatmul.f32.gmra.mxu0 %v1322
  %v1350 = vpop.f32.mrf.mxu0
  %v1351 = vadd.f32 0.0, %v1350
  %1352 = vmatmul.f32.gmra.mxu0 %v1325
  %v1353 = vpop.f32.mrf.mxu0
  %v1354 = vadd.f32 0.0, %v1353
  %1355 = vmatmul.f32.gmra.mxu0 %v1328
  %v1356 = vpop.f32.mrf.mxu0
  %v1357 = vadd.f32 0.0, %v1356
  %1358 = vdwg.mxu0
  %v1359 = vsub.f32 %v1285, %v1348
  %v1360 = vsub.f32 %v1286, %v1351
  %v1361 = vsub.f32 %v1287, %v1354
  %v1362 = vsub.f32 %v1288, %v1357
  %v1363 = vmul.f32 %v1359, %v1359
  %v1364 = vmul.f32 %v1360, %v1360
  %v1365 = vmul.f32 %v1361, %v1361
  %v1366 = vmul.f32 %v1362, %v1362
  %1367 = vmatpush.msra.mxu0 0.0
  %1368 = vmatpush.msra.mxu0 0.0
  %1369 = vmatpush.msra.mxu0 0.0
  %1370 = vmatpush.msra.mxu0 0.0
  %1371 = vmatpush.msra.mxu0 0.0
  %1372 = vmatpush.msra.mxu0 0.0
  %1373 = vmatpush.msra.mxu0 0.0
  %1374 = vmatpush.msra.mxu0 0.0
  %1375 = vmatpush.msra.mxu0 0.0
  %1376 = vmatpush.msra.mxu0 0.0
  %1377 = vmatpush.msra.mxu0 0.0
  %1378 = vmatpush.msra.mxu0 0.0
  %1379 = vmatpush.msra.mxu0 %v1366
  %1380 = vmatpush.msra.mxu0 %v1365
  %1381 = vmatpush.msra.mxu0 %v1364
  %1382 = vmatpush.msra.mxu0 %v1363
  %1383 = vmatmul.f32.gmra.mxu0 %v382
  %v1384 = vpop.f32.mrf.mxu0
  %v1385 = vadd.f32 0.0, %v1384
  %1386 = vmatmul.f32.gmra.mxu0 %v385
  %v1387 = vpop.f32.mrf.mxu0
  %v1388 = vadd.f32 0.0, %v1387
  %1389 = vmatmul.f32.gmra.mxu0 %v388
  %v1390 = vpop.f32.mrf.mxu0
  %v1391 = vadd.f32 0.0, %v1390
  %1392 = vmatmul.f32.gmra.mxu0 %v391
  %v1393 = vpop.f32.mrf.mxu0
  %v1394 = vadd.f32 0.0, %v1393
  %1395 = vdwg.mxu0
  %v1397 = vsel %vm166, %v1385, 0
  %v1400 = vsel %vm166, %v1388, 0
  %v1403 = vsel %vm166, %v1391, 0
  %v1406 = vsel %vm166, %v1394, 0
  %1408 = vmatpush.msra.mxu0 0.0
  %1409 = vmatpush.msra.mxu0 0.0
  %1410 = vmatpush.msra.mxu0 0.0
  %1411 = vmatpush.msra.mxu0 0.0
  %1412 = vmatpush.msra.mxu0 0.0
  %1413 = vmatpush.msra.mxu0 0.0
  %1414 = vmatpush.msra.mxu0 0.0
  %1415 = vmatpush.msra.mxu0 0.0
  %1416 = vmatpush.msra.mxu0 0.0
  %1417 = vmatpush.msra.mxu0 0.0
  %1418 = vmatpush.msra.mxu0 0.0
  %1419 = vmatpush.msra.mxu0 0.0
  %1420 = vmatpush.msra.mxu0 %v92
  %1421 = vmatpush.msra.mxu0 %v91
  %1422 = vmatpush.msra.mxu0 %v90
  %1423 = vmatpush.msra.mxu0 %v89
  %1424 = vmatmul.f32.gmra.mxu0 %v1397
  %v1425 = vpop.f32.mrf.mxu0
  %v1426 = vadd.f32 1e-05, %v1425
  %1427 = vmatmul.f32.gmra.mxu0 %v1400
  %v1428 = vpop.f32.mrf.mxu0
  %v1429 = vadd.f32 1e-05, %v1428
  %1430 = vmatmul.f32.gmra.mxu0 %v1403
  %v1431 = vpop.f32.mrf.mxu0
  %v1432 = vadd.f32 1e-05, %v1431
  %1433 = vmatmul.f32.gmra.mxu0 %v1406
  %v1434 = vpop.f32.mrf.mxu0
  %v1435 = vadd.f32 1e-05, %v1434
  %1436 = vdwg.mxu0
  %v1437 = vrsqrt.pop %v1426
  %v1438 = vmul.f32 %v1437, %v1426
  %v1439 = vmul.f32 %v1438, %v1437
  %v1440 = vmul.f32 0.5, %v1439
  %v1441 = vsub.f32 1.5, %v1440
  %v1442 = vmul.f32 %v1437, %v1441
  %vm1443 = vweird.f32 %v1426
  %vm1444 = vweird.f32 %v1437
  %vm1445 = vmor %vm1443, %vm1444
  %v1446 = vsel %vm1445, %v1437, %v1442
  %v1447 = vrsqrt.pop %v1429
  %v1448 = vmul.f32 %v1447, %v1429
  %v1449 = vmul.f32 %v1448, %v1447
  %v1450 = vmul.f32 0.5, %v1449
  %v1451 = vsub.f32 1.5, %v1450
  %v1452 = vmul.f32 %v1447, %v1451
  %vm1453 = vweird.f32 %v1429
  %vm1454 = vweird.f32 %v1447
  %vm1455 = vmor %vm1453, %vm1454
  %v1456 = vsel %vm1455, %v1447, %v1452
  %v1457 = vrsqrt.pop %v1432
  %v1458 = vmul.f32 %v1457, %v1432
  %v1459 = vmul.f32 %v1458, %v1457
  %v1460 = vmul.f32 0.5, %v1459
  %v1461 = vsub.f32 1.5, %v1460
  %v1462 = vmul.f32 %v1457, %v1461
  %vm1463 = vweird.f32 %v1432
  %vm1464 = vweird.f32 %v1457
  %vm1465 = vmor %vm1463, %vm1464
  %v1466 = vsel %vm1465, %v1457, %v1462
  %v1467 = vrsqrt.pop %v1435
  %v1468 = vmul.f32 %v1467, %v1435
  %v1469 = vmul.f32 %v1468, %v1467
  %v1470 = vmul.f32 0.5, %v1469
  %v1471 = vsub.f32 1.5, %v1470
  %v1472 = vmul.f32 %v1467, %v1471
  %vm1473 = vweird.f32 %v1435
  %vm1474 = vweird.f32 %v1467
  %vm1475 = vmor %vm1473, %vm1474
  %v1476 = vsel %vm1475, %v1467, %v1472
  %v1477 = vmul.f32 %v1359, %v1446
  %v1478 = vmul.f32 %v1360, %v1456
  %v1479 = vmul.f32 %v1361, %v1466
  %v1480 = vmul.f32 %v1362, %v1476
  %v1481 = vld [vmem:[%s10 + $0x2] sm:$0x1]
  %v1482 = vperm.slane %v1481, 0
  %v1483 = vmul.f32 %v1477, %v1482
  %v1484 = vmul.f32 %v1478, %v1482
  %v1485 = vmul.f32 %v1479, %v1482
  %v1486 = vmul.f32 %v1480, %v1482
  %v1487 = vld [vmem:[%s11 + $0x2] sm:$0x1]
  %v1488 = vperm.slane %v1487, 0
  %v1489 = vadd.f32 %v1483, %v1488
  %v1490 = vadd.f32 %v1484, %v1488
  %v1491 = vadd.f32 %v1485, %v1488
  %v1492 = vadd.f32 %v1486, %v1488
  %v1493 = vmul.f32 %v1489, 0.5
  %v1494 = vmul.f32 %v1490, 0.5
  %v1495 = vmul.f32 %v1491, 0.5
  %v1496 = vmul.f32 %v1492, 0.5
  %v1497 = vmul.f32 %v1489, %v1489
  %v1498 = vmul.f32 %v1490, %v1490
  %v1499 = vmul.f32 %v1491, %v1491
  %v1500 = vmul.f32 %v1492, %v1492
  %v1501 = vmul.f32 %v1497, %v1489
  %v1502 = vmul.f32 %v1498, %v1490
  %v1503 = vmul.f32 %v1499, %v1491
  %v1504 = vmul.f32 %v1500, %v1492
  %v1505 = vmul.f32 %v1501, 0.044715
  %v1506 = vmul.f32 %v1502, 0.044715
  %v1507 = vmul.f32 %v1503, 0.044715
  %v1508 = vmul.f32 %v1504, 0.044715
  %v1509 = vadd.f32 %v1489, %v1505
  %v1510 = vadd.f32 %v1490, %v1506
  %v1511 = vadd.f32 %v1491, %v1507
  %v1512 = vadd.f32 %v1492, %v1508
  %v1513 = vmul.f32 %v1509, 0.7978846
  %v1514 = vmul.f32 %v1510, 0.7978846
  %v1515 = vmul.f32 %v1511, 0.7978846
  %v1516 = vmul.f32 %v1512, 0.7978846
  %v1517 = vtanh.pop %v1513
  %v1518 = vtanh.pop %v1514
  %v1519 = vtanh.pop %v1515
  %v1520 = vtanh.pop %v1516
  %v1521 = vadd.f32 %v1517, 1.0
  %v1522 = vadd.f32 %v1518, 1.0
  %v1523 = vadd.f32 %v1519, 1.0
  %v1524 = vadd.f32 %v1520, 1.0
  %v1525 = vmul.f32 %v1493, %v1521
  %v1526 = vmul.f32 %v1494, %v1522
  %v1527 = vmul.f32 %v1495, %v1523
  %v1528 = vmul.f32 %v1496, %v1524
  %v1529 = vadd.f32 %v1525, %v1081
  %v1530 = vadd.f32 %v1526, %v1082
  %v1531 = vadd.f32 %v1527, %v1083
  %v1532 = vadd.f32 %v1528, %v1084
  %v1533 = vmul.f32 %v1529, 0.33333334
  %v1534 = vmul.f32 %v1530, 0.33333334
  %v1535 = vmul.f32 %v1531, 0.33333334
  %v1536 = vmul.f32 %v1532, 0.33333334
  %v1537 = vld [vmem:[%s12] sm:$0xff]
  %v1538 = vld [vmem:[%s12 + $0x8] sm:$0xff]
  %v1539 = vld [vmem:[%s12 + $0x10] sm:$0xff]
  %v1540 = vld [vmem:[%s12 + $0x18] sm:$0xff]
  %v1541 = vld [vmem:[%s13] sm:$0x1]
  %v1542 = vperm.slane %v1541, 0
  %v1544 = vsel %vm166, %v1533, 0
  %v1547 = vsel %vm166, %v1534, 0
  %v1550 = vsel %vm166, %v1535, 0
  %v1553 = vsel %vm166, %v1536, 0
  %1555 = vmatpush.msra.mxu0 0.0
  %1556 = vmatpush.msra.mxu0 0.0
  %1557 = vmatpush.msra.mxu0 0.0
  %1558 = vmatpush.msra.mxu0 0.0
  %1559 = vmatpush.msra.mxu0 0.0
  %1560 = vmatpush.msra.mxu0 0.0
  %1561 = vmatpush.msra.mxu0 0.0
  %1562 = vmatpush.msra.mxu0 0.0
  %1563 = vmatpush.msra.mxu0 0.0
  %1564 = vmatpush.msra.mxu0 0.0
  %1565 = vmatpush.msra.mxu0 0.0
  %1566 = vmatpush.msra.mxu0 0.0
  %1567 = vmatpush.msra.mxu0 %v1540
  %1568 = vmatpush.msra.mxu0 %v1539
  %1569 = vmatpush.msra.mxu0 %v1538
  %1570 = vmatpush.msra.mxu0 %v1537
  %1571 = vmatmul.f32.gmra.mxu0 %v1544
  %v1572 = vpop.f32.mrf.mxu0
  %v1573 = vadd.f32 %v1542, %v1572
  %1574 = vmatmul.f32.gmra.mxu0 %v1547
  %v1575 = vpop.f32.mrf.mxu0
  %v1576 = vadd.f32 %v1542, %v1575
  %1577 = vmatmul.f32.gmra.mxu0 %v1550
  %v1578 = vpop.f32.mrf.mxu0
  %v1579 = vadd.f32 %v1542, %v1578
  %1580 = vmatmul.f32.gmra.mxu0 %v1553
  %v1581 = vpop.f32.mrf.mxu0
  %v1582 = vadd.f32 %v1542, %v1581
  %1583 = vdwg.mxu0
  %v1584 = vld [vmem:[%s14] sm:$0xff]
  %v1585 = vld [vmem:[%s14 + $0x8] sm:$0xff]
  %v1586 = vld [vmem:[%s14 + $0x10] sm:$0xff]
  %v1587 = vld [vmem:[%s14 + $0x18] sm:$0xff]
  %1590 = vrot.lane.b32.xlu0 %v1573, 96
  %v1591 = vpop.permute.xlu0 %1590
  %1592 = vrot.lane.b32.xlu0 %v1576, 96
  %v1593 = vpop.permute.xlu0 %1592
  %vm1594 = vcmask 64512
  %v1595 = vsel %vm1594, %v1573, 0
  %v1597 = vsel %vm1594, %v1576, 0
  %v1599 = vsel %vm1594, %v1591, 0
  %v1601 = vsel %vm1594, %v1593, 0
  %1603 = vmatpush.xpose.msra.mxu0 0.0
  %1604 = vmatpush.xpose.msra.mxu0 0.0
  %1605 = vmatpush.xpose.msra.mxu0 0.0
  %1606 = vmatpush.xpose.msra.mxu0 0.0
  %1607 = vmatpush.xpose.msra.mxu0 0.0
  %1608 = vmatpush.xpose.msra.mxu0 0.0
  %1609 = vmatpush.xpose.msra.mxu0 0.0
  %1610 = vmatpush.xpose.msra.mxu0 0.0
  %1611 = vmatpush.xpose.msra.mxu0 0.0
  %1612 = vmatpush.xpose.msra.mxu0 0.0
  %1613 = vmatpush.xpose.msra.mxu0 0.0
  %1614 = vmatpush.xpose.msra.mxu0 0.0
  %1615 = vmatpush.xpose.msra.mxu0 0.0
  %1616 = vmatpush.xpose.msra.mxu0 0.0
  %1617 = vmatpush.xpose.msra.mxu0 %v1601
  %1618 = vmatpush.xpose.msra.mxu0 %v1599
  %1619 = vmatmul.f32.gmra.mxu0 %v1595
  %v1620 = vpop.f32.mrf.mxu0
  %v1621 = vadd.f32 0.0, %v1620
  %1622 = vmatmul.f32.gmra.mxu0 %v1597
  %v1623 = vpop.f32.mrf.mxu0
  %v1624 = vadd.f32 0.0, %v1623
  %1625 = vdwg.mxu0
  %v1626 = vmul.f32 %v1621, 0.35355338
  %v1627 = vmul.f32 %v1624, 0.35355338
  %v1628 = vperm.slane %v93, 0
  %v1629 = vadd.f32 %v1626, %v1628
  %v1630 = vadd.f32 %v1627, %v1628
  %vm1631 = vcmask 130048
  %v1632 = vsel %vm1631, %v1629, -inf
  %1633 = vmax.xlane.f32.xlu0 %v1632
  %v1634 = vpop.xlane.xlu0 %1633
  %v1635 = vsel %vm1631, %v1630, -inf
  %1636 = vmax.xlane.f32.xlu0 %v1635
  %v1637 = vpop.xlane.xlu0 %1636
  %v1638 = vsub.f32 %v1629, %v1634
  %v1639 = vsub.f32 %v1630, %v1637
  %v1640 = vmul.f32 %v1638, 1.442695
  %v1641 = vpow.pop %v1640
  %v1642 = vmul.f32 %v1639, 1.442695
  %v1643 = vpow.pop %v1642
  %v1644 = vsel %vm1631, %v1641, 0.0
  %1645 = vadd.xlane.f32.xlu0 %v1644
  %v1646 = vpop.xlane.xlu0 %1645
  %v1647 = vsel %vm1631, %v1643, 0.0
  %1648 = vadd.xlane.f32.xlu0 %v1647
  %v1649 = vpop.xlane.xlu0 %1648
  %v1650 = vrcp.pop %v1646
  %v1651 = vmul.f32 %v1646, %v1650
  %v1652 = vsub.f32 1.0, %v1651
  %v1653 = vmul.f32 %v1650, %v1652
  %v1654 = vadd.f32 %v1650, %v1653
  %vm1655 = vweird.f32 %v1646
  %vm1656 = vweird.f32 %v1650
  %vm1657 = vmor %vm1655, %vm1656
  %v1658 = vsel %vm1657, %v1650, %v1654
  %v1659 = vand.u32 2147483647, %v1646
  %vm1660 = vcmp.eq.f32.partialorder %v1659, 8.507059e+37
  %v1661 = vand.u32 %v1646, 2147483648
  %v1662 = vor.u32 1.1754944e-38, %v1661
  %v1663 = vsel %vm1660, %v1662, %v1658
  %v1664 = vmul.f32 %v1641, %v1663
  %v1665 = vrcp.pop %v1649
  %v1666 = vmul.f32 %v1649, %v1665
  %v1667 = vsub.f32 1.0, %v1666
  %v1668 = vmul.f32 %v1665, %v1667
  %v1669 = vadd.f32 %v1665, %v1668
  %vm1670 = vweird.f32 %v1649
  %vm1671 = vweird.f32 %v1665
  %vm1672 = vmor %vm1670, %vm1671
  %v1673 = vsel %vm1672, %v1665, %v1669
  %v1674 = vand.u32 2147483647, %v1649
  %vm1675 = vcmp.eq.f32.partialorder %v1674, 8.507059e+37
  %v1676 = vand.u32 %v1649, 2147483648
  %v1677 = vor.u32 1.1754944e-38, %v1676
  %v1678 = vsel %vm1675, %v1677, %v1673
  %v1679 = vmul.f32 %v1643, %v1678
  %1680 = vrot.lane.b32.xlu0 %v1573, 64
  %v1681 = vpop.permute.xlu0 %1680
  %1682 = vrot.lane.b32.xlu0 %v1576, 64
  %v1683 = vpop.permute.xlu0 %1682
  %v1687 = vsel %vm1631, %v1664, 0
  %v1690 = vsel %vm1631, %v1679, 0
  %1692 = vmatpush.msra.mxu0 0.0
  %1693 = vmatpush.msra.mxu0 0.0
  %1694 = vmatpush.msra.mxu0 0.0
  %1695 = vmatpush.msra.mxu0 0.0
  %1696 = vmatpush.msra.mxu0 0.0
  %1697 = vmatpush.msra.mxu0 0.0
  %1698 = vmatpush.msra.mxu0 0.0
  %1699 = vmatpush.msra.mxu0 0.0
  %1700 = vmatpush.msra.mxu0 0.0
  %1701 = vmatpush.msra.mxu0 0.0
  %1702 = vmatpush.msra.mxu0 0.0
  %1703 = vmatpush.msra.mxu0 0.0
  %1704 = vmatpush.msra.mxu0 0.0
  %1705 = vmatpush.msra.mxu0 0.0
  %1706 = vmatpush.msra.mxu0 %v1683
  %1707 = vmatpush.msra.mxu0 %v1681
  %1708 = vmatmul.f32.gmra.mxu0 %v1687
  %v1709 = vpop.f32.mrf.mxu0
  %v1710 = vadd.f32 0.0, %v1709
  %1711 = vmatmul.f32.gmra.mxu0 %v1690
  %v1712 = vpop.f32.mrf.mxu0
  %v1713 = vadd.f32 0.0, %v1712
  %1714 = vdwg.mxu0
  %1715 = vrot.lane.b32.xlu0 %v1573, 120
  %v1716 = vpop.permute.xlu0 %1715
  %1717 = vrot.lane.b32.xlu0 %v1576, 120
  %v1718 = vpop.permute.xlu0 %1717
  %1719 = vrot.lane.b32.xlu0 %v1573, 88
  %v1720 = vpop.permute.xlu0 %1719
  %1721 = vrot.lane.b32.xlu0 %v1576, 88
  %v1722 = vpop.permute.xlu0 %1721
  %v1723 = vsel %vm1594, %v1716, 0
  %v1725 = vsel %vm1594, %v1718, 0
  %v1727 = vsel %vm1594, %v1720, 0
  %v1729 = vsel %vm1594, %v1722, 0
  %1731 = vmatpush.xpose.msra.mxu0 0.0
  %1732 = vmatpush.xpose.msra.mxu0 0.0
  %1733 = vmatpush.xpose.msra.mxu0 0.0
  %1734 = vmatpush.xpose.msra.mxu0 0.0
  %1735 = vmatpush.xpose.msra.mxu0 0.0
  %1736 = vmatpush.xpose.msra.mxu0 0.0
  %1737 = vmatpush.xpose.msra.mxu0 0.0
  %1738 = vmatpush.xpose.msra.mxu0 0.0
  %1739 = vmatpush.xpose.msra.mxu0 0.0
  %1740 = vmatpush.xpose.msra.mxu0 0.0
  %1741 = vmatpush.xpose.msra.mxu0 0.0
  %1742 = vmatpush.xpose.msra.mxu0 0.0
  %1743 = vmatpush.xpose.msra.mxu0 0.0
  %1744 = vmatpush.xpose.msra.mxu0 0.0
  %1745 = vmatpush.xpose.msra.mxu0 %v1729
  %1746 = vmatpush.xpose.msra.mxu0 %v1727
  %1747 = vmatmul.f32.gmra.mxu0 %v1723
  %v1748 = vpop.f32.mrf.mxu0
  %v1749 = vadd.f32 0.0, %v1748
  %1750 = vmatmul.f32.gmra.mxu0 %v1725
  %v1751 = vpop.f32.mrf.mxu0
  %v1752 = vadd.f32 0.0, %v1751
  %1753 = vdwg.mxu0
  %v1754 = vmul.f32 %v1749, 0.35355338
  %v1755 = vmul.f32 %v1752, 0.35355338
  %v1756 = vadd.f32 %v1754, %v1628
  %v1757 = vadd.f32 %v1755, %v1628
  %v1758 = vsel %vm1631, %v1756, -inf
  %1759 = vmax.xlane.f32.xlu0 %v1758
  %v1760 = vpop.xlane.xlu0 %1759
  %v1761 = vsel %vm1631, %v1757, -inf
  %1762 = vmax.xlane.f32.xlu0 %v1761
  %v1763 = vpop.xlane.xlu0 %1762
  %v1764 = vsub.f32 %v1756, %v1760
  %v1765 = vsub.f32 %v1757, %v1763
  %v1766 = vmul.f32 %v1764, 1.442695
  %v1767 = vpow.pop %v1766
  %v1768 = vmul.f32 %v1765, 1.442695
  %v1769 = vpow.pop %v1768
  %v1770 = vsel %vm1631, %v1767, 0.0
  %1771 = vadd.xlane.f32.xlu0 %v1770
  %v1772 = vpop.xlane.xlu0 %1771
  %v1773 = vsel %vm1631, %v1769, 0.0
  %1774 = vadd.xlane.f32.xlu0 %v1773
  %v1775 = vpop.xlane.xlu0 %1774
  %v1776 = vrcp.pop %v1772
  %v1777 = vmul.f32 %v1772, %v1776
  %v1778 = vsub.f32 1.0, %v1777
  %v1779 = vmul.f32 %v1776, %v1778
  %v1780 = vadd.f32 %v1776, %v1779
  %vm1781 = vweird.f32 %v1772
  %vm1782 = vweird.f32 %v1776
  %vm1783 = vmor %vm1781, %vm1782
  %v1784 = vsel %vm1783, %v1776, %v1780
  %v1785 = vand.u32 2147483647, %v1772
  %vm1786 = vcmp.eq.f32.partialorder %v1785, 8.507059e+37
  %v1787 = vand.u32 %v1772, 2147483648
  %v1788 = vor.u32 1.1754944e-38, %v1787
  %v1789 = vsel %vm1786, %v1788, %v1784
  %v1790 = vmul.f32 %v1767, %v1789
  %v1791 = vrcp.pop %v1775
  %v1792 = vmul.f32 %v1775, %v1791
  %v1793 = vsub.f32 1.0, %v1792
  %v1794 = vmul.f32 %v1791, %v1793
  %v1795 = vadd.f32 %v1791, %v1794
  %vm1796 = vweird.f32 %v1775
  %vm1797 = vweird.f32 %v1791
  %vm1798 = vmor %vm1796, %vm1797
  %v1799 = vsel %vm1798, %v1791, %v1795
  %v1800 = vand.u32 2147483647, %v1775
  %vm1801 = vcmp.eq.f32.partialorder %v1800, 8.507059e+37
  %v1802 = vand.u32 %v1775, 2147483648
  %v1803 = vor.u32 1.1754944e-38, %v1802
  %v1804 = vsel %vm1801, %v1803, %v1799
  %v1805 = vmul.f32 %v1769, %v1804
  %1806 = vrot.lane.b32.xlu0 %v1573, 56
  %v1807 = vpop.permute.xlu0 %1806
  %1808 = vrot.lane.b32.xlu0 %v1576, 56
  %v1809 = vpop.permute.xlu0 %1808
  %v1813 = vsel %vm1631, %v1790, 0
  %v1816 = vsel %vm1631, %v1805, 0
  %1818 = vmatpush.msra.mxu0 0.0
  %1819 = vmatpush.msra.mxu0 0.0
  %1820 = vmatpush.msra.mxu0 0.0
  %1821 = vmatpush.msra.mxu0 0.0
  %1822 = vmatpush.msra.mxu0 0.0
  %1823 = vmatpush.msra.mxu0 0.0
  %1824 = vmatpush.msra.mxu0 0.0
  %1825 = vmatpush.msra.mxu0 0.0
  %1826 = vmatpush.msra.mxu0 0.0
  %1827 = vmatpush.msra.mxu0 0.0
  %1828 = vmatpush.msra.mxu0 0.0
  %1829 = vmatpush.msra.mxu0 0.0
  %1830 = vmatpush.msra.mxu0 0.0
  %1831 = vmatpush.msra.mxu0 0.0
  %1832 = vmatpush.msra.mxu0 %v1809
  %1833 = vmatpush.msra.mxu0 %v1807
  %1834 = vmatmul.f32.gmra.mxu0 %v1813
  %v1835 = vpop.f32.mrf.mxu0
  %v1836 = vadd.f32 0.0, %v1835
  %1837 = vmatmul.f32.gmra.mxu0 %v1816
  %v1838 = vpop.f32.mrf.mxu0
  %v1839 = vadd.f32 0.0, %v1838
  %1840 = vdwg.mxu0
  %v1842 = vsel %vm1594, %v1836, 0
  %v1845 = vsel %vm1594, %v1839, 0
  %1847 = vmatpush.msra.mxu0 0.0
  %1848 = vmatpush.msra.mxu0 0.0
  %1849 = vmatpush.msra.mxu0 0.0
  %1850 = vmatpush.msra.mxu0 0.0
  %1851 = vmatpush.msra.mxu0 0.0
  %1852 = vmatpush.msra.mxu0 0.0
  %1853 = vmatpush.msra.mxu0 0.0
  %1854 = vmatpush.msra.mxu0 0.0
  %1855 = vmatpush.msra.mxu0 0.0
  %1856 = vmatpush.msra.mxu0 0.0
  %1857 = vmatpush.msra.mxu0 0.0
  %1858 = vmatpush.msra.mxu0 0.0
  %1859 = vmatpush.msra.mxu0 0.0
  %1860 = vmatpush.msra.mxu0 0.0
  %1861 = vmatpush.msra.mxu0 0.0
  %1862 = vmatpush.msra.mxu0 %v1585
  %1863 = vmatmul.f32.gmra.mxu0 %v1842
  %v1864 = vpop.f32.mrf.mxu0
  %v1865 = vadd.f32 0.0, %v1864
  %1866 = vmatmul.f32.gmra.mxu0 %v1845
  %v1867 = vpop.f32.mrf.mxu0
  %v1868 = vadd.f32 0.0, %v1867
  %1869 = vdwg.mxu0
  %v1871 = vsel %vm1594, %v1710, 0
  %v1874 = vsel %vm1594, %v1713, 0
  %1876 = vmatpush.msra.mxu0 0.0
  %1877 = vmatpush.msra.mxu0 0.0
  %1878 = vmatpush.msra.mxu0 0.0
  %1879 = vmatpush.msra.mxu0 0.0
  %1880 = vmatpush.msra.mxu0 0.0
  %1881 = vmatpush.msra.mxu0 0.0
  %1882 = vmatpush.msra.mxu0 0.0
  %1883 = vmatpush.msra.mxu0 0.0
  %1884 = vmatpush.msra.mxu0 0.0
  %1885 = vmatpush.msra.mxu0 0.0
  %1886 = vmatpush.msra.mxu0 0.0
  %1887 = vmatpush.msra.mxu0 0.0
  %1888 = vmatpush.msra.mxu0 0.0
  %1889 = vmatpush.msra.mxu0 0.0
  %1890 = vmatpush.msra.mxu0 0.0
  %1891 = vmatpush.msra.mxu0 %v1584
  %1892 = vmatmul.f32.gmra.mxu0 %v1871
  %v1893 = vpop.f32.mrf.mxu0
  %v1894 = vadd.f32 %v1865, %v1893
  %1895 = vmatmul.f32.gmra.mxu0 %v1874
  %v1896 = vpop.f32.mrf.mxu0
  %v1897 = vadd.f32 %v1868, %v1896
  %1898 = vdwg.mxu0
  %1899 = vrot.lane.b32.xlu0 %v1573, 112
  %v1900 = vpop.permute.xlu0 %1899
  %1901 = vrot.lane.b32.xlu0 %v1576, 112
  %v1902 = vpop.permute.xlu0 %1901
  %1903 = vrot.lane.b32.xlu0 %v1573, 80
  %v1904 = vpop.permute.xlu0 %1903
  %1905 = vrot.lane.b32.xlu0 %v1576, 80
  %v1906 = vpop.permute.xlu0 %1905
  %v1907 = vsel %vm1594, %v1900, 0
  %v1909 = vsel %vm1594, %v1902, 0
  %v1911 = vsel %vm1594, %v1904, 0
  %v1913 = vsel %vm1594, %v1906, 0
  %1915 = vmatpush.xpose.msra.mxu0 0.0
  %1916 = vmatpush.xpose.msra.mxu0 0.0
  %1917 = vmatpush.xpose.msra.mxu0 0.0
  %1918 = vmatpush.xpose.msra.mxu0 0.0
  %1919 = vmatpush.xpose.msra.mxu0 0.0
  %1920 = vmatpush.xpose.msra.mxu0 0.0
  %1921 = vmatpush.xpose.msra.mxu0 0.0
  %1922 = vmatpush.xpose.msra.mxu0 0.0
  %1923 = vmatpush.xpose.msra.mxu0 0.0
  %1924 = vmatpush.xpose.msra.mxu0 0.0
  %1925 = vmatpush.xpose.msra.mxu0 0.0
  %1926 = vmatpush.xpose.msra.mxu0 0.0
  %1927 = vmatpush.xpose.msra.mxu0 0.0
  %1928 = vmatpush.xpose.msra.mxu0 0.0
  %1929 = vmatpush.xpose.msra.mxu0 %v1913
  %1930 = vmatpush.xpose.msra.mxu0 %v1911
  %1931 = vmatmul.f32.gmra.mxu0 %v1907
  %v1932 = vpop.f32.mrf.mxu0
  %v1933 = vadd.f32 0.0, %v1932
  %1934 = vmatmul.f32.gmra.mxu0 %v1909
  %v1935 = vpop.f32.mrf.mxu0
  %v1936 = vadd.f32 0.0, %v1935
  %1937 = vdwg.mxu0
  %v1938 = vmul.f32 %v1933, 0.35355338
  %v1939 = vmul.f32 %v1936, 0.35355338
  %v1940 = vadd.f32 %v1938, %v1628
  %v1941 = vadd.f32 %v1939, %v1628
  %v1942 = vsel %vm1631, %v1940, -inf
  %1943 = vmax.xlane.f32.xlu0 %v1942
  %v1944 = vpop.xlane.xlu0 %1943
  %v1945 = vsel %vm1631, %v1941, -inf
  %1946 = vmax.xlane.f32.xlu0 %v1945
  %v1947 = vpop.xlane.xlu0 %1946
  %v1948 = vsub.f32 %v1940, %v1944
  %v1949 = vsub.f32 %v1941, %v1947
  %v1950 = vmul.f32 %v1948, 1.442695
  %v1951 = vpow.pop %v1950
  %v1952 = vmul.f32 %v1949, 1.442695
  %v1953 = vpow.pop %v1952
  %v1954 = vsel %vm1631, %v1951, 0.0
  %1955 = vadd.xlane.f32.xlu0 %v1954
  %v1956 = vpop.xlane.xlu0 %1955
  %v1957 = vsel %vm1631, %v1953, 0.0
  %1958 = vadd.xlane.f32.xlu0 %v1957
  %v1959 = vpop.xlane.xlu0 %1958
  %v1960 = vrcp.pop %v1956
  %v1961 = vmul.f32 %v1956, %v1960
  %v1962 = vsub.f32 1.0, %v1961
  %v1963 = vmul.f32 %v1960, %v1962
  %v1964 = vadd.f32 %v1960, %v1963
  %vm1965 = vweird.f32 %v1956
  %vm1966 = vweird.f32 %v1960
  %vm1967 = vmor %vm1965, %vm1966
  %v1968 = vsel %vm1967, %v1960, %v1964
  %v1969 = vand.u32 2147483647, %v1956
  %vm1970 = vcmp.eq.f32.partialorder %v1969, 8.507059e+37
  %v1971 = vand.u32 %v1956, 2147483648
  %v1972 = vor.u32 1.1754944e-38, %v1971
  %v1973 = vsel %vm1970, %v1972, %v1968
  %v1974 = vmul.f32 %v1951, %v1973
  %v1975 = vrcp.pop %v1959
  %v1976 = vmul.f32 %v1959, %v1975
  %v1977 = vsub.f32 1.0, %v1976
  %v1978 = vmul.f32 %v1975, %v1977
  %v1979 = vadd.f32 %v1975, %v1978
  %vm1980 = vweird.f32 %v1959
  %vm1981 = vweird.f32 %v1975
  %vm1982 = vmor %vm1980, %vm1981
  %v1983 = vsel %vm1982, %v1975, %v1979
  %v1984 = vand.u32 2147483647, %v1959
  %vm1985 = vcmp.eq.f32.partialorder %v1984, 8.507059e+37
  %v1986 = vand.u32 %v1959, 2147483648
  %v1987 = vor.u32 1.1754944e-38, %v1986
  %v1988 = vsel %vm1985, %v1987, %v1983
  %v1989 = vmul.f32 %v1953, %v1988
  %1990 = vrot.lane.b32.xlu0 %v1573, 48
  %v1991 = vpop.permute.xlu0 %1990
  %1992 = vrot.lane.b32.xlu0 %v1576, 48
  %v1993 = vpop.permute.xlu0 %1992
  %v1997 = vsel %vm1631, %v1974, 0
  %v2000 = vsel %vm1631, %v1989, 0
  %2002 = vmatpush.msra.mxu0 0.0
  %2003 = vmatpush.msra.mxu0 0.0
  %2004 = vmatpush.msra.mxu0 0.0
  %2005 = vmatpush.msra.mxu0 0.0
  %2006 = vmatpush.msra.mxu0 0.0
  %2007 = vmatpush.msra.mxu0 0.0
  %2008 = vmatpush.msra.mxu0 0.0
  %2009 = vmatpush.msra.mxu0 0.0
  %2010 = vmatpush.msra.mxu0 0.0
  %2011 = vmatpush.msra.mxu0 0.0
  %2012 = vmatpush.msra.mxu0 0.0
  %2013 = vmatpush.msra.mxu0 0.0
  %2014 = vmatpush.msra.mxu0 0.0
  %2015 = vmatpush.msra.mxu0 0.0
  %2016 = vmatpush.msra.mxu0 %v1993
  %2017 = vmatpush.msra.mxu0 %v1991
  %2018 = vmatmul.f32.gmra.mxu0 %v1997
  %v2019 = vpop.f32.mrf.mxu0
  %v2020 = vadd.f32 0.0, %v2019
  %2021 = vmatmul.f32.gmra.mxu0 %v2000
  %v2022 = vpop.f32.mrf.mxu0
  %v2023 = vadd.f32 0.0, %v2022
  %2024 = vdwg.mxu0
  %v2026 = vsel %vm1594, %v2020, 0
  %v2029 = vsel %vm1594, %v2023, 0
  %2031 = vmatpush.msra.mxu0 0.0
  %2032 = vmatpush.msra.mxu0 0.0
  %2033 = vmatpush.msra.mxu0 0.0
  %2034 = vmatpush.msra.mxu0 0.0
  %2035 = vmatpush.msra.mxu0 0.0
  %2036 = vmatpush.msra.mxu0 0.0
  %2037 = vmatpush.msra.mxu0 0.0
  %2038 = vmatpush.msra.mxu0 0.0
  %2039 = vmatpush.msra.mxu0 0.0
  %2040 = vmatpush.msra.mxu0 0.0
  %2041 = vmatpush.msra.mxu0 0.0
  %2042 = vmatpush.msra.mxu0 0.0
  %2043 = vmatpush.msra.mxu0 0.0
  %2044 = vmatpush.msra.mxu0 0.0
  %2045 = vmatpush.msra.mxu0 0.0
  %2046 = vmatpush.msra.mxu0 %v1586
  %2047 = vmatmul.f32.gmra.mxu0 %v2026
  %v2048 = vpop.f32.mrf.mxu0
  %v2049 = vadd.f32 0.0, %v2048
  %2050 = vmatmul.f32.gmra.mxu0 %v2029
  %v2051 = vpop.f32.mrf.mxu0
  %v2052 = vadd.f32 0.0, %v2051
  %2053 = vdwg.mxu0
  %v2054 = vadd.f32 %v1894, %v2049
  %v2055 = vadd.f32 %v1897, %v2052
  %2056 = vrot.lane.b32.xlu0 %v1573, 104
  %v2057 = vpop.permute.xlu0 %2056
  %2058 = vrot.lane.b32.xlu0 %v1576, 104
  %v2059 = vpop.permute.xlu0 %2058
  %2060 = vrot.lane.b32.xlu0 %v1573, 72
  %v2061 = vpop.permute.xlu0 %2060
  %2062 = vrot.lane.b32.xlu0 %v1576, 72
  %v2063 = vpop.permute.xlu0 %2062
  %v2064 = vsel %vm1594, %v2057, 0
  %v2066 = vsel %vm1594, %v2059, 0
  %v2068 = vsel %vm1594, %v2061, 0
  %v2070 = vsel %vm1594, %v2063, 0
  %2072 = vmatpush.xpose.msra.mxu0 0.0
  %2073 = vmatpush.xpose.msra.mxu0 0.0
  %2074 = vmatpush.xpose.msra.mxu0 0.0
  %2075 = vmatpush.xpose.msra.mxu0 0.0
  %2076 = vmatpush.xpose.msra.mxu0 0.0
  %2077 = vmatpush.xpose.msra.mxu0 0.0
  %2078 = vmatpush.xpose.msra.mxu0 0.0
  %2079 = vmatpush.xpose.msra.mxu0 0.0
  %2080 = vmatpush.xpose.msra.mxu0 0.0
  %2081 = vmatpush.xpose.msra.mxu0 0.0
  %2082 = vmatpush.xpose.msra.mxu0 0.0
  %2083 = vmatpush.xpose.msra.mxu0 0.0
  %2084 = vmatpush.xpose.msra.mxu0 0.0
  %2085 = vmatpush.xpose.msra.mxu0 0.0
  %2086 = vmatpush.xpose.msra.mxu0 %v2070
  %2087 = vmatpush.xpose.msra.mxu0 %v2068
  %2088 = vmatmul.f32.gmra.mxu0 %v2064
  %v2089 = vpop.f32.mrf.mxu0
  %v2090 = vadd.f32 0.0, %v2089
  %2091 = vmatmul.f32.gmra.mxu0 %v2066
  %v2092 = vpop.f32.mrf.mxu0
  %v2093 = vadd.f32 0.0, %v2092
  %2094 = vdwg.mxu0
  %v2095 = vmul.f32 %v2090, 0.35355338
  %v2096 = vmul.f32 %v2093, 0.35355338
  %v2097 = vadd.f32 %v2095, %v1628
  %v2098 = vadd.f32 %v2096, %v1628
  %v2099 = vsel %vm1631, %v2097, -inf
  %2100 = vmax.xlane.f32.xlu0 %v2099
  %v2101 = vpop.xlane.xlu0 %2100
  %v2102 = vsel %vm1631, %v2098, -inf
  %2103 = vmax.xlane.f32.xlu0 %v2102
  %v2104 = vpop.xlane.xlu0 %2103
  %v2105 = vsub.f32 %v2097, %v2101
  %v2106 = vsub.f32 %v2098, %v2104
  %v2107 = vmul.f32 %v2105, 1.442695
  %v2108 = vpow.pop %v2107
  %v2109 = vmul.f32 %v2106, 1.442695
  %v2110 = vpow.pop %v2109
  %v2111 = vsel %vm1631, %v2108, 0.0
  %2112 = vadd.xlane.f32.xlu0 %v2111
  %v2113 = vpop.xlane.xlu0 %2112
  %v2114 = vsel %vm1631, %v2110, 0.0
  %2115 = vadd.xlane.f32.xlu0 %v2114
  %v2116 = vpop.xlane.xlu0 %2115
  %v2117 = vrcp.pop %v2113
  %v2118 = vmul.f32 %v2113, %v2117
  %v2119 = vsub.f32 1.0, %v2118
  %v2120 = vmul.f32 %v2117, %v2119
  %v2121 = vadd.f32 %v2117, %v2120
  %vm2122 = vweird.f32 %v2113
  %vm2123 = vweird.f32 %v2117
  %vm2124 = vmor %vm2122, %vm2123
  %v2125 = vsel %vm2124, %v2117, %v2121
  %v2126 = vand.u32 2147483647, %v2113
  %vm2127 = vcmp.eq.f32.partialorder %v2126, 8.507059e+37
  %v2128 = vand.u32 %v2113, 2147483648
  %v2129 = vor.u32 1.1754944e-38, %v2128
  %v2130 = vsel %vm2127, %v2129, %v2125
  %v2131 = vmul.f32 %v2108, %v2130
  %v2132 = vrcp.pop %v2116
  %v2133 = vmul.f32 %v2116, %v2132
  %v2134 = vsub.f32 1.0, %v2133
  %v2135 = vmul.f32 %v2132, %v2134
  %v2136 = vadd.f32 %v2132, %v2135
  %vm2137 = vweird.f32 %v2116
  %vm2138 = vweird.f32 %v2132
  %vm2139 = vmor %vm2137, %vm2138
  %v2140 = vsel %vm2139, %v2132, %v2136
  %v2141 = vand.u32 2147483647, %v2116
  %vm2142 = vcmp.eq.f32.partialorder %v2141, 8.507059e+37
  %v2143 = vand.u32 %v2116, 2147483648
  %v2144 = vor.u32 1.1754944e-38, %v2143
  %v2145 = vsel %vm2142, %v2144, %v2140
  %v2146 = vmul.f32 %v2110, %v2145
  %2147 = vrot.lane.b32.xlu0 %v1573, 40
  %v2148 = vpop.permute.xlu0 %2147
  %2149 = vrot.lane.b32.xlu0 %v1576, 40
  %v2150 = vpop.permute.xlu0 %2149
  %v2154 = vsel %vm1631, %v2131, 0
  %v2157 = vsel %vm1631, %v2146, 0
  %2159 = vmatpush.msra.mxu0 0.0
  %2160 = vmatpush.msra.mxu0 0.0
  %2161 = vmatpush.msra.mxu0 0.0
  %2162 = vmatpush.msra.mxu0 0.0
  %2163 = vmatpush.msra.mxu0 0.0
  %2164 = vmatpush.msra.mxu0 0.0
  %2165 = vmatpush.msra.mxu0 0.0
  %2166 = vmatpush.msra.mxu0 0.0
  %2167 = vmatpush.msra.mxu0 0.0
  %2168 = vmatpush.msra.mxu0 0.0
  %2169 = vmatpush.msra.mxu0 0.0
  %2170 = vmatpush.msra.mxu0 0.0
  %2171 = vmatpush.msra.mxu0 0.0
  %2172 = vmatpush.msra.mxu0 0.0
  %2173 = vmatpush.msra.mxu0 %v2150
  %2174 = vmatpush.msra.mxu0 %v2148
  %2175 = vmatmul.f32.gmra.mxu0 %v2154
  %v2176 = vpop.f32.mrf.mxu0
  %v2177 = vadd.f32 0.0, %v2176
  %2178 = vmatmul.f32.gmra.mxu0 %v2157
  %v2179 = vpop.f32.mrf.mxu0
  %v2180 = vadd.f32 0.0, %v2179
  %2181 = vdwg.mxu0
  %v2183 = vsel %vm1594, %v2177, 0
  %v2186 = vsel %vm1594, %v2180, 0
  %2188 = vmatpush.msra.mxu0 0.0
  %2189 = vmatpush.msra.mxu0 0.0
  %2190 = vmatpush.msra.mxu0 0.0
  %2191 = vmatpush.msra.mxu0 0.0
  %2192 = vmatpush.msra.mxu0 0.0
  %2193 = vmatpush.msra.mxu0 0.0
  %2194 = vmatpush.msra.mxu0 0.0
  %2195 = vmatpush.msra.mxu0 0.0
  %2196 = vmatpush.msra.mxu0 0.0
  %2197 = vmatpush.msra.mxu0 0.0
  %2198 = vmatpush.msra.mxu0 0.0
  %2199 = vmatpush.msra.mxu0 0.0
  %2200 = vmatpush.msra.mxu0 0.0
  %2201 = vmatpush.msra.mxu0 0.0
  %2202 = vmatpush.msra.mxu0 0.0
  %2203 = vmatpush.msra.mxu0 %v1587
  %2204 = vmatmul.f32.gmra.mxu0 %v2183
  %v2205 = vpop.f32.mrf.mxu0
  %v2206 = vadd.f32 0.0, %v2205
  %2207 = vmatmul.f32.gmra.mxu0 %v2186
  %v2208 = vpop.f32.mrf.mxu0
  %v2209 = vadd.f32 0.0, %v2208
  %2210 = vdwg.mxu0
  %v2211 = vadd.f32 %v2054, %v2206
  %v2212 = vadd.f32 %v2055, %v2209
  %2215 = vrot.lane.b32.xlu0 %v1579, 96
  %v2216 = vpop.permute.xlu0 %2215
  %2217 = vrot.lane.b32.xlu0 %v1582, 96
  %v2218 = vpop.permute.xlu0 %2217
  %v2219 = vsel %vm1594, %v1579, 0
  %v2221 = vsel %vm1594, %v1582, 0
  %v2223 = vsel %vm1594, %v2216, 0
  %v2225 = vsel %vm1594, %v2218, 0
  %2227 = vmatpush.xpose.msra.mxu0 0.0
  %2228 = vmatpush.xpose.msra.mxu0 0.0
  %2229 = vmatpush.xpose.msra.mxu0 0.0
  %2230 = vmatpush.xpose.msra.mxu0 0.0
  %2231 = vmatpush.xpose.msra.mxu0 0.0
  %2232 = vmatpush.xpose.msra.mxu0 0.0
  %2233 = vmatpush.xpose.msra.mxu0 0.0
  %2234 = vmatpush.xpose.msra.mxu0 0.0
  %2235 = vmatpush.xpose.msra.mxu0 0.0
  %2236 = vmatpush.xpose.msra.mxu0 0.0
  %2237 = vmatpush.xpose.msra.mxu0 0.0
  %2238 = vmatpush.xpose.msra.mxu0 0.0
  %2239 = vmatpush.xpose.msra.mxu0 0.0
  %2240 = vmatpush.xpose.msra.mxu0 0.0
  %2241 = vmatpush.xpose.msra.mxu0 %v2225
  %2242 = vmatpush.xpose.msra.mxu0 %v2223
  %2243 = vmatmul.f32.gmra.mxu0 %v2219
  %v2244 = vpop.f32.mrf.mxu0
  %v2245 = vadd.f32 0.0, %v2244
  %2246 = vmatmul.f32.gmra.mxu0 %v2221
  %v2247 = vpop.f32.mrf.mxu0
  %v2248 = vadd.f32 0.0, %v2247
  %2249 = vdwg.mxu0
  %v2250 = vmul.f32 %v2245, 0.35355338
  %v2251 = vmul.f32 %v2248, 0.35355338
  %v2252 = vperm.slane %v93, 1
  %v2253 = vadd.f32 %v2250, %v2252
  %v2254 = vadd.f32 %v2251, %v2252
  %v2255 = vsel %vm1631, %v2253, -inf
  %2256 = vmax.xlane.f32.xlu0 %v2255
  %v2257 = vpop.xlane.xlu0 %2256
  %v2258 = vsel %vm1631, %v2254, -inf
  %2259 = vmax.xlane.f32.xlu0 %v2258
  %v2260 = vpop.xlane.xlu0 %2259
  %v2261 = vsub.f32 %v2253, %v2257
  %v2262 = vsub.f32 %v2254, %v2260
  %v2263 = vmul.f32 %v2261, 1.442695
  %v2264 = vpow.pop %v2263
  %v2265 = vmul.f32 %v2262, 1.442695
  %v2266 = vpow.pop %v2265
  %v2267 = vsel %vm1631, %v2264, 0.0
  %2268 = vadd.xlane.f32.xlu0 %v2267
  %v2269 = vpop.xlane.xlu0 %2268
  %v2270 = vsel %vm1631, %v2266, 0.0
  %2271 = vadd.xlane.f32.xlu0 %v2270
  %v2272 = vpop.xlane.xlu0 %2271
  %v2273 = vrcp.pop %v2269
  %v2274 = vmul.f32 %v2269, %v2273
  %v2275 = vsub.f32 1.0, %v2274
  %v2276 = vmul.f32 %v2273, %v2275
  %v2277 = vadd.f32 %v2273, %v2276
  %vm2278 = vweird.f32 %v2269
  %vm2279 = vweird.f32 %v2273
  %vm2280 = vmor %vm2278, %vm2279
  %v2281 = vsel %vm2280, %v2273, %v2277
  %v2282 = vand.u32 2147483647, %v2269
  %vm2283 = vcmp.eq.f32.partialorder %v2282, 8.507059e+37
  %v2284 = vand.u32 %v2269, 2147483648
  %v2285 = vor.u32 1.1754944e-38, %v2284
  %v2286 = vsel %vm2283, %v2285, %v2281
  %v2287 = vmul.f32 %v2264, %v2286
  %v2288 = vrcp.pop %v2272
  %v2289 = vmul.f32 %v2272, %v2288
  %v2290 = vsub.f32 1.0, %v2289
  %v2291 = vmul.f32 %v2288, %v2290
  %v2292 = vadd.f32 %v2288, %v2291
  %vm2293 = vweird.f32 %v2272
  %vm2294 = vweird.f32 %v2288
  %vm2295 = vmor %vm2293, %vm2294
  %v2296 = vsel %vm2295, %v2288, %v2292
  %v2297 = vand.u32 2147483647, %v2272
  %vm2298 = vcmp.eq.f32.partialorder %v2297, 8.507059e+37
  %v2299 = vand.u32 %v2272, 2147483648
  %v2300 = vor.u32 1.1754944e-38, %v2299
  %v2301 = vsel %vm2298, %v2300, %v2296
  %v2302 = vmul.f32 %v2266, %v2301
  %2303 = vrot.lane.b32.xlu0 %v1579, 64
  %v2304 = vpop.permute.xlu0 %2303
  %2305 = vrot.lane.b32.xlu0 %v1582, 64
  %v2306 = vpop.permute.xlu0 %2305
  %v2310 = vsel %vm1631, %v2287, 0
  %v2313 = vsel %vm1631, %v2302, 0
  %2315 = vmatpush.msra.mxu0 0.0
  %2316 = vmatpush.msra.mxu0 0.0
  %2317 = vmatpush.msra.mxu0 0.0
  %2318 = vmatpush.msra.mxu0 0.0
  %2319 = vmatpush.msra.mxu0 0.0
  %2320 = vmatpush.msra.mxu0 0.0
  %2321 = vmatpush.msra.mxu0 0.0
  %2322 = vmatpush.msra.mxu0 0.0
  %2323 = vmatpush.msra.mxu0 0.0
  %2324 = vmatpush.msra.mxu0 0.0
  %2325 = vmatpush.msra.mxu0 0.0
  %2326 = vmatpush.msra.mxu0 0.0
  %2327 = vmatpush.msra.mxu0 0.0
  %2328 = vmatpush.msra.mxu0 0.0
  %2329 = vmatpush.msra.mxu0 %v2306
  %2330 = vmatpush.msra.mxu0 %v2304
  %2331 = vmatmul.f32.gmra.mxu0 %v2310
  %v2332 = vpop.f32.mrf.mxu0
  %v2333 = vadd.f32 0.0, %v2332
  %2334 = vmatmul.f32.gmra.mxu0 %v2313
  %v2335 = vpop.f32.mrf.mxu0
  %v2336 = vadd.f32 0.0, %v2335
  %2337 = vdwg.mxu0
  %2338 = vrot.lane.b32.xlu0 %v1579, 120
  %v2339 = vpop.permute.xlu0 %2338
  %2340 = vrot.lane.b32.xlu0 %v1582, 120
  %v2341 = vpop.permute.xlu0 %2340
  %2342 = vrot.lane.b32.xlu0 %v1579, 88
  %v2343 = vpop.permute.xlu0 %2342
  %2344 = vrot.lane.b32.xlu0 %v1582, 88
  %v2345 = vpop.permute.xlu0 %2344
  %v2346 = vsel %vm1594, %v2339, 0
  %v2348 = vsel %vm1594, %v2341, 0
  %v2350 = vsel %vm1594, %v2343, 0
  %v2352 = vsel %vm1594, %v2345, 0
  %2354 = vmatpush.xpose.msra.mxu0 0.0
  %2355 = vmatpush.xpose.msra.mxu0 0.0
  %2356 = vmatpush.xpose.msra.mxu0 0.0
  %2357 = vmatpush.xpose.msra.mxu0 0.0
  %2358 = vmatpush.xpose.msra.mxu0 0.0
  %2359 = vmatpush.xpose.msra.mxu0 0.0
  %2360 = vmatpush.xpose.msra.mxu0 0.0
  %2361 = vmatpush.xpose.msra.mxu0 0.0
  %2362 = vmatpush.xpose.msra.mxu0 0.0
  %2363 = vmatpush.xpose.msra.mxu0 0.0
  %2364 = vmatpush.xpose.msra.mxu0 0.0
  %2365 = vmatpush.xpose.msra.mxu0 0.0
  %2366 = vmatpush.xpose.msra.mxu0 0.0
  %2367 = vmatpush.xpose.msra.mxu0 0.0
  %2368 = vmatpush.xpose.msra.mxu0 %v2352
  %2369 = vmatpush.xpose.msra.mxu0 %v2350
  %2370 = vmatmul.f32.gmra.mxu0 %v2346
  %v2371 = vpop.f32.mrf.mxu0
  %v2372 = vadd.f32 0.0, %v2371
  %2373 = vmatmul.f32.gmra.mxu0 %v2348
  %v2374 = vpop.f32.mrf.mxu0
  %v2375 = vadd.f32 0.0, %v2374
  %2376 = vdwg.mxu0
  %v2377 = vmul.f32 %v2372, 0.35355338
  %v2378 = vmul.f32 %v2375, 0.35355338
  %v2379 = vadd.f32 %v2377, %v2252
  %v2380 = vadd.f32 %v2378, %v2252
  %v2381 = vsel %vm1631, %v2379, -inf
  %2382 = vmax.xlane.f32.xlu0 %v2381
  %v2383 = vpop.xlane.xlu0 %2382
  %v2384 = vsel %vm1631, %v2380, -inf
  %2385 = vmax.xlane.f32.xlu0 %v2384
  %v2386 = vpop.xlane.xlu0 %2385
  %v2387 = vsub.f32 %v2379, %v2383
  %v2388 = vsub.f32 %v2380, %v2386
  %v2389 = vmul.f32 %v2387, 1.442695
  %v2390 = vpow.pop %v2389
  %v2391 = vmul.f32 %v2388, 1.442695
  %v2392 = vpow.pop %v2391
  %v2393 = vsel %vm1631, %v2390, 0.0
  %2394 = vadd.xlane.f32.xlu0 %v2393
  %v2395 = vpop.xlane.xlu0 %2394
  %v2396 = vsel %vm1631, %v2392, 0.0
  %2397 = vadd.xlane.f32.xlu0 %v2396
  %v2398 = vpop.xlane.xlu0 %2397
  %v2399 = vrcp.pop %v2395
  %v2400 = vmul.f32 %v2395, %v2399
  %v2401 = vsub.f32 1.0, %v2400
  %v2402 = vmul.f32 %v2399, %v2401
  %v2403 = vadd.f32 %v2399, %v2402
  %vm2404 = vweird.f32 %v2395
  %vm2405 = vweird.f32 %v2399
  %vm2406 = vmor %vm2404, %vm2405
  %v2407 = vsel %vm2406, %v2399, %v2403
  %v2408 = vand.u32 2147483647, %v2395
  %vm2409 = vcmp.eq.f32.partialorder %v2408, 8.507059e+37
  %v2410 = vand.u32 %v2395, 2147483648
  %v2411 = vor.u32 1.1754944e-38, %v2410
  %v2412 = vsel %vm2409, %v2411, %v2407
  %v2413 = vmul.f32 %v2390, %v2412
  %v2414 = vrcp.pop %v2398
  %v2415 = vmul.f32 %v2398, %v2414
  %v2416 = vsub.f32 1.0, %v2415
  %v2417 = vmul.f32 %v2414, %v2416
  %v2418 = vadd.f32 %v2414, %v2417
  %vm2419 = vweird.f32 %v2398
  %vm2420 = vweird.f32 %v2414
  %vm2421 = vmor %vm2419, %vm2420
  %v2422 = vsel %vm2421, %v2414, %v2418
  %v2423 = vand.u32 2147483647, %v2398
  %vm2424 = vcmp.eq.f32.partialorder %v2423, 8.507059e+37
  %v2425 = vand.u32 %v2398, 2147483648
  %v2426 = vor.u32 1.1754944e-38, %v2425
  %v2427 = vsel %vm2424, %v2426, %v2422
  %v2428 = vmul.f32 %v2392, %v2427
  %2429 = vrot.lane.b32.xlu0 %v1579, 56
  %v2430 = vpop.permute.xlu0 %2429
  %2431 = vrot.lane.b32.xlu0 %v1582, 56
  %v2432 = vpop.permute.xlu0 %2431
  %v2436 = vsel %vm1631, %v2413, 0
  %v2439 = vsel %vm1631, %v2428, 0
  %2441 = vmatpush.msra.mxu0 0.0
  %2442 = vmatpush.msra.mxu0 0.0
  %2443 = vmatpush.msra.mxu0 0.0
  %2444 = vmatpush.msra.mxu0 0.0
  %2445 = vmatpush.msra.mxu0 0.0
  %2446 = vmatpush.msra.mxu0 0.0
  %2447 = vmatpush.msra.mxu0 0.0
  %2448 = vmatpush.msra.mxu0 0.0
  %2449 = vmatpush.msra.mxu0 0.0
  %2450 = vmatpush.msra.mxu0 0.0
  %2451 = vmatpush.msra.mxu0 0.0
  %2452 = vmatpush.msra.mxu0 0.0
  %2453 = vmatpush.msra.mxu0 0.0
  %2454 = vmatpush.msra.mxu0 0.0
  %2455 = vmatpush.msra.mxu0 %v2432
  %2456 = vmatpush.msra.mxu0 %v2430
  %2457 = vmatmul.f32.gmra.mxu0 %v2436
  %v2458 = vpop.f32.mrf.mxu0
  %v2459 = vadd.f32 0.0, %v2458
  %2460 = vmatmul.f32.gmra.mxu0 %v2439
  %v2461 = vpop.f32.mrf.mxu0
  %v2462 = vadd.f32 0.0, %v2461
  %2463 = vdwg.mxu0
  %v2465 = vsel %vm1594, %v2459, 0
  %v2468 = vsel %vm1594, %v2462, 0
  %2470 = vmatpush.msra.mxu0 0.0
  %2471 = vmatpush.msra.mxu0 0.0
  %2472 = vmatpush.msra.mxu0 0.0
  %2473 = vmatpush.msra.mxu0 0.0
  %2474 = vmatpush.msra.mxu0 0.0
  %2475 = vmatpush.msra.mxu0 0.0
  %2476 = vmatpush.msra.mxu0 0.0
  %2477 = vmatpush.msra.mxu0 0.0
  %2478 = vmatpush.msra.mxu0 0.0
  %2479 = vmatpush.msra.mxu0 0.0
  %2480 = vmatpush.msra.mxu0 0.0
  %2481 = vmatpush.msra.mxu0 0.0
  %2482 = vmatpush.msra.mxu0 0.0
  %2483 = vmatpush.msra.mxu0 0.0
  %2484 = vmatpush.msra.mxu0 0.0
  %2485 = vmatpush.msra.mxu0 %v1585
  %2486 = vmatmul.f32.gmra.mxu0 %v2465
  %v2487 = vpop.f32.mrf.mxu0
  %v2488 = vadd.f32 0.0, %v2487
  %2489 = vmatmul.f32.gmra.mxu0 %v2468
  %v2490 = vpop.f32.mrf.mxu0
  %v2491 = vadd.f32 0.0, %v2490
  %2492 = vdwg.mxu0
  %v2494 = vsel %vm1594, %v2333, 0
  %v2497 = vsel %vm1594, %v2336, 0
  %2499 = vmatpush.msra.mxu0 0.0
  %2500 = vmatpush.msra.mxu0 0.0
  %2501 = vmatpush.msra.mxu0 0.0
  %2502 = vmatpush.msra.mxu0 0.0
  %2503 = vmatpush.msra.mxu0 0.0
  %2504 = vmatpush.msra.mxu0 0.0
  %2505 = vmatpush.msra.mxu0 0.0
  %2506 = vmatpush.msra.mxu0 0.0
  %2507 = vmatpush.msra.mxu0 0.0
  %2508 = vmatpush.msra.mxu0 0.0
  %2509 = vmatpush.msra.mxu0 0.0
  %2510 = vmatpush.msra.mxu0 0.0
  %2511 = vmatpush.msra.mxu0 0.0
  %2512 = vmatpush.msra.mxu0 0.0
  %2513 = vmatpush.msra.mxu0 0.0
  %2514 = vmatpush.msra.mxu0 %v1584
  %2515 = vmatmul.f32.gmra.mxu0 %v2494
  %v2516 = vpop.f32.mrf.mxu0
  %v2517 = vadd.f32 %v2488, %v2516
  %2518 = vmatmul.f32.gmra.mxu0 %v2497
  %v2519 = vpop.f32.mrf.mxu0
  %v2520 = vadd.f32 %v2491, %v2519
  %2521 = vdwg.mxu0
  %2522 = vrot.lane.b32.xlu0 %v1579, 112
  %v2523 = vpop.permute.xlu0 %2522
  %2524 = vrot.lane.b32.xlu0 %v1582, 112
  %v2525 = vpop.permute.xlu0 %2524
  %2526 = vrot.lane.b32.xlu0 %v1579, 80
  %v2527 = vpop.permute.xlu0 %2526
  %2528 = vrot.lane.b32.xlu0 %v1582, 80
  %v2529 = vpop.permute.xlu0 %2528
  %v2530 = vsel %vm1594, %v2523, 0
  %v2532 = vsel %vm1594, %v2525, 0
  %v2534 = vsel %vm1594, %v2527, 0
  %v2536 = vsel %vm1594, %v2529, 0
  %2538 = vmatpush.xpose.msra.mxu0 0.0
  %2539 = vmatpush.xpose.msra.mxu0 0.0
  %2540 = vmatpush.xpose.msra.mxu0 0.0
  %2541 = vmatpush.xpose.msra.mxu0 0.0
  %2542 = vmatpush.xpose.msra.mxu0 0.0
  %2543 = vmatpush.xpose.msra.mxu0 0.0
  %2544 = vmatpush.xpose.msra.mxu0 0.0
  %2545 = vmatpush.xpose.msra.mxu0 0.0
  %2546 = vmatpush.xpose.msra.mxu0 0.0
  %2547 = vmatpush.xpose.msra.mxu0 0.0
  %2548 = vmatpush.xpose.msra.mxu0 0.0
  %2549 = vmatpush.xpose.msra.mxu0 0.0
  %2550 = vmatpush.xpose.msra.mxu0 0.0
  %2551 = vmatpush.xpose.msra.mxu0 0.0
  %2552 = vmatpush.xpose.msra.mxu0 %v2536
  %2553 = vmatpush.xpose.msra.mxu0 %v2534
  %2554 = vmatmul.f32.gmra.mxu0 %v2530
  %v2555 = vpop.f32.mrf.mxu0
  %v2556 = vadd.f32 0.0, %v2555
  %2557 = vmatmul.f32.gmra.mxu0 %v2532
  %v2558 = vpop.f32.mrf.mxu0
  %v2559 = vadd.f32 0.0, %v2558
  %2560 = vdwg.mxu0
  %v2561 = vmul.f32 %v2556, 0.35355338
  %v2562 = vmul.f32 %v2559, 0.35355338
  %v2563 = vadd.f32 %v2561, %v2252
  %v2564 = vadd.f32 %v2562, %v2252
  %v2565 = vsel %vm1631, %v2563, -inf
  %2566 = vmax.xlane.f32.xlu0 %v2565
  %v2567 = vpop.xlane.xlu0 %2566
  %v2568 = vsel %vm1631, %v2564, -inf
  %2569 = vmax.xlane.f32.xlu0 %v2568
  %v2570 = vpop.xlane.xlu0 %2569
  %v2571 = vsub.f32 %v2563, %v2567
  %v2572 = vsub.f32 %v2564, %v2570
  %v2573 = vmul.f32 %v2571, 1.442695
  %v2574 = vpow.pop %v2573
  %v2575 = vmul.f32 %v2572, 1.442695
  %v2576 = vpow.pop %v2575
  %v2577 = vsel %vm1631, %v2574, 0.0
  %2578 = vadd.xlane.f32.xlu0 %v2577
  %v2579 = vpop.xlane.xlu0 %2578
  %v2580 = vsel %vm1631, %v2576, 0.0
  %2581 = vadd.xlane.f32.xlu0 %v2580
  %v2582 = vpop.xlane.xlu0 %2581
  %v2583 = vrcp.pop %v2579
  %v2584 = vmul.f32 %v2579, %v2583
  %v2585 = vsub.f32 1.0, %v2584
  %v2586 = vmul.f32 %v2583, %v2585
  %v2587 = vadd.f32 %v2583, %v2586
  %vm2588 = vweird.f32 %v2579
  %vm2589 = vweird.f32 %v2583
  %vm2590 = vmor %vm2588, %vm2589
  %v2591 = vsel %vm2590, %v2583, %v2587
  %v2592 = vand.u32 2147483647, %v2579
  %vm2593 = vcmp.eq.f32.partialorder %v2592, 8.507059e+37
  %v2594 = vand.u32 %v2579, 2147483648
  %v2595 = vor.u32 1.1754944e-38, %v2594
  %v2596 = vsel %vm2593, %v2595, %v2591
  %v2597 = vmul.f32 %v2574, %v2596
  %v2598 = vrcp.pop %v2582
  %v2599 = vmul.f32 %v2582, %v2598
  %v2600 = vsub.f32 1.0, %v2599
  %v2601 = vmul.f32 %v2598, %v2600
  %v2602 = vadd.f32 %v2598, %v2601
  %vm2603 = vweird.f32 %v2582
  %vm2604 = vweird.f32 %v2598
  %vm2605 = vmor %vm2603, %vm2604
  %v2606 = vsel %vm2605, %v2598, %v2602
  %v2607 = vand.u32 2147483647, %v2582
  %vm2608 = vcmp.eq.f32.partialorder %v2607, 8.507059e+37
  %v2609 = vand.u32 %v2582, 2147483648
  %v2610 = vor.u32 1.1754944e-38, %v2609
  %v2611 = vsel %vm2608, %v2610, %v2606
  %v2612 = vmul.f32 %v2576, %v2611
  %2613 = vrot.lane.b32.xlu0 %v1579, 48
  %v2614 = vpop.permute.xlu0 %2613
  %2615 = vrot.lane.b32.xlu0 %v1582, 48
  %v2616 = vpop.permute.xlu0 %2615
  %v2620 = vsel %vm1631, %v2597, 0
  %v2623 = vsel %vm1631, %v2612, 0
  %2625 = vmatpush.msra.mxu0 0.0
  %2626 = vmatpush.msra.mxu0 0.0
  %2627 = vmatpush.msra.mxu0 0.0
  %2628 = vmatpush.msra.mxu0 0.0
  %2629 = vmatpush.msra.mxu0 0.0
  %2630 = vmatpush.msra.mxu0 0.0
  %2631 = vmatpush.msra.mxu0 0.0
  %2632 = vmatpush.msra.mxu0 0.0
  %2633 = vmatpush.msra.mxu0 0.0
  %2634 = vmatpush.msra.mxu0 0.0
  %2635 = vmatpush.msra.mxu0 0.0
  %2636 = vmatpush.msra.mxu0 0.0
  %2637 = vmatpush.msra.mxu0 0.0
  %2638 = vmatpush.msra.mxu0 0.0
  %2639 = vmatpush.msra.mxu0 %v2616
  %2640 = vmatpush.msra.mxu0 %v2614
  %2641 = vmatmul.f32.gmra.mxu0 %v2620
  %v2642 = vpop.f32.mrf.mxu0
  %v2643 = vadd.f32 0.0, %v2642
  %2644 = vmatmul.f32.gmra.mxu0 %v2623
  %v2645 = vpop.f32.mrf.mxu0
  %v2646 = vadd.f32 0.0, %v2645
  %2647 = vdwg.mxu0
  %v2649 = vsel %vm1594, %v2643, 0
  %v2652 = vsel %vm1594, %v2646, 0
  %2654 = vmatpush.msra.mxu0 0.0
  %2655 = vmatpush.msra.mxu0 0.0
  %2656 = vmatpush.msra.mxu0 0.0
  %2657 = vmatpush.msra.mxu0 0.0
  %2658 = vmatpush.msra.mxu0 0.0
  %2659 = vmatpush.msra.mxu0 0.0
  %2660 = vmatpush.msra.mxu0 0.0
  %2661 = vmatpush.msra.mxu0 0.0
  %2662 = vmatpush.msra.mxu0 0.0
  %2663 = vmatpush.msra.mxu0 0.0
  %2664 = vmatpush.msra.mxu0 0.0
  %2665 = vmatpush.msra.mxu0 0.0
  %2666 = vmatpush.msra.mxu0 0.0
  %2667 = vmatpush.msra.mxu0 0.0
  %2668 = vmatpush.msra.mxu0 0.0
  %2669 = vmatpush.msra.mxu0 %v1586
  %2670 = vmatmul.f32.gmra.mxu0 %v2649
  %v2671 = vpop.f32.mrf.mxu0
  %v2672 = vadd.f32 0.0, %v2671
  %2673 = vmatmul.f32.gmra.mxu0 %v2652
  %v2674 = vpop.f32.mrf.mxu0
  %v2675 = vadd.f32 0.0, %v2674
  %2676 = vdwg.mxu0
  %v2677 = vadd.f32 %v2517, %v2672
  %v2678 = vadd.f32 %v2520, %v2675
  %2679 = vrot.lane.b32.xlu0 %v1579, 104
  %v2680 = vpop.permute.xlu0 %2679
  %2681 = vrot.lane.b32.xlu0 %v1582, 104
  %v2682 = vpop.permute.xlu0 %2681
  %2683 = vrot.lane.b32.xlu0 %v1579, 72
  %v2684 = vpop.permute.xlu0 %2683
  %2685 = vrot.lane.b32.xlu0 %v1582, 72
  %v2686 = vpop.permute.xlu0 %2685
  %v2687 = vsel %vm1594, %v2680, 0
  %v2689 = vsel %vm1594, %v2682, 0
  %v2691 = vsel %vm1594, %v2684, 0
  %v2693 = vsel %vm1594, %v2686, 0
  %2695 = vmatpush.xpose.msra.mxu0 0.0
  %2696 = vmatpush.xpose.msra.mxu0 0.0
  %2697 = vmatpush.xpose.msra.mxu0 0.0
  %2698 = vmatpush.xpose.msra.mxu0 0.0
  %2699 = vmatpush.xpose.msra.mxu0 0.0
  %2700 = vmatpush.xpose.msra.mxu0 0.0
  %2701 = vmatpush.xpose.msra.mxu0 0.0
  %2702 = vmatpush.xpose.msra.mxu0 0.0
  %2703 = vmatpush.xpose.msra.mxu0 0.0
  %2704 = vmatpush.xpose.msra.mxu0 0.0
  %2705 = vmatpush.xpose.msra.mxu0 0.0
  %2706 = vmatpush.xpose.msra.mxu0 0.0
  %2707 = vmatpush.xpose.msra.mxu0 0.0
  %2708 = vmatpush.xpose.msra.mxu0 0.0
  %2709 = vmatpush.xpose.msra.mxu0 %v2693
  %2710 = vmatpush.xpose.msra.mxu0 %v2691
  %2711 = vmatmul.f32.gmra.mxu0 %v2687
  %v2712 = vpop.f32.mrf.mxu0
  %v2713 = vadd.f32 0.0, %v2712
  %2714 = vmatmul.f32.gmra.mxu0 %v2689
  %v2715 = vpop.f32.mrf.mxu0
  %v2716 = vadd.f32 0.0, %v2715
  %2717 = vdwg.mxu0
  %v2718 = vmul.f32 %v2713, 0.35355338
  %v2719 = vmul.f32 %v2716, 0.35355338
  %v2720 = vadd.f32 %v2718, %v2252
  %v2721 = vadd.f32 %v2719, %v2252
  %v2722 = vsel %vm1631, %v2720, -inf
  %2723 = vmax.xlane.f32.xlu0 %v2722
  %v2724 = vpop.xlane.xlu0 %2723
  %v2725 = vsel %vm1631, %v2721, -inf
  %2726 = vmax.xlane.f32.xlu0 %v2725
  %v2727 = vpop.xlane.xlu0 %2726
  %v2728 = vsub.f32 %v2720, %v2724
  %v2729 = vsub.f32 %v2721, %v2727
  %v2730 = vmul.f32 %v2728, 1.442695
  %v2731 = vpow.pop %v2730
  %v2732 = vmul.f32 %v2729, 1.442695
  %v2733 = vpow.pop %v2732
  %v2734 = vsel %vm1631, %v2731, 0.0
  %2735 = vadd.xlane.f32.xlu0 %v2734
  %v2736 = vpop.xlane.xlu0 %2735
  %v2737 = vsel %vm1631, %v2733, 0.0
  %2738 = vadd.xlane.f32.xlu0 %v2737
  %v2739 = vpop.xlane.xlu0 %2738
  %v2740 = vrcp.pop %v2736
  %v2741 = vmul.f32 %v2736, %v2740
  %v2742 = vsub.f32 1.0, %v2741
  %v2743 = vmul.f32 %v2740, %v2742
  %v2744 = vadd.f32 %v2740, %v2743
  %vm2745 = vweird.f32 %v2736
  %vm2746 = vweird.f32 %v2740
  %vm2747 = vmor %vm2745, %vm2746
  %v2748 = vsel %vm2747, %v2740, %v2744
  %v2749 = vand.u32 2147483647, %v2736
  %vm2750 = vcmp.eq.f32.partialorder %v2749, 8.507059e+37
  %v2751 = vand.u32 %v2736, 2147483648
  %v2752 = vor.u32 1.1754944e-38, %v2751
  %v2753 = vsel %vm2750, %v2752, %v2748
  %v2754 = vmul.f32 %v2731, %v2753
  %v2755 = vrcp.pop %v2739
  %v2756 = vmul.f32 %v2739, %v2755
  %v2757 = vsub.f32 1.0, %v2756
  %v2758 = vmul.f32 %v2755, %v2757
  %v2759 = vadd.f32 %v2755, %v2758
  %vm2760 = vweird.f32 %v2739
  %vm2761 = vweird.f32 %v2755
  %vm2762 = vmor %vm2760, %vm2761
  %v2763 = vsel %vm2762, %v2755, %v2759
  %v2764 = vand.u32 2147483647, %v2739
  %vm2765 = vcmp.eq.f32.partialorder %v2764, 8.507059e+37
  %v2766 = vand.u32 %v2739, 2147483648
  %v2767 = vor.u32 1.1754944e-38, %v2766
  %v2768 = vsel %vm2765, %v2767, %v2763
  %v2769 = vmul.f32 %v2733, %v2768
  %2770 = vrot.lane.b32.xlu0 %v1579, 40
  %v2771 = vpop.permute.xlu0 %2770
  %2772 = vrot.lane.b32.xlu0 %v1582, 40
  %v2773 = vpop.permute.xlu0 %2772
  %v2777 = vsel %vm1631, %v2754, 0
  %v2780 = vsel %vm1631, %v2769, 0
  %2782 = vmatpush.msra.mxu0 0.0
  %2783 = vmatpush.msra.mxu0 0.0
  %2784 = vmatpush.msra.mxu0 0.0
  %2785 = vmatpush.msra.mxu0 0.0
  %2786 = vmatpush.msra.mxu0 0.0
  %2787 = vmatpush.msra.mxu0 0.0
  %2788 = vmatpush.msra.mxu0 0.0
  %2789 = vmatpush.msra.mxu0 0.0
  %2790 = vmatpush.msra.mxu0 0.0
  %2791 = vmatpush.msra.mxu0 0.0
  %2792 = vmatpush.msra.mxu0 0.0
  %2793 = vmatpush.msra.mxu0 0.0
  %2794 = vmatpush.msra.mxu0 0.0
  %2795 = vmatpush.msra.mxu0 0.0
  %2796 = vmatpush.msra.mxu0 %v2773
  %2797 = vmatpush.msra.mxu0 %v2771
  %2798 = vmatmul.f32.gmra.mxu0 %v2777
  %v2799 = vpop.f32.mrf.mxu0
  %v2800 = vadd.f32 0.0, %v2799
  %2801 = vmatmul.f32.gmra.mxu0 %v2780
  %v2802 = vpop.f32.mrf.mxu0
  %v2803 = vadd.f32 0.0, %v2802
  %2804 = vdwg.mxu0
  %v2806 = vsel %vm1594, %v2800, 0
  %v2809 = vsel %vm1594, %v2803, 0
  %2811 = vmatpush.msra.mxu0 0.0
  %2812 = vmatpush.msra.mxu0 0.0
  %2813 = vmatpush.msra.mxu0 0.0
  %2814 = vmatpush.msra.mxu0 0.0
  %2815 = vmatpush.msra.mxu0 0.0
  %2816 = vmatpush.msra.mxu0 0.0
  %2817 = vmatpush.msra.mxu0 0.0
  %2818 = vmatpush.msra.mxu0 0.0
  %2819 = vmatpush.msra.mxu0 0.0
  %2820 = vmatpush.msra.mxu0 0.0
  %2821 = vmatpush.msra.mxu0 0.0
  %2822 = vmatpush.msra.mxu0 0.0
  %2823 = vmatpush.msra.mxu0 0.0
  %2824 = vmatpush.msra.mxu0 0.0
  %2825 = vmatpush.msra.mxu0 0.0
  %2826 = vmatpush.msra.mxu0 %v1587
  %2827 = vmatmul.f32.gmra.mxu0 %v2806
  %v2828 = vpop.f32.mrf.mxu0
  %v2829 = vadd.f32 0.0, %v2828
  %2830 = vmatmul.f32.gmra.mxu0 %v2809
  %v2831 = vpop.f32.mrf.mxu0
  %v2832 = vadd.f32 0.0, %v2831
  %2833 = vdwg.mxu0
  %v2834 = vadd.f32 %v2677, %v2829
  %v2835 = vadd.f32 %v2678, %v2832
  %v2836 = vld [vmem:[%s15] sm:$0x1]
  %v2837 = vperm.slane %v2836, 0
  %v2838 = vadd.f32 %v2211, %v2837
  %v2839 = vadd.f32 %v2212, %v2837
  %v2840 = vadd.f32 %v2834, %v2837
  %v2841 = vadd.f32 %v2835, %v2837
  %v2842 = vadd.f32 %v1533, %v2838
  %v2843 = vadd.f32 %v1534, %v2839
  %v2844 = vadd.f32 %v1535, %v2840
  %v2845 = vadd.f32 %v1536, %v2841
  %v2846 = vld [vmem:[%s20] sm:$0x1]
  %v2847 = vld [vmem:[%s21] sm:$0x1]
  %v2848 = vsel %vm166, %v2842, 0.0
  %2849 = vadd.xlane.f32.xlu0 %v2848
  %v2850 = vpop.xlane.xlu0 %2849
  %v2851 = vsel %vm166, %v2843, 0.0
  %2852 = vadd.xlane.f32.xlu0 %v2851
  %v2853 = vpop.xlane.xlu0 %2852
  %v2854 = vsel %vm166, %v2844, 0.0
  %2855 = vadd.xlane.f32.xlu0 %v2854
  %v2856 = vpop.xlane.xlu0 %2855
  %v2857 = vsel %vm166, %v2845, 0.0
  %2858 = vadd.xlane.f32.xlu0 %v2857
  %v2859 = vpop.xlane.xlu0 %2858
  %v2860 = vrcp.pop 32.0
  %v2861 = vmul.f32 32.0, %v2860
  %v2862 = vsub.f32 1.0, %v2861
  %v2863 = vmul.f32 %v2860, %v2862
  %v2864 = vadd.f32 %v2860, %v2863
  %vm2865 = vweird.f32 %v2860
  %v2866 = vsel %vm2865, %v2860, %v2864
  %v2867 = vmul.f32 %v2850, %v2866
  %v2868 = vmul.f32 %v2853, %v2866
  %v2869 = vmul.f32 %v2856, %v2866
  %v2870 = vmul.f32 %v2859, %v2866
  %v2871 = vsub.f32 %v2842, %v2867
  %v2872 = vsub.f32 %v2843, %v2868
  %v2873 = vsub.f32 %v2844, %v2869
  %v2874 = vsub.f32 %v2845, %v2870
  %v2875 = vmul.f32 %v2871, %v2871
  %v2876 = vmul.f32 %v2872, %v2872
  %v2877 = vmul.f32 %v2873, %v2873
  %v2878 = vmul.f32 %v2874, %v2874
  %v2879 = vsel %vm166, %v2875, 0.0
  %2880 = vadd.xlane.f32.xlu0 %v2879
  %v2881 = vpop.xlane.xlu0 %2880
  %v2882 = vsel %vm166, %v2876, 0.0
  %2883 = vadd.xlane.f32.xlu0 %v2882
  %v2884 = vpop.xlane.xlu0 %2883
  %v2885 = vsel %vm166, %v2877, 0.0
  %2886 = vadd.xlane.f32.xlu0 %v2885
  %v2887 = vpop.xlane.xlu0 %2886
  %v2888 = vsel %vm166, %v2878, 0.0
  %2889 = vadd.xlane.f32.xlu0 %v2888
  %v2890 = vpop.xlane.xlu0 %2889
  %v2891 = vmul.f32 %v2881, %v2866
  %v2892 = vmul.f32 %v2884, %v2866
  %v2893 = vmul.f32 %v2887, %v2866
  %v2894 = vmul.f32 %v2890, %v2866
  %v2895 = vadd.f32 %v2891, 1e-05
  %v2896 = vadd.f32 %v2892, 1e-05
  %v2897 = vadd.f32 %v2893, 1e-05
  %v2898 = vadd.f32 %v2894, 1e-05
  %v2899 = vrsqrt.pop %v2895
  %v2900 = vmul.f32 %v2899, %v2895
  %v2901 = vmul.f32 %v2900, %v2899
  %v2902 = vmul.f32 0.5, %v2901
  %v2903 = vsub.f32 1.5, %v2902
  %v2904 = vmul.f32 %v2899, %v2903
  %vm2905 = vweird.f32 %v2895
  %vm2906 = vweird.f32 %v2899
  %vm2907 = vmor %vm2905, %vm2906
  %v2908 = vsel %vm2907, %v2899, %v2904
  %v2909 = vrsqrt.pop %v2896
  %v2910 = vmul.f32 %v2909, %v2896
  %v2911 = vmul.f32 %v2910, %v2909
  %v2912 = vmul.f32 0.5, %v2911
  %v2913 = vsub.f32 1.5, %v2912
  %v2914 = vmul.f32 %v2909, %v2913
  %vm2915 = vweird.f32 %v2896
  %vm2916 = vweird.f32 %v2909
  %vm2917 = vmor %vm2915, %vm2916
  %v2918 = vsel %vm2917, %v2909, %v2914
  %v2919 = vrsqrt.pop %v2897
  %v2920 = vmul.f32 %v2919, %v2897
  %v2921 = vmul.f32 %v2920, %v2919
  %v2922 = vmul.f32 0.5, %v2921
  %v2923 = vsub.f32 1.5, %v2922
  %v2924 = vmul.f32 %v2919, %v2923
  %vm2925 = vweird.f32 %v2897
  %vm2926 = vweird.f32 %v2919
  %vm2927 = vmor %vm2925, %vm2926
  %v2928 = vsel %vm2927, %v2919, %v2924
  %v2929 = vrsqrt.pop %v2898
  %v2930 = vmul.f32 %v2929, %v2898
  %v2931 = vmul.f32 %v2930, %v2929
  %v2932 = vmul.f32 0.5, %v2931
  %v2933 = vsub.f32 1.5, %v2932
  %v2934 = vmul.f32 %v2929, %v2933
  %vm2935 = vweird.f32 %v2898
  %vm2936 = vweird.f32 %v2929
  %vm2937 = vmor %vm2935, %vm2936
  %v2938 = vsel %vm2937, %v2929, %v2934
  %v2939 = vmul.f32 %v2871, %v2908
  %v2940 = vmul.f32 %v2872, %v2918
  %v2941 = vmul.f32 %v2873, %v2928
  %v2942 = vmul.f32 %v2874, %v2938
  %v2943 = vperm.slane %v2846, 0
  %v2944 = vmul.f32 %v2939, %v2943
  %v2945 = vmul.f32 %v2940, %v2943
  %v2946 = vmul.f32 %v2941, %v2943
  %v2947 = vmul.f32 %v2942, %v2943
  %v2948 = vperm.slane %v2847, 0
  %v2949 = vadd.f32 %v2944, %v2948
  %v2950 = vadd.f32 %v2945, %v2948
  %v2951 = vadd.f32 %v2946, %v2948
  %v2952 = vadd.f32 %v2947, %v2948
  %v2953 = vld [vmem:[%s16] sm:$0xff]
  %v2954 = vld [vmem:[%s16 + $0x8] sm:$0xff]
  %v2955 = vld [vmem:[%s16 + $0x10] sm:$0xff]
  %v2956 = vld [vmem:[%s16 + $0x18] sm:$0xff]
  %v2957 = vld [vmem:[%s17] sm:$0x1]
  %v2958 = vperm.slane %v2957, 0
  %v2960 = vsel %vm166, %v2949, 0
  %v2963 = vsel %vm166, %v2950, 0
  %v2966 = vsel %vm166, %v2951, 0
  %v2969 = vsel %vm166, %v2952, 0
  %2971 = vmatpush.msra.mxu0 0.0
  %2972 = vmatpush.msra.mxu0 0.0
  %2973 = vmatpush.msra.mxu0 0.0
  %2974 = vmatpush.msra.mxu0 0.0
  %2975 = vmatpush.msra.mxu0 0.0
  %2976 = vmatpush.msra.mxu0 0.0
  %2977 = vmatpush.msra.mxu0 0.0
  %2978 = vmatpush.msra.mxu0 0.0
  %2979 = vmatpush.msra.mxu0 0.0
  %2980 = vmatpush.msra.mxu0 0.0
  %2981 = vmatpush.msra.mxu0 0.0
  %2982 = vmatpush.msra.mxu0 0.0
  %2983 = vmatpush.msra.mxu0 %v2956
  %2984 = vmatpush.msra.mxu0 %v2955
  %2985 = vmatpush.msra.mxu0 %v2954
  %2986 = vmatpush.msra.mxu0 %v2953
  %2987 = vmatmul.f32.gmra.mxu0 %v2960
  %v2988 = vpop.f32.mrf.mxu0
  %v2989 = vadd.f32 %v2958, %v2988
  %2990 = vmatmul.f32.gmra.mxu0 %v2963
  %v2991 = vpop.f32.mrf.mxu0
  %v2992 = vadd.f32 %v2958, %v2991
  %2993 = vmatmul.f32.gmra.mxu0 %v2966
  %v2994 = vpop.f32.mrf.mxu0
  %v2995 = vadd.f32 %v2958, %v2994
  %2996 = vmatmul.f32.gmra.mxu0 %v2969
  %v2997 = vpop.f32.mrf.mxu0
  %v2998 = vadd.f32 %v2958, %v2997
  %2999 = vdwg.mxu0
  %v3000 = vmax.f32 %v2989, 0.0
  %v3001 = vmax.f32 %v2992, 0.0
  %v3002 = vmax.f32 %v2995, 0.0
  %v3003 = vmax.f32 %v2998, 0.0
  %v3004 = vld [vmem:[%s18] sm:$0xff]
  %v3005 = vld [vmem:[%s18 + $0x8] sm:$0xff]
  %v3006 = vld [vmem:[%s18 + $0x10] sm:$0xff]
  %v3007 = vld [vmem:[%s18 + $0x18] sm:$0xff]
  %v3008 = vld [vmem:[%s19] sm:$0x1]
  %v3009 = vperm.slane %v3008, 0
  %v3011 = vsel %vm166, %v3000, 0
  %v3014 = vsel %vm166, %v3001, 0
  %v3017 = vsel %vm166, %v3002, 0
  %v3020 = vsel %vm166, %v3003, 0
  %3022 = vmatpush.msra.mxu0 0.0
  %3023 = vmatpush.msra.mxu0 0.0
  %3024 = vmatpush.msra.mxu0 0.0
  %3025 = vmatpush.msra.mxu0 0.0
  %3026 = vmatpush.msra.mxu0 0.0
  %3027 = vmatpush.msra.mxu0 0.0
  %3028 = vmatpush.msra.mxu0 0.0
  %3029 = vmatpush.msra.mxu0 0.0
  %3030 = vmatpush.msra.mxu0 0.0
  %3031 = vmatpush.msra.mxu0 0.0
  %3032 = vmatpush.msra.mxu0 0.0
  %3033 = vmatpush.msra.mxu0 0.0
  %3034 = vmatpush.msra.mxu0 %v3007
  %3035 = vmatpush.msra.mxu0 %v3006
  %3036 = vmatpush.msra.mxu0 %v3005
  %3037 = vmatpush.msra.mxu0 %v3004
  %3038 = vmatmul.f32.gmra.mxu0 %v3011
  %v3039 = vpop.f32.mrf.mxu0
  %v3040 = vadd.f32 %v3009, %v3039
  %3041 = vmatmul.f32.gmra.mxu0 %v3014
  %v3042 = vpop.f32.mrf.mxu0
  %v3043 = vadd.f32 %v3009, %v3042
  %3044 = vmatmul.f32.gmra.mxu0 %v3017
  %v3045 = vpop.f32.mrf.mxu0
  %v3046 = vadd.f32 %v3009, %v3045
  %3047 = vmatmul.f32.gmra.mxu0 %v3020
  %v3048 = vpop.f32.mrf.mxu0
  %v3049 = vadd.f32 %v3009, %v3048
  %3050 = vdwg.mxu0
  %v3051 = vadd.f32 %v2949, %v3040
  %v3052 = vadd.f32 %v2950, %v3043
  %v3053 = vadd.f32 %v2951, %v3046
  %v3054 = vadd.f32 %v2952, %v3049
  %v3055 = vld [vmem:[%s22] sm:$0x1]
  %v3056 = vld [vmem:[%s23] sm:$0x1]
  %v3057 = vsel %vm166, %v3051, 0.0
  %3058 = vadd.xlane.f32.xlu0 %v3057
  %v3059 = vpop.xlane.xlu0 %3058
  %v3060 = vsel %vm166, %v3052, 0.0
  %3061 = vadd.xlane.f32.xlu0 %v3060
  %v3062 = vpop.xlane.xlu0 %3061
  %v3063 = vsel %vm166, %v3053, 0.0
  %3064 = vadd.xlane.f32.xlu0 %v3063
  %v3065 = vpop.xlane.xlu0 %3064
  %v3066 = vsel %vm166, %v3054, 0.0
  %3067 = vadd.xlane.f32.xlu0 %v3066
  %v3068 = vpop.xlane.xlu0 %3067
  %v3069 = vmul.f32 %v3059, %v2866
  %v3070 = vmul.f32 %v3062, %v2866
  %v3071 = vmul.f32 %v3065, %v2866
  %v3072 = vmul.f32 %v3068, %v2866
  %v3073 = vsub.f32 %v3051, %v3069
  %v3074 = vsub.f32 %v3052, %v3070
  %v3075 = vsub.f32 %v3053, %v3071
  %v3076 = vsub.f32 %v3054, %v3072
  %v3077 = vmul.f32 %v3073, %v3073
  %v3078 = vmul.f32 %v3074, %v3074
  %v3079 = vmul.f32 %v3075, %v3075
  %v3080 = vmul.f32 %v3076, %v3076
  %v3081 = vsel %vm166, %v3077, 0.0
  %3082 = vadd.xlane.f32.xlu0 %v3081
  %v3083 = vpop.xlane.xlu0 %3082
  %v3084 = vsel %vm166, %v3078, 0.0
  %3085 = vadd.xlane.f32.xlu0 %v3084
  %v3086 = vpop.xlane.xlu0 %3085
  %v3087 = vsel %vm166, %v3079, 0.0
  %3088 = vadd.xlane.f32.xlu0 %v3087
  %v3089 = vpop.xlane.xlu0 %3088
  %v3090 = vsel %vm166, %v3080, 0.0
  %3091 = vadd.xlane.f32.xlu0 %v3090
  %v3092 = vpop.xlane.xlu0 %3091
  %v3093 = vmul.f32 %v3083, %v2866
  %v3094 = vmul.f32 %v3086, %v2866
  %v3095 = vmul.f32 %v3089, %v2866
  %v3096 = vmul.f32 %v3092, %v2866
  %v3097 = vadd.f32 %v3093, 1e-05
  %v3098 = vadd.f32 %v3094, 1e-05
  %v3099 = vadd.f32 %v3095, 1e-05
  %v3100 = vadd.f32 %v3096, 1e-05
  %v3101 = vrsqrt.pop %v3097
  %v3102 = vmul.f32 %v3101, %v3097
  %v3103 = vmul.f32 %v3102, %v3101
  %v3104 = vmul.f32 0.5, %v3103
  %v3105 = vsub.f32 1.5, %v3104
  %v3106 = vmul.f32 %v3101, %v3105
  %vm3107 = vweird.f32 %v3097
  %vm3108 = vweird.f32 %v3101
  %vm3109 = vmor %vm3107, %vm3108
  %v3110 = vsel %vm3109, %v3101, %v3106
  %v3111 = vrsqrt.pop %v3098
  %v3112 = vmul.f32 %v3111, %v3098
  %v3113 = vmul.f32 %v3112, %v3111
  %v3114 = vmul.f32 0.5, %v3113
  %v3115 = vsub.f32 1.5, %v3114
  %v3116 = vmul.f32 %v3111, %v3115
  %vm3117 = vweird.f32 %v3098
  %vm3118 = vweird.f32 %v3111
  %vm3119 = vmor %vm3117, %vm3118
  %v3120 = vsel %vm3119, %v3111, %v3116
  %v3121 = vrsqrt.pop %v3099
  %v3122 = vmul.f32 %v3121, %v3099
  %v3123 = vmul.f32 %v3122, %v3121
  %v3124 = vmul.f32 0.5, %v3123
  %v3125 = vsub.f32 1.5, %v3124
  %v3126 = vmul.f32 %v3121, %v3125
  %vm3127 = vweird.f32 %v3099
  %vm3128 = vweird.f32 %v3121
  %vm3129 = vmor %vm3127, %vm3128
  %v3130 = vsel %vm3129, %v3121, %v3126
  %v3131 = vrsqrt.pop %v3100
  %v3132 = vmul.f32 %v3131, %v3100
  %v3133 = vmul.f32 %v3132, %v3131
  %v3134 = vmul.f32 0.5, %v3133
  %v3135 = vsub.f32 1.5, %v3134
  %v3136 = vmul.f32 %v3131, %v3135
  %vm3137 = vweird.f32 %v3100
  %vm3138 = vweird.f32 %v3131
  %vm3139 = vmor %vm3137, %vm3138
  %v3140 = vsel %vm3139, %v3131, %v3136
  %v3141 = vmul.f32 %v3073, %v3110
  %v3142 = vmul.f32 %v3074, %v3120
  %v3143 = vmul.f32 %v3075, %v3130
  %v3144 = vmul.f32 %v3076, %v3140
  %v3145 = vperm.slane %v3055, 0
  %v3146 = vmul.f32 %v3141, %v3145
  %v3147 = vmul.f32 %v3142, %v3145
  %v3148 = vmul.f32 %v3143, %v3145
  %v3149 = vmul.f32 %v3144, %v3145
  %v3150 = vperm.slane %v3056, 0
  %v3151 = vadd.f32 %v3146, %v3150
  %v3152 = vadd.f32 %v3147, %v3150
  %v3153 = vadd.f32 %v3148, %v3150
  %v3154 = vadd.f32 %v3149, %v3150
  %v3155 = vadd.f32 %v3151, 0.0
  %v3156 = vadd.f32 %v3152, 0.0
  %v3157 = vadd.f32 %v3153, 0.0
  %v3158 = vadd.f32 %v3154, 0.0
  %s3159 = scalar_lea.vmem %s8, 288
  %v3160 = vld [vmem:[%s3159] sm:$0xff]
  %v3161 = vld [vmem:[%s3159 + $0x8] sm:$0xff]
  %v3162 = vld [vmem:[%s3159 + $0x10] sm:$0xff]
  %v3163 = vld [vmem:[%s3159 + $0x18] sm:$0xff]
  %v3164 = vld [vmem:[%s3159 + $0x20] sm:$0xff]
  %v3165 = vld [vmem:[%s3159 + $0x28] sm:$0xff]
  %v3166 = vld [vmem:[%s3159 + $0x30] sm:$0xff]
  %v3167 = vld [vmem:[%s3159 + $0x38] sm:$0xff]
  %v3168 = vld [vmem:[%s3159 + $0x40] sm:$0xff]
  %v3169 = vld [vmem:[%s3159 + $0x48] sm:$0xff]
  %v3170 = vld [vmem:[%s3159 + $0x50] sm:$0xff]
  %v3171 = vld [vmem:[%s3159 + $0x58] sm:$0xff]
  %v3172 = vld [vmem:[%s9 + $0x3] sm:$0x1]
  %3173 = vmatpush.msra.mxu0 0.0
  %3174 = vmatpush.msra.mxu0 0.0
  %3175 = vmatpush.msra.mxu0 0.0
  %3176 = vmatpush.msra.mxu0 0.0
  %3177 = vmatpush.msra.mxu0 0.0
  %3178 = vmatpush.msra.mxu0 0.0
  %3179 = vmatpush.msra.mxu0 0.0
  %3180 = vmatpush.msra.mxu0 0.0
  %3181 = vmatpush.msra.mxu0 0.0
  %3182 = vmatpush.msra.mxu0 0.0
  %3183 = vmatpush.msra.mxu0 0.0
  %3184 = vmatpush.msra.mxu0 0.0
  %3185 = vmatpush.msra.mxu0 %v3154
  %3186 = vmatpush.msra.mxu0 %v3153
  %3187 = vmatpush.msra.mxu0 %v3152
  %3188 = vmatpush.msra.mxu0 %v3151
  %3189 = vmatmul.f32.gmra.mxu0 %v168
  %v3190 = vpop.f32.mrf.mxu0
  %v3191 = vadd.f32 0.0, %v3190
  %3192 = vmatmul.f32.gmra.mxu0 %v171
  %v3193 = vpop.f32.mrf.mxu0
  %v3194 = vadd.f32 0.0, %v3193
  %3195 = vmatmul.f32.gmra.mxu0 %v174
  %v3196 = vpop.f32.mrf.mxu0
  %v3197 = vadd.f32 0.0, %v3196
  %3198 = vmatmul.f32.gmra.mxu0 %v177
  %v3199 = vpop.f32.mrf.mxu0
  %v3200 = vadd.f32 0.0, %v3199
  %3201 = vdwg.mxu0
  %3202 = vmatpush.msra.mxu0 0.0
  %3203 = vmatpush.msra.mxu0 0.0
  %3204 = vmatpush.msra.mxu0 0.0
  %3205 = vmatpush.msra.mxu0 0.0
  %3206 = vmatpush.msra.mxu0 0.0
  %3207 = vmatpush.msra.mxu0 0.0
  %3208 = vmatpush.msra.mxu0 0.0
  %3209 = vmatpush.msra.mxu0 0.0
  %3210 = vmatpush.msra.mxu0 0.0
  %3211 = vmatpush.msra.mxu0 0.0
  %3212 = vmatpush.msra.mxu0 0.0
  %3213 = vmatpush.msra.mxu0 0.0
  %3214 = vmatpush.msra.mxu0 %v3154
  %3215 = vmatpush.msra.mxu0 %v3153
  %3216 = vmatpush.msra.mxu0 %v3152
  %3217 = vmatpush.msra.mxu0 %v3151
  %3218 = vmatmul.f32.gmra.mxu0 %v209
  %v3219 = vpop.f32.mrf.mxu0
  %v3220 = vadd.f32 0.0, %v3219
  %3221 = vmatmul.f32.gmra.mxu0 %v212
  %v3222 = vpop.f32.mrf.mxu0
  %v3223 = vadd.f32 0.0, %v3222
  %3224 = vmatmul.f32.gmra.mxu0 %v215
  %v3225 = vpop.f32.mrf.mxu0
  %v3226 = vadd.f32 0.0, %v3225
  %3227 = vmatmul.f32.gmra.mxu0 %v218
  %v3228 = vpop.f32.mrf.mxu0
  %v3229 = vadd.f32 0.0, %v3228
  %3230 = vdwg.mxu0
  %v3232 = vsel %vm166, %v3151, 0
  %v3235 = vsel %vm166, %v3152, 0
  %v3238 = vsel %vm166, %v3153, 0
  %v3241 = vsel %vm166, %v3154, 0
  %3243 = vmatpush.msra.mxu0 0.0
  %3244 = vmatpush.msra.mxu0 0.0
  %3245 = vmatpush.msra.mxu0 0.0
  %3246 = vmatpush.msra.mxu0 0.0
  %3247 = vmatpush.msra.mxu0 0.0
  %3248 = vmatpush.msra.mxu0 0.0
  %3249 = vmatpush.msra.mxu0 0.0
  %3250 = vmatpush.msra.mxu0 0.0
  %3251 = vmatpush.msra.mxu0 0.0
  %3252 = vmatpush.msra.mxu0 0.0
  %3253 = vmatpush.msra.mxu0 0.0
  %3254 = vmatpush.msra.mxu0 0.0
  %3255 = vmatpush.msra.mxu0 %v3167
  %3256 = vmatpush.msra.mxu0 %v3166
  %3257 = vmatpush.msra.mxu0 %v3165
  %3258 = vmatpush.msra.mxu0 %v3164
  %3259 = vmatmul.f32.gmra.mxu0 %v3232
  %v3260 = vpop.f32.mrf.mxu0
  %v3261 = vadd.f32 0.0, %v3260
  %3262 = vmatmul.f32.gmra.mxu0 %v3235
  %v3263 = vpop.f32.mrf.mxu0
  %v3264 = vadd.f32 0.0, %v3263
  %3265 = vmatmul.f32.gmra.mxu0 %v3238
  %v3266 = vpop.f32.mrf.mxu0
  %v3267 = vadd.f32 0.0, %v3266
  %3268 = vmatmul.f32.gmra.mxu0 %v3241
  %v3269 = vpop.f32.mrf.mxu0
  %v3270 = vadd.f32 0.0, %v3269
  %3271 = vdwg.mxu0
  %v3273 = vsel %vm166, %v3191, 0
  %v3276 = vsel %vm166, %v3194, 0
  %v3279 = vsel %vm166, %v3197, 0
  %v3282 = vsel %vm166, %v3200, 0
  %3284 = vmatpush.msra.mxu0 0.0
  %3285 = vmatpush.msra.mxu0 0.0
  %3286 = vmatpush.msra.mxu0 0.0
  %3287 = vmatpush.msra.mxu0 0.0
  %3288 = vmatpush.msra.mxu0 0.0
  %3289 = vmatpush.msra.mxu0 0.0
  %3290 = vmatpush.msra.mxu0 0.0
  %3291 = vmatpush.msra.mxu0 0.0
  %3292 = vmatpush.msra.mxu0 0.0
  %3293 = vmatpush.msra.mxu0 0.0
  %3294 = vmatpush.msra.mxu0 0.0
  %3295 = vmatpush.msra.mxu0 0.0
  %3296 = vmatpush.msra.mxu0 %v3163
  %3297 = vmatpush.msra.mxu0 %v3162
  %3298 = vmatpush.msra.mxu0 %v3161
  %3299 = vmatpush.msra.mxu0 %v3160
  %3300 = vmatmul.f32.gmra.mxu0 %v3273
  %v3301 = vpop.f32.mrf.mxu0
  %v3302 = vadd.f32 %v3261, %v3301
  %3303 = vmatmul.f32.gmra.mxu0 %v3276
  %v3304 = vpop.f32.mrf.mxu0
  %v3305 = vadd.f32 %v3264, %v3304
  %3306 = vmatmul.f32.gmra.mxu0 %v3279
  %v3307 = vpop.f32.mrf.mxu0
  %v3308 = vadd.f32 %v3267, %v3307
  %3309 = vmatmul.f32.gmra.mxu0 %v3282
  %v3310 = vpop.f32.mrf.mxu0
  %v3311 = vadd.f32 %v3270, %v3310
  %3312 = vdwg.mxu0
  %v3314 = vsel %vm166, %v3220, 0
  %v3317 = vsel %vm166, %v3223, 0
  %v3320 = vsel %vm166, %v3226, 0
  %v3323 = vsel %vm166, %v3229, 0
  %3325 = vmatpush.msra.mxu0 0.0
  %3326 = vmatpush.msra.mxu0 0.0
  %3327 = vmatpush.msra.mxu0 0.0
  %3328 = vmatpush.msra.mxu0 0.0
  %3329 = vmatpush.msra.mxu0 0.0
  %3330 = vmatpush.msra.mxu0 0.0
  %3331 = vmatpush.msra.mxu0 0.0
  %3332 = vmatpush.msra.mxu0 0.0
  %3333 = vmatpush.msra.mxu0 0.0
  %3334 = vmatpush.msra.mxu0 0.0
  %3335 = vmatpush.msra.mxu0 0.0
  %3336 = vmatpush.msra.mxu0 0.0
  %3337 = vmatpush.msra.mxu0 %v3171
  %3338 = vmatpush.msra.mxu0 %v3170
  %3339 = vmatpush.msra.mxu0 %v3169
  %3340 = vmatpush.msra.mxu0 %v3168
  %3341 = vmatmul.f32.gmra.mxu0 %v3314
  %v3342 = vpop.f32.mrf.mxu0
  %v3343 = vadd.f32 0.0, %v3342
  %3344 = vmatmul.f32.gmra.mxu0 %v3317
  %v3345 = vpop.f32.mrf.mxu0
  %v3346 = vadd.f32 0.0, %v3345
  %3347 = vmatmul.f32.gmra.mxu0 %v3320
  %v3348 = vpop.f32.mrf.mxu0
  %v3349 = vadd.f32 0.0, %v3348
  %3350 = vmatmul.f32.gmra.mxu0 %v3323
  %v3351 = vpop.f32.mrf.mxu0
  %v3352 = vadd.f32 0.0, %v3351
  %3353 = vdwg.mxu0
  %v3354 = vadd.f32 %v3302, %v3343
  %v3355 = vadd.f32 %v3305, %v3346
  %v3356 = vadd.f32 %v3308, %v3349
  %v3357 = vadd.f32 %v3311, %v3352
  %v3358 = vperm.slane %v3172, 0
  %v3359 = vadd.f32 %v3354, %v3358
  %v3360 = vadd.f32 %v3355, %v3358
  %v3361 = vadd.f32 %v3356, %v3358
  %v3362 = vadd.f32 %v3357, %v3358
  %3363 = vmatpush.msra.mxu0 0.0
  %3364 = vmatpush.msra.mxu0 0.0
  %3365 = vmatpush.msra.mxu0 0.0
  %3366 = vmatpush.msra.mxu0 0.0
  %3367 = vmatpush.msra.mxu0 0.0
  %3368 = vmatpush.msra.mxu0 0.0
  %3369 = vmatpush.msra.mxu0 0.0
  %3370 = vmatpush.msra.mxu0 0.0
  %3371 = vmatpush.msra.mxu0 0.0
  %3372 = vmatpush.msra.mxu0 0.0
  %3373 = vmatpush.msra.mxu0 0.0
  %3374 = vmatpush.msra.mxu0 0.0
  %3375 = vmatpush.msra.mxu0 %v3362
  %3376 = vmatpush.msra.mxu0 %v3361
  %3377 = vmatpush.msra.mxu0 %v3360
  %3378 = vmatpush.msra.mxu0 %v3359
  %3379 = vmatmul.f32.gmra.mxu0 %v382
  %v3380 = vpop.f32.mrf.mxu0
  %v3381 = vadd.f32 0.0, %v3380
  %3382 = vmatmul.f32.gmra.mxu0 %v385
  %v3383 = vpop.f32.mrf.mxu0
  %v3384 = vadd.f32 0.0, %v3383
  %3385 = vmatmul.f32.gmra.mxu0 %v388
  %v3386 = vpop.f32.mrf.mxu0
  %v3387 = vadd.f32 0.0, %v3386
  %3388 = vmatmul.f32.gmra.mxu0 %v391
  %v3389 = vpop.f32.mrf.mxu0
  %v3390 = vadd.f32 0.0, %v3389
  %3391 = vdwg.mxu0
  %v3393 = vsel %vm166, %v3381, 0
  %v3396 = vsel %vm166, %v3384, 0
  %v3399 = vsel %vm166, %v3387, 0
  %v3402 = vsel %vm166, %v3390, 0
  %3404 = vmatpush.msra.mxu0 0.0
  %3405 = vmatpush.msra.mxu0 0.0
  %3406 = vmatpush.msra.mxu0 0.0
  %3407 = vmatpush.msra.mxu0 0.0
  %3408 = vmatpush.msra.mxu0 0.0
  %3409 = vmatpush.msra.mxu0 0.0
  %3410 = vmatpush.msra.mxu0 0.0
  %3411 = vmatpush.msra.mxu0 0.0
  %3412 = vmatpush.msra.mxu0 0.0
  %3413 = vmatpush.msra.mxu0 0.0
  %3414 = vmatpush.msra.mxu0 0.0
  %3415 = vmatpush.msra.mxu0 0.0
  %3416 = vmatpush.msra.mxu0 %v92
  %3417 = vmatpush.msra.mxu0 %v91
  %3418 = vmatpush.msra.mxu0 %v90
  %3419 = vmatpush.msra.mxu0 %v89
  %3420 = vmatmul.f32.gmra.mxu0 %v3393
  %v3421 = vpop.f32.mrf.mxu0
  %v3422 = vadd.f32 0.0, %v3421
  %3423 = vmatmul.f32.gmra.mxu0 %v3396
  %v3424 = vpop.f32.mrf.mxu0
  %v3425 = vadd.f32 0.0, %v3424
  %3426 = vmatmul.f32.gmra.mxu0 %v3399
  %v3427 = vpop.f32.mrf.mxu0
  %v3428 = vadd.f32 0.0, %v3427
  %3429 = vmatmul.f32.gmra.mxu0 %v3402
  %v3430 = vpop.f32.mrf.mxu0
  %v3431 = vadd.f32 0.0, %v3430
  %3432 = vdwg.mxu0
  %v3433 = vsub.f32 %v3359, %v3422
  %v3434 = vsub.f32 %v3360, %v3425
  %v3435 = vsub.f32 %v3361, %v3428
  %v3436 = vsub.f32 %v3362, %v3431
  %v3437 = vmul.f32 %v3433, %v3433
  %v3438 = vmul.f32 %v3434, %v3434
  %v3439 = vmul.f32 %v3435, %v3435
  %v3440 = vmul.f32 %v3436, %v3436
  %3441 = vmatpush.msra.mxu0 0.0
  %3442 = vmatpush.msra.mxu0 0.0
  %3443 = vmatpush.msra.mxu0 0.0
  %3444 = vmatpush.msra.mxu0 0.0
  %3445 = vmatpush.msra.mxu0 0.0
  %3446 = vmatpush.msra.mxu0 0.0
  %3447 = vmatpush.msra.mxu0 0.0
  %3448 = vmatpush.msra.mxu0 0.0
  %3449 = vmatpush.msra.mxu0 0.0
  %3450 = vmatpush.msra.mxu0 0.0
  %3451 = vmatpush.msra.mxu0 0.0
  %3452 = vmatpush.msra.mxu0 0.0
  %3453 = vmatpush.msra.mxu0 %v3440
  %3454 = vmatpush.msra.mxu0 %v3439
  %3455 = vmatpush.msra.mxu0 %v3438
  %3456 = vmatpush.msra.mxu0 %v3437
  %3457 = vmatmul.f32.gmra.mxu0 %v382
  %v3458 = vpop.f32.mrf.mxu0
  %v3459 = vadd.f32 0.0, %v3458
  %3460 = vmatmul.f32.gmra.mxu0 %v385
  %v3461 = vpop.f32.mrf.mxu0
  %v3462 = vadd.f32 0.0, %v3461
  %3463 = vmatmul.f32.gmra.mxu0 %v388
  %v3464 = vpop.f32.mrf.mxu0
  %v3465 = vadd.f32 0.0, %v3464
  %3466 = vmatmul.f32.gmra.mxu0 %v391
  %v3467 = vpop.f32.mrf.mxu0
  %v3468 = vadd.f32 0.0, %v3467
  %3469 = vdwg.mxu0
  %v3471 = vsel %vm166, %v3459, 0
  %v3474 = vsel %vm166, %v3462, 0
  %v3477 = vsel %vm166, %v3465, 0
  %v3480 = vsel %vm166, %v3468, 0
  %3482 = vmatpush.msra.mxu0 0.0
  %3483 = vmatpush.msra.mxu0 0.0
  %3484 = vmatpush.msra.mxu0 0.0
  %3485 = vmatpush.msra.mxu0 0.0
  %3486 = vmatpush.msra.mxu0 0.0
  %3487 = vmatpush.msra.mxu0 0.0
  %3488 = vmatpush.msra.mxu0 0.0
  %3489 = vmatpush.msra.mxu0 0.0
  %3490 = vmatpush.msra.mxu0 0.0
  %3491 = vmatpush.msra.mxu0 0.0
  %3492 = vmatpush.msra.mxu0 0.0
  %3493 = vmatpush.msra.mxu0 0.0
  %3494 = vmatpush.msra.mxu0 %v92
  %3495 = vmatpush.msra.mxu0 %v91
  %3496 = vmatpush.msra.mxu0 %v90
  %3497 = vmatpush.msra.mxu0 %v89
  %3498 = vmatmul.f32.gmra.mxu0 %v3471
  %v3499 = vpop.f32.mrf.mxu0
  %v3500 = vadd.f32 1e-05, %v3499
  %3501 = vmatmul.f32.gmra.mxu0 %v3474
  %v3502 = vpop.f32.mrf.mxu0
  %v3503 = vadd.f32 1e-05, %v3502
  %3504 = vmatmul.f32.gmra.mxu0 %v3477
  %v3505 = vpop.f32.mrf.mxu0
  %v3506 = vadd.f32 1e-05, %v3505
  %3507 = vmatmul.f32.gmra.mxu0 %v3480
  %v3508 = vpop.f32.mrf.mxu0
  %v3509 = vadd.f32 1e-05, %v3508
  %3510 = vdwg.mxu0
  %v3511 = vrsqrt.pop %v3500
  %v3512 = vmul.f32 %v3511, %v3500
  %v3513 = vmul.f32 %v3512, %v3511
  %v3514 = vmul.f32 0.5, %v3513
  %v3515 = vsub.f32 1.5, %v3514
  %v3516 = vmul.f32 %v3511, %v3515
  %vm3517 = vweird.f32 %v3500
  %vm3518 = vweird.f32 %v3511
  %vm3519 = vmor %vm3517, %vm3518
  %v3520 = vsel %vm3519, %v3511, %v3516
  %v3521 = vrsqrt.pop %v3503
  %v3522 = vmul.f32 %v3521, %v3503
  %v3523 = vmul.f32 %v3522, %v3521
  %v3524 = vmul.f32 0.5, %v3523
  %v3525 = vsub.f32 1.5, %v3524
  %v3526 = vmul.f32 %v3521, %v3525
  %vm3527 = vweird.f32 %v3503
  %vm3528 = vweird.f32 %v3521
  %vm3529 = vmor %vm3527, %vm3528
  %v3530 = vsel %vm3529, %v3521, %v3526
  %v3531 = vrsqrt.pop %v3506
  %v3532 = vmul.f32 %v3531, %v3506
  %v3533 = vmul.f32 %v3532, %v3531
  %v3534 = vmul.f32 0.5, %v3533
  %v3535 = vsub.f32 1.5, %v3534
  %v3536 = vmul.f32 %v3531, %v3535
  %vm3537 = vweird.f32 %v3506
  %vm3538 = vweird.f32 %v3531
  %vm3539 = vmor %vm3537, %vm3538
  %v3540 = vsel %vm3539, %v3531, %v3536
  %v3541 = vrsqrt.pop %v3509
  %v3542 = vmul.f32 %v3541, %v3509
  %v3543 = vmul.f32 %v3542, %v3541
  %v3544 = vmul.f32 0.5, %v3543
  %v3545 = vsub.f32 1.5, %v3544
  %v3546 = vmul.f32 %v3541, %v3545
  %vm3547 = vweird.f32 %v3509
  %vm3548 = vweird.f32 %v3541
  %vm3549 = vmor %vm3547, %vm3548
  %v3550 = vsel %vm3549, %v3541, %v3546
  %v3551 = vmul.f32 %v3433, %v3520
  %v3552 = vmul.f32 %v3434, %v3530
  %v3553 = vmul.f32 %v3435, %v3540
  %v3554 = vmul.f32 %v3436, %v3550
  %v3555 = vld [vmem:[%s10 + $0x3] sm:$0x1]
  %v3556 = vperm.slane %v3555, 0
  %v3557 = vmul.f32 %v3551, %v3556
  %v3558 = vmul.f32 %v3552, %v3556
  %v3559 = vmul.f32 %v3553, %v3556
  %v3560 = vmul.f32 %v3554, %v3556
  %v3561 = vld [vmem:[%s11 + $0x3] sm:$0x1]
  %v3562 = vperm.slane %v3561, 0
  %v3563 = vadd.f32 %v3557, %v3562
  %v3564 = vadd.f32 %v3558, %v3562
  %v3565 = vadd.f32 %v3559, %v3562
  %v3566 = vadd.f32 %v3560, %v3562
  %v3567 = vmul.f32 %v3563, 0.5
  %v3568 = vmul.f32 %v3564, 0.5
  %v3569 = vmul.f32 %v3565, 0.5
  %v3570 = vmul.f32 %v3566, 0.5
  %v3571 = vmul.f32 %v3563, %v3563
  %v3572 = vmul.f32 %v3564, %v3564
  %v3573 = vmul.f32 %v3565, %v3565
  %v3574 = vmul.f32 %v3566, %v3566
  %v3575 = vmul.f32 %v3571, %v3563
  %v3576 = vmul.f32 %v3572, %v3564
  %v3577 = vmul.f32 %v3573, %v3565
  %v3578 = vmul.f32 %v3574, %v3566
  %v3579 = vmul.f32 %v3575, 0.044715
  %v3580 = vmul.f32 %v3576, 0.044715
  %v3581 = vmul.f32 %v3577, 0.044715
  %v3582 = vmul.f32 %v3578, 0.044715
  %v3583 = vadd.f32 %v3563, %v3579
  %v3584 = vadd.f32 %v3564, %v3580
  %v3585 = vadd.f32 %v3565, %v3581
  %v3586 = vadd.f32 %v3566, %v3582
  %v3587 = vmul.f32 %v3583, 0.7978846
  %v3588 = vmul.f32 %v3584, 0.7978846
  %v3589 = vmul.f32 %v3585, 0.7978846
  %v3590 = vmul.f32 %v3586, 0.7978846
  %v3591 = vtanh.pop %v3587
  %v3592 = vtanh.pop %v3588
  %v3593 = vtanh.pop %v3589
  %v3594 = vtanh.pop %v3590
  %v3595 = vadd.f32 %v3591, 1.0
  %v3596 = vadd.f32 %v3592, 1.0
  %v3597 = vadd.f32 %v3593, 1.0
  %v3598 = vadd.f32 %v3594, 1.0
  %v3599 = vmul.f32 %v3567, %v3595
  %v3600 = vmul.f32 %v3568, %v3596
  %v3601 = vmul.f32 %v3569, %v3597
  %v3602 = vmul.f32 %v3570, %v3598
  %v3603 = vadd.f32 %v3599, %v3151
  %v3604 = vadd.f32 %v3600, %v3152
  %v3605 = vadd.f32 %v3601, %v3153
  %v3606 = vadd.f32 %v3602, %v3154
  %s3607 = scalar_lea.vmem %s8, 384
  %v3608 = vld [vmem:[%s3607] sm:$0xff]
  %v3609 = vld [vmem:[%s3607 + $0x8] sm:$0xff]
  %v3610 = vld [vmem:[%s3607 + $0x10] sm:$0xff]
  %v3611 = vld [vmem:[%s3607 + $0x18] sm:$0xff]
  %v3612 = vld [vmem:[%s3607 + $0x20] sm:$0xff]
  %v3613 = vld [vmem:[%s3607 + $0x28] sm:$0xff]
  %v3614 = vld [vmem:[%s3607 + $0x30] sm:$0xff]
  %v3615 = vld [vmem:[%s3607 + $0x38] sm:$0xff]
  %v3616 = vld [vmem:[%s3607 + $0x40] sm:$0xff]
  %v3617 = vld [vmem:[%s3607 + $0x48] sm:$0xff]
  %v3618 = vld [vmem:[%s3607 + $0x50] sm:$0xff]
  %v3619 = vld [vmem:[%s3607 + $0x58] sm:$0xff]
  %v3620 = vld [vmem:[%s9 + $0x4] sm:$0x1]
  %3621 = vmatpush.msra.mxu0 0.0
  %3622 = vmatpush.msra.mxu0 0.0
  %3623 = vmatpush.msra.mxu0 0.0
  %3624 = vmatpush.msra.mxu0 0.0
  %3625 = vmatpush.msra.mxu0 0.0
  %3626 = vmatpush.msra.mxu0 0.0
  %3627 = vmatpush.msra.mxu0 0.0
  %3628 = vmatpush.msra.mxu0 0.0
  %3629 = vmatpush.msra.mxu0 0.0
  %3630 = vmatpush.msra.mxu0 0.0
  %3631 = vmatpush.msra.mxu0 0.0
  %3632 = vmatpush.msra.mxu0 0.0
  %3633 = vmatpush.msra.mxu0 %v3606
  %3634 = vmatpush.msra.mxu0 %v3605
  %3635 = vmatpush.msra.mxu0 %v3604
  %3636 = vmatpush.msra.mxu0 %v3603
  %3637 = vmatmul.f32.gmra.mxu0 %v168
  %v3638 = vpop.f32.mrf.mxu0
  %v3639 = vadd.f32 0.0, %v3638
  %3640 = vmatmul.f32.gmra.mxu0 %v171
  %v3641 = vpop.f32.mrf.mxu0
  %v3642 = vadd.f32 0.0, %v3641
  %3643 = vmatmul.f32.gmra.mxu0 %v174
  %v3644 = vpop.f32.mrf.mxu0
  %v3645 = vadd.f32 0.0, %v3644
  %3646 = vmatmul.f32.gmra.mxu0 %v177
  %v3647 = vpop.f32.mrf.mxu0
  %v3648 = vadd.f32 0.0, %v3647
  %3649 = vdwg.mxu0
  %3650 = vmatpush.msra.mxu0 0.0
  %3651 = vmatpush.msra.mxu0 0.0
  %3652 = vmatpush.msra.mxu0 0.0
  %3653 = vmatpush.msra.mxu0 0.0
  %3654 = vmatpush.msra.mxu0 0.0
  %3655 = vmatpush.msra.mxu0 0.0
  %3656 = vmatpush.msra.mxu0 0.0
  %3657 = vmatpush.msra.mxu0 0.0
  %3658 = vmatpush.msra.mxu0 0.0
  %3659 = vmatpush.msra.mxu0 0.0
  %3660 = vmatpush.msra.mxu0 0.0
  %3661 = vmatpush.msra.mxu0 0.0
  %3662 = vmatpush.msra.mxu0 %v3606
  %3663 = vmatpush.msra.mxu0 %v3605
  %3664 = vmatpush.msra.mxu0 %v3604
  %3665 = vmatpush.msra.mxu0 %v3603
  %3666 = vmatmul.f32.gmra.mxu0 %v209
  %v3667 = vpop.f32.mrf.mxu0
  %v3668 = vadd.f32 0.0, %v3667
  %3669 = vmatmul.f32.gmra.mxu0 %v212
  %v3670 = vpop.f32.mrf.mxu0
  %v3671 = vadd.f32 0.0, %v3670
  %3672 = vmatmul.f32.gmra.mxu0 %v215
  %v3673 = vpop.f32.mrf.mxu0
  %v3674 = vadd.f32 0.0, %v3673
  %3675 = vmatmul.f32.gmra.mxu0 %v218
  %v3676 = vpop.f32.mrf.mxu0
  %v3677 = vadd.f32 0.0, %v3676
  %3678 = vdwg.mxu0
  %v3680 = vsel %vm166, %v3603, 0
  %v3683 = vsel %vm166, %v3604, 0
  %v3686 = vsel %vm166, %v3605, 0
  %v3689 = vsel %vm166, %v3606, 0
  %3691 = vmatpush.msra.mxu0 0.0
  %3692 = vmatpush.msra.mxu0 0.0
  %3693 = vmatpush.msra.mxu0 0.0
  %3694 = vmatpush.msra.mxu0 0.0
  %3695 = vmatpush.msra.mxu0 0.0
  %3696 = vmatpush.msra.mxu0 0.0
  %3697 = vmatpush.msra.mxu0 0.0
  %3698 = vmatpush.msra.mxu0 0.0
  %3699 = vmatpush.msra.mxu0 0.0
  %3700 = vmatpush.msra.mxu0 0.0
  %3701 = vmatpush.msra.mxu0 0.0
  %3702 = vmatpush.msra.mxu0 0.0
  %3703 = vmatpush.msra.mxu0 %v3615
  %3704 = vmatpush.msra.mxu0 %v3614
  %3705 = vmatpush.msra.mxu0 %v3613
  %3706 = vmatpush.msra.mxu0 %v3612
  %3707 = vmatmul.f32.gmra.mxu0 %v3680
  %v3708 = vpop.f32.mrf.mxu0
  %v3709 = vadd.f32 0.0, %v3708
  %3710 = vmatmul.f32.gmra.mxu0 %v3683
  %v3711 = vpop.f32.mrf.mxu0
  %v3712 = vadd.f32 0.0, %v3711
  %3713 = vmatmul.f32.gmra.mxu0 %v3686
  %v3714 = vpop.f32.mrf.mxu0
  %v3715 = vadd.f32 0.0, %v3714
  %3716 = vmatmul.f32.gmra.mxu0 %v3689
  %v3717 = vpop.f32.mrf.mxu0
  %v3718 = vadd.f32 0.0, %v3717
  %3719 = vdwg.mxu0
  %v3721 = vsel %vm166, %v3639, 0
  %v3724 = vsel %vm166, %v3642, 0
  %v3727 = vsel %vm166, %v3645, 0
  %v3730 = vsel %vm166, %v3648, 0
  %3732 = vmatpush.msra.mxu0 0.0
  %3733 = vmatpush.msra.mxu0 0.0
  %3734 = vmatpush.msra.mxu0 0.0
  %3735 = vmatpush.msra.mxu0 0.0
  %3736 = vmatpush.msra.mxu0 0.0
  %3737 = vmatpush.msra.mxu0 0.0
  %3738 = vmatpush.msra.mxu0 0.0
  %3739 = vmatpush.msra.mxu0 0.0
  %3740 = vmatpush.msra.mxu0 0.0
  %3741 = vmatpush.msra.mxu0 0.0
  %3742 = vmatpush.msra.mxu0 0.0
  %3743 = vmatpush.msra.mxu0 0.0
  %3744 = vmatpush.msra.mxu0 %v3611
  %3745 = vmatpush.msra.mxu0 %v3610
  %3746 = vmatpush.msra.mxu0 %v3609
  %3747 = vmatpush.msra.mxu0 %v3608
  %3748 = vmatmul.f32.gmra.mxu0 %v3721
  %v3749 = vpop.f32.mrf.mxu0
  %v3750 = vadd.f32 %v3709, %v3749
  %3751 = vmatmul.f32.gmra.mxu0 %v3724
  %v3752 = vpop.f32.mrf.mxu0
  %v3753 = vadd.f32 %v3712, %v3752
  %3754 = vmatmul.f32.gmra.mxu0 %v3727
  %v3755 = vpop.f32.mrf.mxu0
  %v3756 = vadd.f32 %v3715, %v3755
  %3757 = vmatmul.f32.gmra.mxu0 %v3730
  %v3758 = vpop.f32.mrf.mxu0
  %v3759 = vadd.f32 %v3718, %v3758
  %3760 = vdwg.mxu0
  %v3762 = vsel %vm166, %v3668, 0
  %v3765 = vsel %vm166, %v3671, 0
  %v3768 = vsel %vm166, %v3674, 0
  %v3771 = vsel %vm166, %v3677, 0
  %3773 = vmatpush.msra.mxu0 0.0
  %3774 = vmatpush.msra.mxu0 0.0
  %3775 = vmatpush.msra.mxu0 0.0
  %3776 = vmatpush.msra.mxu0 0.0
  %3777 = vmatpush.msra.mxu0 0.0
  %3778 = vmatpush.msra.mxu0 0.0
  %3779 = vmatpush.msra.mxu0 0.0
  %3780 = vmatpush.msra.mxu0 0.0
  %3781 = vmatpush.msra.mxu0 0.0
  %3782 = vmatpush.msra.mxu0 0.0
  %3783 = vmatpush.msra.mxu0 0.0
  %3784 = vmatpush.msra.mxu0 0.0
  %3785 = vmatpush.msra.mxu0 %v3619
  %3786 = vmatpush.msra.mxu0 %v3618
  %3787 = vmatpush.msra.mxu0 %v3617
  %3788 = vmatpush.msra.mxu0 %v3616
  %3789 = vmatmul.f32.gmra.mxu0 %v3762
  %v3790 = vpop.f32.mrf.mxu0
  %v3791 = vadd.f32 0.0, %v3790
  %3792 = vmatmul.f32.gmra.mxu0 %v3765
  %v3793 = vpop.f32.mrf.mxu0
  %v3794 = vadd.f32 0.0, %v3793
  %3795 = vmatmul.f32.gmra.mxu0 %v3768
  %v3796 = vpop.f32.mrf.mxu0
  %v3797 = vadd.f32 0.0, %v3796
  %3798 = vmatmul.f32.gmra.mxu0 %v3771
  %v3799 = vpop.f32.mrf.mxu0
  %v3800 = vadd.f32 0.0, %v3799
  %3801 = vdwg.mxu0
  %v3802 = vadd.f32 %v3750, %v3791
  %v3803 = vadd.f32 %v3753, %v3794
  %v3804 = vadd.f32 %v3756, %v3797
  %v3805 = vadd.f32 %v3759, %v3800
  %v3806 = vperm.slane %v3620, 0
  %v3807 = vadd.f32 %v3802, %v3806
  %v3808 = vadd.f32 %v3803, %v3806
  %v3809 = vadd.f32 %v3804, %v3806
  %v3810 = vadd.f32 %v3805, %v3806
  %3811 = vmatpush.msra.mxu0 0.0
  %3812 = vmatpush.msra.mxu0 0.0
  %3813 = vmatpush.msra.mxu0 0.0
  %3814 = vmatpush.msra.mxu0 0.0
  %3815 = vmatpush.msra.mxu0 0.0
  %3816 = vmatpush.msra.mxu0 0.0
  %3817 = vmatpush.msra.mxu0 0.0
  %3818 = vmatpush.msra.mxu0 0.0
  %3819 = vmatpush.msra.mxu0 0.0
  %3820 = vmatpush.msra.mxu0 0.0
  %3821 = vmatpush.msra.mxu0 0.0
  %3822 = vmatpush.msra.mxu0 0.0
  %3823 = vmatpush.msra.mxu0 %v3810
  %3824 = vmatpush.msra.mxu0 %v3809
  %3825 = vmatpush.msra.mxu0 %v3808
  %3826 = vmatpush.msra.mxu0 %v3807
  %3827 = vmatmul.f32.gmra.mxu0 %v382
  %v3828 = vpop.f32.mrf.mxu0
  %v3829 = vadd.f32 0.0, %v3828
  %3830 = vmatmul.f32.gmra.mxu0 %v385
  %v3831 = vpop.f32.mrf.mxu0
  %v3832 = vadd.f32 0.0, %v3831
  %3833 = vmatmul.f32.gmra.mxu0 %v388
  %v3834 = vpop.f32.mrf.mxu0
  %v3835 = vadd.f32 0.0, %v3834
  %3836 = vmatmul.f32.gmra.mxu0 %v391
  %v3837 = vpop.f32.mrf.mxu0
  %v3838 = vadd.f32 0.0, %v3837
  %3839 = vdwg.mxu0
  %v3841 = vsel %vm166, %v3829, 0
  %v3844 = vsel %vm166, %v3832, 0
  %v3847 = vsel %vm166, %v3835, 0
  %v3850 = vsel %vm166, %v3838, 0
  %3852 = vmatpush.msra.mxu0 0.0
  %3853 = vmatpush.msra.mxu0 0.0
  %3854 = vmatpush.msra.mxu0 0.0
  %3855 = vmatpush.msra.mxu0 0.0
  %3856 = vmatpush.msra.mxu0 0.0
  %3857 = vmatpush.msra.mxu0 0.0
  %3858 = vmatpush.msra.mxu0 0.0
  %3859 = vmatpush.msra.mxu0 0.0
  %3860 = vmatpush.msra.mxu0 0.0
  %3861 = vmatpush.msra.mxu0 0.0
  %3862 = vmatpush.msra.mxu0 0.0
  %3863 = vmatpush.msra.mxu0 0.0
  %3864 = vmatpush.msra.mxu0 %v92
  %3865 = vmatpush.msra.mxu0 %v91
  %3866 = vmatpush.msra.mxu0 %v90
  %3867 = vmatpush.msra.mxu0 %v89
  %3868 = vmatmul.f32.gmra.mxu0 %v3841
  %v3869 = vpop.f32.mrf.mxu0
  %v3870 = vadd.f32 0.0, %v3869
  %3871 = vmatmul.f32.gmra.mxu0 %v3844
  %v3872 = vpop.f32.mrf.mxu0
  %v3873 = vadd.f32 0.0, %v3872
  %3874 = vmatmul.f32.gmra.mxu0 %v3847
  %v3875 = vpop.f32.mrf.mxu0
  %v3876 = vadd.f32 0.0, %v3875
  %3877 = vmatmul.f32.gmra.mxu0 %v3850
  %v3878 = vpop.f32.mrf.mxu0
  %v3879 = vadd.f32 0.0, %v3878
  %3880 = vdwg.mxu0
  %v3881 = vsub.f32 %v3807, %v3870
  %v3882 = vsub.f32 %v3808, %v3873
  %v3883 = vsub.f32 %v3809, %v3876
  %v3884 = vsub.f32 %v3810, %v3879
  %v3885 = vmul.f32 %v3881, %v3881
  %v3886 = vmul.f32 %v3882, %v3882
  %v3887 = vmul.f32 %v3883, %v3883
  %v3888 = vmul.f32 %v3884, %v3884
  %3889 = vmatpush.msra.mxu0 0.0
  %3890 = vmatpush.msra.mxu0 0.0
  %3891 = vmatpush.msra.mxu0 0.0
  %3892 = vmatpush.msra.mxu0 0.0
  %3893 = vmatpush.msra.mxu0 0.0
  %3894 = vmatpush.msra.mxu0 0.0
  %3895 = vmatpush.msra.mxu0 0.0
  %3896 = vmatpush.msra.mxu0 0.0
  %3897 = vmatpush.msra.mxu0 0.0
  %3898 = vmatpush.msra.mxu0 0.0
  %3899 = vmatpush.msra.mxu0 0.0
  %3900 = vmatpush.msra.mxu0 0.0
  %3901 = vmatpush.msra.mxu0 %v3888
  %3902 = vmatpush.msra.mxu0 %v3887
  %3903 = vmatpush.msra.mxu0 %v3886
  %3904 = vmatpush.msra.mxu0 %v3885
  %3905 = vmatmul.f32.gmra.mxu0 %v382
  %v3906 = vpop.f32.mrf.mxu0
  %v3907 = vadd.f32 0.0, %v3906
  %3908 = vmatmul.f32.gmra.mxu0 %v385
  %v3909 = vpop.f32.mrf.mxu0
  %v3910 = vadd.f32 0.0, %v3909
  %3911 = vmatmul.f32.gmra.mxu0 %v388
  %v3912 = vpop.f32.mrf.mxu0
  %v3913 = vadd.f32 0.0, %v3912
  %3914 = vmatmul.f32.gmra.mxu0 %v391
  %v3915 = vpop.f32.mrf.mxu0
  %v3916 = vadd.f32 0.0, %v3915
  %3917 = vdwg.mxu0
  %v3919 = vsel %vm166, %v3907, 0
  %v3922 = vsel %vm166, %v3910, 0
  %v3925 = vsel %vm166, %v3913, 0
  %v3928 = vsel %vm166, %v3916, 0
  %3930 = vmatpush.msra.mxu0 0.0
  %3931 = vmatpush.msra.mxu0 0.0
  %3932 = vmatpush.msra.mxu0 0.0
  %3933 = vmatpush.msra.mxu0 0.0
  %3934 = vmatpush.msra.mxu0 0.0
  %3935 = vmatpush.msra.mxu0 0.0
  %3936 = vmatpush.msra.mxu0 0.0
  %3937 = vmatpush.msra.mxu0 0.0
  %3938 = vmatpush.msra.mxu0 0.0
  %3939 = vmatpush.msra.mxu0 0.0
  %3940 = vmatpush.msra.mxu0 0.0
  %3941 = vmatpush.msra.mxu0 0.0
  %3942 = vmatpush.msra.mxu0 %v92
  %3943 = vmatpush.msra.mxu0 %v91
  %3944 = vmatpush.msra.mxu0 %v90
  %3945 = vmatpush.msra.mxu0 %v89
  %3946 = vmatmul.f32.gmra.mxu0 %v3919
  %v3947 = vpop.f32.mrf.mxu0
  %v3948 = vadd.f32 1e-05, %v3947
  %3949 = vmatmul.f32.gmra.mxu0 %v3922
  %v3950 = vpop.f32.mrf.mxu0
  %v3951 = vadd.f32 1e-05, %v3950
  %3952 = vmatmul.f32.gmra.mxu0 %v3925
  %v3953 = vpop.f32.mrf.mxu0
  %v3954 = vadd.f32 1e-05, %v3953
  %3955 = vmatmul.f32.gmra.mxu0 %v3928
  %v3956 = vpop.f32.mrf.mxu0
  %v3957 = vadd.f32 1e-05, %v3956
  %3958 = vdwg.mxu0
  %v3959 = vrsqrt.pop %v3948
  %v3960 = vmul.f32 %v3959, %v3948
  %v3961 = vmul.f32 %v3960, %v3959
  %v3962 = vmul.f32 0.5, %v3961
  %v3963 = vsub.f32 1.5, %v3962
  %v3964 = vmul.f32 %v3959, %v3963
  %vm3965 = vweird.f32 %v3948
  %vm3966 = vweird.f32 %v3959
  %vm3967 = vmor %vm3965, %vm3966
  %v3968 = vsel %vm3967, %v3959, %v3964
  %v3969 = vrsqrt.pop %v3951
  %v3970 = vmul.f32 %v3969, %v3951
  %v3971 = vmul.f32 %v3970, %v3969
  %v3972 = vmul.f32 0.5, %v3971
  %v3973 = vsub.f32 1.5, %v3972
  %v3974 = vmul.f32 %v3969, %v3973
  %vm3975 = vweird.f32 %v3951
  %vm3976 = vweird.f32 %v3969
  %vm3977 = vmor %vm3975, %vm3976
  %v3978 = vsel %vm3977, %v3969, %v3974
  %v3979 = vrsqrt.pop %v3954
  %v3980 = vmul.f32 %v3979, %v3954
  %v3981 = vmul.f32 %v3980, %v3979
  %v3982 = vmul.f32 0.5, %v3981
  %v3983 = vsub.f32 1.5, %v3982
  %v3984 = vmul.f32 %v3979, %v3983
  %vm3985 = vweird.f32 %v3954
  %vm3986 = vweird.f32 %v3979
  %vm3987 = vmor %vm3985, %vm3986
  %v3988 = vsel %vm3987, %v3979, %v3984
  %v3989 = vrsqrt.pop %v3957
  %v3990 = vmul.f32 %v3989, %v3957
  %v3991 = vmul.f32 %v3990, %v3989
  %v3992 = vmul.f32 0.5, %v3991
  %v3993 = vsub.f32 1.5, %v3992
  %v3994 = vmul.f32 %v3989, %v3993
  %vm3995 = vweird.f32 %v3957
  %vm3996 = vweird.f32 %v3989
  %vm3997 = vmor %vm3995, %vm3996
  %v3998 = vsel %vm3997, %v3989, %v3994
  %v3999 = vmul.f32 %v3881, %v3968
  %v4000 = vmul.f32 %v3882, %v3978
  %v4001 = vmul.f32 %v3883, %v3988
  %v4002 = vmul.f32 %v3884, %v3998
  %v4003 = vld [vmem:[%s10 + $0x4] sm:$0x1]
  %v4004 = vperm.slane %v4003, 0
  %v4005 = vmul.f32 %v3999, %v4004
  %v4006 = vmul.f32 %v4000, %v4004
  %v4007 = vmul.f32 %v4001, %v4004
  %v4008 = vmul.f32 %v4002, %v4004
  %v4009 = vld [vmem:[%s11 + $0x4] sm:$0x1]
  %v4010 = vperm.slane %v4009, 0
  %v4011 = vadd.f32 %v4005, %v4010
  %v4012 = vadd.f32 %v4006, %v4010
  %v4013 = vadd.f32 %v4007, %v4010
  %v4014 = vadd.f32 %v4008, %v4010
  %v4015 = vmul.f32 %v4011, 0.5
  %v4016 = vmul.f32 %v4012, 0.5
  %v4017 = vmul.f32 %v4013, 0.5
  %v4018 = vmul.f32 %v4014, 0.5
  %v4019 = vmul.f32 %v4011, %v4011
  %v4020 = vmul.f32 %v4012, %v4012
  %v4021 = vmul.f32 %v4013, %v4013
  %v4022 = vmul.f32 %v4014, %v4014
  %v4023 = vmul.f32 %v4019, %v4011
  %v4024 = vmul.f32 %v4020, %v4012
  %v4025 = vmul.f32 %v4021, %v4013
  %v4026 = vmul.f32 %v4022, %v4014
  %v4027 = vmul.f32 %v4023, 0.044715
  %v4028 = vmul.f32 %v4024, 0.044715
  %v4029 = vmul.f32 %v4025, 0.044715
  %v4030 = vmul.f32 %v4026, 0.044715
  %v4031 = vadd.f32 %v4011, %v4027
  %v4032 = vadd.f32 %v4012, %v4028
  %v4033 = vadd.f32 %v4013, %v4029
  %v4034 = vadd.f32 %v4014, %v4030
  %v4035 = vmul.f32 %v4031, 0.7978846
  %v4036 = vmul.f32 %v4032, 0.7978846
  %v4037 = vmul.f32 %v4033, 0.7978846
  %v4038 = vmul.f32 %v4034, 0.7978846
  %v4039 = vtanh.pop %v4035
  %v4040 = vtanh.pop %v4036
  %v4041 = vtanh.pop %v4037
  %v4042 = vtanh.pop %v4038
  %v4043 = vadd.f32 %v4039, 1.0
  %v4044 = vadd.f32 %v4040, 1.0
  %v4045 = vadd.f32 %v4041, 1.0
  %v4046 = vadd.f32 %v4042, 1.0
  %v4047 = vmul.f32 %v4015, %v4043
  %v4048 = vmul.f32 %v4016, %v4044
  %v4049 = vmul.f32 %v4017, %v4045
  %v4050 = vmul.f32 %v4018, %v4046
  %v4051 = vadd.f32 %v4047, %v3603
  %v4052 = vadd.f32 %v4048, %v3604
  %v4053 = vadd.f32 %v4049, %v3605
  %v4054 = vadd.f32 %v4050, %v3606
  %s4055 = scalar_lea.vmem %s8, 480
  %v4056 = vld [vmem:[%s4055] sm:$0xff]
  %v4057 = vld [vmem:[%s4055 + $0x8] sm:$0xff]
  %v4058 = vld [vmem:[%s4055 + $0x10] sm:$0xff]
  %v4059 = vld [vmem:[%s4055 + $0x18] sm:$0xff]
  %v4060 = vld [vmem:[%s4055 + $0x20] sm:$0xff]
  %v4061 = vld [vmem:[%s4055 + $0x28] sm:$0xff]
  %v4062 = vld [vmem:[%s4055 + $0x30] sm:$0xff]
  %v4063 = vld [vmem:[%s4055 + $0x38] sm:$0xff]
  %v4064 = vld [vmem:[%s4055 + $0x40] sm:$0xff]
  %v4065 = vld [vmem:[%s4055 + $0x48] sm:$0xff]
  %v4066 = vld [vmem:[%s4055 + $0x50] sm:$0xff]
  %v4067 = vld [vmem:[%s4055 + $0x58] sm:$0xff]
  %v4068 = vld [vmem:[%s9 + $0x5] sm:$0x1]
  %4069 = vmatpush.msra.mxu0 0.0
  %4070 = vmatpush.msra.mxu0 0.0
  %4071 = vmatpush.msra.mxu0 0.0
  %4072 = vmatpush.msra.mxu0 0.0
  %4073 = vmatpush.msra.mxu0 0.0
  %4074 = vmatpush.msra.mxu0 0.0
  %4075 = vmatpush.msra.mxu0 0.0
  %4076 = vmatpush.msra.mxu0 0.0
  %4077 = vmatpush.msra.mxu0 0.0
  %4078 = vmatpush.msra.mxu0 0.0
  %4079 = vmatpush.msra.mxu0 0.0
  %4080 = vmatpush.msra.mxu0 0.0
  %4081 = vmatpush.msra.mxu0 %v4054
  %4082 = vmatpush.msra.mxu0 %v4053
  %4083 = vmatpush.msra.mxu0 %v4052
  %4084 = vmatpush.msra.mxu0 %v4051
  %4085 = vmatmul.f32.gmra.mxu0 %v168
  %v4086 = vpop.f32.mrf.mxu0
  %v4087 = vadd.f32 0.0, %v4086
  %4088 = vmatmul.f32.gmra.mxu0 %v171
  %v4089 = vpop.f32.mrf.mxu0
  %v4090 = vadd.f32 0.0, %v4089
  %4091 = vmatmul.f32.gmra.mxu0 %v174
  %v4092 = vpop.f32.mrf.mxu0
  %v4093 = vadd.f32 0.0, %v4092
  %4094 = vmatmul.f32.gmra.mxu0 %v177
  %v4095 = vpop.f32.mrf.mxu0
  %v4096 = vadd.f32 0.0, %v4095
  %4097 = vdwg.mxu0
  %4098 = vmatpush.msra.mxu0 0.0
  %4099 = vmatpush.msra.mxu0 0.0
  %4100 = vmatpush.msra.mxu0 0.0
  %4101 = vmatpush.msra.mxu0 0.0
  %4102 = vmatpush.msra.mxu0 0.0
  %4103 = vmatpush.msra.mxu0 0.0
  %4104 = vmatpush.msra.mxu0 0.0
  %4105 = vmatpush.msra.mxu0 0.0
  %4106 = vmatpush.msra.mxu0 0.0
  %4107 = vmatpush.msra.mxu0 0.0
  %4108 = vmatpush.msra.mxu0 0.0
  %4109 = vmatpush.msra.mxu0 0.0
  %4110 = vmatpush.msra.mxu0 %v4054
  %4111 = vmatpush.msra.mxu0 %v4053
  %4112 = vmatpush.msra.mxu0 %v4052
  %4113 = vmatpush.msra.mxu0 %v4051
  %4114 = vmatmul.f32.gmra.mxu0 %v209
  %v4115 = vpop.f32.mrf.mxu0
  %v4116 = vadd.f32 0.0, %v4115
  %4117 = vmatmul.f32.gmra.mxu0 %v212
  %v4118 = vpop.f32.mrf.mxu0
  %v4119 = vadd.f32 0.0, %v4118
  %4120 = vmatmul.f32.gmra.mxu0 %v215
  %v4121 = vpop.f32.mrf.mxu0
  %v4122 = vadd.f32 0.0, %v4121
  %4123 = vmatmul.f32.gmra.mxu0 %v218
  %v4124 = vpop.f32.mrf.mxu0
  %v4125 = vadd.f32 0.0, %v4124
  %4126 = vdwg.mxu0
  %v4128 = vsel %vm166, %v4051, 0
  %v4131 = vsel %vm166, %v4052, 0
  %v4134 = vsel %vm166, %v4053, 0
  %v4137 = vsel %vm166, %v4054, 0
  %4139 = vmatpush.msra.mxu0 0.0
  %4140 = vmatpush.msra.mxu0 0.0
  %4141 = vmatpush.msra.mxu0 0.0
  %4142 = vmatpush.msra.mxu0 0.0
  %4143 = vmatpush.msra.mxu0 0.0
  %4144 = vmatpush.msra.mxu0 0.0
  %4145 = vmatpush.msra.mxu0 0.0
  %4146 = vmatpush.msra.mxu0 0.0
  %4147 = vmatpush.msra.mxu0 0.0
  %4148 = vmatpush.msra.mxu0 0.0
  %4149 = vmatpush.msra.mxu0 0.0
  %4150 = vmatpush.msra.mxu0 0.0
  %4151 = vmatpush.msra.mxu0 %v4063
  %4152 = vmatpush.msra.mxu0 %v4062
  %4153 = vmatpush.msra.mxu0 %v4061
  %4154 = vmatpush.msra.mxu0 %v4060
  %4155 = vmatmul.f32.gmra.mxu0 %v4128
  %v4156 = vpop.f32.mrf.mxu0
  %v4157 = vadd.f32 0.0, %v4156
  %4158 = vmatmul.f32.gmra.mxu0 %v4131
  %v4159 = vpop.f32.mrf.mxu0
  %v4160 = vadd.f32 0.0, %v4159
  %4161 = vmatmul.f32.gmra.mxu0 %v4134
  %v4162 = vpop.f32.mrf.mxu0
  %v4163 = vadd.f32 0.0, %v4162
  %4164 = vmatmul.f32.gmra.mxu0 %v4137
  %v4165 = vpop.f32.mrf.mxu0
  %v4166 = vadd.f32 0.0, %v4165
  %4167 = vdwg.mxu0
  %v4169 = vsel %vm166, %v4087, 0
  %v4172 = vsel %vm166, %v4090, 0
  %v4175 = vsel %vm166, %v4093, 0
  %v4178 = vsel %vm166, %v4096, 0
  %4180 = vmatpush.msra.mxu0 0.0
  %4181 = vmatpush.msra.mxu0 0.0
  %4182 = vmatpush.msra.mxu0 0.0
  %4183 = vmatpush.msra.mxu0 0.0
  %4184 = vmatpush.msra.mxu0 0.0
  %4185 = vmatpush.msra.mxu0 0.0
  %4186 = vmatpush.msra.mxu0 0.0
  %4187 = vmatpush.msra.mxu0 0.0
  %4188 = vmatpush.msra.mxu0 0.0
  %4189 = vmatpush.msra.mxu0 0.0
  %4190 = vmatpush.msra.mxu0 0.0
  %4191 = vmatpush.msra.mxu0 0.0
  %4192 = vmatpush.msra.mxu0 %v4059
  %4193 = vmatpush.msra.mxu0 %v4058
  %4194 = vmatpush.msra.mxu0 %v4057
  %4195 = vmatpush.msra.mxu0 %v4056
  %4196 = vmatmul.f32.gmra.mxu0 %v4169
  %v4197 = vpop.f32.mrf.mxu0
  %v4198 = vadd.f32 %v4157, %v4197
  %4199 = vmatmul.f32.gmra.mxu0 %v4172
  %v4200 = vpop.f32.mrf.mxu0
  %v4201 = vadd.f32 %v4160, %v4200
  %4202 = vmatmul.f32.gmra.mxu0 %v4175
  %v4203 = vpop.f32.mrf.mxu0
  %v4204 = vadd.f32 %v4163, %v4203
  %4205 = vmatmul.f32.gmra.mxu0 %v4178
  %v4206 = vpop.f32.mrf.mxu0
  %v4207 = vadd.f32 %v4166, %v4206
  %4208 = vdwg.mxu0
  %v4210 = vsel %vm166, %v4116, 0
  %v4213 = vsel %vm166, %v4119, 0
  %v4216 = vsel %vm166, %v4122, 0
  %v4219 = vsel %vm166, %v4125, 0
  %4221 = vmatpush.msra.mxu0 0.0
  %4222 = vmatpush.msra.mxu0 0.0
  %4223 = vmatpush.msra.mxu0 0.0
  %4224 = vmatpush.msra.mxu0 0.0
  %4225 = vmatpush.msra.mxu0 0.0
  %4226 = vmatpush.msra.mxu0 0.0
  %4227 = vmatpush.msra.mxu0 0.0
  %4228 = vmatpush.msra.mxu0 0.0
  %4229 = vmatpush.msra.mxu0 0.0
  %4230 = vmatpush.msra.mxu0 0.0
  %4231 = vmatpush.msra.mxu0 0.0
  %4232 = vmatpush.msra.mxu0 0.0
  %4233 = vmatpush.msra.mxu0 %v4067
  %4234 = vmatpush.msra.mxu0 %v4066
  %4235 = vmatpush.msra.mxu0 %v4065
  %4236 = vmatpush.msra.mxu0 %v4064
  %4237 = vmatmul.f32.gmra.mxu0 %v4210
  %v4238 = vpop.f32.mrf.mxu0
  %v4239 = vadd.f32 0.0, %v4238
  %4240 = vmatmul.f32.gmra.mxu0 %v4213
  %v4241 = vpop.f32.mrf.mxu0
  %v4242 = vadd.f32 0.0, %v4241
  %4243 = vmatmul.f32.gmra.mxu0 %v4216
  %v4244 = vpop.f32.mrf.mxu0
  %v4245 = vadd.f32 0.0, %v4244
  %4246 = vmatmul.f32.gmra.mxu0 %v4219
  %v4247 = vpop.f32.mrf.mxu0
  %v4248 = vadd.f32 0.0, %v4247
  %4249 = vdwg.mxu0
  %v4250 = vadd.f32 %v4198, %v4239
  %v4251 = vadd.f32 %v4201, %v4242
  %v4252 = vadd.f32 %v4204, %v4245
  %v4253 = vadd.f32 %v4207, %v4248
  %v4254 = vperm.slane %v4068, 0
  %v4255 = vadd.f32 %v4250, %v4254
  %v4256 = vadd.f32 %v4251, %v4254
  %v4257 = vadd.f32 %v4252, %v4254
  %v4258 = vadd.f32 %v4253, %v4254
  %4259 = vmatpush.msra.mxu0 0.0
  %4260 = vmatpush.msra.mxu0 0.0
  %4261 = vmatpush.msra.mxu0 0.0
  %4262 = vmatpush.msra.mxu0 0.0
  %4263 = vmatpush.msra.mxu0 0.0
  %4264 = vmatpush.msra.mxu0 0.0
  %4265 = vmatpush.msra.mxu0 0.0
  %4266 = vmatpush.msra.mxu0 0.0
  %4267 = vmatpush.msra.mxu0 0.0
  %4268 = vmatpush.msra.mxu0 0.0
  %4269 = vmatpush.msra.mxu0 0.0
  %4270 = vmatpush.msra.mxu0 0.0
  %4271 = vmatpush.msra.mxu0 %v4258
  %4272 = vmatpush.msra.mxu0 %v4257
  %4273 = vmatpush.msra.mxu0 %v4256
  %4274 = vmatpush.msra.mxu0 %v4255
  %4275 = vmatmul.f32.gmra.mxu0 %v382
  %v4276 = vpop.f32.mrf.mxu0
  %v4277 = vadd.f32 0.0, %v4276
  %4278 = vmatmul.f32.gmra.mxu0 %v385
  %v4279 = vpop.f32.mrf.mxu0
  %v4280 = vadd.f32 0.0, %v4279
  %4281 = vmatmul.f32.gmra.mxu0 %v388
  %v4282 = vpop.f32.mrf.mxu0
  %v4283 = vadd.f32 0.0, %v4282
  %4284 = vmatmul.f32.gmra.mxu0 %v391
  %v4285 = vpop.f32.mrf.mxu0
  %v4286 = vadd.f32 0.0, %v4285
  %4287 = vdwg.mxu0
  %v4289 = vsel %vm166, %v4277, 0
  %v4292 = vsel %vm166, %v4280, 0
  %v4295 = vsel %vm166, %v4283, 0
  %v4298 = vsel %vm166, %v4286, 0
  %4300 = vmatpush.msra.mxu0 0.0
  %4301 = vmatpush.msra.mxu0 0.0
  %4302 = vmatpush.msra.mxu0 0.0
  %4303 = vmatpush.msra.mxu0 0.0
  %4304 = vmatpush.msra.mxu0 0.0
  %4305 = vmatpush.msra.mxu0 0.0
  %4306 = vmatpush.msra.mxu0 0.0
  %4307 = vmatpush.msra.mxu0 0.0
  %4308 = vmatpush.msra.mxu0 0.0
  %4309 = vmatpush.msra.mxu0 0.0
  %4310 = vmatpush.msra.mxu0 0.0
  %4311 = vmatpush.msra.mxu0 0.0
  %4312 = vmatpush.msra.mxu0 %v92
  %4313 = vmatpush.msra.mxu0 %v91
  %4314 = vmatpush.msra.mxu0 %v90
  %4315 = vmatpush.msra.mxu0 %v89
  %4316 = vmatmul.f32.gmra.mxu0 %v4289
  %v4317 = vpop.f32.mrf.mxu0
  %v4318 = vadd.f32 0.0, %v4317
  %4319 = vmatmul.f32.gmra.mxu0 %v4292
  %v4320 = vpop.f32.mrf.mxu0
  %v4321 = vadd.f32 0.0, %v4320
  %4322 = vmatmul.f32.gmra.mxu0 %v4295
  %v4323 = vpop.f32.mrf.mxu0
  %v4324 = vadd.f32 0.0, %v4323
  %4325 = vmatmul.f32.gmra.mxu0 %v4298
  %v4326 = vpop.f32.mrf.mxu0
  %v4327 = vadd.f32 0.0, %v4326
  %4328 = vdwg.mxu0
  %v4329 = vsub.f32 %v4255, %v4318
  %v4330 = vsub.f32 %v4256, %v4321
  %v4331 = vsub.f32 %v4257, %v4324
  %v4332 = vsub.f32 %v4258, %v4327
  %v4333 = vmul.f32 %v4329, %v4329
  %v4334 = vmul.f32 %v4330, %v4330
  %v4335 = vmul.f32 %v4331, %v4331
  %v4336 = vmul.f32 %v4332, %v4332
  %4337 = vmatpush.msra.mxu0 0.0
  %4338 = vmatpush.msra.mxu0 0.0
  %4339 = vmatpush.msra.mxu0 0.0
  %4340 = vmatpush.msra.mxu0 0.0
  %4341 = vmatpush.msra.mxu0 0.0
  %4342 = vmatpush.msra.mxu0 0.0
  %4343 = vmatpush.msra.mxu0 0.0
  %4344 = vmatpush.msra.mxu0 0.0
  %4345 = vmatpush.msra.mxu0 0.0
  %4346 = vmatpush.msra.mxu0 0.0
  %4347 = vmatpush.msra.mxu0 0.0
  %4348 = vmatpush.msra.mxu0 0.0
  %4349 = vmatpush.msra.mxu0 %v4336
  %4350 = vmatpush.msra.mxu0 %v4335
  %4351 = vmatpush.msra.mxu0 %v4334
  %4352 = vmatpush.msra.mxu0 %v4333
  %4353 = vmatmul.f32.gmra.mxu0 %v382
  %v4354 = vpop.f32.mrf.mxu0
  %v4355 = vadd.f32 0.0, %v4354
  %4356 = vmatmul.f32.gmra.mxu0 %v385
  %v4357 = vpop.f32.mrf.mxu0
  %v4358 = vadd.f32 0.0, %v4357
  %4359 = vmatmul.f32.gmra.mxu0 %v388
  %v4360 = vpop.f32.mrf.mxu0
  %v4361 = vadd.f32 0.0, %v4360
  %4362 = vmatmul.f32.gmra.mxu0 %v391
  %v4363 = vpop.f32.mrf.mxu0
  %v4364 = vadd.f32 0.0, %v4363
  %4365 = vdwg.mxu0
  %v4367 = vsel %vm166, %v4355, 0
  %v4370 = vsel %vm166, %v4358, 0
  %v4373 = vsel %vm166, %v4361, 0
  %v4376 = vsel %vm166, %v4364, 0
  %4378 = vmatpush.msra.mxu0 0.0
  %4379 = vmatpush.msra.mxu0 0.0
  %4380 = vmatpush.msra.mxu0 0.0
  %4381 = vmatpush.msra.mxu0 0.0
  %4382 = vmatpush.msra.mxu0 0.0
  %4383 = vmatpush.msra.mxu0 0.0
  %4384 = vmatpush.msra.mxu0 0.0
  %4385 = vmatpush.msra.mxu0 0.0
  %4386 = vmatpush.msra.mxu0 0.0
  %4387 = vmatpush.msra.mxu0 0.0
  %4388 = vmatpush.msra.mxu0 0.0
  %4389 = vmatpush.msra.mxu0 0.0
  %4390 = vmatpush.msra.mxu0 %v92
  %4391 = vmatpush.msra.mxu0 %v91
  %4392 = vmatpush.msra.mxu0 %v90
  %4393 = vmatpush.msra.mxu0 %v89
  %4394 = vmatmul.f32.gmra.mxu0 %v4367
  %v4395 = vpop.f32.mrf.mxu0
  %v4396 = vadd.f32 1e-05, %v4395
  %4397 = vmatmul.f32.gmra.mxu0 %v4370
  %v4398 = vpop.f32.mrf.mxu0
  %v4399 = vadd.f32 1e-05, %v4398
  %4400 = vmatmul.f32.gmra.mxu0 %v4373
  %v4401 = vpop.f32.mrf.mxu0
  %v4402 = vadd.f32 1e-05, %v4401
  %4403 = vmatmul.f32.gmra.mxu0 %v4376
  %v4404 = vpop.f32.mrf.mxu0
  %v4405 = vadd.f32 1e-05, %v4404
  %4406 = vdwg.mxu0
  %v4407 = vrsqrt.pop %v4396
  %v4408 = vmul.f32 %v4407, %v4396
  %v4409 = vmul.f32 %v4408, %v4407
  %v4410 = vmul.f32 0.5, %v4409
  %v4411 = vsub.f32 1.5, %v4410
  %v4412 = vmul.f32 %v4407, %v4411
  %vm4413 = vweird.f32 %v4396
  %vm4414 = vweird.f32 %v4407
  %vm4415 = vmor %vm4413, %vm4414
  %v4416 = vsel %vm4415, %v4407, %v4412
  %v4417 = vrsqrt.pop %v4399
  %v4418 = vmul.f32 %v4417, %v4399
  %v4419 = vmul.f32 %v4418, %v4417
  %v4420 = vmul.f32 0.5, %v4419
  %v4421 = vsub.f32 1.5, %v4420
  %v4422 = vmul.f32 %v4417, %v4421
  %vm4423 = vweird.f32 %v4399
  %vm4424 = vweird.f32 %v4417
  %vm4425 = vmor %vm4423, %vm4424
  %v4426 = vsel %vm4425, %v4417, %v4422
  %v4427 = vrsqrt.pop %v4402
  %v4428 = vmul.f32 %v4427, %v4402
  %v4429 = vmul.f32 %v4428, %v4427
  %v4430 = vmul.f32 0.5, %v4429
  %v4431 = vsub.f32 1.5, %v4430
  %v4432 = vmul.f32 %v4427, %v4431
  %vm4433 = vweird.f32 %v4402
  %vm4434 = vweird.f32 %v4427
  %vm4435 = vmor %vm4433, %vm4434
  %v4436 = vsel %vm4435, %v4427, %v4432
  %v4437 = vrsqrt.pop %v4405
  %v4438 = vmul.f32 %v4437, %v4405
  %v4439 = vmul.f32 %v4438, %v4437
  %v4440 = vmul.f32 0.5, %v4439
  %v4441 = vsub.f32 1.5, %v4440
  %v4442 = vmul.f32 %v4437, %v4441
  %vm4443 = vweird.f32 %v4405
  %vm4444 = vweird.f32 %v4437
  %vm4445 = vmor %vm4443, %vm4444
  %v4446 = vsel %vm4445, %v4437, %v4442
  %v4447 = vmul.f32 %v4329, %v4416
  %v4448 = vmul.f32 %v4330, %v4426
  %v4449 = vmul.f32 %v4331, %v4436
  %v4450 = vmul.f32 %v4332, %v4446
  %v4451 = vld [vmem:[%s10 + $0x5] sm:$0x1]
  %v4452 = vperm.slane %v4451, 0
  %v4453 = vmul.f32 %v4447, %v4452
  %v4454 = vmul.f32 %v4448, %v4452
  %v4455 = vmul.f32 %v4449, %v4452
  %v4456 = vmul.f32 %v4450, %v4452
  %v4457 = vld [vmem:[%s11 + $0x5] sm:$0x1]
  %v4458 = vperm.slane %v4457, 0
  %v4459 = vadd.f32 %v4453, %v4458
  %v4460 = vadd.f32 %v4454, %v4458
  %v4461 = vadd.f32 %v4455, %v4458
  %v4462 = vadd.f32 %v4456, %v4458
  %v4463 = vmul.f32 %v4459, 0.5
  %v4464 = vmul.f32 %v4460, 0.5
  %v4465 = vmul.f32 %v4461, 0.5
  %v4466 = vmul.f32 %v4462, 0.5
  %v4467 = vmul.f32 %v4459, %v4459
  %v4468 = vmul.f32 %v4460, %v4460
  %v4469 = vmul.f32 %v4461, %v4461
  %v4470 = vmul.f32 %v4462, %v4462
  %v4471 = vmul.f32 %v4467, %v4459
  %v4472 = vmul.f32 %v4468, %v4460
  %v4473 = vmul.f32 %v4469, %v4461
  %v4474 = vmul.f32 %v4470, %v4462
  %v4475 = vmul.f32 %v4471, 0.044715
  %v4476 = vmul.f32 %v4472, 0.044715
  %v4477 = vmul.f32 %v4473, 0.044715
  %v4478 = vmul.f32 %v4474, 0.044715
  %v4479 = vadd.f32 %v4459, %v4475
  %v4480 = vadd.f32 %v4460, %v4476
  %v4481 = vadd.f32 %v4461, %v4477
  %v4482 = vadd.f32 %v4462, %v4478
  %v4483 = vmul.f32 %v4479, 0.7978846
  %v4484 = vmul.f32 %v4480, 0.7978846
  %v4485 = vmul.f32 %v4481, 0.7978846
  %v4486 = vmul.f32 %v4482, 0.7978846
  %v4487 = vtanh.pop %v4483
  %v4488 = vtanh.pop %v4484
  %v4489 = vtanh.pop %v4485
  %v4490 = vtanh.pop %v4486
  %v4491 = vadd.f32 %v4487, 1.0
  %v4492 = vadd.f32 %v4488, 1.0
  %v4493 = vadd.f32 %v4489, 1.0
  %v4494 = vadd.f32 %v4490, 1.0
  %v4495 = vmul.f32 %v4463, %v4491
  %v4496 = vmul.f32 %v4464, %v4492
  %v4497 = vmul.f32 %v4465, %v4493
  %v4498 = vmul.f32 %v4466, %v4494
  %v4499 = vadd.f32 %v4495, %v4051
  %v4500 = vadd.f32 %v4496, %v4052
  %v4501 = vadd.f32 %v4497, %v4053
  %v4502 = vadd.f32 %v4498, %v4054
  %v4503 = vmul.f32 %v4499, 0.33333334
  %v4504 = vmul.f32 %v4500, 0.33333334
  %v4505 = vmul.f32 %v4501, 0.33333334
  %v4506 = vmul.f32 %v4502, 0.33333334
  %s4507 = scalar_lea.vmem %s12, 32
  %v4508 = vld [vmem:[%s4507] sm:$0xff]
  %v4509 = vld [vmem:[%s4507 + $0x8] sm:$0xff]
  %v4510 = vld [vmem:[%s4507 + $0x10] sm:$0xff]
  %v4511 = vld [vmem:[%s4507 + $0x18] sm:$0xff]
  %v4512 = vld [vmem:[%s13 + $0x1] sm:$0x1]
  %v4513 = vperm.slane %v4512, 0
  %v4515 = vsel %vm166, %v4503, 0
  %v4518 = vsel %vm166, %v4504, 0
  %v4521 = vsel %vm166, %v4505, 0
  %v4524 = vsel %vm166, %v4506, 0
  %4526 = vmatpush.msra.mxu0 0.0
  %4527 = vmatpush.msra.mxu0 0.0
  %4528 = vmatpush.msra.mxu0 0.0
  %4529 = vmatpush.msra.mxu0 0.0
  %4530 = vmatpush.msra.mxu0 0.0
  %4531 = vmatpush.msra.mxu0 0.0
  %4532 = vmatpush.msra.mxu0 0.0
  %4533 = vmatpush.msra.mxu0 0.0
  %4534 = vmatpush.msra.mxu0 0.0
  %4535 = vmatpush.msra.mxu0 0.0
  %4536 = vmatpush.msra.mxu0 0.0
  %4537 = vmatpush.msra.mxu0 0.0
  %4538 = vmatpush.msra.mxu0 %v4511
  %4539 = vmatpush.msra.mxu0 %v4510
  %4540 = vmatpush.msra.mxu0 %v4509
  %4541 = vmatpush.msra.mxu0 %v4508
  %4542 = vmatmul.f32.gmra.mxu0 %v4515
  %v4543 = vpop.f32.mrf.mxu0
  %v4544 = vadd.f32 %v4513, %v4543
  %4545 = vmatmul.f32.gmra.mxu0 %v4518
  %v4546 = vpop.f32.mrf.mxu0
  %v4547 = vadd.f32 %v4513, %v4546
  %4548 = vmatmul.f32.gmra.mxu0 %v4521
  %v4549 = vpop.f32.mrf.mxu0
  %v4550 = vadd.f32 %v4513, %v4549
  %4551 = vmatmul.f32.gmra.mxu0 %v4524
  %v4552 = vpop.f32.mrf.mxu0
  %v4553 = vadd.f32 %v4513, %v4552
  %4554 = vdwg.mxu0
  %s4555 = scalar_lea.vmem %s14, 32
  %v4556 = vld [vmem:[%s4555] sm:$0xff]
  %v4557 = vld [vmem:[%s4555 + $0x8] sm:$0xff]
  %v4558 = vld [vmem:[%s4555 + $0x10] sm:$0xff]
  %v4559 = vld [vmem:[%s4555 + $0x18] sm:$0xff]
  %4562 = vrot.lane.b32.xlu0 %v4544, 96
  %v4563 = vpop.permute.xlu0 %4562
  %4564 = vrot.lane.b32.xlu0 %v4547, 96
  %v4565 = vpop.permute.xlu0 %4564
  %v4566 = vsel %vm1594, %v4544, 0
  %v4568 = vsel %vm1594, %v4547, 0
  %v4570 = vsel %vm1594, %v4563, 0
  %v4572 = vsel %vm1594, %v4565, 0
  %4574 = vmatpush.xpose.msra.mxu0 0.0
  %4575 = vmatpush.xpose.msra.mxu0 0.0
  %4576 = vmatpush.xpose.msra.mxu0 0.0
  %4577 = vmatpush.xpose.msra.mxu0 0.0
  %4578 = vmatpush.xpose.msra.mxu0 0.0
  %4579 = vmatpush.xpose.msra.mxu0 0.0
  %4580 = vmatpush.xpose.msra.mxu0 0.0
  %4581 = vmatpush.xpose.msra.mxu0 0.0
  %4582 = vmatpush.xpose.msra.mxu0 0.0
  %4583 = vmatpush.xpose.msra.mxu0 0.0
  %4584 = vmatpush.xpose.msra.mxu0 0.0
  %4585 = vmatpush.xpose.msra.mxu0 0.0
  %4586 = vmatpush.xpose.msra.mxu0 0.0
  %4587 = vmatpush.xpose.msra.mxu0 0.0
  %4588 = vmatpush.xpose.msra.mxu0 %v4572
  %4589 = vmatpush.xpose.msra.mxu0 %v4570
  %4590 = vmatmul.f32.gmra.mxu0 %v4566
  %v4591 = vpop.f32.mrf.mxu0
  %v4592 = vadd.f32 0.0, %v4591
  %4593 = vmatmul.f32.gmra.mxu0 %v4568
  %v4594 = vpop.f32.mrf.mxu0
  %v4595 = vadd.f32 0.0, %v4594
  %4596 = vdwg.mxu0
  %v4597 = vmul.f32 %v4592, 0.35355338
  %v4598 = vmul.f32 %v4595, 0.35355338
  %v4599 = vadd.f32 %v4597, %v1628
  %v4600 = vadd.f32 %v4598, %v1628
  %v4601 = vsel %vm1631, %v4599, -inf
  %4602 = vmax.xlane.f32.xlu0 %v4601
  %v4603 = vpop.xlane.xlu0 %4602
  %v4604 = vsel %vm1631, %v4600, -inf
  %4605 = vmax.xlane.f32.xlu0 %v4604
  %v4606 = vpop.xlane.xlu0 %4605
  %v4607 = vsub.f32 %v4599, %v4603
  %v4608 = vsub.f32 %v4600, %v4606
  %v4609 = vmul.f32 %v4607, 1.442695
  %v4610 = vpow.pop %v4609
  %v4611 = vmul.f32 %v4608, 1.442695
  %v4612 = vpow.pop %v4611
  %v4613 = vsel %vm1631, %v4610, 0.0
  %4614 = vadd.xlane.f32.xlu0 %v4613
  %v4615 = vpop.xlane.xlu0 %4614
  %v4616 = vsel %vm1631, %v4612, 0.0
  %4617 = vadd.xlane.f32.xlu0 %v4616
  %v4618 = vpop.xlane.xlu0 %4617
  %v4619 = vrcp.pop %v4615
  %v4620 = vmul.f32 %v4615, %v4619
  %v4621 = vsub.f32 1.0, %v4620
  %v4622 = vmul.f32 %v4619, %v4621
  %v4623 = vadd.f32 %v4619, %v4622
  %vm4624 = vweird.f32 %v4615
  %vm4625 = vweird.f32 %v4619
  %vm4626 = vmor %vm4624, %vm4625
  %v4627 = vsel %vm4626, %v4619, %v4623
  %v4628 = vand.u32 2147483647, %v4615
  %vm4629 = vcmp.eq.f32.partialorder %v4628, 8.507059e+37
  %v4630 = vand.u32 %v4615, 2147483648
  %v4631 = vor.u32 1.1754944e-38, %v4630
  %v4632 = vsel %vm4629, %v4631, %v4627
  %v4633 = vmul.f32 %v4610, %v4632
  %v4634 = vrcp.pop %v4618
  %v4635 = vmul.f32 %v4618, %v4634
  %v4636 = vsub.f32 1.0, %v4635
  %v4637 = vmul.f32 %v4634, %v4636
  %v4638 = vadd.f32 %v4634, %v4637
  %vm4639 = vweird.f32 %v4618
  %vm4640 = vweird.f32 %v4634
  %vm4641 = vmor %vm4639, %vm4640
  %v4642 = vsel %vm4641, %v4634, %v4638
  %v4643 = vand.u32 2147483647, %v4618
  %vm4644 = vcmp.eq.f32.partialorder %v4643, 8.507059e+37
  %v4645 = vand.u32 %v4618, 2147483648
  %v4646 = vor.u32 1.1754944e-38, %v4645
  %v4647 = vsel %vm4644, %v4646, %v4642
  %v4648 = vmul.f32 %v4612, %v4647
  %4649 = vrot.lane.b32.xlu0 %v4544, 64
  %v4650 = vpop.permute.xlu0 %4649
  %4651 = vrot.lane.b32.xlu0 %v4547, 64
  %v4652 = vpop.permute.xlu0 %4651
  %v4656 = vsel %vm1631, %v4633, 0
  %v4659 = vsel %vm1631, %v4648, 0
  %4661 = vmatpush.msra.mxu0 0.0
  %4662 = vmatpush.msra.mxu0 0.0
  %4663 = vmatpush.msra.mxu0 0.0
  %4664 = vmatpush.msra.mxu0 0.0
  %4665 = vmatpush.msra.mxu0 0.0
  %4666 = vmatpush.msra.mxu0 0.0
  %4667 = vmatpush.msra.mxu0 0.0
  %4668 = vmatpush.msra.mxu0 0.0
  %4669 = vmatpush.msra.mxu0 0.0
  %4670 = vmatpush.msra.mxu0 0.0
  %4671 = vmatpush.msra.mxu0 0.0
  %4672 = vmatpush.msra.mxu0 0.0
  %4673 = vmatpush.msra.mxu0 0.0
  %4674 = vmatpush.msra.mxu0 0.0
  %4675 = vmatpush.msra.mxu0 %v4652
  %4676 = vmatpush.msra.mxu0 %v4650
  %4677 = vmatmul.f32.gmra.mxu0 %v4656
  %v4678 = vpop.f32.mrf.mxu0
  %v4679 = vadd.f32 0.0, %v4678
  %4680 = vmatmul.f32.gmra.mxu0 %v4659
  %v4681 = vpop.f32.mrf.mxu0
  %v4682 = vadd.f32 0.0, %v4681
  %4683 = vdwg.mxu0
  %4684 = vrot.lane.b32.xlu0 %v4544, 120
  %v4685 = vpop.permute.xlu0 %4684
  %4686 = vrot.lane.b32.xlu0 %v4547, 120
  %v4687 = vpop.permute.xlu0 %4686
  %4688 = vrot.lane.b32.xlu0 %v4544, 88
  %v4689 = vpop.permute.xlu0 %4688
  %4690 = vrot.lane.b32.xlu0 %v4547, 88
  %v4691 = vpop.permute.xlu0 %4690
  %v4692 = vsel %vm1594, %v4685, 0
  %v4694 = vsel %vm1594, %v4687, 0
  %v4696 = vsel %vm1594, %v4689, 0
  %v4698 = vsel %vm1594, %v4691, 0
  %4700 = vmatpush.xpose.msra.mxu0 0.0
  %4701 = vmatpush.xpose.msra.mxu0 0.0
  %4702 = vmatpush.xpose.msra.mxu0 0.0
  %4703 = vmatpush.xpose.msra.mxu0 0.0
  %4704 = vmatpush.xpose.msra.mxu0 0.0
  %4705 = vmatpush.xpose.msra.mxu0 0.0
  %4706 = vmatpush.xpose.msra.mxu0 0.0
  %4707 = vmatpush.xpose.msra.mxu0 0.0
  %4708 = vmatpush.xpose.msra.mxu0 0.0
  %4709 = vmatpush.xpose.msra.mxu0 0.0
  %4710 = vmatpush.xpose.msra.mxu0 0.0
  %4711 = vmatpush.xpose.msra.mxu0 0.0
  %4712 = vmatpush.xpose.msra.mxu0 0.0
  %4713 = vmatpush.xpose.msra.mxu0 0.0
  %4714 = vmatpush.xpose.msra.mxu0 %v4698
  %4715 = vmatpush.xpose.msra.mxu0 %v4696
  %4716 = vmatmul.f32.gmra.mxu0 %v4692
  %v4717 = vpop.f32.mrf.mxu0
  %v4718 = vadd.f32 0.0, %v4717
  %4719 = vmatmul.f32.gmra.mxu0 %v4694
  %v4720 = vpop.f32.mrf.mxu0
  %v4721 = vadd.f32 0.0, %v4720
  %4722 = vdwg.mxu0
  %v4723 = vmul.f32 %v4718, 0.35355338
  %v4724 = vmul.f32 %v4721, 0.35355338
  %v4725 = vadd.f32 %v4723, %v1628
  %v4726 = vadd.f32 %v4724, %v1628
  %v4727 = vsel %vm1631, %v4725, -inf
  %4728 = vmax.xlane.f32.xlu0 %v4727
  %v4729 = vpop.xlane.xlu0 %4728
  %v4730 = vsel %vm1631, %v4726, -inf
  %4731 = vmax.xlane.f32.xlu0 %v4730
  %v4732 = vpop.xlane.xlu0 %4731
  %v4733 = vsub.f32 %v4725, %v4729
  %v4734 = vsub.f32 %v4726, %v4732
  %v4735 = vmul.f32 %v4733, 1.442695
  %v4736 = vpow.pop %v4735
  %v4737 = vmul.f32 %v4734, 1.442695
  %v4738 = vpow.pop %v4737
  %v4739 = vsel %vm1631, %v4736, 0.0
  %4740 = vadd.xlane.f32.xlu0 %v4739
  %v4741 = vpop.xlane.xlu0 %4740
  %v4742 = vsel %vm1631, %v4738, 0.0
  %4743 = vadd.xlane.f32.xlu0 %v4742
  %v4744 = vpop.xlane.xlu0 %4743
  %v4745 = vrcp.pop %v4741
  %v4746 = vmul.f32 %v4741, %v4745
  %v4747 = vsub.f32 1.0, %v4746
  %v4748 = vmul.f32 %v4745, %v4747
  %v4749 = vadd.f32 %v4745, %v4748
  %vm4750 = vweird.f32 %v4741
  %vm4751 = vweird.f32 %v4745
  %vm4752 = vmor %vm4750, %vm4751
  %v4753 = vsel %vm4752, %v4745, %v4749
  %v4754 = vand.u32 2147483647, %v4741
  %vm4755 = vcmp.eq.f32.partialorder %v4754, 8.507059e+37
  %v4756 = vand.u32 %v4741, 2147483648
  %v4757 = vor.u32 1.1754944e-38, %v4756
  %v4758 = vsel %vm4755, %v4757, %v4753
  %v4759 = vmul.f32 %v4736, %v4758
  %v4760 = vrcp.pop %v4744
  %v4761 = vmul.f32 %v4744, %v4760
  %v4762 = vsub.f32 1.0, %v4761
  %v4763 = vmul.f32 %v4760, %v4762
  %v4764 = vadd.f32 %v4760, %v4763
  %vm4765 = vweird.f32 %v4744
  %vm4766 = vweird.f32 %v4760
  %vm4767 = vmor %vm4765, %vm4766
  %v4768 = vsel %vm4767, %v4760, %v4764
  %v4769 = vand.u32 2147483647, %v4744
  %vm4770 = vcmp.eq.f32.partialorder %v4769, 8.507059e+37
  %v4771 = vand.u32 %v4744, 2147483648
  %v4772 = vor.u32 1.1754944e-38, %v4771
  %v4773 = vsel %vm4770, %v4772, %v4768
  %v4774 = vmul.f32 %v4738, %v4773
  %4775 = vrot.lane.b32.xlu0 %v4544, 56
  %v4776 = vpop.permute.xlu0 %4775
  %4777 = vrot.lane.b32.xlu0 %v4547, 56
  %v4778 = vpop.permute.xlu0 %4777
  %v4782 = vsel %vm1631, %v4759, 0
  %v4785 = vsel %vm1631, %v4774, 0
  %4787 = vmatpush.msra.mxu0 0.0
  %4788 = vmatpush.msra.mxu0 0.0
  %4789 = vmatpush.msra.mxu0 0.0
  %4790 = vmatpush.msra.mxu0 0.0
  %4791 = vmatpush.msra.mxu0 0.0
  %4792 = vmatpush.msra.mxu0 0.0
  %4793 = vmatpush.msra.mxu0 0.0
  %4794 = vmatpush.msra.mxu0 0.0
  %4795 = vmatpush.msra.mxu0 0.0
  %4796 = vmatpush.msra.mxu0 0.0
  %4797 = vmatpush.msra.mxu0 0.0
  %4798 = vmatpush.msra.mxu0 0.0
  %4799 = vmatpush.msra.mxu0 0.0
  %4800 = vmatpush.msra.mxu0 0.0
  %4801 = vmatpush.msra.mxu0 %v4778
  %4802 = vmatpush.msra.mxu0 %v4776
  %4803 = vmatmul.f32.gmra.mxu0 %v4782
  %v4804 = vpop.f32.mrf.mxu0
  %v4805 = vadd.f32 0.0, %v4804
  %4806 = vmatmul.f32.gmra.mxu0 %v4785
  %v4807 = vpop.f32.mrf.mxu0
  %v4808 = vadd.f32 0.0, %v4807
  %4809 = vdwg.mxu0
  %v4811 = vsel %vm1594, %v4805, 0
  %v4814 = vsel %vm1594, %v4808, 0
  %4816 = vmatpush.msra.mxu0 0.0
  %4817 = vmatpush.msra.mxu0 0.0
  %4818 = vmatpush.msra.mxu0 0.0
  %4819 = vmatpush.msra.mxu0 0.0
  %4820 = vmatpush.msra.mxu0 0.0
  %4821 = vmatpush.msra.mxu0 0.0
  %4822 = vmatpush.msra.mxu0 0.0
  %4823 = vmatpush.msra.mxu0 0.0
  %4824 = vmatpush.msra.mxu0 0.0
  %4825 = vmatpush.msra.mxu0 0.0
  %4826 = vmatpush.msra.mxu0 0.0
  %4827 = vmatpush.msra.mxu0 0.0
  %4828 = vmatpush.msra.mxu0 0.0
  %4829 = vmatpush.msra.mxu0 0.0
  %4830 = vmatpush.msra.mxu0 0.0
  %4831 = vmatpush.msra.mxu0 %v4557
  %4832 = vmatmul.f32.gmra.mxu0 %v4811
  %v4833 = vpop.f32.mrf.mxu0
  %v4834 = vadd.f32 0.0, %v4833
  %4835 = vmatmul.f32.gmra.mxu0 %v4814
  %v4836 = vpop.f32.mrf.mxu0
  %v4837 = vadd.f32 0.0, %v4836
  %4838 = vdwg.mxu0
  %v4840 = vsel %vm1594, %v4679, 0
  %v4843 = vsel %vm1594, %v4682, 0
  %4845 = vmatpush.msra.mxu0 0.0
  %4846 = vmatpush.msra.mxu0 0.0
  %4847 = vmatpush.msra.mxu0 0.0
  %4848 = vmatpush.msra.mxu0 0.0
  %4849 = vmatpush.msra.mxu0 0.0
  %4850 = vmatpush.msra.mxu0 0.0
  %4851 = vmatpush.msra.mxu0 0.0
  %4852 = vmatpush.msra.mxu0 0.0
  %4853 = vmatpush.msra.mxu0 0.0
  %4854 = vmatpush.msra.mxu0 0.0
  %4855 = vmatpush.msra.mxu0 0.0
  %4856 = vmatpush.msra.mxu0 0.0
  %4857 = vmatpush.msra.mxu0 0.0
  %4858 = vmatpush.msra.mxu0 0.0
  %4859 = vmatpush.msra.mxu0 0.0
  %4860 = vmatpush.msra.mxu0 %v4556
  %4861 = vmatmul.f32.gmra.mxu0 %v4840
  %v4862 = vpop.f32.mrf.mxu0
  %v4863 = vadd.f32 %v4834, %v4862
  %4864 = vmatmul.f32.gmra.mxu0 %v4843
  %v4865 = vpop.f32.mrf.mxu0
  %v4866 = vadd.f32 %v4837, %v4865
  %4867 = vdwg.mxu0
  %4868 = vrot.lane.b32.xlu0 %v4544, 112
  %v4869 = vpop.permute.xlu0 %4868
  %4870 = vrot.lane.b32.xlu0 %v4547, 112
  %v4871 = vpop.permute.xlu0 %4870
  %4872 = vrot.lane.b32.xlu0 %v4544, 80
  %v4873 = vpop.permute.xlu0 %4872
  %4874 = vrot.lane.b32.xlu0 %v4547, 80
  %v4875 = vpop.permute.xlu0 %4874
  %v4876 = vsel %vm1594, %v4869, 0
  %v4878 = vsel %vm1594, %v4871, 0
  %v4880 = vsel %vm1594, %v4873, 0
  %v4882 = vsel %vm1594, %v4875, 0
  %4884 = vmatpush.xpose.msra.mxu0 0.0
  %4885 = vmatpush.xpose.msra.mxu0 0.0
  %4886 = vmatpush.xpose.msra.mxu0 0.0
  %4887 = vmatpush.xpose.msra.mxu0 0.0
  %4888 = vmatpush.xpose.msra.mxu0 0.0
  %4889 = vmatpush.xpose.msra.mxu0 0.0
  %4890 = vmatpush.xpose.msra.mxu0 0.0
  %4891 = vmatpush.xpose.msra.mxu0 0.0
  %4892 = vmatpush.xpose.msra.mxu0 0.0
  %4893 = vmatpush.xpose.msra.mxu0 0.0
  %4894 = vmatpush.xpose.msra.mxu0 0.0
  %4895 = vmatpush.xpose.msra.mxu0 0.0
  %4896 = vmatpush.xpose.msra.mxu0 0.0
  %4897 = vmatpush.xpose.msra.mxu0 0.0
  %4898 = vmatpush.xpose.msra.mxu0 %v4882
  %4899 = vmatpush.xpose.msra.mxu0 %v4880
  %4900 = vmatmul.f32.gmra.mxu0 %v4876
  %v4901 = vpop.f32.mrf.mxu0
  %v4902 = vadd.f32 0.0, %v4901
  %4903 = vmatmul.f32.gmra.mxu0 %v4878
  %v4904 = vpop.f32.mrf.mxu0
  %v4905 = vadd.f32 0.0, %v4904
  %4906 = vdwg.mxu0
  %v4907 = vmul.f32 %v4902, 0.35355338
  %v4908 = vmul.f32 %v4905, 0.35355338
  %v4909 = vadd.f32 %v4907, %v1628
  %v4910 = vadd.f32 %v4908, %v1628
  %v4911 = vsel %vm1631, %v4909, -inf
  %4912 = vmax.xlane.f32.xlu0 %v4911
  %v4913 = vpop.xlane.xlu0 %4912
  %v4914 = vsel %vm1631, %v4910, -inf
  %4915 = vmax.xlane.f32.xlu0 %v4914
  %v4916 = vpop.xlane.xlu0 %4915
  %v4917 = vsub.f32 %v4909, %v4913
  %v4918 = vsub.f32 %v4910, %v4916
  %v4919 = vmul.f32 %v4917, 1.442695
  %v4920 = vpow.pop %v4919
  %v4921 = vmul.f32 %v4918, 1.442695
  %v4922 = vpow.pop %v4921
  %v4923 = vsel %vm1631, %v4920, 0.0
  %4924 = vadd.xlane.f32.xlu0 %v4923
  %v4925 = vpop.xlane.xlu0 %4924
  %v4926 = vsel %vm1631, %v4922, 0.0
  %4927 = vadd.xlane.f32.xlu0 %v4926
  %v4928 = vpop.xlane.xlu0 %4927
  %v4929 = vrcp.pop %v4925
  %v4930 = vmul.f32 %v4925, %v4929
  %v4931 = vsub.f32 1.0, %v4930
  %v4932 = vmul.f32 %v4929, %v4931
  %v4933 = vadd.f32 %v4929, %v4932
  %vm4934 = vweird.f32 %v4925
  %vm4935 = vweird.f32 %v4929
  %vm4936 = vmor %vm4934, %vm4935
  %v4937 = vsel %vm4936, %v4929, %v4933
  %v4938 = vand.u32 2147483647, %v4925
  %vm4939 = vcmp.eq.f32.partialorder %v4938, 8.507059e+37
  %v4940 = vand.u32 %v4925, 2147483648
  %v4941 = vor.u32 1.1754944e-38, %v4940
  %v4942 = vsel %vm4939, %v4941, %v4937
  %v4943 = vmul.f32 %v4920, %v4942
  %v4944 = vrcp.pop %v4928
  %v4945 = vmul.f32 %v4928, %v4944
  %v4946 = vsub.f32 1.0, %v4945
  %v4947 = vmul.f32 %v4944, %v4946
  %v4948 = vadd.f32 %v4944, %v4947
  %vm4949 = vweird.f32 %v4928
  %vm4950 = vweird.f32 %v4944
  %vm4951 = vmor %vm4949, %vm4950
  %v4952 = vsel %vm4951, %v4944, %v4948
  %v4953 = vand.u32 2147483647, %v4928
  %vm4954 = vcmp.eq.f32.partialorder %v4953, 8.507059e+37
  %v4955 = vand.u32 %v4928, 2147483648
  %v4956 = vor.u32 1.1754944e-38, %v4955
  %v4957 = vsel %vm4954, %v4956, %v4952
  %v4958 = vmul.f32 %v4922, %v4957
  %4959 = vrot.lane.b32.xlu0 %v4544, 48
  %v4960 = vpop.permute.xlu0 %4959
  %4961 = vrot.lane.b32.xlu0 %v4547, 48
  %v4962 = vpop.permute.xlu0 %4961
  %v4966 = vsel %vm1631, %v4943, 0
  %v4969 = vsel %vm1631, %v4958, 0
  %4971 = vmatpush.msra.mxu0 0.0
  %4972 = vmatpush.msra.mxu0 0.0
  %4973 = vmatpush.msra.mxu0 0.0
  %4974 = vmatpush.msra.mxu0 0.0
  %4975 = vmatpush.msra.mxu0 0.0
  %4976 = vmatpush.msra.mxu0 0.0
  %4977 = vmatpush.msra.mxu0 0.0
  %4978 = vmatpush.msra.mxu0 0.0
  %4979 = vmatpush.msra.mxu0 0.0
  %4980 = vmatpush.msra.mxu0 0.0
  %4981 = vmatpush.msra.mxu0 0.0
  %4982 = vmatpush.msra.mxu0 0.0
  %4983 = vmatpush.msra.mxu0 0.0
  %4984 = vmatpush.msra.mxu0 0.0
  %4985 = vmatpush.msra.mxu0 %v4962
  %4986 = vmatpush.msra.mxu0 %v4960
  %4987 = vmatmul.f32.gmra.mxu0 %v4966
  %v4988 = vpop.f32.mrf.mxu0
  %v4989 = vadd.f32 0.0, %v4988
  %4990 = vmatmul.f32.gmra.mxu0 %v4969
  %v4991 = vpop.f32.mrf.mxu0
  %v4992 = vadd.f32 0.0, %v4991
  %4993 = vdwg.mxu0
  %v4995 = vsel %vm1594, %v4989, 0
  %v4998 = vsel %vm1594, %v4992, 0
  %5000 = vmatpush.msra.mxu0 0.0
  %5001 = vmatpush.msra.mxu0 0.0
  %5002 = vmatpush.msra.mxu0 0.0
  %5003 = vmatpush.msra.mxu0 0.0
  %5004 = vmatpush.msra.mxu0 0.0
  %5005 = vmatpush.msra.mxu0 0.0
  %5006 = vmatpush.msra.mxu0 0.0
  %5007 = vmatpush.msra.mxu0 0.0
  %5008 = vmatpush.msra.mxu0 0.0
  %5009 = vmatpush.msra.mxu0 0.0
  %5010 = vmatpush.msra.mxu0 0.0
  %5011 = vmatpush.msra.mxu0 0.0
  %5012 = vmatpush.msra.mxu0 0.0
  %5013 = vmatpush.msra.mxu0 0.0
  %5014 = vmatpush.msra.mxu0 0.0
  %5015 = vmatpush.msra.mxu0 %v4558
  %5016 = vmatmul.f32.gmra.mxu0 %v4995
  %v5017 = vpop.f32.mrf.mxu0
  %v5018 = vadd.f32 0.0, %v5017
  %5019 = vmatmul.f32.gmra.mxu0 %v4998
  %v5020 = vpop.f32.mrf.mxu0
  %v5021 = vadd.f32 0.0, %v5020
  %5022 = vdwg.mxu0
  %v5023 = vadd.f32 %v4863, %v5018
  %v5024 = vadd.f32 %v4866, %v5021
  %5025 = vrot.lane.b32.xlu0 %v4544, 104
  %v5026 = vpop.permute.xlu0 %5025
  %5027 = vrot.lane.b32.xlu0 %v4547, 104
  %v5028 = vpop.permute.xlu0 %5027
  %5029 = vrot.lane.b32.xlu0 %v4544, 72
  %v5030 = vpop.permute.xlu0 %5029
  %5031 = vrot.lane.b32.xlu0 %v4547, 72
  %v5032 = vpop.permute.xlu0 %5031
  %v5033 = vsel %vm1594, %v5026, 0
  %v5035 = vsel %vm1594, %v5028, 0
  %v5037 = vsel %vm1594, %v5030, 0
  %v5039 = vsel %vm1594, %v5032, 0
  %5041 = vmatpush.xpose.msra.mxu0 0.0
  %5042 = vmatpush.xpose.msra.mxu0 0.0
  %5043 = vmatpush.xpose.msra.mxu0 0.0
  %5044 = vmatpush.xpose.msra.mxu0 0.0
  %5045 = vmatpush.xpose.msra.mxu0 0.0
  %5046 = vmatpush.xpose.msra.mxu0 0.0
  %5047 = vmatpush.xpose.msra.mxu0 0.0
  %5048 = vmatpush.xpose.msra.mxu0 0.0
  %5049 = vmatpush.xpose.msra.mxu0 0.0
  %5050 = vmatpush.xpose.msra.mxu0 0.0
  %5051 = vmatpush.xpose.msra.mxu0 0.0
  %5052 = vmatpush.xpose.msra.mxu0 0.0
  %5053 = vmatpush.xpose.msra.mxu0 0.0
  %5054 = vmatpush.xpose.msra.mxu0 0.0
  %5055 = vmatpush.xpose.msra.mxu0 %v5039
  %5056 = vmatpush.xpose.msra.mxu0 %v5037
  %5057 = vmatmul.f32.gmra.mxu0 %v5033
  %v5058 = vpop.f32.mrf.mxu0
  %v5059 = vadd.f32 0.0, %v5058
  %5060 = vmatmul.f32.gmra.mxu0 %v5035
  %v5061 = vpop.f32.mrf.mxu0
  %v5062 = vadd.f32 0.0, %v5061
  %5063 = vdwg.mxu0
  %v5064 = vmul.f32 %v5059, 0.35355338
  %v5065 = vmul.f32 %v5062, 0.35355338
  %v5066 = vadd.f32 %v5064, %v1628
  %v5067 = vadd.f32 %v5065, %v1628
  %v5068 = vsel %vm1631, %v5066, -inf
  %5069 = vmax.xlane.f32.xlu0 %v5068
  %v5070 = vpop.xlane.xlu0 %5069
  %v5071 = vsel %vm1631, %v5067, -inf
  %5072 = vmax.xlane.f32.xlu0 %v5071
  %v5073 = vpop.xlane.xlu0 %5072
  %v5074 = vsub.f32 %v5066, %v5070
  %v5075 = vsub.f32 %v5067, %v5073
  %v5076 = vmul.f32 %v5074, 1.442695
  %v5077 = vpow.pop %v5076
  %v5078 = vmul.f32 %v5075, 1.442695
  %v5079 = vpow.pop %v5078
  %v5080 = vsel %vm1631, %v5077, 0.0
  %5081 = vadd.xlane.f32.xlu0 %v5080
  %v5082 = vpop.xlane.xlu0 %5081
  %v5083 = vsel %vm1631, %v5079, 0.0
  %5084 = vadd.xlane.f32.xlu0 %v5083
  %v5085 = vpop.xlane.xlu0 %5084
  %v5086 = vrcp.pop %v5082
  %v5087 = vmul.f32 %v5082, %v5086
  %v5088 = vsub.f32 1.0, %v5087
  %v5089 = vmul.f32 %v5086, %v5088
  %v5090 = vadd.f32 %v5086, %v5089
  %vm5091 = vweird.f32 %v5082
  %vm5092 = vweird.f32 %v5086
  %vm5093 = vmor %vm5091, %vm5092
  %v5094 = vsel %vm5093, %v5086, %v5090
  %v5095 = vand.u32 2147483647, %v5082
  %vm5096 = vcmp.eq.f32.partialorder %v5095, 8.507059e+37
  %v5097 = vand.u32 %v5082, 2147483648
  %v5098 = vor.u32 1.1754944e-38, %v5097
  %v5099 = vsel %vm5096, %v5098, %v5094
  %v5100 = vmul.f32 %v5077, %v5099
  %v5101 = vrcp.pop %v5085
  %v5102 = vmul.f32 %v5085, %v5101
  %v5103 = vsub.f32 1.0, %v5102
  %v5104 = vmul.f32 %v5101, %v5103
  %v5105 = vadd.f32 %v5101, %v5104
  %vm5106 = vweird.f32 %v5085
  %vm5107 = vweird.f32 %v5101
  %vm5108 = vmor %vm5106, %vm5107
  %v5109 = vsel %vm5108, %v5101, %v5105
  %v5110 = vand.u32 2147483647, %v5085
  %vm5111 = vcmp.eq.f32.partialorder %v5110, 8.507059e+37
  %v5112 = vand.u32 %v5085, 2147483648
  %v5113 = vor.u32 1.1754944e-38, %v5112
  %v5114 = vsel %vm5111, %v5113, %v5109
  %v5115 = vmul.f32 %v5079, %v5114
  %5116 = vrot.lane.b32.xlu0 %v4544, 40
  %v5117 = vpop.permute.xlu0 %5116
  %5118 = vrot.lane.b32.xlu0 %v4547, 40
  %v5119 = vpop.permute.xlu0 %5118
  %v5123 = vsel %vm1631, %v5100, 0
  %v5126 = vsel %vm1631, %v5115, 0
  %5128 = vmatpush.msra.mxu0 0.0
  %5129 = vmatpush.msra.mxu0 0.0
  %5130 = vmatpush.msra.mxu0 0.0
  %5131 = vmatpush.msra.mxu0 0.0
  %5132 = vmatpush.msra.mxu0 0.0
  %5133 = vmatpush.msra.mxu0 0.0
  %5134 = vmatpush.msra.mxu0 0.0
  %5135 = vmatpush.msra.mxu0 0.0
  %5136 = vmatpush.msra.mxu0 0.0
  %5137 = vmatpush.msra.mxu0 0.0
  %5138 = vmatpush.msra.mxu0 0.0
  %5139 = vmatpush.msra.mxu0 0.0
  %5140 = vmatpush.msra.mxu0 0.0
  %5141 = vmatpush.msra.mxu0 0.0
  %5142 = vmatpush.msra.mxu0 %v5119
  %5143 = vmatpush.msra.mxu0 %v5117
  %5144 = vmatmul.f32.gmra.mxu0 %v5123
  %v5145 = vpop.f32.mrf.mxu0
  %v5146 = vadd.f32 0.0, %v5145
  %5147 = vmatmul.f32.gmra.mxu0 %v5126
  %v5148 = vpop.f32.mrf.mxu0
  %v5149 = vadd.f32 0.0, %v5148
  %5150 = vdwg.mxu0
  %v5152 = vsel %vm1594, %v5146, 0
  %v5155 = vsel %vm1594, %v5149, 0
  %5157 = vmatpush.msra.mxu0 0.0
  %5158 = vmatpush.msra.mxu0 0.0
  %5159 = vmatpush.msra.mxu0 0.0
  %5160 = vmatpush.msra.mxu0 0.0
  %5161 = vmatpush.msra.mxu0 0.0
  %5162 = vmatpush.msra.mxu0 0.0
  %5163 = vmatpush.msra.mxu0 0.0
  %5164 = vmatpush.msra.mxu0 0.0
  %5165 = vmatpush.msra.mxu0 0.0
  %5166 = vmatpush.msra.mxu0 0.0
  %5167 = vmatpush.msra.mxu0 0.0
  %5168 = vmatpush.msra.mxu0 0.0
  %5169 = vmatpush.msra.mxu0 0.0
  %5170 = vmatpush.msra.mxu0 0.0
  %5171 = vmatpush.msra.mxu0 0.0
  %5172 = vmatpush.msra.mxu0 %v4559
  %5173 = vmatmul.f32.gmra.mxu0 %v5152
  %v5174 = vpop.f32.mrf.mxu0
  %v5175 = vadd.f32 0.0, %v5174
  %5176 = vmatmul.f32.gmra.mxu0 %v5155
  %v5177 = vpop.f32.mrf.mxu0
  %v5178 = vadd.f32 0.0, %v5177
  %5179 = vdwg.mxu0
  %v5180 = vadd.f32 %v5023, %v5175
  %v5181 = vadd.f32 %v5024, %v5178
  %5184 = vrot.lane.b32.xlu0 %v4550, 96
  %v5185 = vpop.permute.xlu0 %5184
  %5186 = vrot.lane.b32.xlu0 %v4553, 96
  %v5187 = vpop.permute.xlu0 %5186
  %v5188 = vsel %vm1594, %v4550, 0
  %v5190 = vsel %vm1594, %v4553, 0
  %v5192 = vsel %vm1594, %v5185, 0
  %v5194 = vsel %vm1594, %v5187, 0
  %5196 = vmatpush.xpose.msra.mxu0 0.0
  %5197 = vmatpush.xpose.msra.mxu0 0.0
  %5198 = vmatpush.xpose.msra.mxu0 0.0
  %5199 = vmatpush.xpose.msra.mxu0 0.0
  %5200 = vmatpush.xpose.msra.mxu0 0.0
  %5201 = vmatpush.xpose.msra.mxu0 0.0
  %5202 = vmatpush.xpose.msra.mxu0 0.0
  %5203 = vmatpush.xpose.msra.mxu0 0.0
  %5204 = vmatpush.xpose.msra.mxu0 0.0
  %5205 = vmatpush.xpose.msra.mxu0 0.0
  %5206 = vmatpush.xpose.msra.mxu0 0.0
  %5207 = vmatpush.xpose.msra.mxu0 0.0
  %5208 = vmatpush.xpose.msra.mxu0 0.0
  %5209 = vmatpush.xpose.msra.mxu0 0.0
  %5210 = vmatpush.xpose.msra.mxu0 %v5194
  %5211 = vmatpush.xpose.msra.mxu0 %v5192
  %5212 = vmatmul.f32.gmra.mxu0 %v5188
  %v5213 = vpop.f32.mrf.mxu0
  %v5214 = vadd.f32 0.0, %v5213
  %5215 = vmatmul.f32.gmra.mxu0 %v5190
  %v5216 = vpop.f32.mrf.mxu0
  %v5217 = vadd.f32 0.0, %v5216
  %5218 = vdwg.mxu0
  %v5219 = vmul.f32 %v5214, 0.35355338
  %v5220 = vmul.f32 %v5217, 0.35355338
  %v5221 = vadd.f32 %v5219, %v2252
  %v5222 = vadd.f32 %v5220, %v2252
  %v5223 = vsel %vm1631, %v5221, -inf
  %5224 = vmax.xlane.f32.xlu0 %v5223
  %v5225 = vpop.xlane.xlu0 %5224
  %v5226 = vsel %vm1631, %v5222, -inf
  %5227 = vmax.xlane.f32.xlu0 %v5226
  %v5228 = vpop.xlane.xlu0 %5227
  %v5229 = vsub.f32 %v5221, %v5225
  %v5230 = vsub.f32 %v5222, %v5228
  %v5231 = vmul.f32 %v5229, 1.442695
  %v5232 = vpow.pop %v5231
  %v5233 = vmul.f32 %v5230, 1.442695
  %v5234 = vpow.pop %v5233
  %v5235 = vsel %vm1631, %v5232, 0.0
  %5236 = vadd.xlane.f32.xlu0 %v5235
  %v5237 = vpop.xlane.xlu0 %5236
  %v5238 = vsel %vm1631, %v5234, 0.0
  %5239 = vadd.xlane.f32.xlu0 %v5238
  %v5240 = vpop.xlane.xlu0 %5239
  %v5241 = vrcp.pop %v5237
  %v5242 = vmul.f32 %v5237, %v5241
  %v5243 = vsub.f32 1.0, %v5242
  %v5244 = vmul.f32 %v5241, %v5243
  %v5245 = vadd.f32 %v5241, %v5244
  %vm5246 = vweird.f32 %v5237
  %vm5247 = vweird.f32 %v5241
  %vm5248 = vmor %vm5246, %vm5247
  %v5249 = vsel %vm5248, %v5241, %v5245
  %v5250 = vand.u32 2147483647, %v5237
  %vm5251 = vcmp.eq.f32.partialorder %v5250, 8.507059e+37
  %v5252 = vand.u32 %v5237, 2147483648
  %v5253 = vor.u32 1.1754944e-38, %v5252
  %v5254 = vsel %vm5251, %v5253, %v5249
  %v5255 = vmul.f32 %v5232, %v5254
  %v5256 = vrcp.pop %v5240
  %v5257 = vmul.f32 %v5240, %v5256
  %v5258 = vsub.f32 1.0, %v5257
  %v5259 = vmul.f32 %v5256, %v5258
  %v5260 = vadd.f32 %v5256, %v5259
  %vm5261 = vweird.f32 %v5240
  %vm5262 = vweird.f32 %v5256
  %vm5263 = vmor %vm5261, %vm5262
  %v5264 = vsel %vm5263, %v5256, %v5260
  %v5265 = vand.u32 2147483647, %v5240
  %vm5266 = vcmp.eq.f32.partialorder %v5265, 8.507059e+37
  %v5267 = vand.u32 %v5240, 2147483648
  %v5268 = vor.u32 1.1754944e-38, %v5267
  %v5269 = vsel %vm5266, %v5268, %v5264
  %v5270 = vmul.f32 %v5234, %v5269
  %5271 = vrot.lane.b32.xlu0 %v4550, 64
  %v5272 = vpop.permute.xlu0 %5271
  %5273 = vrot.lane.b32.xlu0 %v4553, 64
  %v5274 = vpop.permute.xlu0 %5273
  %v5278 = vsel %vm1631, %v5255, 0
  %v5281 = vsel %vm1631, %v5270, 0
  %5283 = vmatpush.msra.mxu0 0.0
  %5284 = vmatpush.msra.mxu0 0.0
  %5285 = vmatpush.msra.mxu0 0.0
  %5286 = vmatpush.msra.mxu0 0.0
  %5287 = vmatpush.msra.mxu0 0.0
  %5288 = vmatpush.msra.mxu0 0.0
  %5289 = vmatpush.msra.mxu0 0.0
  %5290 = vmatpush.msra.mxu0 0.0
  %5291 = vmatpush.msra.mxu0 0.0
  %5292 = vmatpush.msra.mxu0 0.0
  %5293 = vmatpush.msra.mxu0 0.0
  %5294 = vmatpush.msra.mxu0 0.0
  %5295 = vmatpush.msra.mxu0 0.0
  %5296 = vmatpush.msra.mxu0 0.0
  %5297 = vmatpush.msra.mxu0 %v5274
  %5298 = vmatpush.msra.mxu0 %v5272
  %5299 = vmatmul.f32.gmra.mxu0 %v5278
  %v5300 = vpop.f32.mrf.mxu0
  %v5301 = vadd.f32 0.0, %v5300
  %5302 = vmatmul.f32.gmra.mxu0 %v5281
  %v5303 = vpop.f32.mrf.mxu0
  %v5304 = vadd.f32 0.0, %v5303
  %5305 = vdwg.mxu0
  %5306 = vrot.lane.b32.xlu0 %v4550, 120
  %v5307 = vpop.permute.xlu0 %5306
  %5308 = vrot.lane.b32.xlu0 %v4553, 120
  %v5309 = vpop.permute.xlu0 %5308
  %5310 = vrot.lane.b32.xlu0 %v4550, 88
  %v5311 = vpop.permute.xlu0 %5310
  %5312 = vrot.lane.b32.xlu0 %v4553, 88
  %v5313 = vpop.permute.xlu0 %5312
  %v5314 = vsel %vm1594, %v5307, 0
  %v5316 = vsel %vm1594, %v5309, 0
  %v5318 = vsel %vm1594, %v5311, 0
  %v5320 = vsel %vm1594, %v5313, 0
  %5322 = vmatpush.xpose.msra.mxu0 0.0
  %5323 = vmatpush.xpose.msra.mxu0 0.0
  %5324 = vmatpush.xpose.msra.mxu0 0.0
  %5325 = vmatpush.xpose.msra.mxu0 0.0
  %5326 = vmatpush.xpose.msra.mxu0 0.0
  %5327 = vmatpush.xpose.msra.mxu0 0.0
  %5328 = vmatpush.xpose.msra.mxu0 0.0
  %5329 = vmatpush.xpose.msra.mxu0 0.0
  %5330 = vmatpush.xpose.msra.mxu0 0.0
  %5331 = vmatpush.xpose.msra.mxu0 0.0
  %5332 = vmatpush.xpose.msra.mxu0 0.0
  %5333 = vmatpush.xpose.msra.mxu0 0.0
  %5334 = vmatpush.xpose.msra.mxu0 0.0
  %5335 = vmatpush.xpose.msra.mxu0 0.0
  %5336 = vmatpush.xpose.msra.mxu0 %v5320
  %5337 = vmatpush.xpose.msra.mxu0 %v5318
  %5338 = vmatmul.f32.gmra.mxu0 %v5314
  %v5339 = vpop.f32.mrf.mxu0
  %v5340 = vadd.f32 0.0, %v5339
  %5341 = vmatmul.f32.gmra.mxu0 %v5316
  %v5342 = vpop.f32.mrf.mxu0
  %v5343 = vadd.f32 0.0, %v5342
  %5344 = vdwg.mxu0
  %v5345 = vmul.f32 %v5340, 0.35355338
  %v5346 = vmul.f32 %v5343, 0.35355338
  %v5347 = vadd.f32 %v5345, %v2252
  %v5348 = vadd.f32 %v5346, %v2252
  %v5349 = vsel %vm1631, %v5347, -inf
  %5350 = vmax.xlane.f32.xlu0 %v5349
  %v5351 = vpop.xlane.xlu0 %5350
  %v5352 = vsel %vm1631, %v5348, -inf
  %5353 = vmax.xlane.f32.xlu0 %v5352
  %v5354 = vpop.xlane.xlu0 %5353
  %v5355 = vsub.f32 %v5347, %v5351
  %v5356 = vsub.f32 %v5348, %v5354
  %v5357 = vmul.f32 %v5355, 1.442695
  %v5358 = vpow.pop %v5357
  %v5359 = vmul.f32 %v5356, 1.442695
  %v5360 = vpow.pop %v5359
  %v5361 = vsel %vm1631, %v5358, 0.0
  %5362 = vadd.xlane.f32.xlu0 %v5361
  %v5363 = vpop.xlane.xlu0 %5362
  %v5364 = vsel %vm1631, %v5360, 0.0
  %5365 = vadd.xlane.f32.xlu0 %v5364
  %v5366 = vpop.xlane.xlu0 %5365
  %v5367 = vrcp.pop %v5363
  %v5368 = vmul.f32 %v5363, %v5367
  %v5369 = vsub.f32 1.0, %v5368
  %v5370 = vmul.f32 %v5367, %v5369
  %v5371 = vadd.f32 %v5367, %v5370
  %vm5372 = vweird.f32 %v5363
  %vm5373 = vweird.f32 %v5367
  %vm5374 = vmor %vm5372, %vm5373
  %v5375 = vsel %vm5374, %v5367, %v5371
  %v5376 = vand.u32 2147483647, %v5363
  %vm5377 = vcmp.eq.f32.partialorder %v5376, 8.507059e+37
  %v5378 = vand.u32 %v5363, 2147483648
  %v5379 = vor.u32 1.1754944e-38, %v5378
  %v5380 = vsel %vm5377, %v5379, %v5375
  %v5381 = vmul.f32 %v5358, %v5380
  %v5382 = vrcp.pop %v5366
  %v5383 = vmul.f32 %v5366, %v5382
  %v5384 = vsub.f32 1.0, %v5383
  %v5385 = vmul.f32 %v5382, %v5384
  %v5386 = vadd.f32 %v5382, %v5385
  %vm5387 = vweird.f32 %v5366
  %vm5388 = vweird.f32 %v5382
  %vm5389 = vmor %vm5387, %vm5388
  %v5390 = vsel %vm5389, %v5382, %v5386
  %v5391 = vand.u32 2147483647, %v5366
  %vm5392 = vcmp.eq.f32.partialorder %v5391, 8.507059e+37
  %v5393 = vand.u32 %v5366, 2147483648
  %v5394 = vor.u32 1.1754944e-38, %v5393
  %v5395 = vsel %vm5392, %v5394, %v5390
  %v5396 = vmul.f32 %v5360, %v5395
  %5397 = vrot.lane.b32.xlu0 %v4550, 56
  %v5398 = vpop.permute.xlu0 %5397
  %5399 = vrot.lane.b32.xlu0 %v4553, 56
  %v5400 = vpop.permute.xlu0 %5399
  %v5404 = vsel %vm1631, %v5381, 0
  %v5407 = vsel %vm1631, %v5396, 0
  %5409 = vmatpush.msra.mxu0 0.0
  %5410 = vmatpush.msra.mxu0 0.0
  %5411 = vmatpush.msra.mxu0 0.0
  %5412 = vmatpush.msra.mxu0 0.0
  %5413 = vmatpush.msra.mxu0 0.0
  %5414 = vmatpush.msra.mxu0 0.0
  %5415 = vmatpush.msra.mxu0 0.0
  %5416 = vmatpush.msra.mxu0 0.0
  %5417 = vmatpush.msra.mxu0 0.0
  %5418 = vmatpush.msra.mxu0 0.0
  %5419 = vmatpush.msra.mxu0 0.0
  %5420 = vmatpush.msra.mxu0 0.0
  %5421 = vmatpush.msra.mxu0 0.0
  %5422 = vmatpush.msra.mxu0 0.0
  %5423 = vmatpush.msra.mxu0 %v5400
  %5424 = vmatpush.msra.mxu0 %v5398
  %5425 = vmatmul.f32.gmra.mxu0 %v5404
  %v5426 = vpop.f32.mrf.mxu0
  %v5427 = vadd.f32 0.0, %v5426
  %5428 = vmatmul.f32.gmra.mxu0 %v5407
  %v5429 = vpop.f32.mrf.mxu0
  %v5430 = vadd.f32 0.0, %v5429
  %5431 = vdwg.mxu0
  %v5433 = vsel %vm1594, %v5427, 0
  %v5436 = vsel %vm1594, %v5430, 0
  %5438 = vmatpush.msra.mxu0 0.0
  %5439 = vmatpush.msra.mxu0 0.0
  %5440 = vmatpush.msra.mxu0 0.0
  %5441 = vmatpush.msra.mxu0 0.0
  %5442 = vmatpush.msra.mxu0 0.0
  %5443 = vmatpush.msra.mxu0 0.0
  %5444 = vmatpush.msra.mxu0 0.0
  %5445 = vmatpush.msra.mxu0 0.0
  %5446 = vmatpush.msra.mxu0 0.0
  %5447 = vmatpush.msra.mxu0 0.0
  %5448 = vmatpush.msra.mxu0 0.0
  %5449 = vmatpush.msra.mxu0 0.0
  %5450 = vmatpush.msra.mxu0 0.0
  %5451 = vmatpush.msra.mxu0 0.0
  %5452 = vmatpush.msra.mxu0 0.0
  %5453 = vmatpush.msra.mxu0 %v4557
  %5454 = vmatmul.f32.gmra.mxu0 %v5433
  %v5455 = vpop.f32.mrf.mxu0
  %v5456 = vadd.f32 0.0, %v5455
  %5457 = vmatmul.f32.gmra.mxu0 %v5436
  %v5458 = vpop.f32.mrf.mxu0
  %v5459 = vadd.f32 0.0, %v5458
  %5460 = vdwg.mxu0
  %v5462 = vsel %vm1594, %v5301, 0
  %v5465 = vsel %vm1594, %v5304, 0
  %5467 = vmatpush.msra.mxu0 0.0
  %5468 = vmatpush.msra.mxu0 0.0
  %5469 = vmatpush.msra.mxu0 0.0
  %5470 = vmatpush.msra.mxu0 0.0
  %5471 = vmatpush.msra.mxu0 0.0
  %5472 = vmatpush.msra.mxu0 0.0
  %5473 = vmatpush.msra.mxu0 0.0
  %5474 = vmatpush.msra.mxu0 0.0
  %5475 = vmatpush.msra.mxu0 0.0
  %5476 = vmatpush.msra.mxu0 0.0
  %5477 = vmatpush.msra.mxu0 0.0
  %5478 = vmatpush.msra.mxu0 0.0
  %5479 = vmatpush.msra.mxu0 0.0
  %5480 = vmatpush.msra.mxu0 0.0
  %5481 = vmatpush.msra.mxu0 0.0
  %5482 = vmatpush.msra.mxu0 %v4556
  %5483 = vmatmul.f32.gmra.mxu0 %v5462
  %v5484 = vpop.f32.mrf.mxu0
  %v5485 = vadd.f32 %v5456, %v5484
  %5486 = vmatmul.f32.gmra.mxu0 %v5465
  %v5487 = vpop.f32.mrf.mxu0
  %v5488 = vadd.f32 %v5459, %v5487
  %5489 = vdwg.mxu0
  %5490 = vrot.lane.b32.xlu0 %v4550, 112
  %v5491 = vpop.permute.xlu0 %5490
  %5492 = vrot.lane.b32.xlu0 %v4553, 112
  %v5493 = vpop.permute.xlu0 %5492
  %5494 = vrot.lane.b32.xlu0 %v4550, 80
  %v5495 = vpop.permute.xlu0 %5494
  %5496 = vrot.lane.b32.xlu0 %v4553, 80
  %v5497 = vpop.permute.xlu0 %5496
  %v5498 = vsel %vm1594, %v5491, 0
  %v5500 = vsel %vm1594, %v5493, 0
  %v5502 = vsel %vm1594, %v5495, 0
  %v5504 = vsel %vm1594, %v5497, 0
  %5506 = vmatpush.xpose.msra.mxu0 0.0
  %5507 = vmatpush.xpose.msra.mxu0 0.0
  %5508 = vmatpush.xpose.msra.mxu0 0.0
  %5509 = vmatpush.xpose.msra.mxu0 0.0
  %5510 = vmatpush.xpose.msra.mxu0 0.0
  %5511 = vmatpush.xpose.msra.mxu0 0.0
  %5512 = vmatpush.xpose.msra.mxu0 0.0
  %5513 = vmatpush.xpose.msra.mxu0 0.0
  %5514 = vmatpush.xpose.msra.mxu0 0.0
  %5515 = vmatpush.xpose.msra.mxu0 0.0
  %5516 = vmatpush.xpose.msra.mxu0 0.0
  %5517 = vmatpush.xpose.msra.mxu0 0.0
  %5518 = vmatpush.xpose.msra.mxu0 0.0
  %5519 = vmatpush.xpose.msra.mxu0 0.0
  %5520 = vmatpush.xpose.msra.mxu0 %v5504
  %5521 = vmatpush.xpose.msra.mxu0 %v5502
  %5522 = vmatmul.f32.gmra.mxu0 %v5498
  %v5523 = vpop.f32.mrf.mxu0
  %v5524 = vadd.f32 0.0, %v5523
  %5525 = vmatmul.f32.gmra.mxu0 %v5500
  %v5526 = vpop.f32.mrf.mxu0
  %v5527 = vadd.f32 0.0, %v5526
  %5528 = vdwg.mxu0
  %v5529 = vmul.f32 %v5524, 0.35355338
  %v5530 = vmul.f32 %v5527, 0.35355338
  %v5531 = vadd.f32 %v5529, %v2252
  %v5532 = vadd.f32 %v5530, %v2252
  %v5533 = vsel %vm1631, %v5531, -inf
  %5534 = vmax.xlane.f32.xlu0 %v5533
  %v5535 = vpop.xlane.xlu0 %5534
  %v5536 = vsel %vm1631, %v5532, -inf
  %5537 = vmax.xlane.f32.xlu0 %v5536
  %v5538 = vpop.xlane.xlu0 %5537
  %v5539 = vsub.f32 %v5531, %v5535
  %v5540 = vsub.f32 %v5532, %v5538
  %v5541 = vmul.f32 %v5539, 1.442695
  %v5542 = vpow.pop %v5541
  %v5543 = vmul.f32 %v5540, 1.442695
  %v5544 = vpow.pop %v5543
  %v5545 = vsel %vm1631, %v5542, 0.0
  %5546 = vadd.xlane.f32.xlu0 %v5545
  %v5547 = vpop.xlane.xlu0 %5546
  %v5548 = vsel %vm1631, %v5544, 0.0
  %5549 = vadd.xlane.f32.xlu0 %v5548
  %v5550 = vpop.xlane.xlu0 %5549
  %v5551 = vrcp.pop %v5547
  %v5552 = vmul.f32 %v5547, %v5551
  %v5553 = vsub.f32 1.0, %v5552
  %v5554 = vmul.f32 %v5551, %v5553
  %v5555 = vadd.f32 %v5551, %v5554
  %vm5556 = vweird.f32 %v5547
  %vm5557 = vweird.f32 %v5551
  %vm5558 = vmor %vm5556, %vm5557
  %v5559 = vsel %vm5558, %v5551, %v5555
  %v5560 = vand.u32 2147483647, %v5547
  %vm5561 = vcmp.eq.f32.partialorder %v5560, 8.507059e+37
  %v5562 = vand.u32 %v5547, 2147483648
  %v5563 = vor.u32 1.1754944e-38, %v5562
  %v5564 = vsel %vm5561, %v5563, %v5559
  %v5565 = vmul.f32 %v5542, %v5564
  %v5566 = vrcp.pop %v5550
  %v5567 = vmul.f32 %v5550, %v5566
  %v5568 = vsub.f32 1.0, %v5567
  %v5569 = vmul.f32 %v5566, %v5568
  %v5570 = vadd.f32 %v5566, %v5569
  %vm5571 = vweird.f32 %v5550
  %vm5572 = vweird.f32 %v5566
  %vm5573 = vmor %vm5571, %vm5572
  %v5574 = vsel %vm5573, %v5566, %v5570
  %v5575 = vand.u32 2147483647, %v5550
  %vm5576 = vcmp.eq.f32.partialorder %v5575, 8.507059e+37
  %v5577 = vand.u32 %v5550, 2147483648
  %v5578 = vor.u32 1.1754944e-38, %v5577
  %v5579 = vsel %vm5576, %v5578, %v5574
  %v5580 = vmul.f32 %v5544, %v5579
  %5581 = vrot.lane.b32.xlu0 %v4550, 48
  %v5582 = vpop.permute.xlu0 %5581
  %5583 = vrot.lane.b32.xlu0 %v4553, 48
  %v5584 = vpop.permute.xlu0 %5583
  %v5588 = vsel %vm1631, %v5565, 0
  %v5591 = vsel %vm1631, %v5580, 0
  %5593 = vmatpush.msra.mxu0 0.0
  %5594 = vmatpush.msra.mxu0 0.0
  %5595 = vmatpush.msra.mxu0 0.0
  %5596 = vmatpush.msra.mxu0 0.0
  %5597 = vmatpush.msra.mxu0 0.0
  %5598 = vmatpush.msra.mxu0 0.0
  %5599 = vmatpush.msra.mxu0 0.0
  %5600 = vmatpush.msra.mxu0 0.0
  %5601 = vmatpush.msra.mxu0 0.0
  %5602 = vmatpush.msra.mxu0 0.0
  %5603 = vmatpush.msra.mxu0 0.0
  %5604 = vmatpush.msra.mxu0 0.0
  %5605 = vmatpush.msra.mxu0 0.0
  %5606 = vmatpush.msra.mxu0 0.0
  %5607 = vmatpush.msra.mxu0 %v5584
  %5608 = vmatpush.msra.mxu0 %v5582
  %5609 = vmatmul.f32.gmra.mxu0 %v5588
  %v5610 = vpop.f32.mrf.mxu0
  %v5611 = vadd.f32 0.0, %v5610
  %5612 = vmatmul.f32.gmra.mxu0 %v5591
  %v5613 = vpop.f32.mrf.mxu0
  %v5614 = vadd.f32 0.0, %v5613
  %5615 = vdwg.mxu0
  %v5617 = vsel %vm1594, %v5611, 0
  %v5620 = vsel %vm1594, %v5614, 0
  %5622 = vmatpush.msra.mxu0 0.0
  %5623 = vmatpush.msra.mxu0 0.0
  %5624 = vmatpush.msra.mxu0 0.0
  %5625 = vmatpush.msra.mxu0 0.0
  %5626 = vmatpush.msra.mxu0 0.0
  %5627 = vmatpush.msra.mxu0 0.0
  %5628 = vmatpush.msra.mxu0 0.0
  %5629 = vmatpush.msra.mxu0 0.0
  %5630 = vmatpush.msra.mxu0 0.0
  %5631 = vmatpush.msra.mxu0 0.0
  %5632 = vmatpush.msra.mxu0 0.0
  %5633 = vmatpush.msra.mxu0 0.0
  %5634 = vmatpush.msra.mxu0 0.0
  %5635 = vmatpush.msra.mxu0 0.0
  %5636 = vmatpush.msra.mxu0 0.0
  %5637 = vmatpush.msra.mxu0 %v4558
  %5638 = vmatmul.f32.gmra.mxu0 %v5617
  %v5639 = vpop.f32.mrf.mxu0
  %v5640 = vadd.f32 0.0, %v5639
  %5641 = vmatmul.f32.gmra.mxu0 %v5620
  %v5642 = vpop.f32.mrf.mxu0
  %v5643 = vadd.f32 0.0, %v5642
  %5644 = vdwg.mxu0
  %v5645 = vadd.f32 %v5485, %v5640
  %v5646 = vadd.f32 %v5488, %v5643
  %5647 = vrot.lane.b32.xlu0 %v4550, 104
  %v5648 = vpop.permute.xlu0 %5647
  %5649 = vrot.lane.b32.xlu0 %v4553, 104
  %v5650 = vpop.permute.xlu0 %5649
  %5651 = vrot.lane.b32.xlu0 %v4550, 72
  %v5652 = vpop.permute.xlu0 %5651
  %5653 = vrot.lane.b32.xlu0 %v4553, 72
  %v5654 = vpop.permute.xlu0 %5653
  %v5655 = vsel %vm1594, %v5648, 0
  %v5657 = vsel %vm1594, %v5650, 0
  %v5659 = vsel %vm1594, %v5652, 0
  %v5661 = vsel %vm1594, %v5654, 0
  %5663 = vmatpush.xpose.msra.mxu0 0.0
  %5664 = vmatpush.xpose.msra.mxu0 0.0
  %5665 = vmatpush.xpose.msra.mxu0 0.0
  %5666 = vmatpush.xpose.msra.mxu0 0.0
  %5667 = vmatpush.xpose.msra.mxu0 0.0
  %5668 = vmatpush.xpose.msra.mxu0 0.0
  %5669 = vmatpush.xpose.msra.mxu0 0.0
  %5670 = vmatpush.xpose.msra.mxu0 0.0
  %5671 = vmatpush.xpose.msra.mxu0 0.0
  %5672 = vmatpush.xpose.msra.mxu0 0.0
  %5673 = vmatpush.xpose.msra.mxu0 0.0
  %5674 = vmatpush.xpose.msra.mxu0 0.0
  %5675 = vmatpush.xpose.msra.mxu0 0.0
  %5676 = vmatpush.xpose.msra.mxu0 0.0
  %5677 = vmatpush.xpose.msra.mxu0 %v5661
  %5678 = vmatpush.xpose.msra.mxu0 %v5659
  %5679 = vmatmul.f32.gmra.mxu0 %v5655
  %v5680 = vpop.f32.mrf.mxu0
  %v5681 = vadd.f32 0.0, %v5680
  %5682 = vmatmul.f32.gmra.mxu0 %v5657
  %v5683 = vpop.f32.mrf.mxu0
  %v5684 = vadd.f32 0.0, %v5683
  %5685 = vdwg.mxu0
  %v5686 = vmul.f32 %v5681, 0.35355338
  %v5687 = vmul.f32 %v5684, 0.35355338
  %v5688 = vadd.f32 %v5686, %v2252
  %v5689 = vadd.f32 %v5687, %v2252
  %v5690 = vsel %vm1631, %v5688, -inf
  %5691 = vmax.xlane.f32.xlu0 %v5690
  %v5692 = vpop.xlane.xlu0 %5691
  %v5693 = vsel %vm1631, %v5689, -inf
  %5694 = vmax.xlane.f32.xlu0 %v5693
  %v5695 = vpop.xlane.xlu0 %5694
  %v5696 = vsub.f32 %v5688, %v5692
  %v5697 = vsub.f32 %v5689, %v5695
  %v5698 = vmul.f32 %v5696, 1.442695
  %v5699 = vpow.pop %v5698
  %v5700 = vmul.f32 %v5697, 1.442695
  %v5701 = vpow.pop %v5700
  %v5702 = vsel %vm1631, %v5699, 0.0
  %5703 = vadd.xlane.f32.xlu0 %v5702
  %v5704 = vpop.xlane.xlu0 %5703
  %v5705 = vsel %vm1631, %v5701, 0.0
  %5706 = vadd.xlane.f32.xlu0 %v5705
  %v5707 = vpop.xlane.xlu0 %5706
  %v5708 = vrcp.pop %v5704
  %v5709 = vmul.f32 %v5704, %v5708
  %v5710 = vsub.f32 1.0, %v5709
  %v5711 = vmul.f32 %v5708, %v5710
  %v5712 = vadd.f32 %v5708, %v5711
  %vm5713 = vweird.f32 %v5704
  %vm5714 = vweird.f32 %v5708
  %vm5715 = vmor %vm5713, %vm5714
  %v5716 = vsel %vm5715, %v5708, %v5712
  %v5717 = vand.u32 2147483647, %v5704
  %vm5718 = vcmp.eq.f32.partialorder %v5717, 8.507059e+37
  %v5719 = vand.u32 %v5704, 2147483648
  %v5720 = vor.u32 1.1754944e-38, %v5719
  %v5721 = vsel %vm5718, %v5720, %v5716
  %v5722 = vmul.f32 %v5699, %v5721
  %v5723 = vrcp.pop %v5707
  %v5724 = vmul.f32 %v5707, %v5723
  %v5725 = vsub.f32 1.0, %v5724
  %v5726 = vmul.f32 %v5723, %v5725
  %v5727 = vadd.f32 %v5723, %v5726
  %vm5728 = vweird.f32 %v5707
  %vm5729 = vweird.f32 %v5723
  %vm5730 = vmor %vm5728, %vm5729
  %v5731 = vsel %vm5730, %v5723, %v5727
  %v5732 = vand.u32 2147483647, %v5707
  %vm5733 = vcmp.eq.f32.partialorder %v5732, 8.507059e+37
  %v5734 = vand.u32 %v5707, 2147483648
  %v5735 = vor.u32 1.1754944e-38, %v5734
  %v5736 = vsel %vm5733, %v5735, %v5731
  %v5737 = vmul.f32 %v5701, %v5736
  %5738 = vrot.lane.b32.xlu0 %v4550, 40
  %v5739 = vpop.permute.xlu0 %5738
  %5740 = vrot.lane.b32.xlu0 %v4553, 40
  %v5741 = vpop.permute.xlu0 %5740
  %v5745 = vsel %vm1631, %v5722, 0
  %v5748 = vsel %vm1631, %v5737, 0
  %5750 = vmatpush.msra.mxu0 0.0
  %5751 = vmatpush.msra.mxu0 0.0
  %5752 = vmatpush.msra.mxu0 0.0
  %5753 = vmatpush.msra.mxu0 0.0
  %5754 = vmatpush.msra.mxu0 0.0
  %5755 = vmatpush.msra.mxu0 0.0
  %5756 = vmatpush.msra.mxu0 0.0
  %5757 = vmatpush.msra.mxu0 0.0
  %5758 = vmatpush.msra.mxu0 0.0
  %5759 = vmatpush.msra.mxu0 0.0
  %5760 = vmatpush.msra.mxu0 0.0
  %5761 = vmatpush.msra.mxu0 0.0
  %5762 = vmatpush.msra.mxu0 0.0
  %5763 = vmatpush.msra.mxu0 0.0
  %5764 = vmatpush.msra.mxu0 %v5741
  %5765 = vmatpush.msra.mxu0 %v5739
  %5766 = vmatmul.f32.gmra.mxu0 %v5745
  %v5767 = vpop.f32.mrf.mxu0
  %v5768 = vadd.f32 0.0, %v5767
  %5769 = vmatmul.f32.gmra.mxu0 %v5748
  %v5770 = vpop.f32.mrf.mxu0
  %v5771 = vadd.f32 0.0, %v5770
  %5772 = vdwg.mxu0
  %v5774 = vsel %vm1594, %v5768, 0
  %v5777 = vsel %vm1594, %v5771, 0
  %5779 = vmatpush.msra.mxu0 0.0
  %5780 = vmatpush.msra.mxu0 0.0
  %5781 = vmatpush.msra.mxu0 0.0
  %5782 = vmatpush.msra.mxu0 0.0
  %5783 = vmatpush.msra.mxu0 0.0
  %5784 = vmatpush.msra.mxu0 0.0
  %5785 = vmatpush.msra.mxu0 0.0
  %5786 = vmatpush.msra.mxu0 0.0
  %5787 = vmatpush.msra.mxu0 0.0
  %5788 = vmatpush.msra.mxu0 0.0
  %5789 = vmatpush.msra.mxu0 0.0
  %5790 = vmatpush.msra.mxu0 0.0
  %5791 = vmatpush.msra.mxu0 0.0
  %5792 = vmatpush.msra.mxu0 0.0
  %5793 = vmatpush.msra.mxu0 0.0
  %5794 = vmatpush.msra.mxu0 %v4559
  %5795 = vmatmul.f32.gmra.mxu0 %v5774
  %v5796 = vpop.f32.mrf.mxu0
  %v5797 = vadd.f32 0.0, %v5796
  %5798 = vmatmul.f32.gmra.mxu0 %v5777
  %v5799 = vpop.f32.mrf.mxu0
  %v5800 = vadd.f32 0.0, %v5799
  %5801 = vdwg.mxu0
  %v5802 = vadd.f32 %v5645, %v5797
  %v5803 = vadd.f32 %v5646, %v5800
  %v5804 = vld [vmem:[%s15 + $0x1] sm:$0x1]
  %v5805 = vperm.slane %v5804, 0
  %v5806 = vadd.f32 %v5180, %v5805
  %v5807 = vadd.f32 %v5181, %v5805
  %v5808 = vadd.f32 %v5802, %v5805
  %v5809 = vadd.f32 %v5803, %v5805
  %v5810 = vadd.f32 %v4503, %v5806
  %v5811 = vadd.f32 %v4504, %v5807
  %v5812 = vadd.f32 %v4505, %v5808
  %v5813 = vadd.f32 %v4506, %v5809
  %v5814 = vld [vmem:[%s20 + $0x1] sm:$0x1]
  %v5815 = vld [vmem:[%s21 + $0x1] sm:$0x1]
  %v5816 = vsel %vm166, %v5810, 0.0
  %5817 = vadd.xlane.f32.xlu0 %v5816
  %v5818 = vpop.xlane.xlu0 %5817
  %v5819 = vsel %vm166, %v5811, 0.0
  %5820 = vadd.xlane.f32.xlu0 %v5819
  %v5821 = vpop.xlane.xlu0 %5820
  %v5822 = vsel %vm166, %v5812, 0.0
  %5823 = vadd.xlane.f32.xlu0 %v5822
  %v5824 = vpop.xlane.xlu0 %5823
  %v5825 = vsel %vm166, %v5813, 0.0
  %5826 = vadd.xlane.f32.xlu0 %v5825
  %v5827 = vpop.xlane.xlu0 %5826
  %v5828 = vmul.f32 %v5818, %v2866
  %v5829 = vmul.f32 %v5821, %v2866
  %v5830 = vmul.f32 %v5824, %v2866
  %v5831 = vmul.f32 %v5827, %v2866
  %v5832 = vsub.f32 %v5810, %v5828
  %v5833 = vsub.f32 %v5811, %v5829
  %v5834 = vsub.f32 %v5812, %v5830
  %v5835 = vsub.f32 %v5813, %v5831
  %v5836 = vmul.f32 %v5832, %v5832
  %v5837 = vmul.f32 %v5833, %v5833
  %v5838 = vmul.f32 %v5834, %v5834
  %v5839 = vmul.f32 %v5835, %v5835
  %v5840 = vsel %vm166, %v5836, 0.0
  %5841 = vadd.xlane.f32.xlu0 %v5840
  %v5842 = vpop.xlane.xlu0 %5841
  %v5843 = vsel %vm166, %v5837, 0.0
  %5844 = vadd.xlane.f32.xlu0 %v5843
  %v5845 = vpop.xlane.xlu0 %5844
  %v5846 = vsel %vm166, %v5838, 0.0
  %5847 = vadd.xlane.f32.xlu0 %v5846
  %v5848 = vpop.xlane.xlu0 %5847
  %v5849 = vsel %vm166, %v5839, 0.0
  %5850 = vadd.xlane.f32.xlu0 %v5849
  %v5851 = vpop.xlane.xlu0 %5850
  %v5852 = vmul.f32 %v5842, %v2866
  %v5853 = vmul.f32 %v5845, %v2866
  %v5854 = vmul.f32 %v5848, %v2866
  %v5855 = vmul.f32 %v5851, %v2866
  %v5856 = vadd.f32 %v5852, 1e-05
  %v5857 = vadd.f32 %v5853, 1e-05
  %v5858 = vadd.f32 %v5854, 1e-05
  %v5859 = vadd.f32 %v5855, 1e-05
  %v5860 = vrsqrt.pop %v5856
  %v5861 = vmul.f32 %v5860, %v5856
  %v5862 = vmul.f32 %v5861, %v5860
  %v5863 = vmul.f32 0.5, %v5862
  %v5864 = vsub.f32 1.5, %v5863
  %v5865 = vmul.f32 %v5860, %v5864
  %vm5866 = vweird.f32 %v5856
  %vm5867 = vweird.f32 %v5860
  %vm5868 = vmor %vm5866, %vm5867
  %v5869 = vsel %vm5868, %v5860, %v5865
  %v5870 = vrsqrt.pop %v5857
  %v5871 = vmul.f32 %v5870, %v5857
  %v5872 = vmul.f32 %v5871, %v5870
  %v5873 = vmul.f32 0.5, %v5872
  %v5874 = vsub.f32 1.5, %v5873
  %v5875 = vmul.f32 %v5870, %v5874
  %vm5876 = vweird.f32 %v5857
  %vm5877 = vweird.f32 %v5870
  %vm5878 = vmor %vm5876, %vm5877
  %v5879 = vsel %vm5878, %v5870, %v5875
  %v5880 = vrsqrt.pop %v5858
  %v5881 = vmul.f32 %v5880, %v5858
  %v5882 = vmul.f32 %v5881, %v5880
  %v5883 = vmul.f32 0.5, %v5882
  %v5884 = vsub.f32 1.5, %v5883
  %v5885 = vmul.f32 %v5880, %v5884
  %vm5886 = vweird.f32 %v5858
  %vm5887 = vweird.f32 %v5880
  %vm5888 = vmor %vm5886, %vm5887
  %v5889 = vsel %vm5888, %v5880, %v5885
  %v5890 = vrsqrt.pop %v5859
  %v5891 = vmul.f32 %v5890, %v5859
  %v5892 = vmul.f32 %v5891, %v5890
  %v5893 = vmul.f32 0.5, %v5892
  %v5894 = vsub.f32 1.5, %v5893
  %v5895 = vmul.f32 %v5890, %v5894
  %vm5896 = vweird.f32 %v5859
  %vm5897 = vweird.f32 %v5890
  %vm5898 = vmor %vm5896, %vm5897
  %v5899 = vsel %vm5898, %v5890, %v5895
  %v5900 = vmul.f32 %v5832, %v5869
  %v5901 = vmul.f32 %v5833, %v5879
  %v5902 = vmul.f32 %v5834, %v5889
  %v5903 = vmul.f32 %v5835, %v5899
  %v5904 = vperm.slane %v5814, 0
  %v5905 = vmul.f32 %v5900, %v5904
  %v5906 = vmul.f32 %v5901, %v5904
  %v5907 = vmul.f32 %v5902, %v5904
  %v5908 = vmul.f32 %v5903, %v5904
  %v5909 = vperm.slane %v5815, 0
  %v5910 = vadd.f32 %v5905, %v5909
  %v5911 = vadd.f32 %v5906, %v5909
  %v5912 = vadd.f32 %v5907, %v5909
  %v5913 = vadd.f32 %v5908, %v5909
  %s5914 = scalar_lea.vmem %s16, 32
  %v5915 = vld [vmem:[%s5914] sm:$0xff]
  %v5916 = vld [vmem:[%s5914 + $0x8] sm:$0xff]
  %v5917 = vld [vmem:[%s5914 + $0x10] sm:$0xff]
  %v5918 = vld [vmem:[%s5914 + $0x18] sm:$0xff]
  %v5919 = vld [vmem:[%s17 + $0x1] sm:$0x1]
  %v5920 = vperm.slane %v5919, 0
  %v5922 = vsel %vm166, %v5910, 0
  %v5925 = vsel %vm166, %v5911, 0
  %v5928 = vsel %vm166, %v5912, 0
  %v5931 = vsel %vm166, %v5913, 0
  %5933 = vmatpush.msra.mxu0 0.0
  %5934 = vmatpush.msra.mxu0 0.0
  %5935 = vmatpush.msra.mxu0 0.0
  %5936 = vmatpush.msra.mxu0 0.0
  %5937 = vmatpush.msra.mxu0 0.0
  %5938 = vmatpush.msra.mxu0 0.0
  %5939 = vmatpush.msra.mxu0 0.0
  %5940 = vmatpush.msra.mxu0 0.0
  %5941 = vmatpush.msra.mxu0 0.0
  %5942 = vmatpush.msra.mxu0 0.0
  %5943 = vmatpush.msra.mxu0 0.0
  %5944 = vmatpush.msra.mxu0 0.0
  %5945 = vmatpush.msra.mxu0 %v5918
  %5946 = vmatpush.msra.mxu0 %v5917
  %5947 = vmatpush.msra.mxu0 %v5916
  %5948 = vmatpush.msra.mxu0 %v5915
  %5949 = vmatmul.f32.gmra.mxu0 %v5922
  %v5950 = vpop.f32.mrf.mxu0
  %v5951 = vadd.f32 %v5920, %v5950
  %5952 = vmatmul.f32.gmra.mxu0 %v5925
  %v5953 = vpop.f32.mrf.mxu0
  %v5954 = vadd.f32 %v5920, %v5953
  %5955 = vmatmul.f32.gmra.mxu0 %v5928
  %v5956 = vpop.f32.mrf.mxu0
  %v5957 = vadd.f32 %v5920, %v5956
  %5958 = vmatmul.f32.gmra.mxu0 %v5931
  %v5959 = vpop.f32.mrf.mxu0
  %v5960 = vadd.f32 %v5920, %v5959
  %5961 = vdwg.mxu0
  %v5962 = vmax.f32 %v5951, 0.0
  %v5963 = vmax.f32 %v5954, 0.0
  %v5964 = vmax.f32 %v5957, 0.0
  %v5965 = vmax.f32 %v5960, 0.0
  %s5966 = scalar_lea.vmem %s18, 32
  %v5967 = vld [vmem:[%s5966] sm:$0xff]
  %v5968 = vld [vmem:[%s5966 + $0x8] sm:$0xff]
  %v5969 = vld [vmem:[%s5966 + $0x10] sm:$0xff]
  %v5970 = vld [vmem:[%s5966 + $0x18] sm:$0xff]
  %v5971 = vld [vmem:[%s19 + $0x1] sm:$0x1]
  %v5972 = vperm.slane %v5971, 0
  %v5974 = vsel %vm166, %v5962, 0
  %v5977 = vsel %vm166, %v5963, 0
  %v5980 = vsel %vm166, %v5964, 0
  %v5983 = vsel %vm166, %v5965, 0
  %5985 = vmatpush.msra.mxu0 0.0
  %5986 = vmatpush.msra.mxu0 0.0
  %5987 = vmatpush.msra.mxu0 0.0
  %5988 = vmatpush.msra.mxu0 0.0
  %5989 = vmatpush.msra.mxu0 0.0
  %5990 = vmatpush.msra.mxu0 0.0
  %5991 = vmatpush.msra.mxu0 0.0
  %5992 = vmatpush.msra.mxu0 0.0
  %5993 = vmatpush.msra.mxu0 0.0
  %5994 = vmatpush.msra.mxu0 0.0
  %5995 = vmatpush.msra.mxu0 0.0
  %5996 = vmatpush.msra.mxu0 0.0
  %5997 = vmatpush.msra.mxu0 %v5970
  %5998 = vmatpush.msra.mxu0 %v5969
  %5999 = vmatpush.msra.mxu0 %v5968
  %6000 = vmatpush.msra.mxu0 %v5967
  %6001 = vmatmul.f32.gmra.mxu0 %v5974
  %v6002 = vpop.f32.mrf.mxu0
  %v6003 = vadd.f32 %v5972, %v6002
  %6004 = vmatmul.f32.gmra.mxu0 %v5977
  %v6005 = vpop.f32.mrf.mxu0
  %v6006 = vadd.f32 %v5972, %v6005
  %6007 = vmatmul.f32.gmra.mxu0 %v5980
  %v6008 = vpop.f32.mrf.mxu0
  %v6009 = vadd.f32 %v5972, %v6008
  %6010 = vmatmul.f32.gmra.mxu0 %v5983
  %v6011 = vpop.f32.mrf.mxu0
  %v6012 = vadd.f32 %v5972, %v6011
  %6013 = vdwg.mxu0
  %v6014 = vadd.f32 %v5910, %v6003
  %v6015 = vadd.f32 %v5911, %v6006
  %v6016 = vadd.f32 %v5912, %v6009
  %v6017 = vadd.f32 %v5913, %v6012
  %v6018 = vld [vmem:[%s22 + $0x1] sm:$0x1]
  %v6019 = vld [vmem:[%s23 + $0x1] sm:$0x1]
  %v6020 = vsel %vm166, %v6014, 0.0
  %6021 = vadd.xlane.f32.xlu0 %v6020
  %v6022 = vpop.xlane.xlu0 %6021
  %v6023 = vsel %vm166, %v6015, 0.0
  %6024 = vadd.xlane.f32.xlu0 %v6023
  %v6025 = vpop.xlane.xlu0 %6024
  %v6026 = vsel %vm166, %v6016, 0.0
  %6027 = vadd.xlane.f32.xlu0 %v6026
  %v6028 = vpop.xlane.xlu0 %6027
  %v6029 = vsel %vm166, %v6017, 0.0
  %6030 = vadd.xlane.f32.xlu0 %v6029
  %v6031 = vpop.xlane.xlu0 %6030
  %v6032 = vmul.f32 %v6022, %v2866
  %v6033 = vmul.f32 %v6025, %v2866
  %v6034 = vmul.f32 %v6028, %v2866
  %v6035 = vmul.f32 %v6031, %v2866
  %v6036 = vsub.f32 %v6014, %v6032
  %v6037 = vsub.f32 %v6015, %v6033
  %v6038 = vsub.f32 %v6016, %v6034
  %v6039 = vsub.f32 %v6017, %v6035
  %v6040 = vmul.f32 %v6036, %v6036
  %v6041 = vmul.f32 %v6037, %v6037
  %v6042 = vmul.f32 %v6038, %v6038
  %v6043 = vmul.f32 %v6039, %v6039
  %v6044 = vsel %vm166, %v6040, 0.0
  %6045 = vadd.xlane.f32.xlu0 %v6044
  %v6046 = vpop.xlane.xlu0 %6045
  %v6047 = vsel %vm166, %v6041, 0.0
  %6048 = vadd.xlane.f32.xlu0 %v6047
  %v6049 = vpop.xlane.xlu0 %6048
  %v6050 = vsel %vm166, %v6042, 0.0
  %6051 = vadd.xlane.f32.xlu0 %v6050
  %v6052 = vpop.xlane.xlu0 %6051
  %v6053 = vsel %vm166, %v6043, 0.0
  %6054 = vadd.xlane.f32.xlu0 %v6053
  %v6055 = vpop.xlane.xlu0 %6054
  %v6056 = vmul.f32 %v6046, %v2866
  %v6057 = vmul.f32 %v6049, %v2866
  %v6058 = vmul.f32 %v6052, %v2866
  %v6059 = vmul.f32 %v6055, %v2866
  %v6060 = vadd.f32 %v6056, 1e-05
  %v6061 = vadd.f32 %v6057, 1e-05
  %v6062 = vadd.f32 %v6058, 1e-05
  %v6063 = vadd.f32 %v6059, 1e-05
  %v6064 = vrsqrt.pop %v6060
  %v6065 = vmul.f32 %v6064, %v6060
  %v6066 = vmul.f32 %v6065, %v6064
  %v6067 = vmul.f32 0.5, %v6066
  %v6068 = vsub.f32 1.5, %v6067
  %v6069 = vmul.f32 %v6064, %v6068
  %vm6070 = vweird.f32 %v6060
  %vm6071 = vweird.f32 %v6064
  %vm6072 = vmor %vm6070, %vm6071
  %v6073 = vsel %vm6072, %v6064, %v6069
  %v6074 = vrsqrt.pop %v6061
  %v6075 = vmul.f32 %v6074, %v6061
  %v6076 = vmul.f32 %v6075, %v6074
  %v6077 = vmul.f32 0.5, %v6076
  %v6078 = vsub.f32 1.5, %v6077
  %v6079 = vmul.f32 %v6074, %v6078
  %vm6080 = vweird.f32 %v6061
  %vm6081 = vweird.f32 %v6074
  %vm6082 = vmor %vm6080, %vm6081
  %v6083 = vsel %vm6082, %v6074, %v6079
  %v6084 = vrsqrt.pop %v6062
  %v6085 = vmul.f32 %v6084, %v6062
  %v6086 = vmul.f32 %v6085, %v6084
  %v6087 = vmul.f32 0.5, %v6086
  %v6088 = vsub.f32 1.5, %v6087
  %v6089 = vmul.f32 %v6084, %v6088
  %vm6090 = vweird.f32 %v6062
  %vm6091 = vweird.f32 %v6084
  %vm6092 = vmor %vm6090, %vm6091
  %v6093 = vsel %vm6092, %v6084, %v6089
  %v6094 = vrsqrt.pop %v6063
  %v6095 = vmul.f32 %v6094, %v6063
  %v6096 = vmul.f32 %v6095, %v6094
  %v6097 = vmul.f32 0.5, %v6096
  %v6098 = vsub.f32 1.5, %v6097
  %v6099 = vmul.f32 %v6094, %v6098
  %vm6100 = vweird.f32 %v6063
  %vm6101 = vweird.f32 %v6094
  %vm6102 = vmor %vm6100, %vm6101
  %v6103 = vsel %vm6102, %v6094, %v6099
  %v6104 = vmul.f32 %v6036, %v6073
  %v6105 = vmul.f32 %v6037, %v6083
  %v6106 = vmul.f32 %v6038, %v6093
  %v6107 = vmul.f32 %v6039, %v6103
  %v6108 = vperm.slane %v6018, 0
  %v6109 = vmul.f32 %v6104, %v6108
  %v6110 = vmul.f32 %v6105, %v6108
  %v6111 = vmul.f32 %v6106, %v6108
  %v6112 = vmul.f32 %v6107, %v6108
  %v6113 = vperm.slane %v6019, 0
  %v6114 = vadd.f32 %v6109, %v6113
  %v6115 = vadd.f32 %v6110, %v6113
  %v6116 = vadd.f32 %v6111, %v6113
  %v6117 = vadd.f32 %v6112, %v6113
  %v6118 = vadd.f32 %v3155, %v6114
  %v6119 = vadd.f32 %v3156, %v6115
  %v6120 = vadd.f32 %v3157, %v6116
  %v6121 = vadd.f32 %v3158, %v6117
  %v6122 = vmul.f32 %v6118, 0.5
  %v6123 = vmul.f32 %v6119, 0.5
  %v6124 = vmul.f32 %v6120, 0.5
  %v6125 = vmul.f32 %v6121, 0.5
  %6126 = vst.msk [vmem:[%s24] sm:$0xff] %vm166, %v6122
  %6127 = vst.msk [vmem:[%s24 + $0x8] sm:$0xff] %vm166, %v6123
  %6128 = vst.msk [vmem:[%s24 + $0x10] sm:$0xff] %vm166, %v6124
  %6129 = vst.msk [vmem:[%s24 + $0x18] sm:$0xff] %vm166, %v6125
  // Predicated region
  $region98: #{pretrain_net_forward.2} parent=0 // pred_check
    _
  $region99: #{pretrain_net_forward.2} parent=0 // pred_check_branch
    %6131 = sbr.rel (0) target = $region101
  $region100: #{pretrain_net_forward.2} parent=0 // pred_region
    _
  $region101: #{pretrain_net_forward.2} parent=0 // pred_fallthru
    _
  // Predicated region
  $region102: #{pretrain_net_forward.2} parent=0 // pred_check
    _
  $region103: #{pretrain_net_forward.2} parent=0 // pred_check_branch
    %6133 = sbr.rel (0) target = $region105
  $region104: #{pretrain_net_forward.2} parent=0 // pred_region
    _
  $region105: #{pretrain_net_forward.2} parent=0 // pred_fallthru
    _

</llo_original>
